<compile_context>
chip_gen: v5e
topology: v5e:2x2
jax: 0.10.0
libtpu: 0.0.40
codegen_flags: <defaults>
</compile_context>

<pallas_src>
import math
from functools import partial

import jax
import jax.numpy as jnp
from jax.experimental import pallas as pl
from jax.experimental.pallas import tpu as pltpu


_NEG_MASK = -1e30        # finite "masked" sentinel (avoids exp(-inf - -inf) = NaN)


def _vmem_limit_bytes():
    """Per-generation scoped-VMEM budget: v7x has 64 MiB physical, v4/v5/v6 have 128 MiB."""
    try:
        kind = jax.devices()[0].device_kind.lower()
    except Exception:
        return 32 * 2**20
    if "v7" in kind:
        return 48 * 2**20
    if any(v in kind for v in ("v4", "v5", "v6")):
        return 96 * 2**20
    return 32 * 2**20


VMEM_LIMIT = _vmem_limit_bytes()


def _pick_tile(dim, cap, align):
    """Largest tile <= cap that divides `dim` and is a multiple of `align`.
    Falls back to the full dim (always a legal Pallas block) when nothing fits."""
    if dim <= cap:
        return dim
    t = (cap // align) * align
    while t >= align:
        if dim % t == 0:
            return t
        t -= align
    return dim


# --------------------- grouped linear: x @ W_g + b_g for g in 0..G-1 ------------------------
# One pallas_call computes the fused QKV (G=3), KV (G=2) or Q (G=1) projection and writes a
# (G, M, N) bf16 output: every block is 128-lane aligned (no column-slicing of a 3D-wide
# buffer, no jnp.split copies afterwards).

def _grouped_linear_kernel(x_ref, w_ref, b_ref, o_ref, acc_ref, *, k_steps):
    k = pl.program_id(3)

    @pl.when(k == 0)
    def _():
        acc_ref[...] = jnp.zeros_like(acc_ref)

    acc_ref[...] += jnp.dot(x_ref[...].astype(jnp.bfloat16), w_ref[0],
                            preferred_element_type=jnp.float32)

    @pl.when(k == k_steps - 1)
    def _():
        o_ref[0] = (acc_ref[...] + b_ref[0]).astype(o_ref.dtype)


def grouped_linear(x, w_g, b_g, out_dtype=jnp.bfloat16):
    """x: (M, K) f32, w_g: (G, K, N) bf16, b_g: (G, 1, N) f32 -> (G, M, N) out_dtype."""
    M, K = x.shape
    G, _, N = w_g.shape
    sub = 16 if out_dtype == jnp.bfloat16 else 8
    tm = _pick_tile(M, 512, sub)
    tn = _pick_tile(N, 512, 128)
    tk = _pick_tile(K, 1024, 128)
    k_steps = K // tk
    return pl.pallas_call(
        partial(_grouped_linear_kernel, k_steps=k_steps),
        out_shape=jax.ShapeDtypeStruct((G, M, N), out_dtype),
        grid=(G, M // tm, N // tn, k_steps),
        in_specs=[pl.BlockSpec((tm, tk), lambda g, i, j, k: (i, k)),
                  pl.BlockSpec((1, tk, tn), lambda g, i, j, k: (g, k, j)),
                  pl.BlockSpec((1, 1, tn), lambda g, i, j, k: (g, 0, j))],
        out_specs=pl.BlockSpec((1, tm, tn), lambda g, i, j, k: (g, i, j)),
        scratch_shapes=[pltpu.VMEM((tm, tn), jnp.float32)],
        compiler_params=pltpu.CompilerParams(
            dimension_semantics=("parallel", "parallel", "parallel", "arbitrary"),
            vmem_limit_bytes=VMEM_LIMIT),
    )(x, w_g, b_g)


# --------- fused attention block: SDPA + out-proj + residual + LayerNorm (per (b, q-tile)) ---

def _attn_block_kernel(q_ref, k_ref, v_ref, *rest, nhead, masked, eps):
    if masked:
        m_ref, wo_ref, bo_ref, res_ref, g_ref, bt_ref, o_ref = rest
        m = m_ref[0]                       # (tq, Sk) or (1, Sk) — broadcasts over rows
    else:
        wo_ref, bo_ref, res_ref, g_ref, bt_ref, o_ref = rest

    q = q_ref[0, 0]                        # (tq, D) bf16, scale pre-folded into Wq
    k = k_ref[0, 0]                        # (Sk, D) bf16
    v = v_ref[0, 0]                        # (Sk, D) bf16
    D = q.shape[-1]
    dh = D // nhead

    outs = []
    for h in range(nhead):                 # static unroll: MXU pushes back-to-back
        sl = slice(h * dh, (h + 1) * dh)
        # contract the head dims directly (no K transpose materialized anywhere)
        s = jax.lax.dot_general(q[:, sl], k[:, sl], (((1,), (1,)), ((), ())),
                                preferred_element_type=jnp.float32)
        if masked:
            s = s + m
        mx = jnp.max(s, axis=-1, keepdims=True)
        p = jnp.exp(s - mx)
        denom = jnp.sum(p, axis=-1, keepdims=True)
        attn = (p * pl.reciprocal(denom, approx=True)).astype(jnp.bfloat16)
        outs.append(jnp.dot(attn, v[:, sl], preferred_element_type=jnp.float32))

    # assemble all heads into one full-width value -> single lane-dense store path
    ao = jnp.concatenate(outs, axis=-1)    # (tq, D) f32

    # fused out-projection + residual + LayerNorm (attention output never hits HBM)
    y = jnp.dot(ao.astype(jnp.bfloat16), wo_ref[...],
                preferred_element_type=jnp.float32) + bo_ref[...]
    y = y + res_ref[0]
    mu = jnp.mean(y, axis=-1, keepdims=True)
    var = jnp.mean(jnp.square(y - mu), axis=-1, keepdims=True)
    o_ref[0] = (y - mu) * jax.lax.rsqrt(var + eps) * g_ref[...] + bt_ref[...]


def attention_block(q_g, q_idx, kv_g, k_idx, v_idx, nhead, residual,
                    wo_t, bo, gamma, beta, mask=None, eps=1e-5):
    """q_g: (Gq, B, Sq, D) bf16 grouped projection, kv_g: (Gkv, B, Sk, D) bf16.
    residual: (B, Sq, D) f32. Returns LayerNorm(residual + SDPA(...) @ Wo + bo), f32."""
    _, B, Sq, D = q_g.shape
    Sk = kv_g.shape[2]
    tq = _pick_tile(Sq, 256, 16)           # bf16 q blocks -> sublane align 16
    masked = mask is not None

    in_specs = [
        pl.BlockSpec((1, 1, tq, D), lambda b, qi, g=q_idx: (g, b, qi, 0)),
        pl.BlockSpec((1, 1, Sk, D), lambda b, qi, g=k_idx: (g, b, 0, 0)),
        pl.BlockSpec((1, 1, Sk, D), lambda b, qi, g=v_idx: (g, b, 0, 0)),
    ]
    args = [q_g, kv_g, kv_g]
    if masked:
        mb, mq, _ = mask.shape
        mrows = tq if mq == Sq else 1

        def mmap(b, qi, _mb=mb, _mq=mq):
            return (b if _mb > 1 else 0, qi if _mq > 1 else 0, 0)

        in_specs.append(pl.BlockSpec((1, mrows, Sk), mmap))
        args.append(mask)
    in_specs += [
        pl.BlockSpec((D, D), lambda b, qi: (0, 0)),
        pl.BlockSpec((1, D), lambda b, qi: (0, 0)),
        pl.BlockSpec((1, tq, D), lambda b, qi: (b, qi, 0)),
        pl.BlockSpec((1, D), lambda b, qi: (0, 0)),
        pl.BlockSpec((1, D), lambda b, qi: (0, 0)),
    ]
    args += [wo_t, bo.reshape(1, D), residual, gamma.reshape(1, D), beta.reshape(1, D)]

    return pl.pallas_call(
        partial(_attn_block_kernel, nhead=nhead, masked=masked, eps=eps),
        out_shape=jax.ShapeDtypeStruct((B, Sq, D), jnp.float32),
        grid=(B, Sq // tq),
        in_specs=in_specs,
        out_specs=pl.BlockSpec((1, tq, D), lambda b, qi: (b, qi, 0)),
        compiler_params=pltpu.CompilerParams(
            dimension_semantics=("parallel", "parallel"),
            vmem_limit_bytes=VMEM_LIMIT),
    )(*args)


# ------------- fused FFN: F-tiled lin1 + ReLU + lin2 + residual + LayerNorm ------------------
# Hidden activation (tm, tf) lives only in VMEM/vregs; lin2 partials accumulate into a
# (tm, D) f32 scratch across the F grid axis, so the weight working set per step is bounded.

def _ffn_kernel(x_ref, w1_ref, b1_ref, w2_ref, b2_ref, g_ref, bt_ref, o_ref, acc_ref,
                *, eps, f_steps):
    f = pl.program_id(1)

    @pl.when(f == 0)
    def _():
        acc_ref[...] = jnp.zeros_like(acc_ref)

    x = x_ref[...]
    h = jnp.dot(x.astype(jnp.bfloat16), w1_ref[...],
                preferred_element_type=jnp.float32) + b1_ref[...]
    h = jnp.maximum(h, 0.0)
    acc_ref[...] += jnp.dot(h.astype(jnp.bfloat16), w2_ref[...],
                            preferred_element_type=jnp.float32)

    @pl.when(f == f_steps - 1)
    def _():
        y = acc_ref[...] + b2_ref[...] + x
        mu = jnp.mean(y, axis=-1, keepdims=True)
        var = jnp.mean(jnp.square(y - mu), axis=-1, keepdims=True)
        o_ref[...] = (y - mu) * jax.lax.rsqrt(var + eps) * g_ref[...] + bt_ref[...]


def ffn_residual_layernorm(x, w1_t, b1, w2_t, b2, gamma, beta, eps=1e-5):
    """LayerNorm(x + ReLU(x@W1+b1)@W2+b2). x: (M, D) f32, W1: (D,F) bf16, W2: (F,D) bf16."""
    M, D = x.shape
    F = w1_t.shape[1]
    tm = _pick_tile(M, 256, 8)
    tf = _pick_tile(F, 512, 128)
    f_steps = F // tf
    return pl.pallas_call(
        partial(_ffn_kernel, eps=eps, f_steps=f_steps),
        out_shape=jax.ShapeDtypeStruct((M, D), jnp.float32),
        grid=(M // tm, f_steps),
        in_specs=[pl.BlockSpec((tm, D), lambda i, f: (i, 0)),
                  pl.BlockSpec((D, tf), lambda i, f: (0, f)),
                  pl.BlockSpec((1, tf), lambda i, f: (0, f)),
                  pl.BlockSpec((tf, D), lambda i, f: (f, 0)),
                  pl.BlockSpec((1, D), lambda i, f: (0, 0)),
                  pl.BlockSpec((1, D), lambda i, f: (0, 0)),
                  pl.BlockSpec((1, D), lambda i, f: (0, 0))],
        out_specs=pl.BlockSpec((tm, D), lambda i, f: (i, 0)),
        scratch_shapes=[pltpu.VMEM((tm, D), jnp.float32)],
        compiler_params=pltpu.CompilerParams(
            dimension_semantics=("parallel", "arbitrary"),
            vmem_limit_bytes=VMEM_LIMIT),
    )(x, w1_t, b1.reshape(1, F), w2_t, b2.reshape(1, D),
      gamma.reshape(1, D), beta.reshape(1, D))


# -------------------------------- plain LayerNorm (final norm) ------------------------------

def _ln_kernel(x_ref, g_ref, b_ref, o_ref, *, eps):
    x = x_ref[...]
    mu = jnp.mean(x, axis=-1, keepdims=True)
    var = jnp.mean(jnp.square(x - mu), axis=-1, keepdims=True)
    o_ref[...] = (x - mu) * jax.lax.rsqrt(var + eps) * g_ref[...] + b_ref[...]


def layernorm(x, gamma, beta, eps=1e-5):
    M, D = x.shape
    tm = _pick_tile(M, 1024, 8)
    return pl.pallas_call(
        partial(_ln_kernel, eps=eps),
        out_shape=jax.ShapeDtypeStruct((M, D), jnp.float32),
        grid=(M // tm,),
        in_specs=[pl.BlockSpec((tm, D), lambda i: (i, 0)),
                  pl.BlockSpec((1, D), lambda i: (0, 0)),
                  pl.BlockSpec((1, D), lambda i: (0, 0))],
        out_specs=pl.BlockSpec((tm, D), lambda i: (i, 0)),
        compiler_params=pltpu.CompilerParams(
            dimension_semantics=("parallel",), vmem_limit_bytes=VMEM_LIMIT),
    )(x, gamma.reshape(1, D), beta.reshape(1, D))


# ------------------------------------ glue (JAX, batch-first) -------------------------------

def _combine_mask(attn_mask, key_padding_mask, B, Sq, Sk):
    """Compact additive mask: None, (1,Sq,Sk), (B,1,Sk) or (B,Sq,Sk) f32."""
    if attn_mask is None and key_padding_mask is None:
        return None
    am = None
    if attn_mask is not None:
        am = attn_mask
        if am.dtype == jnp.bool_:
            am = jnp.where(am, _NEG_MASK, 0.0)
        am = am.astype(jnp.float32).reshape(1, Sq, Sk)
    kp = None
    if key_padding_mask is not None:
        kp = jnp.where(key_padding_mask, _NEG_MASK, 0.0).astype(jnp.float32).reshape(B, 1, Sk)
    if am is None:
        return kp
    if kp is None:
        return am
    return am + kp                 # broadcasts to (B, Sq, Sk)


def decoder_layer_forward(x, mem_flat, p, nhead, sa_mask, ca_mask):
    """One nn.TransformerDecoderLayer, batch-first: x (B,Sq,D), mem_flat (B*Sk, D)."""
    B, Sq, D = x.shape
    Sk = mem_flat.shape[0] // B
    x_flat = x.reshape(B * Sq, D)

    # --- self-attention: fused QKV (grouped) -> fused SDPA+out-proj+residual+LN ---
    qkv = grouped_linear(x_flat, p["sa_qkv_w"], p["sa_qkv_b"])      # (3, B*Sq, D) bf16
    qkv = qkv.reshape(3, B, Sq, D)
    x = attention_block(qkv, 0, qkv, 1, 2, nhead, x,
                        p["sa_out_w_t"], p["sa_out_b"],
                        p["norm1_g"], p["norm1_b"], mask=sa_mask)    # (B, Sq, D) f32

    # --- cross-attention: Q proj of tgt, fused KV proj of memory ---
    x_flat = x.reshape(B * Sq, D)
    q = grouped_linear(x_flat, p["ca_q_w"], p["ca_q_b"]).reshape(1, B, Sq, D)
    kv = grouped_linear(mem_flat, p["ca_kv_w"], p["ca_kv_b"]).reshape(2, B, Sk, D)
    x = attention_block(q, 0, kv, 0, 1, nhead, x,
                        p["ca_out_w_t"], p["ca_out_b"],
                        p["norm2_g"], p["norm2_b"], mask=ca_mask)

    # --- feed-forward block, F-tiled and fully fused ---
    x_flat = ffn_residual_layernorm(x.reshape(B * Sq, D), p["lin1_w_t"], p["lin1_b"],
                                    p["lin2_w_t"], p["lin2_b"],
                                    p["norm3_g"], p["norm3_b"])
    return x_flat.reshape(B, Sq, D)


def transformer_decoder_forward(tgt, memory, layer_params, nhead, final_norm=None,
                                tgt_mask=None, memory_mask=None,
                                tgt_key_padding_mask=None, memory_key_padding_mask=None):
    """tgt: (S, B, D), memory: (Sm, B, D) — PyTorch batch_first=False convention."""
    x = jnp.transpose(tgt, (1, 0, 2))            # single layout change on entry
    mem = jnp.transpose(memory, (1, 0, 2))
    B, Sq, D = x.shape
    Sk = mem.shape[1]
    sa_mask = _combine_mask(tgt_mask, tgt_key_padding_mask, B, Sq, Sq)
    ca_mask = _combine_mask(memory_mask, memory_key_padding_mask, B, Sq, Sk)
    mem_flat = mem.reshape(B * Sk, D)
    for p in layer_params:
        x = decoder_layer_forward(x, mem_flat, p, nhead, sa_mask, ca_mask)
    if final_norm is not None:
        x = layernorm(x.reshape(B * Sq, D), final_norm["g"], final_norm["b"]).reshape(B, Sq, D)
    return jnp.transpose(x, (1, 0, 2))           # single layout change on exit


# --------------------------------------- parameters -----------------------------------------

def init_layer_params(key, d_model, nhead, dim_ff):
    """PyTorch-layout parameters of one nn.TransformerDecoderLayer."""
    ks = jax.random.split(key, 6)
    w = lambda k, shape: jax.random.normal(k, shape, jnp.float32) * 0.02

    def mha(k0, k1):
        return {"in_proj_w": w(k0, (3 * d_model, d_model)),
                "in_proj_b": jnp.zeros((3 * d_model,), jnp.float32),
                "out_proj_w": w(k1, (d_model, d_model)),
                "out_proj_b": jnp.zeros((d_model,), jnp.float32)}

    ones, zeros = (jnp.ones((d_model,), jnp.float32), jnp.zeros((d_model,), jnp.float32))
    return {"self_attn": mha(ks[0], ks[1]),
            "cross_attn": mha(ks[2], ks[3]),
            "lin1_w": w(ks[4], (dim_ff, d_model)), "lin1_b": jnp.zeros((dim_ff,), jnp.float32),
            "lin2_w": w(ks[5], (d_model, dim_ff)), "lin2_b": jnp.zeros((d_model,), jnp.float32),
            "norm1_g": ones, "norm1_b": zeros,
            "norm2_g": ones, "norm2_b": zeros,
            "norm3_g": ones, "norm3_b": zeros}


def preprocess_layer_params(p, nhead):
    """Preprocess once: bf16 weights, pre-transposed to (K, N), QKV / KV stacked along a
    leading group axis (lane-aligned grouped projections), 1/sqrt(dh) folded into Wq/bq."""
    d = p["self_attn"]["out_proj_w"].shape[0]
    assert d % nhead == 0, "d_model must be divisible by nhead"
    scale = 1.0 / math.sqrt(d // nhead)
    bf = jnp.bfloat16

    def stack_groups(w, b, n_groups, scale_first=False):
        wg = w.reshape(n_groups, d, d).transpose(0, 2, 1)     # (G, D_in, D_out) = W_g.T
        bg = b.reshape(n_groups, 1, d)
        if scale_first:                                        # fold softmax scale into Q
            wg = wg.at[0].multiply(scale)
            bg = bg.at[0].multiply(scale)
        return wg.astype(bf), bg.astype(jnp.float32)

    sa_w, sa_b = p["self_attn"]["in_proj_w"], p["self_attn"]["in_proj_b"]
    ca_w, ca_b = p["cross_attn"]["in_proj_w"], p["cross_attn"]["in_proj_b"]
    sa_qkv_w, sa_qkv_b = stack_groups(sa_w, sa_b, 3, scale_first=True)
    ca_q_w, ca_q_b = stack_groups(ca_w[:d], ca_b[:d], 1, scale_first=True)
    ca_kv_w, ca_kv_b = stack_groups(ca_w[d:], ca_b[d:], 2)

    return {
        "sa_qkv_w": sa_qkv_w, "sa_qkv_b": sa_qkv_b,                   # (3, D, D), (3, 1, D)
        "sa_out_w_t": p["self_attn"]["out_proj_w"].T.astype(bf),
        "sa_out_b": p["self_attn"]["out_proj_b"],
        "ca_q_w": ca_q_w, "ca_q_b": ca_q_b,                           # (1, D, D), (1, 1, D)
        "ca_kv_w": ca_kv_w, "ca_kv_b": ca_kv_b,                       # (2, D, D), (2, 1, D)
        "ca_out_w_t": p["cross_attn"]["out_proj_w"].T.astype(bf),
        "ca_out_b": p["cross_attn"]["out_proj_b"],
        "lin1_w_t": p["lin1_w"].T.astype(bf),                         # (D, F)
        "lin1_b": p["lin1_b"],
        "lin2_w_t": p["lin2_w"].T.astype(bf),                         # (F, D)
        "lin2_b": p["lin2_b"],
        "norm1_g": p["norm1_g"], "norm1_b": p["norm1_b"],
        "norm2_g": p["norm2_g"], "norm2_b": p["norm2_b"],
        "norm3_g": p["norm3_g"], "norm3_b": p["norm3_b"],
    }


# --------------------------------- pure-JAX reference (f32) ---------------------------------

def _ref_mha(q_in, kv_in, prm, nhead, mask):
    D = q_in.shape[-1]
    dh = D // nhead
    W, bia = prm["in_proj_w"], prm["in_proj_b"]
    q = q_in @ W[:D].T + bia[:D]
    k = kv_in @ W[D:2 * D].T + bia[D:2 * D]
    v = kv_in @ W[2 * D:].T + bia[2 * D:]
    B, Sq, _ = q.shape
    Sk = k.shape[1]
    q = q.reshape(B, Sq, nhead, dh).transpose(0, 2, 1, 3) / math.sqrt(dh)
    k = k.reshape(B, Sk, nhead, dh).transpose(0, 2, 1, 3)
    v = v.reshape(B, Sk, nhead, dh).transpose(0, 2, 1, 3)
    s = jnp.einsum("bhqd,bhkd->bhqk", q, k)
    if mask is not None:
        s = s + mask[:, None]
    p = jax.nn.softmax(s, axis=-1)
    o = jnp.einsum("bhqk,bhkd->bhqd", p, v).transpose(0, 2, 1, 3).reshape(B, Sq, D)
    return o @ prm["out_proj_w"].T + prm["out_proj_b"]


def _ref_ln(x, g, b, eps=1e-5):
    mu = x.mean(-1, keepdims=True)
    var = ((x - mu) ** 2).mean(-1, keepdims=True)
    return (x - mu) / jnp.sqrt(var + eps) * g + b


def reference_decoder(tgt, memory, torch_layers, nhead, final_norm=None,
                      tgt_mask=None, memory_mask=None,
                      tgt_key_padding_mask=None, memory_key_padding_mask=None):
    x = tgt.transpose(1, 0, 2)
    mem = memory.transpose(1, 0, 2)
    B, Sq, D = x.shape
    Sk = mem.shape[1]
    sa_mask = _combine_mask(tgt_mask, tgt_key_padding_mask, B, Sq, Sq)
    ca_mask = _combine_mask(memory_mask, memory_key_padding_mask, B, Sq, Sk)
    for p in torch_layers:
        x = _ref_ln(x + _ref_mha(x, x, p["self_attn"], nhead, sa_mask),
                    p["norm1_g"], p["norm1_b"])
        x = _ref_ln(x + _ref_mha(x, mem, p["cross_attn"], nhead, ca_mask),
                    p["norm2_g"], p["norm2_b"])
        ff = jnp.maximum(x @ p["lin1_w"].T + p["lin1_b"], 0.0) @ p["lin2_w"].T + p["lin2_b"]
        x = _ref_ln(x + ff, p["norm3_g"], p["norm3_b"])
    if final_norm is not None:
        x = _ref_ln(x, final_norm["g"], final_norm["b"])
    return x.transpose(1, 0, 2)


# --------------------------------------------- main -----------------------------------------

if __name__ == "__main__":
    d_model, nhead, dim_ff, num_layers = 32, 4, 64, 2
    tgt_len, mem_len, batch = 8, 8, 2

    key = jax.random.PRNGKey(0)
    k_tgt, k_mem, k_par = jax.random.split(key, 3)

    tgt = jax.random.normal(k_tgt, (tgt_len, batch, d_model), jnp.float32)
    memory = jax.random.normal(k_mem, (mem_len, batch, d_model), jnp.float32)

    # _get_clones deep-copies one layer -> all layers share identical init weights.
    torch_layer = init_layer_params(k_par, d_model, nhead, dim_ff)
    torch_layers = [torch_layer] * num_layers
    layers = [preprocess_layer_params(p, nhead) for p in torch_layers]
    final_norm = {"g": jnp.ones((d_model,), jnp.float32),
                  "b": jnp.zeros((d_model,), jnp.float32)}

    fwd = jax.jit(transformer_decoder_forward, static_argnames=("nhead",))

    # --- no-mask path ---
    out = jax.block_until_ready(fwd(tgt, memory, layers, nhead=nhead, final_norm=final_norm))
    assert out.shape == (tgt_len, batch, d_model)
    assert bool(jnp.all(jnp.isfinite(out)))
    ref = reference_decoder(tgt, memory, torch_layers, nhead, final_norm)
    err = float(jnp.max(jnp.abs(out - ref)))
    assert err < 0.25, f"no-mask mismatch vs f32 reference: max abs err {err}"

    # --- masked path: causal tgt mask + memory key-padding mask ---
    causal = jnp.where(jnp.triu(jnp.ones((tgt_len, tgt_len), bool), k=1),
                       -1e9, 0.0).astype(jnp.float32)
    mem_kpm = jnp.zeros((batch, mem_len), bool).at[1, -1].set(True)
    out_m = jax.block_until_ready(
        fwd(tgt, memory, layers, nhead=nhead, final_norm=final_norm,
            tgt_mask=causal, memory_key_padding_mask=mem_kpm))
    assert out_m.shape == (tgt_len, batch, d_model)
    assert bool(jnp.all(jnp.isfinite(out_m)))
    ref_m = reference_decoder(tgt, memory, torch_layers, nhead, final_norm,
                              tgt_mask=causal, memory_key_padding_mask=mem_kpm)
    err_m = float(jnp.max(jnp.abs(out_m - ref_m)))
    assert err_m < 0.25, f"masked mismatch vs f32 reference: max abs err {err_m}"

    print("KERNEL_OK")
</pallas_src>

<mosaic_0001>
module attributes {stable_mosaic.version = 11 : i64} {
  func.func @_grouped_linear_kernel(%arg0: i32, %arg1: i32, %arg2: i32, %arg3: i32, %arg4: memref<16x32xf32, #tpu.memory_space<vmem>>, %arg5: memref<1x32x32xbf16, #tpu.memory_space<vmem>>, %arg6: memref<1x1x32xf32, #tpu.memory_space<vmem>>, %arg7: memref<1x16x32xbf16, #tpu.memory_space<vmem>>, %arg8: memref<16x32xf32, #tpu.memory_space<vmem>>) attributes {dimension_semantics = [#tpu.dimension_semantics<parallel>, #tpu.dimension_semantics<parallel>, #tpu.dimension_semantics<parallel>, #tpu.dimension_semantics<arbitrary>], iteration_bounds = array<i64: 1, 1, 1, 1>, scalar_prefetch = 0 : i64, scratch_operands = 1 : i64, tpu.core_type = #tpu.core_type<tc>, window_params = [{transform_indices = @transform_0, window_bounds = array<i64: 16, 32>}, {transform_indices = @transform_1, window_bounds = array<i64: 1, 32, 32>}, {transform_indices = @transform_2, window_bounds = array<i64: 1, 1, 32>}, {transform_indices = @transform_3, window_bounds = array<i64: 1, 16, 32>}]} {
    %c0_i32 = arith.constant 0 : i32
    %0 = arith.cmpi eq, %arg3, %c0_i32 : i32
    %1 = arith.extui %0 : i1 to i32
    %c0_i32_0 = arith.constant 0 : i32
    %2 = arith.cmpi ne, %1, %c0_i32_0 : i32
    scf.if %2 {
      %cst_11 = arith.constant 0.000000e+00 : f32
      %14 = vector.broadcast %cst_11 : f32 to vector<16x32xf32>
      %c0_12 = arith.constant 0 : index
      %c0_13 = arith.constant 0 : index
      %15 = vector.load %arg8[%c0_12, %c0_13] : memref<16x32xf32, #tpu.memory_space<vmem>>, vector<16x32xf32>
      tpu.vector_store %arg8[%c0_12, %c0_13], %14 {strides = array<i32>} : memref<16x32xf32, #tpu.memory_space<vmem>>, vector<16x32xf32>,
    } else {
    }
    %c0 = arith.constant 0 : index
    %c0_1 = arith.constant 0 : index
    %3 = vector.load %arg8[%c0, %c0_1] : memref<16x32xf32, #tpu.memory_space<vmem>>, vector<16x32xf32>
    %c0_2 = arith.constant 0 : index
    %c0_3 = arith.constant 0 : index
    %4 = vector.load %arg4[%c0_2, %c0_3] : memref<16x32xf32, #tpu.memory_space<vmem>>, vector<16x32xf32>
    %5 = arith.truncf %4 : vector<16x32xf32> to vector<16x32xbf16>
    %c0_4 = arith.constant 0 : index
    %c0_5 = arith.constant 0 : index
    %c0_6 = arith.constant 0 : index
    %6 = vector.load %arg5[%c0_4, %c0_5, %c0_6] : memref<1x32x32xbf16, #tpu.memory_space<vmem>>, vector<1x32x32xbf16>
    %7 = vector.shape_cast %6 : vector<1x32x32xbf16> to vector<32x32xbf16>
    %cst = arith.constant dense<0.000000e+00> : vector<16x32xf32>
    %8 = tpu.matmul %5, %7, %cst {dimension_numbers = #tpu.dot_dimension_numbers<[1], [0], [0], [1], [0, 0, 1, 1], [], []>} : vector<16x32xbf16>, vector<32x32xbf16>, vector<16x32xf32> -> vector<16x32xf32>
    %9 = arith.addf %3, %8 : vector<16x32xf32>
    %c0_7 = arith.constant 0 : index
    %c0_8 = arith.constant 0 : index
    %10 = vector.load %arg8[%c0_7, %c0_8] : memref<16x32xf32, #tpu.memory_space<vmem>>, vector<16x32xf32>
    tpu.vector_store %arg8[%c0_7, %c0_8], %9 {strides = array<i32>} : memref<16x32xf32, #tpu.memory_space<vmem>>, vector<16x32xf32>,
    %c0_i32_9 = arith.constant 0 : i32
    %11 = arith.cmpi eq, %arg3, %c0_i32_9 : i32
    %12 = arith.extui %11 : i1 to i32
    %c0_i32_10 = arith.constant 0 : i32
    %13 = arith.cmpi ne, %12, %c0_i32_10 : i32
    scf.if %13 {
      %c0_11 = arith.constant 0 : index
      %c0_12 = arith.constant 0 : index
      %14 = vector.load %arg8[%c0_11, %c0_12] : memref<16x32xf32, #tpu.memory_space<vmem>>, vector<16x32xf32>
      %c0_13 = arith.constant 0 : index
      %c0_14 = arith.constant 0 : index
      %c0_15 = arith.constant 0 : index
      %15 = vector.load %arg6[%c0_13, %c0_14, %c0_15] : memref<1x1x32xf32, #tpu.memory_space<vmem>>, vector<1x1x32xf32>
      %16 = vector.shape_cast %15 : vector<1x1x32xf32> to vector<1x32xf32>
      %17 = vector.broadcast %16 : vector<1x32xf32> to vector<16x32xf32>
      %18 = arith.addf %14, %17 : vector<16x32xf32>
      %19 = arith.truncf %18 : vector<16x32xf32> to vector<16x32xbf16>
      %c0_16 = arith.constant 0 : index
      %c0_17 = arith.constant 0 : index
      %c0_18 = arith.constant 0 : index
      %20 = vector.load %arg7[%c0_16, %c0_17, %c0_18] : memref<1x16x32xbf16, #tpu.memory_space<vmem>>, vector<1x16x32xbf16>
      %21 = vector.shape_cast %20 : vector<1x16x32xbf16> to vector<16x32xbf16>
      %22 = vector.shape_cast %19 : vector<16x32xbf16> to vector<1x16x32xbf16>
      tpu.vector_store %arg7[%c0_16, %c0_17, %c0_18], %22 {strides = array<i32>} : memref<1x16x32xbf16, #tpu.memory_space<vmem>>, vector<1x16x32xbf16>,
    } else {
    }
    return
  }
  func.func @transform_0(%arg0: i32, %arg1: i32, %arg2: i32, %arg3: i32) -> (i32, i32) {
    %c0_i32 = arith.constant 0 : i32
    return %arg1, %arg3 : i32, i32
  }
  func.func @transform_1(%arg0: i32, %arg1: i32, %arg2: i32, %arg3: i32) -> (i32, i32, i32) {
    %c0_i32 = arith.constant 0 : i32
    return %arg0, %arg3, %arg2 : i32, i32, i32
  }
  func.func @transform_2(%arg0: i32, %arg1: i32, %arg2: i32, %arg3: i32) -> (i32, i32, i32) {
    %c0_i32 = arith.constant 0 : i32
    %c0_i32_0 = arith.constant 0 : i32
    return %arg0, %c0_i32, %arg2 : i32, i32, i32
  }
  func.func @transform_3(%arg0: i32, %arg1: i32, %arg2: i32, %arg3: i32) -> (i32, i32, i32) {
    %c0_i32 = arith.constant 0 : i32
    return %arg0, %arg1, %arg2 : i32, i32, i32
  }
}

module attributes {stable_mosaic.version = 11 : i64} {
  func.func @_grouped_linear_kernel(%arg0: i32, %arg1: i32, %arg2: i32, %arg3: i32, %arg4: memref<16x32xf32, #tpu.memory_space<vmem>>, %arg5: memref<1x32x32xbf16, #tpu.memory_space<vmem>>, %arg6: memref<1x1x32xf32, #tpu.memory_space<vmem>>, %arg7: memref<1x16x32xbf16, #tpu.memory_space<vmem>>, %arg8: memref<16x32xf32, #tpu.memory_space<vmem>>) attributes {dimension_semantics = [#tpu.dimension_semantics<parallel>, #tpu.dimension_semantics<parallel>, #tpu.dimension_semantics<parallel>, #tpu.dimension_semantics<arbitrary>], iteration_bounds = array<i64: 3, 1, 1, 1>, scalar_prefetch = 0 : i64, scratch_operands = 1 : i64, tpu.core_type = #tpu.core_type<tc>, window_params = [{transform_indices = @transform_0, window_bounds = array<i64: 16, 32>}, {transform_indices = @transform_1, window_bounds = array<i64: 1, 32, 32>}, {transform_indices = @transform_2, window_bounds = array<i64: 1, 1, 32>}, {transform_indices = @transform_3, window_bounds = array<i64: 1, 16, 32>}]} {
    %c0_i32 = arith.constant 0 : i32
    %0 = arith.cmpi eq, %arg3, %c0_i32 : i32
    %1 = arith.extui %0 : i1 to i32
    %c0_i32_0 = arith.constant 0 : i32
    %2 = arith.cmpi ne, %1, %c0_i32_0 : i32
    scf.if %2 {
      %cst_11 = arith.constant 0.000000e+00 : f32
      %14 = vector.broadcast %cst_11 : f32 to vector<16x32xf32>
      %c0_12 = arith.constant 0 : index
      %c0_13 = arith.constant 0 : index
      %15 = vector.load %arg8[%c0_12, %c0_13] : memref<16x32xf32, #tpu.memory_space<vmem>>, vector<16x32xf32>
      tpu.vector_store %arg8[%c0_12, %c0_13], %14 {strides = array<i32>} : memref<16x32xf32, #tpu.memory_space<vmem>>, vector<16x32xf32>,
    } else {
    }
    %c0 = arith.constant 0 : index
    %c0_1 = arith.constant 0 : index
    %3 = vector.load %arg8[%c0, %c0_1] : memref<16x32xf32, #tpu.memory_space<vmem>>, vector<16x32xf32>
    %c0_2 = arith.constant 0 : index
    %c0_3 = arith.constant 0 : index
    %4 = vector.load %arg4[%c0_2, %c0_3] : memref<16x32xf32, #tpu.memory_space<vmem>>, vector<16x32xf32>
    %5 = arith.truncf %4 : vector<16x32xf32> to vector<16x32xbf16>
    %c0_4 = arith.constant 0 : index
    %c0_5 = arith.constant 0 : index
    %c0_6 = arith.constant 0 : index
    %6 = vector.load %arg5[%c0_4, %c0_5, %c0_6] : memref<1x32x32xbf16, #tpu.memory_space<vmem>>, vector<1x32x32xbf16>
    %7 = vector.shape_cast %6 : vector<1x32x32xbf16> to vector<32x32xbf16>
    %cst = arith.constant dense<0.000000e+00> : vector<16x32xf32>
    %8 = tpu.matmul %5, %7, %cst {dimension_numbers = #tpu.dot_dimension_numbers<[1], [0], [0], [1], [0, 0, 1, 1], [], []>} : vector<16x32xbf16>, vector<32x32xbf16>, vector<16x32xf32> -> vector<16x32xf32>
    %9 = arith.addf %3, %8 : vector<16x32xf32>
    %c0_7 = arith.constant 0 : index
    %c0_8 = arith.constant 0 : index
    %10 = vector.load %arg8[%c0_7, %c0_8] : memref<16x32xf32, #tpu.memory_space<vmem>>, vector<16x32xf32>
    tpu.vector_store %arg8[%c0_7, %c0_8], %9 {strides = array<i32>} : memref<16x32xf32, #tpu.memory_space<vmem>>, vector<16x32xf32>,
    %c0_i32_9 = arith.constant 0 : i32
    %11 = arith.cmpi eq, %arg3, %c0_i32_9 : i32
    %12 = arith.extui %11 : i1 to i32
    %c0_i32_10 = arith.constant 0 : i32
    %13 = arith.cmpi ne, %12, %c0_i32_10 : i32
    scf.if %13 {
      %c0_11 = arith.constant 0 : index
      %c0_12 = arith.constant 0 : index
      %14 = vector.load %arg8[%c0_11, %c0_12] : memref<16x32xf32, #tpu.memory_space<vmem>>, vector<16x32xf32>
      %c0_13 = arith.constant 0 : index
      %c0_14 = arith.constant 0 : index
      %c0_15 = arith.constant 0 : index
      %15 = vector.load %arg6[%c0_13, %c0_14, %c0_15] : memref<1x1x32xf32, #tpu.memory_space<vmem>>, vector<1x1x32xf32>
      %16 = vector.shape_cast %15 : vector<1x1x32xf32> to vector<1x32xf32>
      %17 = vector.broadcast %16 : vector<1x32xf32> to vector<16x32xf32>
      %18 = arith.addf %14, %17 : vector<16x32xf32>
      %19 = arith.truncf %18 : vector<16x32xf32> to vector<16x32xbf16>
      %c0_16 = arith.constant 0 : index
      %c0_17 = arith.constant 0 : index
      %c0_18 = arith.constant 0 : index
      %20 = vector.load %arg7[%c0_16, %c0_17, %c0_18] : memref<1x16x32xbf16, #tpu.memory_space<vmem>>, vector<1x16x32xbf16>
      %21 = vector.shape_cast %20 : vector<1x16x32xbf16> to vector<16x32xbf16>
      %22 = vector.shape_cast %19 : vector<16x32xbf16> to vector<1x16x32xbf16>
      tpu.vector_store %arg7[%c0_16, %c0_17, %c0_18], %22 {strides = array<i32>} : memref<1x16x32xbf16, #tpu.memory_space<vmem>>, vector<1x16x32xbf16>,
    } else {
    }
    return
  }
  func.func @transform_0(%arg0: i32, %arg1: i32, %arg2: i32, %arg3: i32) -> (i32, i32) {
    %c0_i32 = arith.constant 0 : i32
    return %arg1, %arg3 : i32, i32
  }
  func.func @transform_1(%arg0: i32, %arg1: i32, %arg2: i32, %arg3: i32) -> (i32, i32, i32) {
    %c0_i32 = arith.constant 0 : i32
    return %arg0, %arg3, %arg2 : i32, i32, i32
  }
  func.func @transform_2(%arg0: i32, %arg1: i32, %arg2: i32, %arg3: i32) -> (i32, i32, i32) {
    %c0_i32 = arith.constant 0 : i32
    %c0_i32_0 = arith.constant 0 : i32
    return %arg0, %c0_i32, %arg2 : i32, i32, i32
  }
  func.func @transform_3(%arg0: i32, %arg1: i32, %arg2: i32, %arg3: i32) -> (i32, i32, i32) {
    %c0_i32 = arith.constant 0 : i32
    return %arg0, %arg1, %arg2 : i32, i32, i32
  }
}

module attributes {stable_mosaic.version = 11 : i64} {
  func.func @_attn_block_kernel(%arg0: i32, %arg1: i32, %arg2: memref<1x1x8x32xbf16, #tpu.memory_space<vmem>>, %arg3: memref<1x1x8x32xbf16, #tpu.memory_space<vmem>>, %arg4: memref<1x1x8x32xbf16, #tpu.memory_space<vmem>>, %arg5: memref<32x32xbf16, #tpu.memory_space<vmem>>, %arg6: memref<1x32xf32, #tpu.memory_space<vmem>>, %arg7: memref<1x8x32xf32, #tpu.memory_space<vmem>>, %arg8: memref<1x32xf32, #tpu.memory_space<vmem>>, %arg9: memref<1x32xf32, #tpu.memory_space<vmem>>, %arg10: memref<1x8x32xf32, #tpu.memory_space<vmem>>) attributes {dimension_semantics = [#tpu.dimension_semantics<parallel>, #tpu.dimension_semantics<parallel>], iteration_bounds = array<i64: 2, 1>, scalar_prefetch = 0 : i64, scratch_operands = 0 : i64, tpu.core_type = #tpu.core_type<tc>, window_params = [{transform_indices = @transform_0, window_bounds = array<i64: 1, 1, 8, 32>}, {transform_indices = @transform_1, window_bounds = array<i64: 1, 1, 8, 32>}, {transform_indices = @transform_2, window_bounds = array<i64: 1, 1, 8, 32>}, {pipeline_mode = #tpu.pipeline_mode<synchronous>, transform_indices = @transform_3, window_bounds = array<i64: 32, 32>}, {pipeline_mode = #tpu.pipeline_mode<synchronous>, transform_indices = @transform_4, window_bounds = array<i64: 1, 32>}, {transform_indices = @transform_5, window_bounds = array<i64: 1, 8, 32>}, {pipeline_mode = #tpu.pipeline_mode<synchronous>, transform_indices = @transform_6, window_bounds = array<i64: 1, 32>}, {pipeline_mode = #tpu.pipeline_mode<synchronous>, transform_indices = @transform_7, window_bounds = array<i64: 1, 32>}, {transform_indices = @transform_8, window_bounds = array<i64: 1, 8, 32>}]} {
    %c0 = arith.constant 0 : index
    %c0_0 = arith.constant 0 : index
    %c0_1 = arith.constant 0 : index
    %c0_2 = arith.constant 0 : index
    %0 = vector.load %arg2[%c0, %c0_0, %c0_1, %c0_2] : memref<1x1x8x32xbf16, #tpu.memory_space<vmem>>, vector<1x1x8x32xbf16>
    %1 = vector.shape_cast %0 : vector<1x1x8x32xbf16> to vector<8x32xbf16>
    %c0_3 = arith.constant 0 : index
    %c0_4 = arith.constant 0 : index
    %c0_5 = arith.constant 0 : index
    %c0_6 = arith.constant 0 : index
    %2 = vector.load %arg3[%c0_3, %c0_4, %c0_5, %c0_6] : memref<1x1x8x32xbf16, #tpu.memory_space<vmem>>, vector<1x1x8x32xbf16>
    %3 = vector.shape_cast %2 : vector<1x1x8x32xbf16> to vector<8x32xbf16>
    %c0_7 = arith.constant 0 : index
    %c0_8 = arith.constant 0 : index
    %c0_9 = arith.constant 0 : index
    %c0_10 = arith.constant 0 : index
    %4 = vector.load %arg4[%c0_7, %c0_8, %c0_9, %c0_10] : memref<1x1x8x32xbf16, #tpu.memory_space<vmem>>, vector<1x1x8x32xbf16>
    %5 = vector.shape_cast %4 : vector<1x1x8x32xbf16> to vector<8x32xbf16>
    %6 = vector.extract_strided_slice %1 {offsets = [0, 0], sizes = [8, 8], strides = [1, 1]} : vector<8x32xbf16> to vector<8x8xbf16>
    %7 = vector.extract_strided_slice %3 {offsets = [0, 0], sizes = [8, 8], strides = [1, 1]} : vector<8x32xbf16> to vector<8x8xbf16>
    %cst = arith.constant dense<0.000000e+00> : vector<8x8xf32>
    %8 = tpu.matmul %6, %7, %cst {dimension_numbers = #tpu.dot_dimension_numbers<[1], [1], [0], [0], [0, 0, 1, 0], [], []>} : vector<8x8xbf16>, vector<8x8xbf16>, vector<8x8xf32> -> vector<8x8xf32>
    %cst_11 = arith.constant dense<0xFF800000> : vector<8xf32>
    %9 = vector.multi_reduction <maximumf>, %8, %cst_11 [1] : vector<8x8xf32> to vector<8xf32>
    %10 = vector.shape_cast %9 : vector<8xf32> to vector<8x1xf32>
    %11 = vector.broadcast %10 : vector<8x1xf32> to vector<8x8xf32>
    %12 = arith.subf %8, %11 : vector<8x8xf32>
    %13 = math.exp %12 : vector<8x8xf32>
    %cst_12 = arith.constant dense<0.000000e+00> : vector<8xf32>
    %14 = vector.multi_reduction <add>, %13, %cst_12 [1] : vector<8x8xf32> to vector<8xf32>
    %15 = vector.shape_cast %14 : vector<8xf32> to vector<8x1xf32>
    %16 = tpu.reciprocal %15 {approx = true} : vector<8x1xf32> -> vector<8x1xf32>
    %17 = vector.broadcast %16 : vector<8x1xf32> to vector<8x8xf32>
    %18 = arith.mulf %13, %17 : vector<8x8xf32>
    %19 = arith.truncf %18 : vector<8x8xf32> to vector<8x8xbf16>
    %20 = vector.extract_strided_slice %5 {offsets = [0, 0], sizes = [8, 8], strides = [1, 1]} : vector<8x32xbf16> to vector<8x8xbf16>
    %cst_13 = arith.constant dense<0.000000e+00> : vector<8x8xf32>
    %21 = tpu.matmul %19, %20, %cst_13 {dimension_numbers = #tpu.dot_dimension_numbers<[1], [0], [0], [1], [0, 0, 1, 1], [], []>} : vector<8x8xbf16>, vector<8x8xbf16>, vector<8x8xf32> -> vector<8x8xf32>
    %22 = vector.extract_strided_slice %1 {offsets = [0, 8], sizes = [8, 8], strides = [1, 1]} : vector<8x32xbf16> to vector<8x8xbf16>
    %23 = vector.extract_strided_slice %3 {offsets = [0, 8], sizes = [8, 8], strides = [1, 1]} : vector<8x32xbf16> to vector<8x8xbf16>
    %cst_14 = arith.constant dense<0.000000e+00> : vector<8x8xf32>
    %24 = tpu.matmul %22, %23, %cst_14 {dimension_numbers = #tpu.dot_dimension_numbers<[1], [1], [0], [0], [0, 0, 1, 0], [], []>} : vector<8x8xbf16>, vector<8x8xbf16>, vector<8x8xf32> -> vector<8x8xf32>
    %cst_15 = arith.constant dense<0xFF800000> : vector<8xf32>
    %25 = vector.multi_reduction <maximumf>, %24, %cst_15 [1] : vector<8x8xf32> to vector<8xf32>
    %26 = vector.shape_cast %25 : vector<8xf32> to vector<8x1xf32>
    %27 = vector.broadcast %26 : vector<8x1xf32> to vector<8x8xf32>
    %28 = arith.subf %24, %27 : vector<8x8xf32>
    %29 = math.exp %28 : vector<8x8xf32>
    %cst_16 = arith.constant dense<0.000000e+00> : vector<8xf32>
    %30 = vector.multi_reduction <add>, %29, %cst_16 [1] : vector<8x8xf32> to vector<8xf32>
    %31 = vector.shape_cast %30 : vector<8xf32> to vector<8x1xf32>
    %32 = tpu.reciprocal %31 {approx = true} : vector<8x1xf32> -> vector<8x1xf32>
    %33 = vector.broadcast %32 : vector<8x1xf32> to vector<8x8xf32>
    %34 = arith.mulf %29, %33 : vector<8x8xf32>
    %35 = arith.truncf %34 : vector<8x8xf32> to vector<8x8xbf16>
    %36 = vector.extract_strided_slice %5 {offsets = [0, 8], sizes = [8, 8], strides = [1, 1]} : vector<8x32xbf16> to vector<8x8xbf16>
    %cst_17 = arith.constant dense<0.000000e+00> : vector<8x8xf32>
    %37 = tpu.matmul %35, %36, %cst_17 {dimension_numbers = #tpu.dot_dimension_numbers<[1], [0], [0], [1], [0, 0, 1, 1], [], []>} : vector<8x8xbf16>, vector<8x8xbf16>, vector<8x8xf32> -> vector<8x8xf32>
    %38 = vector.extract_strided_slice %1 {offsets = [0, 16], sizes = [8, 8], strides = [1, 1]} : vector<8x32xbf16> to vector<8x8xbf16>
    %39 = vector.extract_strided_slice %3 {offsets = [0, 16], sizes = [8, 8], strides = [1, 1]} : vector<8x32xbf16> to vector<8x8xbf16>
    %cst_18 = arith.constant dense<0.000000e+00> : vector<8x8xf32>
    %40 = tpu.matmul %38, %39, %cst_18 {dimension_numbers = #tpu.dot_dimension_numbers<[1], [1], [0], [0], [0, 0, 1, 0], [], []>} : vector<8x8xbf16>, vector<8x8xbf16>, vector<8x8xf32> -> vector<8x8xf32>
    %cst_19 = arith.constant dense<0xFF800000> : vector<8xf32>
    %41 = vector.multi_reduction <maximumf>, %40, %cst_19 [1] : vector<8x8xf32> to vector<8xf32>
    %42 = vector.shape_cast %41 : vector<8xf32> to vector<8x1xf32>
    %43 = vector.broadcast %42 : vector<8x1xf32> to vector<8x8xf32>
    %44 = arith.subf %40, %43 : vector<8x8xf32>
    %45 = math.exp %44 : vector<8x8xf32>
    %cst_20 = arith.constant dense<0.000000e+00> : vector<8xf32>
    %46 = vector.multi_reduction <add>, %45, %cst_20 [1] : vector<8x8xf32> to vector<8xf32>
    %47 = vector.shape_cast %46 : vector<8xf32> to vector<8x1xf32>
    %48 = tpu.reciprocal %47 {approx = true} : vector<8x1xf32> -> vector<8x1xf32>
    %49 = vector.broadcast %48 : vector<8x1xf32> to vector<8x8xf32>
    %50 = arith.mulf %45, %49 : vector<8x8xf32>
    %51 = arith.truncf %50 : vector<8x8xf32> to vector<8x8xbf16>
    %52 = vector.extract_strided_slice %5 {offsets = [0, 16], sizes = [8, 8], strides = [1, 1]} : vector<8x32xbf16> to vector<8x8xbf16>
    %cst_21 = arith.constant dense<0.000000e+00> : vector<8x8xf32>
    %53 = tpu.matmul %51, %52, %cst_21 {dimension_numbers = #tpu.dot_dimension_numbers<[1], [0], [0], [1], [0, 0, 1, 1], [], []>} : vector<8x8xbf16>, vector<8x8xbf16>, vector<8x8xf32> -> vector<8x8xf32>
    %54 = vector.extract_strided_slice %1 {offsets = [0, 24], sizes = [8, 8], strides = [1, 1]} : vector<8x32xbf16> to vector<8x8xbf16>
    %55 = vector.extract_strided_slice %3 {offsets = [0, 24], sizes = [8, 8], strides = [1, 1]} : vector<8x32xbf16> to vector<8x8xbf16>
    %cst_22 = arith.constant dense<0.000000e+00> : vector<8x8xf32>
    %56 = tpu.matmul %54, %55, %cst_22 {dimension_numbers = #tpu.dot_dimension_numbers<[1], [1], [0], [0], [0, 0, 1, 0], [], []>} : vector<8x8xbf16>, vector<8x8xbf16>, vector<8x8xf32> -> vector<8x8xf32>
    %cst_23 = arith.constant dense<0xFF800000> : vector<8xf32>
    %57 = vector.multi_reduction <maximumf>, %56, %cst_23 [1] : vector<8x8xf32> to vector<8xf32>
    %58 = vector.shape_cast %57 : vector<8xf32> to vector<8x1xf32>
    %59 = vector.broadcast %58 : vector<8x1xf32> to vector<8x8xf32>
    %60 = arith.subf %56, %59 : vector<8x8xf32>
    %61 = math.exp %60 : vector<8x8xf32>
    %cst_24 = arith.constant dense<0.000000e+00> : vector<8xf32>
    %62 = vector.multi_reduction <add>, %61, %cst_24 [1] : vector<8x8xf32> to vector<8xf32>
    %63 = vector.shape_cast %62 : vector<8xf32> to vector<8x1xf32>
    %64 = tpu.reciprocal %63 {approx = true} : vector<8x1xf32> -> vector<8x1xf32>
    %65 = vector.broadcast %64 : vector<8x1xf32> to vector<8x8xf32>
    %66 = arith.mulf %61, %65 : vector<8x8xf32>
    %67 = arith.truncf %66 : vector<8x8xf32> to vector<8x8xbf16>
    %68 = vector.extract_strided_slice %5 {offsets = [0, 24], sizes = [8, 8], strides = [1, 1]} : vector<8x32xbf16> to vector<8x8xbf16>
    %cst_25 = arith.constant dense<0.000000e+00> : vector<8x8xf32>
    %69 = tpu.matmul %67, %68, %cst_25 {dimension_numbers = #tpu.dot_dimension_numbers<[1], [0], [0], [1], [0, 0, 1, 1], [], []>} : vector<8x8xbf16>, vector<8x8xbf16>, vector<8x8xf32> -> vector<8x8xf32>
    %70 = tpu.concatenate %21, %37, %53, %69 in 1 : vector<8x8xf32>, vector<8x8xf32>, vector<8x8xf32>, vector<8x8xf32> -> vector<8x32xf32>
    %71 = arith.truncf %70 : vector<8x32xf32> to vector<8x32xbf16>
    %c0_26 = arith.constant 0 : index
    %c0_27 = arith.constant 0 : index
    %72 = vector.load %arg5[%c0_26, %c0_27] : memref<32x32xbf16, #tpu.memory_space<vmem>>, vector<32x32xbf16>
    %cst_28 = arith.constant dense<0.000000e+00> : vector<8x32xf32>
    %73 = tpu.matmul %71, %72, %cst_28 {dimension_numbers = #tpu.dot_dimension_numbers<[1], [0], [0], [1], [0, 0, 1, 1], [], []>} : vector<8x32xbf16>, vector<32x32xbf16>, vector<8x32xf32> -> vector<8x32xf32>
    %c0_29 = arith.constant 0 : index
    %c0_30 = arith.constant 0 : index
    %74 = vector.load %arg6[%c0_29, %c0_30] : memref<1x32xf32, #tpu.memory_space<vmem>>, vector<1x32xf32>
    %75 = vector.broadcast %74 : vector<1x32xf32> to vector<8x32xf32>
    %76 = arith.addf %73, %75 : vector<8x32xf32>
    %c0_31 = arith.constant 0 : index
    %c0_32 = arith.constant 0 : index
    %c0_33 = arith.constant 0 : index
    %77 = vector.load %arg7[%c0_31, %c0_32, %c0_33] : memref<1x8x32xf32, #tpu.memory_space<vmem>>, vector<1x8x32xf32>
    %78 = vector.shape_cast %77 : vector<1x8x32xf32> to vector<8x32xf32>
    %79 = arith.addf %76, %78 : vector<8x32xf32>
    %cst_34 = arith.constant dense<0.000000e+00> : vector<8xf32>
    %80 = vector.multi_reduction <add>, %79, %cst_34 [1] : vector<8x32xf32> to vector<8xf32>
    %81 = vector.shape_cast %80 : vector<8xf32> to vector<8x1xf32>
    %cst_35 = arith.constant 3.200000e+01 : f32
    %82 = vector.broadcast %cst_35 : f32 to vector<8x1xf32>
    %83 = arith.divf %81, %82 : vector<8x1xf32>
    %84 = vector.broadcast %83 : vector<8x1xf32> to vector<8x32xf32>
    %85 = arith.subf %79, %84 : vector<8x32xf32>
    %86 = arith.mulf %85, %85 : vector<8x32xf32>
    %cst_36 = arith.constant dense<0.000000e+00> : vector<8xf32>
    %87 = vector.multi_reduction <add>, %86, %cst_36 [1] : vector<8x32xf32> to vector<8xf32>
    %88 = vector.shape_cast %87 : vector<8xf32> to vector<8x1xf32>
    %cst_37 = arith.constant 3.200000e+01 : f32
    %89 = vector.broadcast %cst_37 : f32 to vector<8x1xf32>
    %90 = arith.divf %88, %89 : vector<8x1xf32>
    %91 = vector.broadcast %83 : vector<8x1xf32> to vector<8x32xf32>
    %92 = arith.subf %79, %91 : vector<8x32xf32>
    %cst_38 = arith.constant 9.99999974E-6 : f32
    %93 = vector.broadcast %cst_38 : f32 to vector<8x1xf32>
    %94 = arith.addf %90, %93 : vector<8x1xf32>
    %95 = math.rsqrt %94 : vector<8x1xf32>
    %96 = vector.broadcast %95 : vector<8x1xf32> to vector<8x32xf32>
    %97 = arith.mulf %92, %96 : vector<8x32xf32>
    %c0_39 = arith.constant 0 : index
    %c0_40 = arith.constant 0 : index
    %98 = vector.load %arg8[%c0_39, %c0_40] : memref<1x32xf32, #tpu.memory_space<vmem>>, vector<1x32xf32>
    %99 = vector.broadcast %98 : vector<1x32xf32> to vector<8x32xf32>
    %100 = arith.mulf %97, %99 : vector<8x32xf32>
    %c0_41 = arith.constant 0 : index
    %c0_42 = arith.constant 0 : index
    %101 = vector.load %arg9[%c0_41, %c0_42] : memref<1x32xf32, #tpu.memory_space<vmem>>, vector<1x32xf32>
    %102 = vector.broadcast %101 : vector<1x32xf32> to vector<8x32xf32>
    %103 = arith.addf %100, %102 : vector<8x32xf32>
    %c0_43 = arith.constant 0 : index
    %c0_44 = arith.constant 0 : index
    %c0_45 = arith.constant 0 : index
    %104 = vector.load %arg10[%c0_43, %c0_44, %c0_45] : memref<1x8x32xf32, #tpu.memory_space<vmem>>, vector<1x8x32xf32>
    %105 = vector.shape_cast %104 : vector<1x8x32xf32> to vector<8x32xf32>
    %106 = vector.shape_cast %103 : vector<8x32xf32> to vector<1x8x32xf32>
    tpu.vector_store %arg10[%c0_43, %c0_44, %c0_45], %106 {strides = array<i32>} : memref<1x8x32xf32, #tpu.memory_space<vmem>>, vector<1x8x32xf32>,
    return
  }
  func.func @transform_0(%arg0: i32, %arg1: i32) -> (i32, i32, i32, i32) {
    %c0_i32 = arith.constant 0 : i32
    %c0_i32_0 = arith.constant 0 : i32
    %c0_i32_1 = arith.constant 0 : i32
    return %c0_i32, %arg0, %arg1, %c0_i32_0 : i32, i32, i32, i32
  }
  func.func @transform_1(%arg0: i32, %arg1: i32) -> (i32, i32, i32, i32) {
    %c1_i32 = arith.constant 1 : i32
    %c0_i32 = arith.constant 0 : i32
    %c0_i32_0 = arith.constant 0 : i32
    %c0_i32_1 = arith.constant 0 : i32
    return %c1_i32, %arg0, %c0_i32, %c0_i32_0 : i32, i32, i32, i32
  }
  func.func @transform_2(%arg0: i32, %arg1: i32) -> (i32, i32, i32, i32) {
    %c2_i32 = arith.constant 2 : i32
    %c0_i32 = arith.constant 0 : i32
    %c0_i32_0 = arith.constant 0 : i32
    %c0_i32_1 = arith.constant 0 : i32
    return %c2_i32, %arg0, %c0_i32, %c0_i32_0 : i32, i32, i32, i32
  }
  func.func @transform_3(%arg0: i32, %arg1: i32) -> (i32, i32) {
    %c0_i32 = arith.constant 0 : i32
    %c0_i32_0 = arith.constant 0 : i32
    %c0_i32_1 = arith.constant 0 : i32
    return %c0_i32, %c0_i32_0 : i32, i32
  }
  func.func @transform_4(%arg0: i32, %arg1: i32) -> (i32, i32) {
    %c0_i32 = arith.constant 0 : i32
    %c0_i32_0 = arith.constant 0 : i32
    %c0_i32_1 = arith.constant 0 : i32
    return %c0_i32, %c0_i32_0 : i32, i32
  }
  func.func @transform_5(%arg0: i32, %arg1: i32) -> (i32, i32, i32) {
    %c0_i32 = arith.constant 0 : i32
    %c0_i32_0 = arith.constant 0 : i32
    return %arg0, %arg1, %c0_i32 : i32, i32, i32
  }
  func.func @transform_6(%arg0: i32, %arg1: i32) -> (i32, i32) {
    %c0_i32 = arith.constant 0 : i32
    %c0_i32_0 = arith.constant 0 : i32
    %c0_i32_1 = arith.constant 0 : i32
    return %c0_i32, %c0_i32_0 : i32, i32
  }
  func.func @transform_7(%arg0: i32, %arg1: i32) -> (i32, i32) {
    %c0_i32 = arith.constant 0 : i32
    %c0_i32_0 = arith.constant 0 : i32
    %c0_i32_1 = arith.constant 0 : i32
    return %c0_i32, %c0_i32_0 : i32, i32
  }
  func.func @transform_8(%arg0: i32, %arg1: i32) -> (i32, i32, i32) {
    %c0_i32 = arith.constant 0 : i32
    %c0_i32_0 = arith.constant 0 : i32
    return %arg0, %arg1, %c0_i32 : i32, i32, i32
  }
}

module attributes {stable_mosaic.version = 11 : i64} {
  func.func @_grouped_linear_kernel(%arg0: i32, %arg1: i32, %arg2: i32, %arg3: i32, %arg4: memref<16x32xf32, #tpu.memory_space<vmem>>, %arg5: memref<1x32x32xbf16, #tpu.memory_space<vmem>>, %arg6: memref<1x1x32xf32, #tpu.memory_space<vmem>>, %arg7: memref<1x16x32xbf16, #tpu.memory_space<vmem>>, %arg8: memref<16x32xf32, #tpu.memory_space<vmem>>) attributes {dimension_semantics = [#tpu.dimension_semantics<parallel>, #tpu.dimension_semantics<parallel>, #tpu.dimension_semantics<parallel>, #tpu.dimension_semantics<arbitrary>], iteration_bounds = array<i64: 2, 1, 1, 1>, scalar_prefetch = 0 : i64, scratch_operands = 1 : i64, tpu.core_type = #tpu.core_type<tc>, window_params = [{transform_indices = @transform_0, window_bounds = array<i64: 16, 32>}, {transform_indices = @transform_1, window_bounds = array<i64: 1, 32, 32>}, {transform_indices = @transform_2, window_bounds = array<i64: 1, 1, 32>}, {transform_indices = @transform_3, window_bounds = array<i64: 1, 16, 32>}]} {
    %c0_i32 = arith.constant 0 : i32
    %0 = arith.cmpi eq, %arg3, %c0_i32 : i32
    %1 = arith.extui %0 : i1 to i32
    %c0_i32_0 = arith.constant 0 : i32
    %2 = arith.cmpi ne, %1, %c0_i32_0 : i32
    scf.if %2 {
      %cst_11 = arith.constant 0.000000e+00 : f32
      %14 = vector.broadcast %cst_11 : f32 to vector<16x32xf32>
      %c0_12 = arith.constant 0 : index
      %c0_13 = arith.constant 0 : index
      %15 = vector.load %arg8[%c0_12, %c0_13] : memref<16x32xf32, #tpu.memory_space<vmem>>, vector<16x32xf32>
      tpu.vector_store %arg8[%c0_12, %c0_13], %14 {strides = array<i32>} : memref<16x32xf32, #tpu.memory_space<vmem>>, vector<16x32xf32>,
    } else {
    }
    %c0 = arith.constant 0 : index
    %c0_1 = arith.constant 0 : index
    %3 = vector.load %arg8[%c0, %c0_1] : memref<16x32xf32, #tpu.memory_space<vmem>>, vector<16x32xf32>
    %c0_2 = arith.constant 0 : index
    %c0_3 = arith.constant 0 : index
    %4 = vector.load %arg4[%c0_2, %c0_3] : memref<16x32xf32, #tpu.memory_space<vmem>>, vector<16x32xf32>
    %5 = arith.truncf %4 : vector<16x32xf32> to vector<16x32xbf16>
    %c0_4 = arith.constant 0 : index
    %c0_5 = arith.constant 0 : index
    %c0_6 = arith.constant 0 : index
    %6 = vector.load %arg5[%c0_4, %c0_5, %c0_6] : memref<1x32x32xbf16, #tpu.memory_space<vmem>>, vector<1x32x32xbf16>
    %7 = vector.shape_cast %6 : vector<1x32x32xbf16> to vector<32x32xbf16>
    %cst = arith.constant dense<0.000000e+00> : vector<16x32xf32>
    %8 = tpu.matmul %5, %7, %cst {dimension_numbers = #tpu.dot_dimension_numbers<[1], [0], [0], [1], [0, 0, 1, 1], [], []>} : vector<16x32xbf16>, vector<32x32xbf16>, vector<16x32xf32> -> vector<16x32xf32>
    %9 = arith.addf %3, %8 : vector<16x32xf32>
    %c0_7 = arith.constant 0 : index
    %c0_8 = arith.constant 0 : index
    %10 = vector.load %arg8[%c0_7, %c0_8] : memref<16x32xf32, #tpu.memory_space<vmem>>, vector<16x32xf32>
    tpu.vector_store %arg8[%c0_7, %c0_8], %9 {strides = array<i32>} : memref<16x32xf32, #tpu.memory_space<vmem>>, vector<16x32xf32>,
    %c0_i32_9 = arith.constant 0 : i32
    %11 = arith.cmpi eq, %arg3, %c0_i32_9 : i32
    %12 = arith.extui %11 : i1 to i32
    %c0_i32_10 = arith.constant 0 : i32
    %13 = arith.cmpi ne, %12, %c0_i32_10 : i32
    scf.if %13 {
      %c0_11 = arith.constant 0 : index
      %c0_12 = arith.constant 0 : index
      %14 = vector.load %arg8[%c0_11, %c0_12] : memref<16x32xf32, #tpu.memory_space<vmem>>, vector<16x32xf32>
      %c0_13 = arith.constant 0 : index
      %c0_14 = arith.constant 0 : index
      %c0_15 = arith.constant 0 : index
      %15 = vector.load %arg6[%c0_13, %c0_14, %c0_15] : memref<1x1x32xf32, #tpu.memory_space<vmem>>, vector<1x1x32xf32>
      %16 = vector.shape_cast %15 : vector<1x1x32xf32> to vector<1x32xf32>
      %17 = vector.broadcast %16 : vector<1x32xf32> to vector<16x32xf32>
      %18 = arith.addf %14, %17 : vector<16x32xf32>
      %19 = arith.truncf %18 : vector<16x32xf32> to vector<16x32xbf16>
      %c0_16 = arith.constant 0 : index
      %c0_17 = arith.constant 0 : index
      %c0_18 = arith.constant 0 : index
      %20 = vector.load %arg7[%c0_16, %c0_17, %c0_18] : memref<1x16x32xbf16, #tpu.memory_space<vmem>>, vector<1x16x32xbf16>
      %21 = vector.shape_cast %20 : vector<1x16x32xbf16> to vector<16x32xbf16>
      %22 = vector.shape_cast %19 : vector<16x32xbf16> to vector<1x16x32xbf16>
      tpu.vector_store %arg7[%c0_16, %c0_17, %c0_18], %22 {strides = array<i32>} : memref<1x16x32xbf16, #tpu.memory_space<vmem>>, vector<1x16x32xbf16>,
    } else {
    }
    return
  }
  func.func @transform_0(%arg0: i32, %arg1: i32, %arg2: i32, %arg3: i32) -> (i32, i32) {
    %c0_i32 = arith.constant 0 : i32
    return %arg1, %arg3 : i32, i32
  }
  func.func @transform_1(%arg0: i32, %arg1: i32, %arg2: i32, %arg3: i32) -> (i32, i32, i32) {
    %c0_i32 = arith.constant 0 : i32
    return %arg0, %arg3, %arg2 : i32, i32, i32
  }
  func.func @transform_2(%arg0: i32, %arg1: i32, %arg2: i32, %arg3: i32) -> (i32, i32, i32) {
    %c0_i32 = arith.constant 0 : i32
    %c0_i32_0 = arith.constant 0 : i32
    return %arg0, %c0_i32, %arg2 : i32, i32, i32
  }
  func.func @transform_3(%arg0: i32, %arg1: i32, %arg2: i32, %arg3: i32) -> (i32, i32, i32) {
    %c0_i32 = arith.constant 0 : i32
    return %arg0, %arg1, %arg2 : i32, i32, i32
  }
}

module attributes {stable_mosaic.version = 11 : i64} {
  func.func @_attn_block_kernel(%arg0: i32, %arg1: i32, %arg2: memref<1x1x8x32xbf16, #tpu.memory_space<vmem>>, %arg3: memref<1x1x8x32xbf16, #tpu.memory_space<vmem>>, %arg4: memref<1x1x8x32xbf16, #tpu.memory_space<vmem>>, %arg5: memref<32x32xbf16, #tpu.memory_space<vmem>>, %arg6: memref<1x32xf32, #tpu.memory_space<vmem>>, %arg7: memref<1x8x32xf32, #tpu.memory_space<vmem>>, %arg8: memref<1x32xf32, #tpu.memory_space<vmem>>, %arg9: memref<1x32xf32, #tpu.memory_space<vmem>>, %arg10: memref<1x8x32xf32, #tpu.memory_space<vmem>>) attributes {dimension_semantics = [#tpu.dimension_semantics<parallel>, #tpu.dimension_semantics<parallel>], iteration_bounds = array<i64: 2, 1>, scalar_prefetch = 0 : i64, scratch_operands = 0 : i64, tpu.core_type = #tpu.core_type<tc>, window_params = [{transform_indices = @transform_0, window_bounds = array<i64: 1, 1, 8, 32>}, {transform_indices = @transform_1, window_bounds = array<i64: 1, 1, 8, 32>}, {transform_indices = @transform_2, window_bounds = array<i64: 1, 1, 8, 32>}, {pipeline_mode = #tpu.pipeline_mode<synchronous>, transform_indices = @transform_3, window_bounds = array<i64: 32, 32>}, {pipeline_mode = #tpu.pipeline_mode<synchronous>, transform_indices = @transform_4, window_bounds = array<i64: 1, 32>}, {transform_indices = @transform_5, window_bounds = array<i64: 1, 8, 32>}, {pipeline_mode = #tpu.pipeline_mode<synchronous>, transform_indices = @transform_6, window_bounds = array<i64: 1, 32>}, {pipeline_mode = #tpu.pipeline_mode<synchronous>, transform_indices = @transform_7, window_bounds = array<i64: 1, 32>}, {transform_indices = @transform_8, window_bounds = array<i64: 1, 8, 32>}]} {
    %c0 = arith.constant 0 : index
    %c0_0 = arith.constant 0 : index
    %c0_1 = arith.constant 0 : index
    %c0_2 = arith.constant 0 : index
    %0 = vector.load %arg2[%c0, %c0_0, %c0_1, %c0_2] : memref<1x1x8x32xbf16, #tpu.memory_space<vmem>>, vector<1x1x8x32xbf16>
    %1 = vector.shape_cast %0 : vector<1x1x8x32xbf16> to vector<8x32xbf16>
    %c0_3 = arith.constant 0 : index
    %c0_4 = arith.constant 0 : index
    %c0_5 = arith.constant 0 : index
    %c0_6 = arith.constant 0 : index
    %2 = vector.load %arg3[%c0_3, %c0_4, %c0_5, %c0_6] : memref<1x1x8x32xbf16, #tpu.memory_space<vmem>>, vector<1x1x8x32xbf16>
    %3 = vector.shape_cast %2 : vector<1x1x8x32xbf16> to vector<8x32xbf16>
    %c0_7 = arith.constant 0 : index
    %c0_8 = arith.constant 0 : index
    %c0_9 = arith.constant 0 : index
    %c0_10 = arith.constant 0 : index
    %4 = vector.load %arg4[%c0_7, %c0_8, %c0_9, %c0_10] : memref<1x1x8x32xbf16, #tpu.memory_space<vmem>>, vector<1x1x8x32xbf16>
    %5 = vector.shape_cast %4 : vector<1x1x8x32xbf16> to vector<8x32xbf16>
    %6 = vector.extract_strided_slice %1 {offsets = [0, 0], sizes = [8, 8], strides = [1, 1]} : vector<8x32xbf16> to vector<8x8xbf16>
    %7 = vector.extract_strided_slice %3 {offsets = [0, 0], sizes = [8, 8], strides = [1, 1]} : vector<8x32xbf16> to vector<8x8xbf16>
    %cst = arith.constant dense<0.000000e+00> : vector<8x8xf32>
    %8 = tpu.matmul %6, %7, %cst {dimension_numbers = #tpu.dot_dimension_numbers<[1], [1], [0], [0], [0, 0, 1, 0], [], []>} : vector<8x8xbf16>, vector<8x8xbf16>, vector<8x8xf32> -> vector<8x8xf32>
    %cst_11 = arith.constant dense<0xFF800000> : vector<8xf32>
    %9 = vector.multi_reduction <maximumf>, %8, %cst_11 [1] : vector<8x8xf32> to vector<8xf32>
    %10 = vector.shape_cast %9 : vector<8xf32> to vector<8x1xf32>
    %11 = vector.broadcast %10 : vector<8x1xf32> to vector<8x8xf32>
    %12 = arith.subf %8, %11 : vector<8x8xf32>
    %13 = math.exp %12 : vector<8x8xf32>
    %cst_12 = arith.constant dense<0.000000e+00> : vector<8xf32>
    %14 = vector.multi_reduction <add>, %13, %cst_12 [1] : vector<8x8xf32> to vector<8xf32>
    %15 = vector.shape_cast %14 : vector<8xf32> to vector<8x1xf32>
    %16 = tpu.reciprocal %15 {approx = true} : vector<8x1xf32> -> vector<8x1xf32>
    %17 = vector.broadcast %16 : vector<8x1xf32> to vector<8x8xf32>
    %18 = arith.mulf %13, %17 : vector<8x8xf32>
    %19 = arith.truncf %18 : vector<8x8xf32> to vector<8x8xbf16>
    %20 = vector.extract_strided_slice %5 {offsets = [0, 0], sizes = [8, 8], strides = [1, 1]} : vector<8x32xbf16> to vector<8x8xbf16>
    %cst_13 = arith.constant dense<0.000000e+00> : vector<8x8xf32>
    %21 = tpu.matmul %19, %20, %cst_13 {dimension_numbers = #tpu.dot_dimension_numbers<[1], [0], [0], [1], [0, 0, 1, 1], [], []>} : vector<8x8xbf16>, vector<8x8xbf16>, vector<8x8xf32> -> vector<8x8xf32>
    %22 = vector.extract_strided_slice %1 {offsets = [0, 8], sizes = [8, 8], strides = [1, 1]} : vector<8x32xbf16> to vector<8x8xbf16>
    %23 = vector.extract_strided_slice %3 {offsets = [0, 8], sizes = [8, 8], strides = [1, 1]} : vector<8x32xbf16> to vector<8x8xbf16>
    %cst_14 = arith.constant dense<0.000000e+00> : vector<8x8xf32>
    %24 = tpu.matmul %22, %23, %cst_14 {dimension_numbers = #tpu.dot_dimension_numbers<[1], [1], [0], [0], [0, 0, 1, 0], [], []>} : vector<8x8xbf16>, vector<8x8xbf16>, vector<8x8xf32> -> vector<8x8xf32>
    %cst_15 = arith.constant dense<0xFF800000> : vector<8xf32>
    %25 = vector.multi_reduction <maximumf>, %24, %cst_15 [1] : vector<8x8xf32> to vector<8xf32>
    %26 = vector.shape_cast %25 : vector<8xf32> to vector<8x1xf32>
    %27 = vector.broadcast %26 : vector<8x1xf32> to vector<8x8xf32>
    %28 = arith.subf %24, %27 : vector<8x8xf32>
    %29 = math.exp %28 : vector<8x8xf32>
    %cst_16 = arith.constant dense<0.000000e+00> : vector<8xf32>
    %30 = vector.multi_reduction <add>, %29, %cst_16 [1] : vector<8x8xf32> to vector<8xf32>
    %31 = vector.shape_cast %30 : vector<8xf32> to vector<8x1xf32>
    %32 = tpu.reciprocal %31 {approx = true} : vector<8x1xf32> -> vector<8x1xf32>
    %33 = vector.broadcast %32 : vector<8x1xf32> to vector<8x8xf32>
    %34 = arith.mulf %29, %33 : vector<8x8xf32>
    %35 = arith.truncf %34 : vector<8x8xf32> to vector<8x8xbf16>
    %36 = vector.extract_strided_slice %5 {offsets = [0, 8], sizes = [8, 8], strides = [1, 1]} : vector<8x32xbf16> to vector<8x8xbf16>
    %cst_17 = arith.constant dense<0.000000e+00> : vector<8x8xf32>
    %37 = tpu.matmul %35, %36, %cst_17 {dimension_numbers = #tpu.dot_dimension_numbers<[1], [0], [0], [1], [0, 0, 1, 1], [], []>} : vector<8x8xbf16>, vector<8x8xbf16>, vector<8x8xf32> -> vector<8x8xf32>
    %38 = vector.extract_strided_slice %1 {offsets = [0, 16], sizes = [8, 8], strides = [1, 1]} : vector<8x32xbf16> to vector<8x8xbf16>
    %39 = vector.extract_strided_slice %3 {offsets = [0, 16], sizes = [8, 8], strides = [1, 1]} : vector<8x32xbf16> to vector<8x8xbf16>
    %cst_18 = arith.constant dense<0.000000e+00> : vector<8x8xf32>
    %40 = tpu.matmul %38, %39, %cst_18 {dimension_numbers = #tpu.dot_dimension_numbers<[1], [1], [0], [0], [0, 0, 1, 0], [], []>} : vector<8x8xbf16>, vector<8x8xbf16>, vector<8x8xf32> -> vector<8x8xf32>
    %cst_19 = arith.constant dense<0xFF800000> : vector<8xf32>
    %41 = vector.multi_reduction <maximumf>, %40, %cst_19 [1] : vector<8x8xf32> to vector<8xf32>
    %42 = vector.shape_cast %41 : vector<8xf32> to vector<8x1xf32>
    %43 = vector.broadcast %42 : vector<8x1xf32> to vector<8x8xf32>
    %44 = arith.subf %40, %43 : vector<8x8xf32>
    %45 = math.exp %44 : vector<8x8xf32>
    %cst_20 = arith.constant dense<0.000000e+00> : vector<8xf32>
    %46 = vector.multi_reduction <add>, %45, %cst_20 [1] : vector<8x8xf32> to vector<8xf32>
    %47 = vector.shape_cast %46 : vector<8xf32> to vector<8x1xf32>
    %48 = tpu.reciprocal %47 {approx = true} : vector<8x1xf32> -> vector<8x1xf32>
    %49 = vector.broadcast %48 : vector<8x1xf32> to vector<8x8xf32>
    %50 = arith.mulf %45, %49 : vector<8x8xf32>
    %51 = arith.truncf %50 : vector<8x8xf32> to vector<8x8xbf16>
    %52 = vector.extract_strided_slice %5 {offsets = [0, 16], sizes = [8, 8], strides = [1, 1]} : vector<8x32xbf16> to vector<8x8xbf16>
    %cst_21 = arith.constant dense<0.000000e+00> : vector<8x8xf32>
    %53 = tpu.matmul %51, %52, %cst_21 {dimension_numbers = #tpu.dot_dimension_numbers<[1], [0], [0], [1], [0, 0, 1, 1], [], []>} : vector<8x8xbf16>, vector<8x8xbf16>, vector<8x8xf32> -> vector<8x8xf32>
    %54 = vector.extract_strided_slice %1 {offsets = [0, 24], sizes = [8, 8], strides = [1, 1]} : vector<8x32xbf16> to vector<8x8xbf16>
    %55 = vector.extract_strided_slice %3 {offsets = [0, 24], sizes = [8, 8], strides = [1, 1]} : vector<8x32xbf16> to vector<8x8xbf16>
    %cst_22 = arith.constant dense<0.000000e+00> : vector<8x8xf32>
    %56 = tpu.matmul %54, %55, %cst_22 {dimension_numbers = #tpu.dot_dimension_numbers<[1], [1], [0], [0], [0, 0, 1, 0], [], []>} : vector<8x8xbf16>, vector<8x8xbf16>, vector<8x8xf32> -> vector<8x8xf32>
    %cst_23 = arith.constant dense<0xFF800000> : vector<8xf32>
    %57 = vector.multi_reduction <maximumf>, %56, %cst_23 [1] : vector<8x8xf32> to vector<8xf32>
    %58 = vector.shape_cast %57 : vector<8xf32> to vector<8x1xf32>
    %59 = vector.broadcast %58 : vector<8x1xf32> to vector<8x8xf32>
    %60 = arith.subf %56, %59 : vector<8x8xf32>
    %61 = math.exp %60 : vector<8x8xf32>
    %cst_24 = arith.constant dense<0.000000e+00> : vector<8xf32>
    %62 = vector.multi_reduction <add>, %61, %cst_24 [1] : vector<8x8xf32> to vector<8xf32>
    %63 = vector.shape_cast %62 : vector<8xf32> to vector<8x1xf32>
    %64 = tpu.reciprocal %63 {approx = true} : vector<8x1xf32> -> vector<8x1xf32>
    %65 = vector.broadcast %64 : vector<8x1xf32> to vector<8x8xf32>
    %66 = arith.mulf %61, %65 : vector<8x8xf32>
    %67 = arith.truncf %66 : vector<8x8xf32> to vector<8x8xbf16>
    %68 = vector.extract_strided_slice %5 {offsets = [0, 24], sizes = [8, 8], strides = [1, 1]} : vector<8x32xbf16> to vector<8x8xbf16>
    %cst_25 = arith.constant dense<0.000000e+00> : vector<8x8xf32>
    %69 = tpu.matmul %67, %68, %cst_25 {dimension_numbers = #tpu.dot_dimension_numbers<[1], [0], [0], [1], [0, 0, 1, 1], [], []>} : vector<8x8xbf16>, vector<8x8xbf16>, vector<8x8xf32> -> vector<8x8xf32>
    %70 = tpu.concatenate %21, %37, %53, %69 in 1 : vector<8x8xf32>, vector<8x8xf32>, vector<8x8xf32>, vector<8x8xf32> -> vector<8x32xf32>
    %71 = arith.truncf %70 : vector<8x32xf32> to vector<8x32xbf16>
    %c0_26 = arith.constant 0 : index
    %c0_27 = arith.constant 0 : index
    %72 = vector.load %arg5[%c0_26, %c0_27] : memref<32x32xbf16, #tpu.memory_space<vmem>>, vector<32x32xbf16>
    %cst_28 = arith.constant dense<0.000000e+00> : vector<8x32xf32>
    %73 = tpu.matmul %71, %72, %cst_28 {dimension_numbers = #tpu.dot_dimension_numbers<[1], [0], [0], [1], [0, 0, 1, 1], [], []>} : vector<8x32xbf16>, vector<32x32xbf16>, vector<8x32xf32> -> vector<8x32xf32>
    %c0_29 = arith.constant 0 : index
    %c0_30 = arith.constant 0 : index
    %74 = vector.load %arg6[%c0_29, %c0_30] : memref<1x32xf32, #tpu.memory_space<vmem>>, vector<1x32xf32>
    %75 = vector.broadcast %74 : vector<1x32xf32> to vector<8x32xf32>
    %76 = arith.addf %73, %75 : vector<8x32xf32>
    %c0_31 = arith.constant 0 : index
    %c0_32 = arith.constant 0 : index
    %c0_33 = arith.constant 0 : index
    %77 = vector.load %arg7[%c0_31, %c0_32, %c0_33] : memref<1x8x32xf32, #tpu.memory_space<vmem>>, vector<1x8x32xf32>
    %78 = vector.shape_cast %77 : vector<1x8x32xf32> to vector<8x32xf32>
    %79 = arith.addf %76, %78 : vector<8x32xf32>
    %cst_34 = arith.constant dense<0.000000e+00> : vector<8xf32>
    %80 = vector.multi_reduction <add>, %79, %cst_34 [1] : vector<8x32xf32> to vector<8xf32>
    %81 = vector.shape_cast %80 : vector<8xf32> to vector<8x1xf32>
    %cst_35 = arith.constant 3.200000e+01 : f32
    %82 = vector.broadcast %cst_35 : f32 to vector<8x1xf32>
    %83 = arith.divf %81, %82 : vector<8x1xf32>
    %84 = vector.broadcast %83 : vector<8x1xf32> to vector<8x32xf32>
    %85 = arith.subf %79, %84 : vector<8x32xf32>
    %86 = arith.mulf %85, %85 : vector<8x32xf32>
    %cst_36 = arith.constant dense<0.000000e+00> : vector<8xf32>
    %87 = vector.multi_reduction <add>, %86, %cst_36 [1] : vector<8x32xf32> to vector<8xf32>
    %88 = vector.shape_cast %87 : vector<8xf32> to vector<8x1xf32>
    %cst_37 = arith.constant 3.200000e+01 : f32
    %89 = vector.broadcast %cst_37 : f32 to vector<8x1xf32>
    %90 = arith.divf %88, %89 : vector<8x1xf32>
    %91 = vector.broadcast %83 : vector<8x1xf32> to vector<8x32xf32>
    %92 = arith.subf %79, %91 : vector<8x32xf32>
    %cst_38 = arith.constant 9.99999974E-6 : f32
    %93 = vector.broadcast %cst_38 : f32 to vector<8x1xf32>
    %94 = arith.addf %90, %93 : vector<8x1xf32>
    %95 = math.rsqrt %94 : vector<8x1xf32>
    %96 = vector.broadcast %95 : vector<8x1xf32> to vector<8x32xf32>
    %97 = arith.mulf %92, %96 : vector<8x32xf32>
    %c0_39 = arith.constant 0 : index
    %c0_40 = arith.constant 0 : index
    %98 = vector.load %arg8[%c0_39, %c0_40] : memref<1x32xf32, #tpu.memory_space<vmem>>, vector<1x32xf32>
    %99 = vector.broadcast %98 : vector<1x32xf32> to vector<8x32xf32>
    %100 = arith.mulf %97, %99 : vector<8x32xf32>
    %c0_41 = arith.constant 0 : index
    %c0_42 = arith.constant 0 : index
    %101 = vector.load %arg9[%c0_41, %c0_42] : memref<1x32xf32, #tpu.memory_space<vmem>>, vector<1x32xf32>
    %102 = vector.broadcast %101 : vector<1x32xf32> to vector<8x32xf32>
    %103 = arith.addf %100, %102 : vector<8x32xf32>
    %c0_43 = arith.constant 0 : index
    %c0_44 = arith.constant 0 : index
    %c0_45 = arith.constant 0 : index
    %104 = vector.load %arg10[%c0_43, %c0_44, %c0_45] : memref<1x8x32xf32, #tpu.memory_space<vmem>>, vector<1x8x32xf32>
    %105 = vector.shape_cast %104 : vector<1x8x32xf32> to vector<8x32xf32>
    %106 = vector.shape_cast %103 : vector<8x32xf32> to vector<1x8x32xf32>
    tpu.vector_store %arg10[%c0_43, %c0_44, %c0_45], %106 {strides = array<i32>} : memref<1x8x32xf32, #tpu.memory_space<vmem>>, vector<1x8x32xf32>,
    return
  }
  func.func @transform_0(%arg0: i32, %arg1: i32) -> (i32, i32, i32, i32) {
    %c0_i32 = arith.constant 0 : i32
    %c0_i32_0 = arith.constant 0 : i32
    %c0_i32_1 = arith.constant 0 : i32
    return %c0_i32, %arg0, %arg1, %c0_i32_0 : i32, i32, i32, i32
  }
  func.func @transform_1(%arg0: i32, %arg1: i32) -> (i32, i32, i32, i32) {
    %c0_i32 = arith.constant 0 : i32
    %c0_i32_0 = arith.constant 0 : i32
    %c0_i32_1 = arith.constant 0 : i32
    %c0_i32_2 = arith.constant 0 : i32
    return %c0_i32, %arg0, %c0_i32_0, %c0_i32_1 : i32, i32, i32, i32
  }
  func.func @transform_2(%arg0: i32, %arg1: i32) -> (i32, i32, i32, i32) {
    %c1_i32 = arith.constant 1 : i32
    %c0_i32 = arith.constant 0 : i32
    %c0_i32_0 = arith.constant 0 : i32
    %c0_i32_1 = arith.constant 0 : i32
    return %c1_i32, %arg0, %c0_i32, %c0_i32_0 : i32, i32, i32, i32
  }
  func.func @transform_3(%arg0: i32, %arg1: i32) -> (i32, i32) {
    %c0_i32 = arith.constant 0 : i32
    %c0_i32_0 = arith.constant 0 : i32
    %c0_i32_1 = arith.constant 0 : i32
    return %c0_i32, %c0_i32_0 : i32, i32
  }
  func.func @transform_4(%arg0: i32, %arg1: i32) -> (i32, i32) {
    %c0_i32 = arith.constant 0 : i32
    %c0_i32_0 = arith.constant 0 : i32
    %c0_i32_1 = arith.constant 0 : i32
    return %c0_i32, %c0_i32_0 : i32, i32
  }
  func.func @transform_5(%arg0: i32, %arg1: i32) -> (i32, i32, i32) {
    %c0_i32 = arith.constant 0 : i32
    %c0_i32_0 = arith.constant 0 : i32
    return %arg0, %arg1, %c0_i32 : i32, i32, i32
  }
  func.func @transform_6(%arg0: i32, %arg1: i32) -> (i32, i32) {
    %c0_i32 = arith.constant 0 : i32
    %c0_i32_0 = arith.constant 0 : i32
    %c0_i32_1 = arith.constant 0 : i32
    return %c0_i32, %c0_i32_0 : i32, i32
  }
  func.func @transform_7(%arg0: i32, %arg1: i32) -> (i32, i32) {
    %c0_i32 = arith.constant 0 : i32
    %c0_i32_0 = arith.constant 0 : i32
    %c0_i32_1 = arith.constant 0 : i32
    return %c0_i32, %c0_i32_0 : i32, i32
  }
  func.func @transform_8(%arg0: i32, %arg1: i32) -> (i32, i32, i32) {
    %c0_i32 = arith.constant 0 : i32
    %c0_i32_0 = arith.constant 0 : i32
    return %arg0, %arg1, %c0_i32 : i32, i32, i32
  }
}

module attributes {stable_mosaic.version = 11 : i64} {
  func.func @_attn_block_kernel(%arg0: i32, %arg1: i32, %arg2: memref<1x1x8x32xbf16, #tpu.memory_space<vmem>>, %arg3: memref<1x1x8x32xbf16, #tpu.memory_space<vmem>>, %arg4: memref<1x1x8x32xbf16, #tpu.memory_space<vmem>>, %arg5: memref<32x32xbf16, #tpu.memory_space<vmem>>, %arg6: memref<1x32xf32, #tpu.memory_space<vmem>>, %arg7: memref<1x8x32xf32, #tpu.memory_space<vmem>>, %arg8: memref<1x32xf32, #tpu.memory_space<vmem>>, %arg9: memref<1x32xf32, #tpu.memory_space<vmem>>, %arg10: memref<1x8x32xf32, #tpu.memory_space<vmem>>) attributes {dimension_semantics = [#tpu.dimension_semantics<parallel>, #tpu.dimension_semantics<parallel>], iteration_bounds = array<i64: 2, 1>, scalar_prefetch = 0 : i64, scratch_operands = 0 : i64, tpu.core_type = #tpu.core_type<tc>, window_params = [{transform_indices = @transform_0, window_bounds = array<i64: 1, 1, 8, 32>}, {transform_indices = @transform_1, window_bounds = array<i64: 1, 1, 8, 32>}, {transform_indices = @transform_2, window_bounds = array<i64: 1, 1, 8, 32>}, {pipeline_mode = #tpu.pipeline_mode<synchronous>, transform_indices = @transform_3, window_bounds = array<i64: 32, 32>}, {pipeline_mode = #tpu.pipeline_mode<synchronous>, transform_indices = @transform_4, window_bounds = array<i64: 1, 32>}, {transform_indices = @transform_5, window_bounds = array<i64: 1, 8, 32>}, {pipeline_mode = #tpu.pipeline_mode<synchronous>, transform_indices = @transform_6, window_bounds = array<i64: 1, 32>}, {pipeline_mode = #tpu.pipeline_mode<synchronous>, transform_indices = @transform_7, window_bounds = array<i64: 1, 32>}, {transform_indices = @transform_8, window_bounds = array<i64: 1, 8, 32>}]} {
    %c0 = arith.constant 0 : index
    %c0_0 = arith.constant 0 : index
    %c0_1 = arith.constant 0 : index
    %c0_2 = arith.constant 0 : index
    %0 = vector.load %arg2[%c0, %c0_0, %c0_1, %c0_2] : memref<1x1x8x32xbf16, #tpu.memory_space<vmem>>, vector<1x1x8x32xbf16>
    %1 = vector.shape_cast %0 : vector<1x1x8x32xbf16> to vector<8x32xbf16>
    %c0_3 = arith.constant 0 : index
    %c0_4 = arith.constant 0 : index
    %c0_5 = arith.constant 0 : index
    %c0_6 = arith.constant 0 : index
    %2 = vector.load %arg3[%c0_3, %c0_4, %c0_5, %c0_6] : memref<1x1x8x32xbf16, #tpu.memory_space<vmem>>, vector<1x1x8x32xbf16>
    %3 = vector.shape_cast %2 : vector<1x1x8x32xbf16> to vector<8x32xbf16>
    %c0_7 = arith.constant 0 : index
    %c0_8 = arith.constant 0 : index
    %c0_9 = arith.constant 0 : index
    %c0_10 = arith.constant 0 : index
    %4 = vector.load %arg4[%c0_7, %c0_8, %c0_9, %c0_10] : memref<1x1x8x32xbf16, #tpu.memory_space<vmem>>, vector<1x1x8x32xbf16>
    %5 = vector.shape_cast %4 : vector<1x1x8x32xbf16> to vector<8x32xbf16>
    %6 = vector.extract_strided_slice %1 {offsets = [0, 0], sizes = [8, 8], strides = [1, 1]} : vector<8x32xbf16> to vector<8x8xbf16>
    %7 = vector.extract_strided_slice %3 {offsets = [0, 0], sizes = [8, 8], strides = [1, 1]} : vector<8x32xbf16> to vector<8x8xbf16>
    %cst = arith.constant dense<0.000000e+00> : vector<8x8xf32>
    %8 = tpu.matmul %6, %7, %cst {dimension_numbers = #tpu.dot_dimension_numbers<[1], [1], [0], [0], [0, 0, 1, 0], [], []>} : vector<8x8xbf16>, vector<8x8xbf16>, vector<8x8xf32> -> vector<8x8xf32>
    %cst_11 = arith.constant dense<0xFF800000> : vector<8xf32>
    %9 = vector.multi_reduction <maximumf>, %8, %cst_11 [1] : vector<8x8xf32> to vector<8xf32>
    %10 = vector.shape_cast %9 : vector<8xf32> to vector<8x1xf32>
    %11 = vector.broadcast %10 : vector<8x1xf32> to vector<8x8xf32>
    %12 = arith.subf %8, %11 : vector<8x8xf32>
    %13 = math.exp %12 : vector<8x8xf32>
    %cst_12 = arith.constant dense<0.000000e+00> : vector<8xf32>
    %14 = vector.multi_reduction <add>, %13, %cst_12 [1] : vector<8x8xf32> to vector<8xf32>
    %15 = vector.shape_cast %14 : vector<8xf32> to vector<8x1xf32>
    %16 = tpu.reciprocal %15 {approx = true} : vector<8x1xf32> -> vector<8x1xf32>
    %17 = vector.broadcast %16 : vector<8x1xf32> to vector<8x8xf32>
    %18 = arith.mulf %13, %17 : vector<8x8xf32>
    %19 = arith.truncf %18 : vector<8x8xf32> to vector<8x8xbf16>
    %20 = vector.extract_strided_slice %5 {offsets = [0, 0], sizes = [8, 8], strides = [1, 1]} : vector<8x32xbf16> to vector<8x8xbf16>
    %cst_13 = arith.constant dense<0.000000e+00> : vector<8x8xf32>
    %21 = tpu.matmul %19, %20, %cst_13 {dimension_numbers = #tpu.dot_dimension_numbers<[1], [0], [0], [1], [0, 0, 1, 1], [], []>} : vector<8x8xbf16>, vector<8x8xbf16>, vector<8x8xf32> -> vector<8x8xf32>
    %22 = vector.extract_strided_slice %1 {offsets = [0, 8], sizes = [8, 8], strides = [1, 1]} : vector<8x32xbf16> to vector<8x8xbf16>
    %23 = vector.extract_strided_slice %3 {offsets = [0, 8], sizes = [8, 8], strides = [1, 1]} : vector<8x32xbf16> to vector<8x8xbf16>
    %cst_14 = arith.constant dense<0.000000e+00> : vector<8x8xf32>
    %24 = tpu.matmul %22, %23, %cst_14 {dimension_numbers = #tpu.dot_dimension_numbers<[1], [1], [0], [0], [0, 0, 1, 0], [], []>} : vector<8x8xbf16>, vector<8x8xbf16>, vector<8x8xf32> -> vector<8x8xf32>
    %cst_15 = arith.constant dense<0xFF800000> : vector<8xf32>
    %25 = vector.multi_reduction <maximumf>, %24, %cst_15 [1] : vector<8x8xf32> to vector<8xf32>
    %26 = vector.shape_cast %25 : vector<8xf32> to vector<8x1xf32>
    %27 = vector.broadcast %26 : vector<8x1xf32> to vector<8x8xf32>
    %28 = arith.subf %24, %27 : vector<8x8xf32>
    %29 = math.exp %28 : vector<8x8xf32>
    %cst_16 = arith.constant dense<0.000000e+00> : vector<8xf32>
    %30 = vector.multi_reduction <add>, %29, %cst_16 [1] : vector<8x8xf32> to vector<8xf32>
    %31 = vector.shape_cast %30 : vector<8xf32> to vector<8x1xf32>
    %32 = tpu.reciprocal %31 {approx = true} : vector<8x1xf32> -> vector<8x1xf32>
    %33 = vector.broadcast %32 : vector<8x1xf32> to vector<8x8xf32>
    %34 = arith.mulf %29, %33 : vector<8x8xf32>
    %35 = arith.truncf %34 : vector<8x8xf32> to vector<8x8xbf16>
    %36 = vector.extract_strided_slice %5 {offsets = [0, 8], sizes = [8, 8], strides = [1, 1]} : vector<8x32xbf16> to vector<8x8xbf16>
    %cst_17 = arith.constant dense<0.000000e+00> : vector<8x8xf32>
    %37 = tpu.matmul %35, %36, %cst_17 {dimension_numbers = #tpu.dot_dimension_numbers<[1], [0], [0], [1], [0, 0, 1, 1], [], []>} : vector<8x8xbf16>, vector<8x8xbf16>, vector<8x8xf32> -> vector<8x8xf32>
    %38 = vector.extract_strided_slice %1 {offsets = [0, 16], sizes = [8, 8], strides = [1, 1]} : vector<8x32xbf16> to vector<8x8xbf16>
    %39 = vector.extract_strided_slice %3 {offsets = [0, 16], sizes = [8, 8], strides = [1, 1]} : vector<8x32xbf16> to vector<8x8xbf16>
    %cst_18 = arith.constant dense<0.000000e+00> : vector<8x8xf32>
    %40 = tpu.matmul %38, %39, %cst_18 {dimension_numbers = #tpu.dot_dimension_numbers<[1], [1], [0], [0], [0, 0, 1, 0], [], []>} : vector<8x8xbf16>, vector<8x8xbf16>, vector<8x8xf32> -> vector<8x8xf32>
    %cst_19 = arith.constant dense<0xFF800000> : vector<8xf32>
    %41 = vector.multi_reduction <maximumf>, %40, %cst_19 [1] : vector<8x8xf32> to vector<8xf32>
    %42 = vector.shape_cast %41 : vector<8xf32> to vector<8x1xf32>
    %43 = vector.broadcast %42 : vector<8x1xf32> to vector<8x8xf32>
    %44 = arith.subf %40, %43 : vector<8x8xf32>
    %45 = math.exp %44 : vector<8x8xf32>
    %cst_20 = arith.constant dense<0.000000e+00> : vector<8xf32>
    %46 = vector.multi_reduction <add>, %45, %cst_20 [1] : vector<8x8xf32> to vector<8xf32>
    %47 = vector.shape_cast %46 : vector<8xf32> to vector<8x1xf32>
    %48 = tpu.reciprocal %47 {approx = true} : vector<8x1xf32> -> vector<8x1xf32>
    %49 = vector.broadcast %48 : vector<8x1xf32> to vector<8x8xf32>
    %50 = arith.mulf %45, %49 : vector<8x8xf32>
    %51 = arith.truncf %50 : vector<8x8xf32> to vector<8x8xbf16>
    %52 = vector.extract_strided_slice %5 {offsets = [0, 16], sizes = [8, 8], strides = [1, 1]} : vector<8x32xbf16> to vector<8x8xbf16>
    %cst_21 = arith.constant dense<0.000000e+00> : vector<8x8xf32>
    %53 = tpu.matmul %51, %52, %cst_21 {dimension_numbers = #tpu.dot_dimension_numbers<[1], [0], [0], [1], [0, 0, 1, 1], [], []>} : vector<8x8xbf16>, vector<8x8xbf16>, vector<8x8xf32> -> vector<8x8xf32>
    %54 = vector.extract_strided_slice %1 {offsets = [0, 24], sizes = [8, 8], strides = [1, 1]} : vector<8x32xbf16> to vector<8x8xbf16>
    %55 = vector.extract_strided_slice %3 {offsets = [0, 24], sizes = [8, 8], strides = [1, 1]} : vector<8x32xbf16> to vector<8x8xbf16>
    %cst_22 = arith.constant dense<0.000000e+00> : vector<8x8xf32>
    %56 = tpu.matmul %54, %55, %cst_22 {dimension_numbers = #tpu.dot_dimension_numbers<[1], [1], [0], [0], [0, 0, 1, 0], [], []>} : vector<8x8xbf16>, vector<8x8xbf16>, vector<8x8xf32> -> vector<8x8xf32>
    %cst_23 = arith.constant dense<0xFF800000> : vector<8xf32>
    %57 = vector.multi_reduction <maximumf>, %56, %cst_23 [1] : vector<8x8xf32> to vector<8xf32>
    %58 = vector.shape_cast %57 : vector<8xf32> to vector<8x1xf32>
    %59 = vector.broadcast %58 : vector<8x1xf32> to vector<8x8xf32>
    %60 = arith.subf %56, %59 : vector<8x8xf32>
    %61 = math.exp %60 : vector<8x8xf32>
    %cst_24 = arith.constant dense<0.000000e+00> : vector<8xf32>
    %62 = vector.multi_reduction <add>, %61, %cst_24 [1] : vector<8x8xf32> to vector<8xf32>
    %63 = vector.shape_cast %62 : vector<8xf32> to vector<8x1xf32>
    %64 = tpu.reciprocal %63 {approx = true} : vector<8x1xf32> -> vector<8x1xf32>
    %65 = vector.broadcast %64 : vector<8x1xf32> to vector<8x8xf32>
    %66 = arith.mulf %61, %65 : vector<8x8xf32>
    %67 = arith.truncf %66 : vector<8x8xf32> to vector<8x8xbf16>
    %68 = vector.extract_strided_slice %5 {offsets = [0, 24], sizes = [8, 8], strides = [1, 1]} : vector<8x32xbf16> to vector<8x8xbf16>
    %cst_25 = arith.constant dense<0.000000e+00> : vector<8x8xf32>
    %69 = tpu.matmul %67, %68, %cst_25 {dimension_numbers = #tpu.dot_dimension_numbers<[1], [0], [0], [1], [0, 0, 1, 1], [], []>} : vector<8x8xbf16>, vector<8x8xbf16>, vector<8x8xf32> -> vector<8x8xf32>
    %70 = tpu.concatenate %21, %37, %53, %69 in 1 : vector<8x8xf32>, vector<8x8xf32>, vector<8x8xf32>, vector<8x8xf32> -> vector<8x32xf32>
    %71 = arith.truncf %70 : vector<8x32xf32> to vector<8x32xbf16>
    %c0_26 = arith.constant 0 : index
    %c0_27 = arith.constant 0 : index
    %72 = vector.load %arg5[%c0_26, %c0_27] : memref<32x32xbf16, #tpu.memory_space<vmem>>, vector<32x32xbf16>
    %cst_28 = arith.constant dense<0.000000e+00> : vector<8x32xf32>
    %73 = tpu.matmul %71, %72, %cst_28 {dimension_numbers = #tpu.dot_dimension_numbers<[1], [0], [0], [1], [0, 0, 1, 1], [], []>} : vector<8x32xbf16>, vector<32x32xbf16>, vector<8x32xf32> -> vector<8x32xf32>
    %c0_29 = arith.constant 0 : index
    %c0_30 = arith.constant 0 : index
    %74 = vector.load %arg6[%c0_29, %c0_30] : memref<1x32xf32, #tpu.memory_space<vmem>>, vector<1x32xf32>
    %75 = vector.broadcast %74 : vector<1x32xf32> to vector<8x32xf32>
    %76 = arith.addf %73, %75 : vector<8x32xf32>
    %c0_31 = arith.constant 0 : index
    %c0_32 = arith.constant 0 : index
    %c0_33 = arith.constant 0 : index
    %77 = vector.load %arg7[%c0_31, %c0_32, %c0_33] : memref<1x8x32xf32, #tpu.memory_space<vmem>>, vector<1x8x32xf32>
    %78 = vector.shape_cast %77 : vector<1x8x32xf32> to vector<8x32xf32>
    %79 = arith.addf %76, %78 : vector<8x32xf32>
    %cst_34 = arith.constant dense<0.000000e+00> : vector<8xf32>
    %80 = vector.multi_reduction <add>, %79, %cst_34 [1] : vector<8x32xf32> to vector<8xf32>
    %81 = vector.shape_cast %80 : vector<8xf32> to vector<8x1xf32>
    %cst_35 = arith.constant 3.200000e+01 : f32
    %82 = vector.broadcast %cst_35 : f32 to vector<8x1xf32>
    %83 = arith.divf %81, %82 : vector<8x1xf32>
    %84 = vector.broadcast %83 : vector<8x1xf32> to vector<8x32xf32>
    %85 = arith.subf %79, %84 : vector<8x32xf32>
    %86 = arith.mulf %85, %85 : vector<8x32xf32>
    %cst_36 = arith.constant dense<0.000000e+00> : vector<8xf32>
    %87 = vector.multi_reduction <add>, %86, %cst_36 [1] : vector<8x32xf32> to vector<8xf32>
    %88 = vector.shape_cast %87 : vector<8xf32> to vector<8x1xf32>
    %cst_37 = arith.constant 3.200000e+01 : f32
    %89 = vector.broadcast %cst_37 : f32 to vector<8x1xf32>
    %90 = arith.divf %88, %89 : vector<8x1xf32>
    %91 = vector.broadcast %83 : vector<8x1xf32> to vector<8x32xf32>
    %92 = arith.subf %79, %91 : vector<8x32xf32>
    %cst_38 = arith.constant 9.99999974E-6 : f32
    %93 = vector.broadcast %cst_38 : f32 to vector<8x1xf32>
    %94 = arith.addf %90, %93 : vector<8x1xf32>
    %95 = math.rsqrt %94 : vector<8x1xf32>
    %96 = vector.broadcast %95 : vector<8x1xf32> to vector<8x32xf32>
    %97 = arith.mulf %92, %96 : vector<8x32xf32>
    %c0_39 = arith.constant 0 : index
    %c0_40 = arith.constant 0 : index
    %98 = vector.load %arg8[%c0_39, %c0_40] : memref<1x32xf32, #tpu.memory_space<vmem>>, vector<1x32xf32>
    %99 = vector.broadcast %98 : vector<1x32xf32> to vector<8x32xf32>
    %100 = arith.mulf %97, %99 : vector<8x32xf32>
    %c0_41 = arith.constant 0 : index
    %c0_42 = arith.constant 0 : index
    %101 = vector.load %arg9[%c0_41, %c0_42] : memref<1x32xf32, #tpu.memory_space<vmem>>, vector<1x32xf32>
    %102 = vector.broadcast %101 : vector<1x32xf32> to vector<8x32xf32>
    %103 = arith.addf %100, %102 : vector<8x32xf32>
    %c0_43 = arith.constant 0 : index
    %c0_44 = arith.constant 0 : index
    %c0_45 = arith.constant 0 : index
    %104 = vector.load %arg10[%c0_43, %c0_44, %c0_45] : memref<1x8x32xf32, #tpu.memory_space<vmem>>, vector<1x8x32xf32>
    %105 = vector.shape_cast %104 : vector<1x8x32xf32> to vector<8x32xf32>
    %106 = vector.shape_cast %103 : vector<8x32xf32> to vector<1x8x32xf32>
    tpu.vector_store %arg10[%c0_43, %c0_44, %c0_45], %106 {strides = array<i32>} : memref<1x8x32xf32, #tpu.memory_space<vmem>>, vector<1x8x32xf32>,
    return
  }
  func.func @transform_0(%arg0: i32, %arg1: i32) -> (i32, i32, i32, i32) {
    %c0_i32 = arith.constant 0 : i32
    %c0_i32_0 = arith.constant 0 : i32
    %c0_i32_1 = arith.constant 0 : i32
    return %c0_i32, %arg0, %arg1, %c0_i32_0 : i32, i32, i32, i32
  }
  func.func @transform_1(%arg0: i32, %arg1: i32) -> (i32, i32, i32, i32) {
    %c1_i32 = arith.constant 1 : i32
    %c0_i32 = arith.constant 0 : i32
    %c0_i32_0 = arith.constant 0 : i32
    %c0_i32_1 = arith.constant 0 : i32
    return %c1_i32, %arg0, %c0_i32, %c0_i32_0 : i32, i32, i32, i32
  }
  func.func @transform_2(%arg0: i32, %arg1: i32) -> (i32, i32, i32, i32) {
    %c2_i32 = arith.constant 2 : i32
    %c0_i32 = arith.constant 0 : i32
    %c0_i32_0 = arith.constant 0 : i32
    %c0_i32_1 = arith.constant 0 : i32
    return %c2_i32, %arg0, %c0_i32, %c0_i32_0 : i32, i32, i32, i32
  }
  func.func @transform_3(%arg0: i32, %arg1: i32) -> (i32, i32) {
    %c0_i32 = arith.constant 0 : i32
    %c0_i32_0 = arith.constant 0 : i32
    %c0_i32_1 = arith.constant 0 : i32
    return %c0_i32, %c0_i32_0 : i32, i32
  }
  func.func @transform_4(%arg0: i32, %arg1: i32) -> (i32, i32) {
    %c0_i32 = arith.constant 0 : i32
    %c0_i32_0 = arith.constant 0 : i32
    %c0_i32_1 = arith.constant 0 : i32
    return %c0_i32, %c0_i32_0 : i32, i32
  }
  func.func @transform_5(%arg0: i32, %arg1: i32) -> (i32, i32, i32) {
    %c0_i32 = arith.constant 0 : i32
    %c0_i32_0 = arith.constant 0 : i32
    return %arg0, %arg1, %c0_i32 : i32, i32, i32
  }
  func.func @transform_6(%arg0: i32, %arg1: i32) -> (i32, i32) {
    %c0_i32 = arith.constant 0 : i32
    %c0_i32_0 = arith.constant 0 : i32
    %c0_i32_1 = arith.constant 0 : i32
    return %c0_i32, %c0_i32_0 : i32, i32
  }
  func.func @transform_7(%arg0: i32, %arg1: i32) -> (i32, i32) {
    %c0_i32 = arith.constant 0 : i32
    %c0_i32_0 = arith.constant 0 : i32
    %c0_i32_1 = arith.constant 0 : i32
    return %c0_i32, %c0_i32_0 : i32, i32
  }
  func.func @transform_8(%arg0: i32, %arg1: i32) -> (i32, i32, i32) {
    %c0_i32 = arith.constant 0 : i32
    %c0_i32_0 = arith.constant 0 : i32
    return %arg0, %arg1, %c0_i32 : i32, i32, i32
  }
}

module attributes {stable_mosaic.version = 11 : i64} {
  func.func @_grouped_linear_kernel(%arg0: i32, %arg1: i32, %arg2: i32, %arg3: i32, %arg4: memref<16x32xf32, #tpu.memory_space<vmem>>, %arg5: memref<1x32x32xbf16, #tpu.memory_space<vmem>>, %arg6: memref<1x1x32xf32, #tpu.memory_space<vmem>>, %arg7: memref<1x16x32xbf16, #tpu.memory_space<vmem>>, %arg8: memref<16x32xf32, #tpu.memory_space<vmem>>) attributes {dimension_semantics = [#tpu.dimension_semantics<parallel>, #tpu.dimension_semantics<parallel>, #tpu.dimension_semantics<parallel>, #tpu.dimension_semantics<arbitrary>], iteration_bounds = array<i64: 2, 1, 1, 1>, scalar_prefetch = 0 : i64, scratch_operands = 1 : i64, tpu.core_type = #tpu.core_type<tc>, window_params = [{transform_indices = @transform_0, window_bounds = array<i64: 16, 32>}, {transform_indices = @transform_1, window_bounds = array<i64: 1, 32, 32>}, {transform_indices = @transform_2, window_bounds = array<i64: 1, 1, 32>}, {transform_indices = @transform_3, window_bounds = array<i64: 1, 16, 32>}]} {
    %c0_i32 = arith.constant 0 : i32
    %0 = arith.cmpi eq, %arg3, %c0_i32 : i32
    %1 = arith.extui %0 : i1 to i32
    %c0_i32_0 = arith.constant 0 : i32
    %2 = arith.cmpi ne, %1, %c0_i32_0 : i32
    scf.if %2 {
      %cst_11 = arith.constant 0.000000e+00 : f32
      %14 = vector.broadcast %cst_11 : f32 to vector<16x32xf32>
      %c0_12 = arith.constant 0 : index
      %c0_13 = arith.constant 0 : index
      %15 = vector.load %arg8[%c0_12, %c0_13] : memref<16x32xf32, #tpu.memory_space<vmem>>, vector<16x32xf32>
      tpu.vector_store %arg8[%c0_12, %c0_13], %14 {strides = array<i32>} : memref<16x32xf32, #tpu.memory_space<vmem>>, vector<16x32xf32>,
    } else {
    }
    %c0 = arith.constant 0 : index
    %c0_1 = arith.constant 0 : index
    %3 = vector.load %arg8[%c0, %c0_1] : memref<16x32xf32, #tpu.memory_space<vmem>>, vector<16x32xf32>
    %c0_2 = arith.constant 0 : index
    %c0_3 = arith.constant 0 : index
    %4 = vector.load %arg4[%c0_2, %c0_3] : memref<16x32xf32, #tpu.memory_space<vmem>>, vector<16x32xf32>
    %5 = arith.truncf %4 : vector<16x32xf32> to vector<16x32xbf16>
    %c0_4 = arith.constant 0 : index
    %c0_5 = arith.constant 0 : index
    %c0_6 = arith.constant 0 : index
    %6 = vector.load %arg5[%c0_4, %c0_5, %c0_6] : memref<1x32x32xbf16, #tpu.memory_space<vmem>>, vector<1x32x32xbf16>
    %7 = vector.shape_cast %6 : vector<1x32x32xbf16> to vector<32x32xbf16>
    %cst = arith.constant dense<0.000000e+00> : vector<16x32xf32>
    %8 = tpu.matmul %5, %7, %cst {dimension_numbers = #tpu.dot_dimension_numbers<[1], [0], [0], [1], [0, 0, 1, 1], [], []>} : vector<16x32xbf16>, vector<32x32xbf16>, vector<16x32xf32> -> vector<16x32xf32>
    %9 = arith.addf %3, %8 : vector<16x32xf32>
    %c0_7 = arith.constant 0 : index
    %c0_8 = arith.constant 0 : index
    %10 = vector.load %arg8[%c0_7, %c0_8] : memref<16x32xf32, #tpu.memory_space<vmem>>, vector<16x32xf32>
    tpu.vector_store %arg8[%c0_7, %c0_8], %9 {strides = array<i32>} : memref<16x32xf32, #tpu.memory_space<vmem>>, vector<16x32xf32>,
    %c0_i32_9 = arith.constant 0 : i32
    %11 = arith.cmpi eq, %arg3, %c0_i32_9 : i32
    %12 = arith.extui %11 : i1 to i32
    %c0_i32_10 = arith.constant 0 : i32
    %13 = arith.cmpi ne, %12, %c0_i32_10 : i32
    scf.if %13 {
      %c0_11 = arith.constant 0 : index
      %c0_12 = arith.constant 0 : index
      %14 = vector.load %arg8[%c0_11, %c0_12] : memref<16x32xf32, #tpu.memory_space<vmem>>, vector<16x32xf32>
      %c0_13 = arith.constant 0 : index
      %c0_14 = arith.constant 0 : index
      %c0_15 = arith.constant 0 : index
      %15 = vector.load %arg6[%c0_13, %c0_14, %c0_15] : memref<1x1x32xf32, #tpu.memory_space<vmem>>, vector<1x1x32xf32>
      %16 = vector.shape_cast %15 : vector<1x1x32xf32> to vector<1x32xf32>
      %17 = vector.broadcast %16 : vector<1x32xf32> to vector<16x32xf32>
      %18 = arith.addf %14, %17 : vector<16x32xf32>
      %19 = arith.truncf %18 : vector<16x32xf32> to vector<16x32xbf16>
      %c0_16 = arith.constant 0 : index
      %c0_17 = arith.constant 0 : index
      %c0_18 = arith.constant 0 : index
      %20 = vector.load %arg7[%c0_16, %c0_17, %c0_18] : memref<1x16x32xbf16, #tpu.memory_space<vmem>>, vector<1x16x32xbf16>
      %21 = vector.shape_cast %20 : vector<1x16x32xbf16> to vector<16x32xbf16>
      %22 = vector.shape_cast %19 : vector<16x32xbf16> to vector<1x16x32xbf16>
      tpu.vector_store %arg7[%c0_16, %c0_17, %c0_18], %22 {strides = array<i32>} : memref<1x16x32xbf16, #tpu.memory_space<vmem>>, vector<1x16x32xbf16>,
    } else {
    }
    return
  }
  func.func @transform_0(%arg0: i32, %arg1: i32, %arg2: i32, %arg3: i32) -> (i32, i32) {
    %c0_i32 = arith.constant 0 : i32
    return %arg1, %arg3 : i32, i32
  }
  func.func @transform_1(%arg0: i32, %arg1: i32, %arg2: i32, %arg3: i32) -> (i32, i32, i32) {
    %c0_i32 = arith.constant 0 : i32
    return %arg0, %arg3, %arg2 : i32, i32, i32
  }
  func.func @transform_2(%arg0: i32, %arg1: i32, %arg2: i32, %arg3: i32) -> (i32, i32, i32) {
    %c0_i32 = arith.constant 0 : i32
    %c0_i32_0 = arith.constant 0 : i32
    return %arg0, %c0_i32, %arg2 : i32, i32, i32
  }
  func.func @transform_3(%arg0: i32, %arg1: i32, %arg2: i32, %arg3: i32) -> (i32, i32, i32) {
    %c0_i32 = arith.constant 0 : i32
    return %arg0, %arg1, %arg2 : i32, i32, i32
  }
}

module attributes {stable_mosaic.version = 11 : i64} {
  func.func @_ffn_kernel(%arg0: i32, %arg1: i32, %arg2: memref<16x32xf32, #tpu.memory_space<vmem>>, %arg3: memref<32x64xbf16, #tpu.memory_space<vmem>>, %arg4: memref<1x64xf32, #tpu.memory_space<vmem>>, %arg5: memref<64x32xbf16, #tpu.memory_space<vmem>>, %arg6: memref<1x32xf32, #tpu.memory_space<vmem>>, %arg7: memref<1x32xf32, #tpu.memory_space<vmem>>, %arg8: memref<1x32xf32, #tpu.memory_space<vmem>>, %arg9: memref<16x32xf32, #tpu.memory_space<vmem>>, %arg10: memref<16x32xf32, #tpu.memory_space<vmem>>) attributes {dimension_semantics = [#tpu.dimension_semantics<parallel>, #tpu.dimension_semantics<arbitrary>], iteration_bounds = array<i64: 1, 1>, scalar_prefetch = 0 : i64, scratch_operands = 1 : i64, tpu.core_type = #tpu.core_type<tc>, window_params = [{transform_indices = @transform_0, window_bounds = array<i64: 16, 32>}, {transform_indices = @transform_1, window_bounds = array<i64: 32, 64>}, {transform_indices = @transform_2, window_bounds = array<i64: 1, 64>}, {transform_indices = @transform_3, window_bounds = array<i64: 64, 32>}, {pipeline_mode = #tpu.pipeline_mode<synchronous>, transform_indices = @transform_4, window_bounds = array<i64: 1, 32>}, {pipeline_mode = #tpu.pipeline_mode<synchronous>, transform_indices = @transform_5, window_bounds = array<i64: 1, 32>}, {pipeline_mode = #tpu.pipeline_mode<synchronous>, transform_indices = @transform_6, window_bounds = array<i64: 1, 32>}, {transform_indices = @transform_7, window_bounds = array<i64: 16, 32>}]} {
    %c0_i32 = arith.constant 0 : i32
    %0 = arith.cmpi eq, %arg1, %c0_i32 : i32
    %1 = arith.extui %0 : i1 to i32
    %c0_i32_0 = arith.constant 0 : i32
    %2 = arith.cmpi ne, %1, %c0_i32_0 : i32
    scf.if %2 {
      %cst_16 = arith.constant 0.000000e+00 : f32
      %21 = vector.broadcast %cst_16 : f32 to vector<16x32xf32>
      %c0_17 = arith.constant 0 : index
      %c0_18 = arith.constant 0 : index
      %22 = vector.load %arg10[%c0_17, %c0_18] : memref<16x32xf32, #tpu.memory_space<vmem>>, vector<16x32xf32>
      tpu.vector_store %arg10[%c0_17, %c0_18], %21 {strides = array<i32>} : memref<16x32xf32, #tpu.memory_space<vmem>>, vector<16x32xf32>,
    } else {
    }
    %c0 = arith.constant 0 : index
    %c0_1 = arith.constant 0 : index
    %3 = vector.load %arg2[%c0, %c0_1] : memref<16x32xf32, #tpu.memory_space<vmem>>, vector<16x32xf32>
    %4 = arith.truncf %3 : vector<16x32xf32> to vector<16x32xbf16>
    %c0_2 = arith.constant 0 : index
    %c0_3 = arith.constant 0 : index
    %5 = vector.load %arg3[%c0_2, %c0_3] : memref<32x64xbf16, #tpu.memory_space<vmem>>, vector<32x64xbf16>
    %cst = arith.constant dense<0.000000e+00> : vector<16x64xf32>
    %6 = tpu.matmul %4, %5, %cst {dimension_numbers = #tpu.dot_dimension_numbers<[1], [0], [0], [1], [0, 0, 1, 1], [], []>} : vector<16x32xbf16>, vector<32x64xbf16>, vector<16x64xf32> -> vector<16x64xf32>
    %c0_4 = arith.constant 0 : index
    %c0_5 = arith.constant 0 : index
    %7 = vector.load %arg4[%c0_4, %c0_5] : memref<1x64xf32, #tpu.memory_space<vmem>>, vector<1x64xf32>
    %8 = vector.broadcast %7 : vector<1x64xf32> to vector<16x64xf32>
    %9 = arith.addf %6, %8 : vector<16x64xf32>
    %cst_6 = arith.constant 0.000000e+00 : f32
    %10 = vector.broadcast %cst_6 : f32 to vector<16x64xf32>
    %11 = arith.maximumf %9, %10 : vector<16x64xf32>
    %c0_7 = arith.constant 0 : index
    %c0_8 = arith.constant 0 : index
    %12 = vector.load %arg10[%c0_7, %c0_8] : memref<16x32xf32, #tpu.memory_space<vmem>>, vector<16x32xf32>
    %13 = arith.truncf %11 : vector<16x64xf32> to vector<16x64xbf16>
    %c0_9 = arith.constant 0 : index
    %c0_10 = arith.constant 0 : index
    %14 = vector.load %arg5[%c0_9, %c0_10] : memref<64x32xbf16, #tpu.memory_space<vmem>>, vector<64x32xbf16>
    %cst_11 = arith.constant dense<0.000000e+00> : vector<16x32xf32>
    %15 = tpu.matmul %13, %14, %cst_11 {dimension_numbers = #tpu.dot_dimension_numbers<[1], [0], [0], [1], [0, 0, 1, 1], [], []>} : vector<16x64xbf16>, vector<64x32xbf16>, vector<16x32xf32> -> vector<16x32xf32>
    %16 = arith.addf %12, %15 : vector<16x32xf32>
    %c0_12 = arith.constant 0 : index
    %c0_13 = arith.constant 0 : index
    %17 = vector.load %arg10[%c0_12, %c0_13] : memref<16x32xf32, #tpu.memory_space<vmem>>, vector<16x32xf32>
    tpu.vector_store %arg10[%c0_12, %c0_13], %16 {strides = array<i32>} : memref<16x32xf32, #tpu.memory_space<vmem>>, vector<16x32xf32>,
    %c0_i32_14 = arith.constant 0 : i32
    %18 = arith.cmpi eq, %arg1, %c0_i32_14 : i32
    %19 = arith.extui %18 : i1 to i32
    %c0_i32_15 = arith.constant 0 : i32
    %20 = arith.cmpi ne, %19, %c0_i32_15 : i32
    scf.if %20 {
      %c0_16 = arith.constant 0 : index
      %c0_17 = arith.constant 0 : index
      %21 = vector.load %arg10[%c0_16, %c0_17] : memref<16x32xf32, #tpu.memory_space<vmem>>, vector<16x32xf32>
      %c0_18 = arith.constant 0 : index
      %c0_19 = arith.constant 0 : index
      %22 = vector.load %arg6[%c0_18, %c0_19] : memref<1x32xf32, #tpu.memory_space<vmem>>, vector<1x32xf32>
      %23 = vector.broadcast %22 : vector<1x32xf32> to vector<16x32xf32>
      %24 = arith.addf %21, %23 : vector<16x32xf32>
      %25 = arith.addf %24, %3 : vector<16x32xf32>
      %cst_20 = arith.constant dense<0.000000e+00> : vector<16xf32>
      %26 = vector.multi_reduction <add>, %25, %cst_20 [1] : vector<16x32xf32> to vector<16xf32>
      %27 = vector.shape_cast %26 : vector<16xf32> to vector<16x1xf32>
      %cst_21 = arith.constant 3.200000e+01 : f32
      %28 = vector.broadcast %cst_21 : f32 to vector<16x1xf32>
      %29 = arith.divf %27, %28 : vector<16x1xf32>
      %30 = vector.broadcast %29 : vector<16x1xf32> to vector<16x32xf32>
      %31 = arith.subf %25, %30 : vector<16x32xf32>
      %32 = arith.mulf %31, %31 : vector<16x32xf32>
      %cst_22 = arith.constant dense<0.000000e+00> : vector<16xf32>
      %33 = vector.multi_reduction <add>, %32, %cst_22 [1] : vector<16x32xf32> to vector<16xf32>
      %34 = vector.shape_cast %33 : vector<16xf32> to vector<16x1xf32>
      %cst_23 = arith.constant 3.200000e+01 : f32
      %35 = vector.broadcast %cst_23 : f32 to vector<16x1xf32>
      %36 = arith.divf %34, %35 : vector<16x1xf32>
      %37 = vector.broadcast %29 : vector<16x1xf32> to vector<16x32xf32>
      %38 = arith.subf %25, %37 : vector<16x32xf32>
      %cst_24 = arith.constant 9.99999974E-6 : f32
      %39 = vector.broadcast %cst_24 : f32 to vector<16x1xf32>
      %40 = arith.addf %36, %39 : vector<16x1xf32>
      %41 = math.rsqrt %40 : vector<16x1xf32>
      %42 = vector.broadcast %41 : vector<16x1xf32> to vector<16x32xf32>
      %43 = arith.mulf %38, %42 : vector<16x32xf32>
      %c0_25 = arith.constant 0 : index
      %c0_26 = arith.constant 0 : index
      %44 = vector.load %arg7[%c0_25, %c0_26] : memref<1x32xf32, #tpu.memory_space<vmem>>, vector<1x32xf32>
      %45 = vector.broadcast %44 : vector<1x32xf32> to vector<16x32xf32>
      %46 = arith.mulf %43, %45 : vector<16x32xf32>
      %c0_27 = arith.constant 0 : index
      %c0_28 = arith.constant 0 : index
      %47 = vector.load %arg8[%c0_27, %c0_28] : memref<1x32xf32, #tpu.memory_space<vmem>>, vector<1x32xf32>
      %48 = vector.broadcast %47 : vector<1x32xf32> to vector<16x32xf32>
      %49 = arith.addf %46, %48 : vector<16x32xf32>
      %c0_29 = arith.constant 0 : index
      %c0_30 = arith.constant 0 : index
      %50 = vector.load %arg9[%c0_29, %c0_30] : memref<16x32xf32, #tpu.memory_space<vmem>>, vector<16x32xf32>
      tpu.vector_store %arg9[%c0_29, %c0_30], %49 {strides = array<i32>} : memref<16x32xf32, #tpu.memory_space<vmem>>, vector<16x32xf32>,
    } else {
    }
    return
  }
  func.func @transform_0(%arg0: i32, %arg1: i32) -> (i32, i32) {
    %c0_i32 = arith.constant 0 : i32
    %c0_i32_0 = arith.constant 0 : i32
    return %arg0, %c0_i32 : i32, i32
  }
  func.func @transform_1(%arg0: i32, %arg1: i32) -> (i32, i32) {
    %c0_i32 = arith.constant 0 : i32
    %c0_i32_0 = arith.constant 0 : i32
    return %c0_i32, %arg1 : i32, i32
  }
  func.func @transform_2(%arg0: i32, %arg1: i32) -> (i32, i32) {
    %c0_i32 = arith.constant 0 : i32
    %c0_i32_0 = arith.constant 0 : i32
    return %c0_i32, %arg1 : i32, i32
  }
  func.func @transform_3(%arg0: i32, %arg1: i32) -> (i32, i32) {
    %c0_i32 = arith.constant 0 : i32
    %c0_i32_0 = arith.constant 0 : i32
    return %arg1, %c0_i32 : i32, i32
  }
  func.func @transform_4(%arg0: i32, %arg1: i32) -> (i32, i32) {
    %c0_i32 = arith.constant 0 : i32
    %c0_i32_0 = arith.constant 0 : i32
    %c0_i32_1 = arith.constant 0 : i32
    return %c0_i32, %c0_i32_0 : i32, i32
  }
  func.func @transform_5(%arg0: i32, %arg1: i32) -> (i32, i32) {
    %c0_i32 = arith.constant 0 : i32
    %c0_i32_0 = arith.constant 0 : i32
    %c0_i32_1 = arith.constant 0 : i32
    return %c0_i32, %c0_i32_0 : i32, i32
  }
  func.func @transform_6(%arg0: i32, %arg1: i32) -> (i32, i32) {
    %c0_i32 = arith.constant 0 : i32
    %c0_i32_0 = arith.constant 0 : i32
    %c0_i32_1 = arith.constant 0 : i32
    return %c0_i32, %c0_i32_0 : i32, i32
  }
  func.func @transform_7(%arg0: i32, %arg1: i32) -> (i32, i32) {
    %c0_i32 = arith.constant 0 : i32
    %c0_i32_0 = arith.constant 0 : i32
    return %arg0, %c0_i32 : i32, i32
  }
}

module attributes {stable_mosaic.version = 11 : i64} {
  func.func @_ln_kernel(%arg0: i32, %arg1: memref<16x32xf32, #tpu.memory_space<vmem>>, %arg2: memref<1x32xf32, #tpu.memory_space<vmem>>, %arg3: memref<1x32xf32, #tpu.memory_space<vmem>>, %arg4: memref<16x32xf32, #tpu.memory_space<vmem>>) attributes {dimension_semantics = [#tpu.dimension_semantics<parallel>], iteration_bounds = array<i64: 1>, scalar_prefetch = 0 : i64, scratch_operands = 0 : i64, tpu.core_type = #tpu.core_type<tc>, window_params = [{transform_indices = @transform_0, window_bounds = array<i64: 16, 32>}, {pipeline_mode = #tpu.pipeline_mode<synchronous>, transform_indices = @transform_1, window_bounds = array<i64: 1, 32>}, {pipeline_mode = #tpu.pipeline_mode<synchronous>, transform_indices = @transform_2, window_bounds = array<i64: 1, 32>}, {transform_indices = @transform_3, window_bounds = array<i64: 16, 32>}]} {
    %c0 = arith.constant 0 : index
    %c0_0 = arith.constant 0 : index
    %0 = vector.load %arg1[%c0, %c0_0] : memref<16x32xf32, #tpu.memory_space<vmem>>, vector<16x32xf32>
    %cst = arith.constant dense<0.000000e+00> : vector<16xf32>
    %1 = vector.multi_reduction <add>, %0, %cst [1] : vector<16x32xf32> to vector<16xf32>
    %2 = vector.shape_cast %1 : vector<16xf32> to vector<16x1xf32>
    %cst_1 = arith.constant 3.200000e+01 : f32
    %3 = vector.broadcast %cst_1 : f32 to vector<16x1xf32>
    %4 = arith.divf %2, %3 : vector<16x1xf32>
    %5 = vector.broadcast %4 : vector<16x1xf32> to vector<16x32xf32>
    %6 = arith.subf %0, %5 : vector<16x32xf32>
    %7 = arith.mulf %6, %6 : vector<16x32xf32>
    %cst_2 = arith.constant dense<0.000000e+00> : vector<16xf32>
    %8 = vector.multi_reduction <add>, %7, %cst_2 [1] : vector<16x32xf32> to vector<16xf32>
    %9 = vector.shape_cast %8 : vector<16xf32> to vector<16x1xf32>
    %cst_3 = arith.constant 3.200000e+01 : f32
    %10 = vector.broadcast %cst_3 : f32 to vector<16x1xf32>
    %11 = arith.divf %9, %10 : vector<16x1xf32>
    %12 = vector.broadcast %4 : vector<16x1xf32> to vector<16x32xf32>
    %13 = arith.subf %0, %12 : vector<16x32xf32>
    %cst_4 = arith.constant 9.99999974E-6 : f32
    %14 = vector.broadcast %cst_4 : f32 to vector<16x1xf32>
    %15 = arith.addf %11, %14 : vector<16x1xf32>
    %16 = math.rsqrt %15 : vector<16x1xf32>
    %17 = vector.broadcast %16 : vector<16x1xf32> to vector<16x32xf32>
    %18 = arith.mulf %13, %17 : vector<16x32xf32>
    %c0_5 = arith.constant 0 : index
    %c0_6 = arith.constant 0 : index
    %19 = vector.load %arg2[%c0_5, %c0_6] : memref<1x32xf32, #tpu.memory_space<vmem>>, vector<1x32xf32>
    %20 = vector.broadcast %19 : vector<1x32xf32> to vector<16x32xf32>
    %21 = arith.mulf %18, %20 : vector<16x32xf32>
    %c0_7 = arith.constant 0 : index
    %c0_8 = arith.constant 0 : index
    %22 = vector.load %arg3[%c0_7, %c0_8] : memref<1x32xf32, #tpu.memory_space<vmem>>, vector<1x32xf32>
    %23 = vector.broadcast %22 : vector<1x32xf32> to vector<16x32xf32>
    %24 = arith.addf %21, %23 : vector<16x32xf32>
    %c0_9 = arith.constant 0 : index
    %c0_10 = arith.constant 0 : index
    %25 = vector.load %arg4[%c0_9, %c0_10] : memref<16x32xf32, #tpu.memory_space<vmem>>, vector<16x32xf32>
    tpu.vector_store %arg4[%c0_9, %c0_10], %24 {strides = array<i32>} : memref<16x32xf32, #tpu.memory_space<vmem>>, vector<16x32xf32>,
    return
  }
  func.func @transform_0(%arg0: i32) -> (i32, i32) {
    %c0_i32 = arith.constant 0 : i32
    %c0_i32_0 = arith.constant 0 : i32
    return %arg0, %c0_i32 : i32, i32
  }
  func.func @transform_1(%arg0: i32) -> (i32, i32) {
    %c0_i32 = arith.constant 0 : i32
    %c0_i32_0 = arith.constant 0 : i32
    %c0_i32_1 = arith.constant 0 : i32
    return %c0_i32, %c0_i32_0 : i32, i32
  }
  func.func @transform_2(%arg0: i32) -> (i32, i32) {
    %c0_i32 = arith.constant 0 : i32
    %c0_i32_0 = arith.constant 0 : i32
    %c0_i32_1 = arith.constant 0 : i32
    return %c0_i32, %c0_i32_0 : i32, i32
  }
  func.func @transform_3(%arg0: i32) -> (i32, i32) {
    %c0_i32 = arith.constant 0 : i32
    %c0_i32_0 = arith.constant 0 : i32
    return %arg0, %c0_i32 : i32, i32
  }
}

module attributes {stable_mosaic.version = 11 : i64} {
  func.func @_ffn_kernel(%arg0: i32, %arg1: i32, %arg2: memref<16x32xf32, #tpu.memory_space<vmem>>, %arg3: memref<32x64xbf16, #tpu.memory_space<vmem>>, %arg4: memref<1x64xf32, #tpu.memory_space<vmem>>, %arg5: memref<64x32xbf16, #tpu.memory_space<vmem>>, %arg6: memref<1x32xf32, #tpu.memory_space<vmem>>, %arg7: memref<1x32xf32, #tpu.memory_space<vmem>>, %arg8: memref<1x32xf32, #tpu.memory_space<vmem>>, %arg9: memref<16x32xf32, #tpu.memory_space<vmem>>, %arg10: memref<16x32xf32, #tpu.memory_space<vmem>>) attributes {dimension_semantics = [#tpu.dimension_semantics<parallel>, #tpu.dimension_semantics<arbitrary>], iteration_bounds = array<i64: 1, 1>, scalar_prefetch = 0 : i64, scratch_operands = 1 : i64, tpu.core_type = #tpu.core_type<tc>, window_params = [{transform_indices = @transform_0, window_bounds = array<i64: 16, 32>}, {transform_indices = @transform_1, window_bounds = array<i64: 32, 64>}, {transform_indices = @transform_2, window_bounds = array<i64: 1, 64>}, {transform_indices = @transform_3, window_bounds = array<i64: 64, 32>}, {pipeline_mode = #tpu.pipeline_mode<synchronous>, transform_indices = @transform_4, window_bounds = array<i64: 1, 32>}, {pipeline_mode = #tpu.pipeline_mode<synchronous>, transform_indices = @transform_5, window_bounds = array<i64: 1, 32>}, {pipeline_mode = #tpu.pipeline_mode<synchronous>, transform_indices = @transform_6, window_bounds = array<i64: 1, 32>}, {transform_indices = @transform_7, window_bounds = array<i64: 16, 32>}]} {
    %c0_i32 = arith.constant 0 : i32
    %0 = arith.cmpi eq, %arg1, %c0_i32 : i32
    %1 = arith.extui %0 : i1 to i32
    %c0_i32_0 = arith.constant 0 : i32
    %2 = arith.cmpi ne, %1, %c0_i32_0 : i32
    scf.if %2 {
      %cst_16 = arith.constant 0.000000e+00 : f32
      %21 = vector.broadcast %cst_16 : f32 to vector<16x32xf32>
      %c0_17 = arith.constant 0 : index
      %c0_18 = arith.constant 0 : index
      %22 = vector.load %arg10[%c0_17, %c0_18] : memref<16x32xf32, #tpu.memory_space<vmem>>, vector<16x32xf32>
      tpu.vector_store %arg10[%c0_17, %c0_18], %21 {strides = array<i32>} : memref<16x32xf32, #tpu.memory_space<vmem>>, vector<16x32xf32>,
    } else {
    }
    %c0 = arith.constant 0 : index
    %c0_1 = arith.constant 0 : index
    %3 = vector.load %arg2[%c0, %c0_1] : memref<16x32xf32, #tpu.memory_space<vmem>>, vector<16x32xf32>
    %4 = arith.truncf %3 : vector<16x32xf32> to vector<16x32xbf16>
    %c0_2 = arith.constant 0 : index
    %c0_3 = arith.constant 0 : index
    %5 = vector.load %arg3[%c0_2, %c0_3] : memref<32x64xbf16, #tpu.memory_space<vmem>>, vector<32x64xbf16>
    %cst = arith.constant dense<0.000000e+00> : vector<16x64xf32>
    %6 = tpu.matmul %4, %5, %cst {dimension_numbers = #tpu.dot_dimension_numbers<[1], [0], [0], [1], [0, 0, 1, 1], [], []>} : vector<16x32xbf16>, vector<32x64xbf16>, vector<16x64xf32> -> vector<16x64xf32>
    %c0_4 = arith.constant 0 : index
    %c0_5 = arith.constant 0 : index
    %7 = vector.load %arg4[%c0_4, %c0_5] : memref<1x64xf32, #tpu.memory_space<vmem>>, vector<1x64xf32>
    %8 = vector.broadcast %7 : vector<1x64xf32> to vector<16x64xf32>
    %9 = arith.addf %6, %8 : vector<16x64xf32>
    %cst_6 = arith.constant 0.000000e+00 : f32
    %10 = vector.broadcast %cst_6 : f32 to vector<16x64xf32>
    %11 = arith.maximumf %9, %10 : vector<16x64xf32>
    %c0_7 = arith.constant 0 : index
    %c0_8 = arith.constant 0 : index
    %12 = vector.load %arg10[%c0_7, %c0_8] : memref<16x32xf32, #tpu.memory_space<vmem>>, vector<16x32xf32>
    %13 = arith.truncf %11 : vector<16x64xf32> to vector<16x64xbf16>
    %c0_9 = arith.constant 0 : index
    %c0_10 = arith.constant 0 : index
    %14 = vector.load %arg5[%c0_9, %c0_10] : memref<64x32xbf16, #tpu.memory_space<vmem>>, vector<64x32xbf16>
    %cst_11 = arith.constant dense<0.000000e+00> : vector<16x32xf32>
    %15 = tpu.matmul %13, %14, %cst_11 {dimension_numbers = #tpu.dot_dimension_numbers<[1], [0], [0], [1], [0, 0, 1, 1], [], []>} : vector<16x64xbf16>, vector<64x32xbf16>, vector<16x32xf32> -> vector<16x32xf32>
    %16 = arith.addf %12, %15 : vector<16x32xf32>
    %c0_12 = arith.constant 0 : index
    %c0_13 = arith.constant 0 : index
    %17 = vector.load %arg10[%c0_12, %c0_13] : memref<16x32xf32, #tpu.memory_space<vmem>>, vector<16x32xf32>
    tpu.vector_store %arg10[%c0_12, %c0_13], %16 {strides = array<i32>} : memref<16x32xf32, #tpu.memory_space<vmem>>, vector<16x32xf32>,
    %c0_i32_14 = arith.constant 0 : i32
    %18 = arith.cmpi eq, %arg1, %c0_i32_14 : i32
    %19 = arith.extui %18 : i1 to i32
    %c0_i32_15 = arith.constant 0 : i32
    %20 = arith.cmpi ne, %19, %c0_i32_15 : i32
    scf.if %20 {
      %c0_16 = arith.constant 0 : index
      %c0_17 = arith.constant 0 : index
      %21 = vector.load %arg10[%c0_16, %c0_17] : memref<16x32xf32, #tpu.memory_space<vmem>>, vector<16x32xf32>
      %c0_18 = arith.constant 0 : index
      %c0_19 = arith.constant 0 : index
      %22 = vector.load %arg6[%c0_18, %c0_19] : memref<1x32xf32, #tpu.memory_space<vmem>>, vector<1x32xf32>
      %23 = vector.broadcast %22 : vector<1x32xf32> to vector<16x32xf32>
      %24 = arith.addf %21, %23 : vector<16x32xf32>
      %25 = arith.addf %24, %3 : vector<16x32xf32>
      %cst_20 = arith.constant dense<0.000000e+00> : vector<16xf32>
      %26 = vector.multi_reduction <add>, %25, %cst_20 [1] : vector<16x32xf32> to vector<16xf32>
      %27 = vector.shape_cast %26 : vector<16xf32> to vector<16x1xf32>
      %cst_21 = arith.constant 3.200000e+01 : f32
      %28 = vector.broadcast %cst_21 : f32 to vector<16x1xf32>
      %29 = arith.divf %27, %28 : vector<16x1xf32>
      %30 = vector.broadcast %29 : vector<16x1xf32> to vector<16x32xf32>
      %31 = arith.subf %25, %30 : vector<16x32xf32>
      %32 = arith.mulf %31, %31 : vector<16x32xf32>
      %cst_22 = arith.constant dense<0.000000e+00> : vector<16xf32>
      %33 = vector.multi_reduction <add>, %32, %cst_22 [1] : vector<16x32xf32> to vector<16xf32>
      %34 = vector.shape_cast %33 : vector<16xf32> to vector<16x1xf32>
      %cst_23 = arith.constant 3.200000e+01 : f32
      %35 = vector.broadcast %cst_23 : f32 to vector<16x1xf32>
      %36 = arith.divf %34, %35 : vector<16x1xf32>
      %37 = vector.broadcast %29 : vector<16x1xf32> to vector<16x32xf32>
      %38 = arith.subf %25, %37 : vector<16x32xf32>
      %cst_24 = arith.constant 9.99999974E-6 : f32
      %39 = vector.broadcast %cst_24 : f32 to vector<16x1xf32>
      %40 = arith.addf %36, %39 : vector<16x1xf32>
      %41 = math.rsqrt %40 : vector<16x1xf32>
      %42 = vector.broadcast %41 : vector<16x1xf32> to vector<16x32xf32>
      %43 = arith.mulf %38, %42 : vector<16x32xf32>
      %c0_25 = arith.constant 0 : index
      %c0_26 = arith.constant 0 : index
      %44 = vector.load %arg7[%c0_25, %c0_26] : memref<1x32xf32, #tpu.memory_space<vmem>>, vector<1x32xf32>
      %45 = vector.broadcast %44 : vector<1x32xf32> to vector<16x32xf32>
      %46 = arith.mulf %43, %45 : vector<16x32xf32>
      %c0_27 = arith.constant 0 : index
      %c0_28 = arith.constant 0 : index
      %47 = vector.load %arg8[%c0_27, %c0_28] : memref<1x32xf32, #tpu.memory_space<vmem>>, vector<1x32xf32>
      %48 = vector.broadcast %47 : vector<1x32xf32> to vector<16x32xf32>
      %49 = arith.addf %46, %48 : vector<16x32xf32>
      %c0_29 = arith.constant 0 : index
      %c0_30 = arith.constant 0 : index
      %50 = vector.load %arg9[%c0_29, %c0_30] : memref<16x32xf32, #tpu.memory_space<vmem>>, vector<16x32xf32>
      tpu.vector_store %arg9[%c0_29, %c0_30], %49 {strides = array<i32>} : memref<16x32xf32, #tpu.memory_space<vmem>>, vector<16x32xf32>,
    } else {
    }
    return
  }
  func.func @transform_0(%arg0: i32, %arg1: i32) -> (i32, i32) {
    %c0_i32 = arith.constant 0 : i32
    %c0_i32_0 = arith.constant 0 : i32
    return %arg0, %c0_i32 : i32, i32
  }
  func.func @transform_1(%arg0: i32, %arg1: i32) -> (i32, i32) {
    %c0_i32 = arith.constant 0 : i32
    %c0_i32_0 = arith.constant 0 : i32
    return %c0_i32, %arg1 : i32, i32
  }
  func.func @transform_2(%arg0: i32, %arg1: i32) -> (i32, i32) {
    %c0_i32 = arith.constant 0 : i32
    %c0_i32_0 = arith.constant 0 : i32
    return %c0_i32, %arg1 : i32, i32
  }
  func.func @transform_3(%arg0: i32, %arg1: i32) -> (i32, i32) {
    %c0_i32 = arith.constant 0 : i32
    %c0_i32_0 = arith.constant 0 : i32
    return %arg1, %c0_i32 : i32, i32
  }
  func.func @transform_4(%arg0: i32, %arg1: i32) -> (i32, i32) {
    %c0_i32 = arith.constant 0 : i32
    %c0_i32_0 = arith.constant 0 : i32
    %c0_i32_1 = arith.constant 0 : i32
    return %c0_i32, %c0_i32_0 : i32, i32
  }
  func.func @transform_5(%arg0: i32, %arg1: i32) -> (i32, i32) {
    %c0_i32 = arith.constant 0 : i32
    %c0_i32_0 = arith.constant 0 : i32
    %c0_i32_1 = arith.constant 0 : i32
    return %c0_i32, %c0_i32_0 : i32, i32
  }
  func.func @transform_6(%arg0: i32, %arg1: i32) -> (i32, i32) {
    %c0_i32 = arith.constant 0 : i32
    %c0_i32_0 = arith.constant 0 : i32
    %c0_i32_1 = arith.constant 0 : i32
    return %c0_i32, %c0_i32_0 : i32, i32
  }
  func.func @transform_7(%arg0: i32, %arg1: i32) -> (i32, i32) {
    %c0_i32 = arith.constant 0 : i32
    %c0_i32_0 = arith.constant 0 : i32
    return %arg0, %c0_i32 : i32, i32
  }
}

</mosaic_0001>

<llo_original>
// kernel: transformer_decoder_forward.15
$region0: #{transformer_decoder_forward.15}
  #allocation0 [shape = 'u32[]', space=smem, size = 0x4, offset = 0x4, fixed_abs, tag = 'smem constant byte address 0x4 - core index']
  #allocation1 [shape = 'u32[72,128]{1,0:T(1,128)}', space=vmem, size = 0x9000, scoped, tag = 'internal scratch']
  #allocation2 [shape = 'f32[16,32]{1,0:T(8,128)}', space=vmem, size = 0x2000, scoped, tag = 'scratch operand']
  %s0 = inlined_call_operand.vmem [shape: f32[16,32], index: 0, kind: input, shape index: {}]
  %s1 = inlined_call_operand.hbm [shape: bf16[1,32,32], index: 1, kind: input, shape index: {}]
  %s2 = inlined_call_operand.hbm [shape: f32[1,1,32], index: 2, kind: input, shape index: {}]
  %s3 = inlined_call_operand.vmem [shape: bf16[1,16,32], index: 3, kind: output, shape index: {}]
  %s4 = sld [smem:[#allocation0]]
  $region38: #{transformer_decoder_forward.15} parent=0
    _
  %s6 = ssub.s32 1, %s4
  %s7 = scalar_select 0, %s6, %s4
  $region1: #{transformer_decoder_forward.15} parent=0
    #allocation3 [shape = 'u8[8192]{0}', space=vmem, size = 0x2000, scoped, tag = 'input window, operand 1, single buffered']
    #allocation4 [shape = 's32[1]{0}', space=sflag, size = 0x4, scoped, tag = 'scoped memory for transformer_decoder_forward.15']
    #allocation5 [shape = 'u8[512]{0}', space=vmem, size = 0x400, scoped, tag = 'input window, operand 2, single buffered']
    #allocation6 [shape = 's32[1]{0}', space=sflag, size = 0x4, scoped, tag = 'scoped memory for transformer_decoder_forward.15']
    %8 = vsyncpa [#allocation4], 0
    %9 = vsyncpa [#allocation6], 0
    // Predicated region
    $region2: #{transformer_decoder_forward.15} parent=1 // pred_check
      _
    $region3: #{transformer_decoder_forward.15} parent=1 // pred_check_branch
      %11 = sbr.rel (0) target = $region5
    $region4: #{transformer_decoder_forward.15} parent=1 // pred_region
      _
    $region5: #{transformer_decoder_forward.15} parent=1 // pred_fallthru
      _
    // Predicated region
    $region6: #{transformer_decoder_forward.15} parent=1 // pred_check
      _
    $region7: #{transformer_decoder_forward.15} parent=1 // pred_check_branch
      %13 = sbr.rel (0) target = $region9
    $region8: #{transformer_decoder_forward.15} parent=1 // pred_region
      %15 = vsyncadd [#allocation4], 0
      %s16 = sshll.u32 %s1, 4
      %s17 = int_to_ptr.hbm [resolvable:$true] %s16
      %s18 = sshll.u32 [#allocation3], 4
      %s19 = int_to_ptr.vmem [resolvable:$true] %s18
      %24 = dma.hbm_to_vmem [thread:$0]  %s17, 256, %s19, [#allocation4], 64, 64, 4
    $region9: #{transformer_decoder_forward.15} parent=1 // pred_fallthru
      _
    // Predicated region
    $region10: #{transformer_decoder_forward.15} parent=1 // pred_check
      _
    $region11: #{transformer_decoder_forward.15} parent=1 // pred_check_branch
      %26 = sbr.rel (0) target = $region13
    $region12: #{transformer_decoder_forward.15} parent=1 // pred_region
      %28 = vsyncadd [#allocation6], 0
      %s30 = sshll.u32 %s2, 4
      %s31 = int_to_ptr.hbm [resolvable:$true] %s30
      %s32 = sshll.u32 [#allocation5], 4
      %s33 = int_to_ptr.vmem [resolvable:$true] %s32
      %35 = dma.hbm_to_vmem [thread:$0]  %s31, 16, %s33, [#allocation6]
    $region13: #{transformer_decoder_forward.15} parent=1 // pred_fallthru
      _
    // Predicated region
    $region14: #{transformer_decoder_forward.15} parent=1 // pred_check
      _
    $region15: #{transformer_decoder_forward.15} parent=1 // pred_check_branch
      %37 = sbr.rel (0) target = $region17
    $region16: #{transformer_decoder_forward.15} parent=1 // pred_region
      %39 = dma.done [#allocation4], 256
    $region17: #{transformer_decoder_forward.15} parent=1 // pred_fallthru
      _
    // Predicated region
    $region18: #{transformer_decoder_forward.15} parent=1 // pred_check
      _
    $region19: #{transformer_decoder_forward.15} parent=1 // pred_check_branch
      %41 = sbr.rel (0) target = $region21
    $region20: #{transformer_decoder_forward.15} parent=1 // pred_region
      %43 = dma.done [#allocation6], 16
    $region21: #{transformer_decoder_forward.15} parent=1 // pred_fallthru
      _
    %p45 = scmp.eq.s32.totalorder 0, 0
    // Predicated region
    $region22: #{transformer_decoder_forward.15} parent=1 // pred_check
      %p46 = pneg %p45
    $region23: #{transformer_decoder_forward.15} parent=1 // pred_check_branch
      %48 = sbr.rel (%p46) target = $region25
    $region24: #{transformer_decoder_forward.15} parent=1 // pred_region
      %vm49 = vcmask 261120
      %50 = vst.msk [vmem:[#allocation2] sm:$0xff] %vm49, 0.0
      %51 = vst.msk [vmem:[#allocation2 + $0x8] sm:$0xff] %vm49, 0.0
    $region25: #{transformer_decoder_forward.15} parent=1 // pred_fallthru
      _
    %v52 = vld [vmem:[#allocation2] sm:$0xff]
    %v53 = vld [vmem:[#allocation2 + $0x8] sm:$0xff]
    %v54 = vld [vmem:[%s0] sm:$0xff]
    %v55 = vld [vmem:[%s0 + $0x8] sm:$0xff]
    %v56 = vpack.c.bf16 %v55, %v54
    %v57 = vld [vmem:[#allocation3] sm:$0xf]
    %v58 = vld [vmem:[#allocation3 + $0x4] sm:$0xf]
    %v59 = vld [vmem:[#allocation3 + $0x8] sm:$0xf]
    %v60 = vld [vmem:[#allocation3 + $0xc] sm:$0xf]
    %v65 = vunpack.c.l.b16 %v57
    %v66 = vunpack.c.l.b16 %v58
    %v67 = vunpack.c.l.b16 %v59
    %v68 = vunpack.c.l.b16 %v60
    %v69 = vpack.c.b16 %v66, %v65
    %v70 = vpack.c.b16 %v68, %v67
    %vm73 = vcmask 261120
    %v75 = vsel %vm73, %v56, 0
    %77 = vmatpush.bf16.msra.mxu0 0
    %78 = vmatpush.bf16.msra.mxu0 0
    %79 = vmatpush.bf16.msra.mxu0 0
    %80 = vmatpush.bf16.msra.mxu0 0
    %81 = vmatpush.bf16.msra.mxu0 0
    %82 = vmatpush.bf16.msra.mxu0 0
    %83 = vmatpush.bf16.msra.mxu0 %v70
    %84 = vmatpush.bf16.msra.mxu0 %v69
    %85 = vmatmul.bf16.gmra.mxu0 %v75
    %v86 = vpop.f32.mrf.mxu0
    %v87 = vadd.f32 0.0, %v86
    %v88 = vpop.f32.mrf.mxu0
    %v89 = vadd.f32 0.0, %v88
    %90 = vdwg.mxu0
    %v91 = vadd.f32 %v52, %v87
    %v92 = vadd.f32 %v53, %v89
    %93 = vst.msk [vmem:[#allocation2] sm:$0xff] %vm73, %v91
    %94 = vst.msk [vmem:[#allocation2 + $0x8] sm:$0xff] %vm73, %v92
    // Predicated region
    $region26: #{transformer_decoder_forward.15} parent=1 // pred_check
      %p95 = pneg %p45
    $region27: #{transformer_decoder_forward.15} parent=1 // pred_check_branch
      %97 = sbr.rel (%p95) target = $region29
    $region28: #{transformer_decoder_forward.15} parent=1 // pred_region
      %v98 = vld [vmem:[#allocation2] sm:$0xff]
      %v99 = vld [vmem:[#allocation2 + $0x8] sm:$0xff]
      %v100 = vld [vmem:[#allocation5] sm:$0x1]
      %v102 = vperm.slane %v100, 0
      %v104 = vadd.f32 %v98, %v102
      %v105 = vadd.f32 %v99, %v102
      %v106 = vpack.c.bf16 %v104, %v104
      %v107 = vpack.c.bf16 %v105, %v105
      %vm108 = vcmask 257024
      %109 = vst.msk [vmem:[%s3] sm:$0xf] %vm108, %v106
      %110 = vst.msk [vmem:[%s3 + $0x4] sm:$0xf] %vm108, %v107
    $region29: #{transformer_decoder_forward.15} parent=1 // pred_fallthru
      _
    // Predicated region
    $region30: #{transformer_decoder_forward.15} parent=1 // pred_check
      _
    $region31: #{transformer_decoder_forward.15} parent=1 // pred_check_branch
      %112 = sbr.rel (0) target = $region33
    $region32: #{transformer_decoder_forward.15} parent=1 // pred_region
      _
    $region33: #{transformer_decoder_forward.15} parent=1 // pred_fallthru
      _
    // Predicated region
    $region34: #{transformer_decoder_forward.15} parent=1 // pred_check
      _
    $region35: #{transformer_decoder_forward.15} parent=1 // pred_check_branch
      %114 = sbr.rel (0) target = $region37
    $region36: #{transformer_decoder_forward.15} parent=1 // pred_region
      _
    $region37: #{transformer_decoder_forward.15} parent=1 // pred_fallthru
      _
    %115 = vsyncpa [#allocation4], 1
    %116 = vsyncpa [#allocation6], 1

// kernel: transformer_decoder_forward.13
$region0: #{transformer_decoder_forward.13}
  #allocation0 [shape = 'u32[]', space=smem, size = 0x4, offset = 0x4, fixed_abs, tag = 'smem constant byte address 0x4 - core index']
  #allocation1 [shape = 'u32[72,128]{1,0:T(1,128)}', space=vmem, size = 0x9000, scoped, tag = 'internal scratch']
  #allocation2 [shape = 'f32[16,32]{1,0:T(8,128)}', space=vmem, size = 0x2000, scoped, tag = 'scratch operand']
  %s0 = inlined_call_operand.vmem [shape: f32[16,32], index: 0, kind: input, shape index: {}]
  %s1 = inlined_call_operand.vmem [shape: bf16[3,32,32], index: 1, kind: input, shape index: {}]
  %s2 = inlined_call_operand.vmem [shape: f32[3,1,32], index: 2, kind: input, shape index: {}]
  %s3 = inlined_call_operand.vmem [shape: bf16[3,16,32], index: 3, kind: output, shape index: {}]
  %s4 = sld [smem:[#allocation0]]
  $region53: #{transformer_decoder_forward.13} parent=0
    _
  %s6 = ssub.s32 1, %s4
  %s7 = scalar_select 0, %s6, %s4
  loop: start=0, step=1, limit=5
  $region2: #{transformer_decoder_forward.13} parent=0 // loop_pre_header
    _
  $region3: #{transformer_decoder_forward.13} parent=0 // loop_header
    %s9 = sphi 0, %s13
    %p10 = scmp.ge.s32.totalorder %s9, 5
    %s16 = sphi 0, %s42
    %s17 = sphi 0, %s38
    %s18 = sphi 0, %s34
    %s19 = sphi 0, %s30
    %s20 = sphi 0, %s16
    %s21 = sphi 0, %s17
    %s22 = sphi 0, %s18
    %s23 = sphi 0, %s19
    %s24 = sphi 0, %s20
    %s25 = sphi 0, %s21
    %s26 = sphi 0, %s22
    %s27 = sphi 0, %s23
    %s47 = sphi 0, %s49
    %s50 = sphi 0, %s47
    %s51 = sphi 0, %s50
    %s67 = sphi 0, %s51
    %s77 = sphi 0, %s79
    %s80 = sphi 0, %s77
    %s81 = sphi 0, %s80
    %s97 = sphi 0, %s81
    %s105 = sphi 0, %s107
    %s108 = sphi 0, %s105
    %s109 = sphi 0, %s108
    %s125 = sphi 0, %s109
    %s135 = sphi 0, %s137
    %s138 = sphi 0, %s135
    %s139 = sphi 0, %s138
    %s155 = sphi 0, %s139
  $region4: #{transformer_decoder_forward.13} parent=0 // loop_header_branch
    %12 = sbr.rel (%p10) target = $region8
  $region5: #{transformer_decoder_forward.13} parent=0 // loop_body
    %s14 = ssub.s32 %s9, 1
    %s15 = ssub.s32 %s9, 2
    %s28 = sadd.s32 1, %s19
    %p29 = scmp.ge.s32.totalorder %s28, 1
    %s30 = scalar_select %p29, 0, %s28
    %s31 = sadd.s32 1, %s18
    %s32 = scalar_select %p29, %s31, %s18
    %p33 = scmp.ge.s32.totalorder %s32, 1
    %s34 = scalar_select %p33, 0, %s32
    %s35 = sadd.s32 1, %s17
    %s36 = scalar_select %p33, %s35, %s17
    %p37 = scmp.ge.s32.totalorder %s36, 1
    %s38 = scalar_select %p37, 0, %s36
    %s39 = sadd.s32 1, %s16
    %s40 = scalar_select %p37, %s39, %s16
    %p41 = scmp.ge.s32.totalorder %s40, 3
    %s42 = scalar_select %p41, 0, %s40
    %s43 = ssub.s32 %s17, %s38
    %s44 = ssub.s32 %s19, %s30
    %s45 = sor.u32 %s43, %s44
    %p46 = scmp.eq.s32.totalorder %s45, 0
    %s48 = sadd.s32 %s47, 1
    %s49 = scalar_select %p46, %s47, %s48
    %p52 = pneg %p46
    %p53 = scmp.eq.s32.totalorder %s9, 2
    %p54 = por %p52, %p53
    %p55 = scmp.ne.s32.totalorder %s47, %s50
    %p56 = scmp.eq.s32.totalorder %s9, 0
    %p57 = por %p55, %p56
    %p58 = scmp.ne.s32.totalorder %s47, %s50
    %p59 = scmp.eq.s32.totalorder %s14, 2
    %p60 = por %p58, %p59
    %p61 = scmp.ne.s32.totalorder %s50, %s51
    %p62 = scmp.eq.s32.totalorder %s14, 0
    %p63 = por %p61, %p62
    %p64 = scmp.ne.s32.totalorder %s50, %s51
    %p65 = scmp.eq.s32.totalorder %s15, 2
    %p66 = por %p64, %p65
    %p68 = scmp.ne.s32.totalorder %s51, %s67
    %p69 = scmp.eq.s32.totalorder %s15, 0
    %p70 = por %p68, %p69
    %s71 = ssub.s32 %s16, %s42
    %s72 = ssub.s32 %s19, %s30
    %s73 = sor.u32 %s71, %s72
    %s74 = ssub.s32 %s18, %s34
    %s75 = sor.u32 %s73, %s74
    %p76 = scmp.eq.s32.totalorder %s75, 0
    %s78 = sadd.s32 %s77, 1
    %s79 = scalar_select %p76, %s77, %s78
    %p82 = pneg %p76
    %p83 = scmp.eq.s32.totalorder %s9, 2
    %p84 = por %p82, %p83
    %p85 = scmp.ne.s32.totalorder %s77, %s80
    %p86 = scmp.eq.s32.totalorder %s9, 0
    %p87 = por %p85, %p86
    %p88 = scmp.ne.s32.totalorder %s77, %s80
    %p89 = scmp.eq.s32.totalorder %s14, 2
    %p90 = por %p88, %p89
    %p91 = scmp.ne.s32.totalorder %s80, %s81
    %p92 = scmp.eq.s32.totalorder %s14, 0
    %p93 = por %p91, %p92
    %p94 = scmp.ne.s32.totalorder %s80, %s81
    %p95 = scmp.eq.s32.totalorder %s15, 2
    %p96 = por %p94, %p95
    %p98 = scmp.ne.s32.totalorder %s81, %s97
    %p99 = scmp.eq.s32.totalorder %s15, 0
    %p100 = por %p98, %p99
    %s101 = ssub.s32 %s16, %s42
    %s102 = ssub.s32 %s18, %s34
    %s103 = sor.u32 %s101, %s102
    %p104 = scmp.eq.s32.totalorder %s103, 0
    %s106 = sadd.s32 %s105, 1
    %s107 = scalar_select %p104, %s105, %s106
    %p110 = pneg %p104
    %p111 = scmp.eq.s32.totalorder %s9, 2
    %p112 = por %p110, %p111
    %p113 = scmp.ne.s32.totalorder %s105, %s108
    %p114 = scmp.eq.s32.totalorder %s9, 0
    %p115 = por %p113, %p114
    %p116 = scmp.ne.s32.totalorder %s105, %s108
    %p117 = scmp.eq.s32.totalorder %s14, 2
    %p118 = por %p116, %p117
    %p119 = scmp.ne.s32.totalorder %s108, %s109
    %p120 = scmp.eq.s32.totalorder %s14, 0
    %p121 = por %p119, %p120
    %p122 = scmp.ne.s32.totalorder %s108, %s109
    %p123 = scmp.eq.s32.totalorder %s15, 2
    %p124 = por %p122, %p123
    %p126 = scmp.ne.s32.totalorder %s109, %s125
    %p127 = scmp.eq.s32.totalorder %s15, 0
    %p128 = por %p126, %p127
    %s129 = ssub.s32 %s16, %s42
    %s130 = ssub.s32 %s17, %s38
    %s131 = sor.u32 %s129, %s130
    %s132 = ssub.s32 %s18, %s34
    %s133 = sor.u32 %s131, %s132
    %p134 = scmp.eq.s32.totalorder %s133, 0
    %s136 = sadd.s32 %s135, 1
    %s137 = scalar_select %p134, %s135, %s136
    %p140 = pneg %p134
    %p141 = scmp.eq.s32.totalorder %s9, 2
    %p142 = por %p140, %p141
    %p143 = scmp.ne.s32.totalorder %s135, %s138
    %p144 = scmp.eq.s32.totalorder %s9, 0
    %p145 = por %p143, %p144
    %p146 = scmp.ne.s32.totalorder %s135, %s138
    %p147 = scmp.eq.s32.totalorder %s14, 2
    %p148 = por %p146, %p147
    %p149 = scmp.ne.s32.totalorder %s138, %s139
    %p150 = scmp.eq.s32.totalorder %s14, 0
    %p151 = por %p149, %p150
    %p152 = scmp.ne.s32.totalorder %s138, %s139
    %p153 = scmp.eq.s32.totalorder %s15, 2
    %p154 = por %p152, %p153
    %p156 = scmp.ne.s32.totalorder %s139, %s155
    %p157 = scmp.eq.s32.totalorder %s15, 0
    %p158 = por %p156, %p157
    %p159 = scmp.le.s32.totalorder 1, %s9
    %p160 = scmp.lt.s32.totalorder %s9, 4
    %p161 = pnand %p159, %p160
    %p162 = pneg %p161
    // Predicated region
    $region9: #{transformer_decoder_forward.13} parent=5 // pred_check
      _
    $region10: #{transformer_decoder_forward.13} parent=5 // pred_check_branch
      %164 = sbr.rel (%p161) target = $region12
    $region11: #{transformer_decoder_forward.13} parent=5 // pred_region
      %s165 = ssub.s32 %s9, 1
      // Predicated region
      $region13: #{transformer_decoder_forward.13} parent=11 // pred_check
        %p166 = pneg %p63
      $region14: #{transformer_decoder_forward.13} parent=11 // pred_check_branch
        %168 = sbr.rel (%p166) target = $region16
      $region15: #{transformer_decoder_forward.13} parent=11 // pred_region
        %s169 = smul.u32 2, %s21
        %p170 = scmp.lt.s32.totalorder %s169, 1
        %s171 = scalar_select %p170, %s169, 1
        %p172 = scmp.lt.s32.totalorder %s23, 0
        %s173 = scalar_select %p172, %s23, 0
        %s174 = sadd.s32 %s173, %s171
        %s175 = smul.addr %s174, 8
        %s176 = scalar_lea.vmem %s0, %s175
        %s177 = smul.u32 2, %s21
      $region16: #{transformer_decoder_forward.13} parent=11 // pred_fallthru
        _
    $region12: #{transformer_decoder_forward.13} parent=5 // pred_fallthru
      _
    %p178 = scmp.lt.s32.totalorder %s9, 3
    // Predicated region
    $region17: #{transformer_decoder_forward.13} parent=5 // pred_check
      %p179 = pneg %p178
    $region18: #{transformer_decoder_forward.13} parent=5 // pred_check_branch
      %181 = sbr.rel (%p179) target = $region20
    $region19: #{transformer_decoder_forward.13} parent=5 // pred_region
      // Predicated region
      $region21: #{transformer_decoder_forward.13} parent=19 // pred_check
        %p182 = pneg %p87
      $region22: #{transformer_decoder_forward.13} parent=19 // pred_check_branch
        %184 = sbr.rel (%p182) target = $region24
      $region23: #{transformer_decoder_forward.13} parent=19 // pred_region
        %s185 = smul.u32 4, %s19
        %p186 = scmp.lt.s32.totalorder %s16, 2
        %s187 = scalar_select %p186, %s16, 2
        %p188 = scmp.lt.s32.totalorder %s185, 3
        %s189 = scalar_select %p188, %s185, 3
        %p190 = scmp.lt.s32.totalorder %s18, 0
        %s191 = scalar_select %p190, %s18, 0
        %s192 = sadd.s32 %s191, %s189
        %s193 = smul.addr %s187, 4
        %s194 = sadd.s32 %s192, %s193
        %s195 = smul.addr %s194, 4
        %s196 = scalar_lea.vmem %s1, %s195
        %s197 = smul.u32 4, %s19
      $region24: #{transformer_decoder_forward.13} parent=19 // pred_fallthru
        _
      // Predicated region
      $region25: #{transformer_decoder_forward.13} parent=19 // pred_check
        %p198 = pneg %p115
      $region26: #{transformer_decoder_forward.13} parent=19 // pred_check_branch
        %200 = sbr.rel (%p198) target = $region28
      $region27: #{transformer_decoder_forward.13} parent=19 // pred_region
        %p201 = scmp.lt.s32.totalorder %s16, 2
        %s202 = scalar_select %p201, %s16, 2
        %p203 = scmp.lt.s32.totalorder %s18, 0
        %s204 = scalar_select %p203, %s18, 0
        %s205 = sadd.s32 %s204, %s202
        %s206 = scalar_lea.vmem %s2, %s205
      $region28: #{transformer_decoder_forward.13} parent=19 // pred_fallthru
        _
    $region20: #{transformer_decoder_forward.13} parent=5 // pred_fallthru
      _
    %p207 = scmp.le.s32.totalorder 1, %s9
    %p208 = scmp.lt.s32.totalorder %s9, 4
    %p209 = pnand %p207, %p208
    %p210 = pneg %p209
    // Predicated region
    $region29: #{transformer_decoder_forward.13} parent=5 // pred_check
      _
    $region30: #{transformer_decoder_forward.13} parent=5 // pred_check_branch
      %212 = sbr.rel (%p209) target = $region32
    $region31: #{transformer_decoder_forward.13} parent=5 // pred_region
      %s213 = ssub.s32 %s9, 1
      %s214 = smul.u32 2, %s21
      %p215 = scmp.lt.s32.totalorder %s214, 1
      %s216 = scalar_select %p215, %s214, 1
      %p217 = scmp.lt.s32.totalorder %s23, 0
      %s218 = scalar_select %p217, %s23, 0
      %s219 = sadd.s32 %s218, %s216
      %s220 = smul.addr %s219, 8
      %s221 = scalar_lea.vmem %s0, %s220
      %p222 = pneg %p63
      %p223 = pneg %p60
      %s224 = smul.u32 4, %s23
      %p225 = scmp.lt.s32.totalorder %s20, 2
      %s226 = scalar_select %p225, %s20, 2
      %p227 = scmp.lt.s32.totalorder %s224, 3
      %s228 = scalar_select %p227, %s224, 3
      %p229 = scmp.lt.s32.totalorder %s22, 0
      %s230 = scalar_select %p229, %s22, 0
      %s231 = sadd.s32 %s230, %s228
      %s232 = smul.addr %s226, 4
      %s233 = sadd.s32 %s231, %s232
      %s234 = smul.addr %s233, 4
      %s235 = scalar_lea.vmem %s1, %s234
      %p236 = pneg %p93
      %p237 = pneg %p90
      %p238 = scmp.lt.s32.totalorder %s20, 2
      %s239 = scalar_select %p238, %s20, 2
      %p240 = scmp.lt.s32.totalorder %s22, 0
      %s241 = scalar_select %p240, %s22, 0
      %s242 = sadd.s32 %s241, %s239
      %s243 = scalar_lea.vmem %s2, %s242
      %p244 = pneg %p121
      %p245 = pneg %p118
      %p246 = pneg %p151
      %p247 = pneg %p148
      %s248 = smul.u32 2, %s21
      %p249 = scmp.lt.s32.totalorder %s20, 2
      %s250 = scalar_select %p249, %s20, 2
      %p251 = scmp.lt.s32.totalorder %s248, 1
      %s252 = scalar_select %p251, %s248, 1
      %p253 = scmp.lt.s32.totalorder %s22, 0
      %s254 = scalar_select %p253, %s22, 0
      %s255 = sadd.s32 %s254, %s252
      %s256 = smul.addr %s250, 2
      %s257 = sadd.s32 %s255, %s256
      %s258 = smul.addr %s257, 4
      %s259 = scalar_lea.vmem %s3, %s258
      %s260 = smul.u32 2, %s21
      %p261 = scmp.lt.s32.totalorder %s260, 1
      %s262 = scalar_select %p261, %s260, 1
      %p263 = scmp.lt.s32.totalorder %s23, 0
      %s264 = scalar_select %p263, %s23, 0
      %s265 = sadd.s32 %s264, %s262
      %s266 = smul.addr %s265, 8
      %s267 = scalar_lea.vmem %s0, %s266
      %s268 = smul.u32 2, %s21
      %s269 = smul.u32 4, %s23
      %p270 = scmp.lt.s32.totalorder %s20, 2
      %s271 = scalar_select %p270, %s20, 2
      %p272 = scmp.lt.s32.totalorder %s269, 3
      %s273 = scalar_select %p272, %s269, 3
      %p274 = scmp.lt.s32.totalorder %s22, 0
      %s275 = scalar_select %p274, %s22, 0
      %s276 = sadd.s32 %s275, %s273
      %s277 = smul.addr %s271, 4
      %s278 = sadd.s32 %s276, %s277
      %s279 = smul.addr %s278, 4
      %s280 = scalar_lea.vmem %s1, %s279
      %s281 = smul.u32 4, %s23
      %p282 = scmp.lt.s32.totalorder %s20, 2
      %s283 = scalar_select %p282, %s20, 2
      %p284 = scmp.lt.s32.totalorder %s22, 0
      %s285 = scalar_select %p284, %s22, 0
      %s286 = sadd.s32 %s285, %s283
      %s287 = scalar_lea.vmem %s2, %s286
      %s288 = smul.u32 2, %s21
      %p289 = scmp.lt.s32.totalorder %s20, 2
      %s290 = scalar_select %p289, %s20, 2
      %p291 = scmp.lt.s32.totalorder %s288, 1
      %s292 = scalar_select %p291, %s288, 1
      %p293 = scmp.lt.s32.totalorder %s22, 0
      %s294 = scalar_select %p293, %s22, 0
      %s295 = sadd.s32 %s294, %s292
      %s296 = smul.addr %s290, 2
      %s297 = sadd.s32 %s295, %s296
      %s298 = smul.addr %s297, 4
      %s299 = scalar_lea.vmem %s3, %s298
      %s300 = smul.u32 2, %s21
      %p302 = scmp.eq.s32.totalorder %s23, 0
      // Predicated region
      $region33: #{transformer_decoder_forward.13} parent=31 // pred_check
        %p303 = pneg %p302
      $region34: #{transformer_decoder_forward.13} parent=31 // pred_check_branch
        %305 = sbr.rel (%p303) target = $region36
      $region35: #{transformer_decoder_forward.13} parent=31 // pred_region
        %vm306 = vcmask 261120
        %307 = vst.msk [vmem:[#allocation2] sm:$0xff] %vm306, 0.0
        %308 = vst.msk [vmem:[#allocation2 + $0x8] sm:$0xff] %vm306, 0.0
      $region36: #{transformer_decoder_forward.13} parent=31 // pred_fallthru
        _
      %v309 = vld [vmem:[#allocation2] sm:$0xff]
      %v310 = vld [vmem:[#allocation2 + $0x8] sm:$0xff]
      %v311 = vld [vmem:[%s267] sm:$0xff]
      %v312 = vld [vmem:[%s267 + $0x8] sm:$0xff]
      %v313 = vpack.c.bf16 %v312, %v311
      %v314 = vld [vmem:[%s280] sm:$0xf]
      %v315 = vld [vmem:[%s280 + $0x4] sm:$0xf]
      %v316 = vld [vmem:[%s280 + $0x8] sm:$0xf]
      %v317 = vld [vmem:[%s280 + $0xc] sm:$0xf]
      %v322 = vunpack.c.l.b16 %v314
      %v323 = vunpack.c.l.b16 %v315
      %v324 = vunpack.c.l.b16 %v316
      %v325 = vunpack.c.l.b16 %v317
      %v326 = vpack.c.b16 %v323, %v322
      %v327 = vpack.c.b16 %v325, %v324
      %vm330 = vcmask 261120
      %v332 = vsel %vm330, %v313, 0
      %334 = vmatpush.bf16.msra.mxu0 0
      %335 = vmatpush.bf16.msra.mxu0 0
      %336 = vmatpush.bf16.msra.mxu0 0
      %337 = vmatpush.bf16.msra.mxu0 0
      %338 = vmatpush.bf16.msra.mxu0 0
      %339 = vmatpush.bf16.msra.mxu0 0
      %340 = vmatpush.bf16.msra.mxu0 %v327
      %341 = vmatpush.bf16.msra.mxu0 %v326
      %342 = vmatmul.bf16.gmra.mxu0 %v332
      %v343 = vpop.f32.mrf.mxu0
      %v344 = vadd.f32 0.0, %v343
      %v345 = vpop.f32.mrf.mxu0
      %v346 = vadd.f32 0.0, %v345
      %347 = vdwg.mxu0
      %v348 = vadd.f32 %v309, %v344
      %v349 = vadd.f32 %v310, %v346
      %350 = vst.msk [vmem:[#allocation2] sm:$0xff] %vm330, %v348
      %351 = vst.msk [vmem:[#allocation2 + $0x8] sm:$0xff] %vm330, %v349
      // Predicated region
      $region37: #{transformer_decoder_forward.13} parent=31 // pred_check
        %p352 = pneg %p302
      $region38: #{transformer_decoder_forward.13} parent=31 // pred_check_branch
        %354 = sbr.rel (%p352) target = $region40
      $region39: #{transformer_decoder_forward.13} parent=31 // pred_region
        %v355 = vld [vmem:[#allocation2] sm:$0xff]
        %v356 = vld [vmem:[#allocation2 + $0x8] sm:$0xff]
        %v357 = vld [vmem:[%s287] sm:$0x1]
        %v359 = vperm.slane %v357, 0
        %v361 = vadd.f32 %v355, %v359
        %v362 = vadd.f32 %v356, %v359
        %v363 = vpack.c.bf16 %v361, %v361
        %v364 = vpack.c.bf16 %v362, %v362
        %vm365 = vcmask 257024
        %366 = vst.msk [vmem:[%s299] sm:$0xf] %vm365, %v363
        %367 = vst.msk [vmem:[%s299 + $0x4] sm:$0xf] %vm365, %v364
      $region40: #{transformer_decoder_forward.13} parent=31 // pred_fallthru
        _
      %s368 = smul.u32 2, %s21
      %p369 = scmp.lt.s32.totalorder %s20, 2
      %s370 = scalar_select %p369, %s20, 2
      %p371 = scmp.lt.s32.totalorder %s368, 1
      %s372 = scalar_select %p371, %s368, 1
      %p373 = scmp.lt.s32.totalorder %s22, 0
      %s374 = scalar_select %p373, %s22, 0
      %s375 = sadd.s32 %s374, %s372
      %s376 = smul.addr %s370, 2
      %s377 = sadd.s32 %s375, %s376
      %s378 = smul.addr %s377, 4
      %s379 = scalar_lea.vmem %s3, %s378
      // Predicated region
      $region41: #{transformer_decoder_forward.13} parent=31 // pred_check
        %p380 = pneg %p148
      $region42: #{transformer_decoder_forward.13} parent=31 // pred_check_branch
        %382 = sbr.rel (%p380) target = $region44
      $region43: #{transformer_decoder_forward.13} parent=31 // pred_region
        %s383 = smul.u32 2, %s21
      $region44: #{transformer_decoder_forward.13} parent=31 // pred_fallthru
        _
    $region32: #{transformer_decoder_forward.13} parent=5 // pred_fallthru
      _
    %p384 = scmp.le.s32.totalorder 2, %s9
    // Predicated region
    $region45: #{transformer_decoder_forward.13} parent=5 // pred_check
      %p385 = pneg %p384
    $region46: #{transformer_decoder_forward.13} parent=5 // pred_check_branch
      %387 = sbr.rel (%p385) target = $region48
    $region47: #{transformer_decoder_forward.13} parent=5 // pred_region
      %s388 = ssub.s32 %s9, 2
      // Predicated region
      $region49: #{transformer_decoder_forward.13} parent=47 // pred_check
        %p389 = pneg %p154
      $region50: #{transformer_decoder_forward.13} parent=47 // pred_check_branch
        %391 = sbr.rel (%p389) target = $region52
      $region51: #{transformer_decoder_forward.13} parent=47 // pred_region
        %s392 = smul.u32 2, %s25
        %p393 = scmp.lt.s32.totalorder %s24, 2
        %s394 = scalar_select %p393, %s24, 2
        %p395 = scmp.lt.s32.totalorder %s392, 1
        %s396 = scalar_select %p395, %s392, 1
        %p397 = scmp.lt.s32.totalorder %s26, 0
        %s398 = scalar_select %p397, %s26, 0
        %s399 = sadd.s32 %s398, %s396
        %s400 = smul.addr %s394, 2
        %s401 = sadd.s32 %s399, %s400
        %s402 = smul.addr %s401, 4
        %s403 = scalar_lea.vmem %s3, %s402
      $region52: #{transformer_decoder_forward.13} parent=47 // pred_fallthru
        _
    $region48: #{transformer_decoder_forward.13} parent=5 // pred_fallthru
      _
  $region6: #{transformer_decoder_forward.13} parent=0 // loop_footer
    %s13 = sadd.s32 1, %s9
  $region7: #{transformer_decoder_forward.13} parent=0 // loop_footer_branch
    %8 = sbr.rel target = $region3
  $region8: #{transformer_decoder_forward.13} parent=0 // loop_exit
    _

// kernel: transformer_decoder_forward.14
$region0: #{transformer_decoder_forward.14}
  #allocation0 [shape = 'u32[]', space=smem, size = 0x4, offset = 0x4, fixed_abs, tag = 'smem constant byte address 0x4 - core index']
  #allocation1 [shape = 'u32[72,128]{1,0:T(1,128)}', space=vmem, size = 0x9000, scoped, tag = 'internal scratch']
  %s0 = inlined_call_operand.vmem [shape: bf16[3,2,8,32], index: 0, kind: input, shape index: {}, may-alias: {0,1,2}]
  %s1 = inlined_call_operand.vmem [shape: bf16[3,2,8,32], index: 1, kind: input, shape index: {}, may-alias: {0,1,2}]
  %s2 = inlined_call_operand.vmem [shape: bf16[3,2,8,32], index: 2, kind: input, shape index: {}, may-alias: {0,1,2}]
  %s3 = inlined_call_operand.hbm [shape: bf16[32,32], index: 3, kind: input, shape index: {}]
  %s4 = inlined_call_operand.vmem [shape: f32[1,32], index: 4, kind: input, shape index: {}]
  %s5 = inlined_call_operand.vmem [shape: f32[2,8,32], index: 5, kind: input, shape index: {}]
  %s6 = inlined_call_operand.vmem [shape: f32[1,32], index: 6, kind: input, shape index: {}]
  %s7 = inlined_call_operand.vmem [shape: f32[1,32], index: 7, kind: input, shape index: {}]
  %s8 = inlined_call_operand.vmem [shape: f32[2,8,32], index: 8, kind: output, shape index: {}]
  %s9 = sld [smem:[#allocation0]]
  $region69: #{transformer_decoder_forward.14} parent=0
    _
  %s11 = ssub.s32 1, %s9
  %s12 = scalar_select 0, %s11, %s9
  $region1: #{transformer_decoder_forward.14} parent=0
    #allocation2 [shape = 'u8[8192]{0}', space=vmem, size = 0x2000, scoped, tag = 'input window, operand 3, single buffered']
    #allocation3 [shape = 's32[2]{0}', space=sflag, size = 0x8, scoped, tag = 'scoped memory for transformer_decoder_forward.14']
    %13 = vsyncpa [#allocation3], 0
    loop: start=0, step=1, limit=4
    $region2: #{transformer_decoder_forward.14} parent=1 // loop_pre_header
      _
    $region3: #{transformer_decoder_forward.14} parent=1 // loop_header
      %s15 = sphi 0, %s19
      %p16 = scmp.ge.s32.totalorder %s15, 4
      %s22 = sphi 0, %s34
      %s23 = sphi 0, %s30
      %s24 = sphi 0, %s22
      %s25 = sphi 0, %s23
      %s26 = sphi 0, %s24
      %s27 = sphi 0, %s25
      %s39 = sphi 0, %s41
      %s42 = sphi 0, %s39
      %s43 = sphi 0, %s42
      %s59 = sphi 0, %s43
      %s65 = sphi 0, %s67
      %s68 = sphi 0, %s65
      %s69 = sphi 0, %s68
      %s85 = sphi 0, %s69
      %s91 = sphi 0, %s93
      %s94 = sphi 0, %s91
      %s95 = sphi 0, %s94
      %s111 = sphi 0, %s95
      %s115 = sphi 0, %s115
      %s117 = sphi 0, %s115
      %s118 = sphi 0, %s117
      %s132 = sphi 0, %s118
      %s136 = sphi 0, %s136
      %s138 = sphi 0, %s136
      %s139 = sphi 0, %s138
      %s153 = sphi 0, %s139
      %s161 = sphi 0, %s163
      %s164 = sphi 0, %s161
      %s165 = sphi 0, %s164
      %s181 = sphi 0, %s165
      %s185 = sphi 0, %s185
      %s187 = sphi 0, %s185
      %s188 = sphi 0, %s187
      %s202 = sphi 0, %s188
      %s206 = sphi 0, %s206
      %s208 = sphi 0, %s206
      %s209 = sphi 0, %s208
      %s223 = sphi 0, %s209
      %s231 = sphi 0, %s233
      %s234 = sphi 0, %s231
      %s235 = sphi 0, %s234
      %s251 = sphi 0, %s235
    $region4: #{transformer_decoder_forward.14} parent=1 // loop_header_branch
      %18 = sbr.rel (%p16) target = $region8
    $region5: #{transformer_decoder_forward.14} parent=1 // loop_body
      %s20 = ssub.s32 %s15, 1
      %s21 = ssub.s32 %s15, 2
      %s28 = sadd.s32 1, %s23
      %p29 = scmp.ge.s32.totalorder %s28, 1
      %s30 = scalar_select %p29, 0, %s28
      %s31 = sadd.s32 1, %s22
      %s32 = scalar_select %p29, %s31, %s22
      %p33 = scmp.ge.s32.totalorder %s32, 2
      %s34 = scalar_select %p33, 0, %s32
      %s35 = ssub.s32 %s22, %s34
      %s36 = ssub.s32 %s23, %s30
      %s37 = sor.u32 %s35, %s36
      %p38 = scmp.eq.s32.totalorder %s37, 0
      %s40 = sadd.s32 %s39, 1
      %s41 = scalar_select %p38, %s39, %s40
      %p44 = pneg %p38
      %p45 = scmp.eq.s32.totalorder %s15, 1
      %p46 = por %p44, %p45
      %p47 = scmp.ne.s32.totalorder %s39, %s42
      %p48 = scmp.eq.s32.totalorder %s15, 0
      %p49 = por %p47, %p48
      %p50 = scmp.ne.s32.totalorder %s39, %s42
      %p51 = scmp.eq.s32.totalorder %s20, 1
      %p52 = por %p50, %p51
      %p53 = scmp.ne.s32.totalorder %s42, %s43
      %p54 = scmp.eq.s32.totalorder %s20, 0
      %p55 = por %p53, %p54
      %p56 = scmp.ne.s32.totalorder %s42, %s43
      %p57 = scmp.eq.s32.totalorder %s21, 1
      %p58 = por %p56, %p57
      %p60 = scmp.ne.s32.totalorder %s43, %s59
      %p61 = scmp.eq.s32.totalorder %s21, 0
      %p62 = por %p60, %p61
      %s63 = ssub.s32 %s22, %s34
      %p64 = scmp.eq.s32.totalorder %s63, 0
      %s66 = sadd.s32 %s65, 1
      %s67 = scalar_select %p64, %s65, %s66
      %p70 = pneg %p64
      %p71 = scmp.eq.s32.totalorder %s15, 1
      %p72 = por %p70, %p71
      %p73 = scmp.ne.s32.totalorder %s65, %s68
      %p74 = scmp.eq.s32.totalorder %s15, 0
      %p75 = por %p73, %p74
      %p76 = scmp.ne.s32.totalorder %s65, %s68
      %p77 = scmp.eq.s32.totalorder %s20, 1
      %p78 = por %p76, %p77
      %p79 = scmp.ne.s32.totalorder %s68, %s69
      %p80 = scmp.eq.s32.totalorder %s20, 0
      %p81 = por %p79, %p80
      %p82 = scmp.ne.s32.totalorder %s68, %s69
      %p83 = scmp.eq.s32.totalorder %s21, 1
      %p84 = por %p82, %p83
      %p86 = scmp.ne.s32.totalorder %s69, %s85
      %p87 = scmp.eq.s32.totalorder %s21, 0
      %p88 = por %p86, %p87
      %s89 = ssub.s32 %s22, %s34
      %p90 = scmp.eq.s32.totalorder %s89, 0
      %s92 = sadd.s32 %s91, 1
      %s93 = scalar_select %p90, %s91, %s92
      %p96 = pneg %p90
      %p97 = scmp.eq.s32.totalorder %s15, 1
      %p98 = por %p96, %p97
      %p99 = scmp.ne.s32.totalorder %s91, %s94
      %p100 = scmp.eq.s32.totalorder %s15, 0
      %p101 = por %p99, %p100
      %p102 = scmp.ne.s32.totalorder %s91, %s94
      %p103 = scmp.eq.s32.totalorder %s20, 1
      %p104 = por %p102, %p103
      %p105 = scmp.ne.s32.totalorder %s94, %s95
      %p106 = scmp.eq.s32.totalorder %s20, 0
      %p107 = por %p105, %p106
      %p108 = scmp.ne.s32.totalorder %s94, %s95
      %p109 = scmp.eq.s32.totalorder %s21, 1
      %p110 = por %p108, %p109
      %p112 = scmp.ne.s32.totalorder %s95, %s111
      %p113 = scmp.eq.s32.totalorder %s21, 0
      %p114 = por %p112, %p113
      %s116 = sadd.s32 %s115, 1
      %p119 = scmp.eq.s32.totalorder %s15, 1
      %p120 = scmp.ne.s32.totalorder %s115, %s117
      %p121 = scmp.eq.s32.totalorder %s15, 0
      %p122 = por %p120, %p121
      %p123 = scmp.ne.s32.totalorder %s115, %s117
      %p124 = scmp.eq.s32.totalorder %s20, 1
      %p125 = por %p123, %p124
      %p126 = scmp.ne.s32.totalorder %s117, %s118
      %p127 = scmp.eq.s32.totalorder %s20, 0
      %p128 = por %p126, %p127
      %p129 = scmp.ne.s32.totalorder %s117, %s118
      %p130 = scmp.eq.s32.totalorder %s21, 1
      %p131 = por %p129, %p130
      %p133 = scmp.ne.s32.totalorder %s118, %s132
      %p134 = scmp.eq.s32.totalorder %s21, 0
      %p135 = por %p133, %p134
      %s137 = sadd.s32 %s136, 1
      %p140 = scmp.eq.s32.totalorder %s15, 1
      %p141 = scmp.ne.s32.totalorder %s136, %s138
      %p142 = scmp.eq.s32.totalorder %s15, 0
      %p143 = por %p141, %p142
      %p144 = scmp.ne.s32.totalorder %s136, %s138
      %p145 = scmp.eq.s32.totalorder %s20, 1
      %p146 = por %p144, %p145
      %p147 = scmp.ne.s32.totalorder %s138, %s139
      %p148 = scmp.eq.s32.totalorder %s20, 0
      %p149 = por %p147, %p148
      %p150 = scmp.ne.s32.totalorder %s138, %s139
      %p151 = scmp.eq.s32.totalorder %s21, 1
      %p152 = por %p150, %p151
      %p154 = scmp.ne.s32.totalorder %s139, %s153
      %p155 = scmp.eq.s32.totalorder %s21, 0
      %p156 = por %p154, %p155
      %s157 = ssub.s32 %s22, %s34
      %s158 = ssub.s32 %s23, %s30
      %s159 = sor.u32 %s157, %s158
      %p160 = scmp.eq.s32.totalorder %s159, 0
      %s162 = sadd.s32 %s161, 1
      %s163 = scalar_select %p160, %s161, %s162
      %p166 = pneg %p160
      %p167 = scmp.eq.s32.totalorder %s15, 1
      %p168 = por %p166, %p167
      %p169 = scmp.ne.s32.totalorder %s161, %s164
      %p170 = scmp.eq.s32.totalorder %s15, 0
      %p171 = por %p169, %p170
      %p172 = scmp.ne.s32.totalorder %s161, %s164
      %p173 = scmp.eq.s32.totalorder %s20, 1
      %p174 = por %p172, %p173
      %p175 = scmp.ne.s32.totalorder %s164, %s165
      %p176 = scmp.eq.s32.totalorder %s20, 0
      %p177 = por %p175, %p176
      %p178 = scmp.ne.s32.totalorder %s164, %s165
      %p179 = scmp.eq.s32.totalorder %s21, 1
      %p180 = por %p178, %p179
      %p182 = scmp.ne.s32.totalorder %s165, %s181
      %p183 = scmp.eq.s32.totalorder %s21, 0
      %p184 = por %p182, %p183
      %s186 = sadd.s32 %s185, 1
      %p189 = scmp.eq.s32.totalorder %s15, 1
      %p190 = scmp.ne.s32.totalorder %s185, %s187
      %p191 = scmp.eq.s32.totalorder %s15, 0
      %p192 = por %p190, %p191
      %p193 = scmp.ne.s32.totalorder %s185, %s187
      %p194 = scmp.eq.s32.totalorder %s20, 1
      %p195 = por %p193, %p194
      %p196 = scmp.ne.s32.totalorder %s187, %s188
      %p197 = scmp.eq.s32.totalorder %s20, 0
      %p198 = por %p196, %p197
      %p199 = scmp.ne.s32.totalorder %s187, %s188
      %p200 = scmp.eq.s32.totalorder %s21, 1
      %p201 = por %p199, %p200
      %p203 = scmp.ne.s32.totalorder %s188, %s202
      %p204 = scmp.eq.s32.totalorder %s21, 0
      %p205 = por %p203, %p204
      %s207 = sadd.s32 %s206, 1
      %p210 = scmp.eq.s32.totalorder %s15, 1
      %p211 = scmp.ne.s32.totalorder %s206, %s208
      %p212 = scmp.eq.s32.totalorder %s15, 0
      %p213 = por %p211, %p212
      %p214 = scmp.ne.s32.totalorder %s206, %s208
      %p215 = scmp.eq.s32.totalorder %s20, 1
      %p216 = por %p214, %p215
      %p217 = scmp.ne.s32.totalorder %s208, %s209
      %p218 = scmp.eq.s32.totalorder %s20, 0
      %p219 = por %p217, %p218
      %p220 = scmp.ne.s32.totalorder %s208, %s209
      %p221 = scmp.eq.s32.totalorder %s21, 1
      %p222 = por %p220, %p221
      %p224 = scmp.ne.s32.totalorder %s209, %s223
      %p225 = scmp.eq.s32.totalorder %s21, 0
      %p226 = por %p224, %p225
      %s227 = ssub.s32 %s22, %s34
      %s228 = ssub.s32 %s23, %s30
      %s229 = sor.u32 %s227, %s228
      %p230 = scmp.eq.s32.totalorder %s229, 0
      %s232 = sadd.s32 %s231, 1
      %s233 = scalar_select %p230, %s231, %s232
      %p236 = pneg %p230
      %p237 = scmp.eq.s32.totalorder %s15, 1
      %p238 = por %p236, %p237
      %p239 = scmp.ne.s32.totalorder %s231, %s234
      %p240 = scmp.eq.s32.totalorder %s15, 0
      %p241 = por %p239, %p240
      %p242 = scmp.ne.s32.totalorder %s231, %s234
      %p243 = scmp.eq.s32.totalorder %s20, 1
      %p244 = por %p242, %p243
      %p245 = scmp.ne.s32.totalorder %s234, %s235
      %p246 = scmp.eq.s32.totalorder %s20, 0
      %p247 = por %p245, %p246
      %p248 = scmp.ne.s32.totalorder %s234, %s235
      %p249 = scmp.eq.s32.totalorder %s21, 1
      %p250 = por %p248, %p249
      %p252 = scmp.ne.s32.totalorder %s235, %s251
      %p253 = scmp.eq.s32.totalorder %s21, 0
      %p254 = por %p252, %p253
      %p255 = scmp.le.s32.totalorder 1, %s15
      %p256 = scmp.lt.s32.totalorder %s15, 3
      %p257 = pnand %p255, %p256
      %p258 = pneg %p257
      // Predicated region
      $region9: #{transformer_decoder_forward.14} parent=5 // pred_check
        _
      $region10: #{transformer_decoder_forward.14} parent=5 // pred_check_branch
        %260 = sbr.rel (%p257) target = $region12
      $region11: #{transformer_decoder_forward.14} parent=5 // pred_region
        %s261 = ssub.s32 %s15, 1
        // Predicated region
        $region13: #{transformer_decoder_forward.14} parent=11 // pred_check
          %p262 = pneg %p128
        $region14: #{transformer_decoder_forward.14} parent=11 // pred_check_branch
          %264 = sbr.rel (%p262) target = $region16
        $region15: #{transformer_decoder_forward.14} parent=11 // pred_region
          %266 = vsyncadd [#allocation3], 0
          %s267 = sshll.u32 %s3, 4
          %s268 = int_to_ptr.hbm [resolvable:$true] %s267
          %s269 = sshll.u32 [#allocation2], 4
          %s270 = int_to_ptr.vmem [resolvable:$true] %s269
          %275 = dma.hbm_to_vmem [thread:$0]  %s268, 256, %s270, [#allocation3], 64, 64, 4
        $region16: #{transformer_decoder_forward.14} parent=11 // pred_fallthru
          _
        // Predicated region
        $region17: #{transformer_decoder_forward.14} parent=11 // pred_check
          %p276 = pneg %p149
        $region18: #{transformer_decoder_forward.14} parent=11 // pred_check_branch
          %278 = sbr.rel (%p276) target = $region20
        $region19: #{transformer_decoder_forward.14} parent=11 // pred_region
          _
        $region20: #{transformer_decoder_forward.14} parent=11 // pred_fallthru
          _
        // Predicated region
        $region21: #{transformer_decoder_forward.14} parent=11 // pred_check
          %p279 = pneg %p198
        $region22: #{transformer_decoder_forward.14} parent=11 // pred_check_branch
          %281 = sbr.rel (%p279) target = $region24
        $region23: #{transformer_decoder_forward.14} parent=11 // pred_region
          _
        $region24: #{transformer_decoder_forward.14} parent=11 // pred_fallthru
          _
        // Predicated region
        $region25: #{transformer_decoder_forward.14} parent=11 // pred_check
          %p282 = pneg %p219
        $region26: #{transformer_decoder_forward.14} parent=11 // pred_check_branch
          %284 = sbr.rel (%p282) target = $region28
        $region27: #{transformer_decoder_forward.14} parent=11 // pred_region
          _
        $region28: #{transformer_decoder_forward.14} parent=11 // pred_fallthru
          _
      $region12: #{transformer_decoder_forward.14} parent=5 // pred_fallthru
        _
      %p285 = scmp.lt.s32.totalorder %s15, 2
      // Predicated region
      $region29: #{transformer_decoder_forward.14} parent=5 // pred_check
        %p286 = pneg %p285
      $region30: #{transformer_decoder_forward.14} parent=5 // pred_check_branch
        %288 = sbr.rel (%p286) target = $region32
      $region31: #{transformer_decoder_forward.14} parent=5 // pred_region
        // Predicated region
        $region33: #{transformer_decoder_forward.14} parent=31 // pred_check
          %p289 = pneg %p49
        $region34: #{transformer_decoder_forward.14} parent=31 // pred_check_branch
          %291 = sbr.rel (%p289) target = $region36
        $region35: #{transformer_decoder_forward.14} parent=31 // pred_region
          %p292 = scmp.lt.s32.totalorder %s22, 1
          %s293 = scalar_select %p292, %s22, 1
          %p294 = scmp.lt.s32.totalorder %s23, 0
          %s295 = scalar_select %p294, %s23, 0
          %s296 = sadd.s32 %s295, %s293
          %s297 = smul.addr %s296, 4
          %s298 = scalar_lea.vmem %s0, %s297
        $region36: #{transformer_decoder_forward.14} parent=31 // pred_fallthru
          _
        // Predicated region
        $region37: #{transformer_decoder_forward.14} parent=31 // pred_check
          %p299 = pneg %p75
        $region38: #{transformer_decoder_forward.14} parent=31 // pred_check_branch
          %301 = sbr.rel (%p299) target = $region40
        $region39: #{transformer_decoder_forward.14} parent=31 // pred_region
          %p302 = scmp.lt.s32.totalorder %s22, 1
          %s303 = scalar_select %p302, %s22, 1
          %s304 = sadd.s32 %s303, 2
          %s305 = smul.addr %s304, 4
          %s306 = scalar_lea.vmem %s1, %s305
        $region40: #{transformer_decoder_forward.14} parent=31 // pred_fallthru
          _
        // Predicated region
        $region41: #{transformer_decoder_forward.14} parent=31 // pred_check
          %p307 = pneg %p101
        $region42: #{transformer_decoder_forward.14} parent=31 // pred_check_branch
          %309 = sbr.rel (%p307) target = $region44
        $region43: #{transformer_decoder_forward.14} parent=31 // pred_region
          %p310 = scmp.lt.s32.totalorder %s22, 1
          %s311 = scalar_select %p310, %s22, 1
          %s312 = sadd.s32 %s311, 4
          %s313 = smul.addr %s312, 4
          %s314 = scalar_lea.vmem %s2, %s313
        $region44: #{transformer_decoder_forward.14} parent=31 // pred_fallthru
          _
        // Predicated region
        $region45: #{transformer_decoder_forward.14} parent=31 // pred_check
          %p315 = pneg %p171
        $region46: #{transformer_decoder_forward.14} parent=31 // pred_check_branch
          %317 = sbr.rel (%p315) target = $region48
        $region47: #{transformer_decoder_forward.14} parent=31 // pred_region
          %p318 = scmp.lt.s32.totalorder %s22, 1
          %s319 = scalar_select %p318, %s22, 1
          %p320 = scmp.lt.s32.totalorder %s23, 0
          %s321 = scalar_select %p320, %s23, 0
          %s322 = sadd.s32 %s321, %s319
          %s323 = smul.addr %s322, 8
          %s324 = scalar_lea.vmem %s5, %s323
        $region48: #{transformer_decoder_forward.14} parent=31 // pred_fallthru
          _
      $region32: #{transformer_decoder_forward.14} parent=5 // pred_fallthru
        _
      %p325 = scmp.le.s32.totalorder 1, %s15
      %p326 = scmp.lt.s32.totalorder %s15, 3
      %p327 = pnand %p325, %p326
      %p328 = pneg %p327
      // Predicated region
      $region49: #{transformer_decoder_forward.14} parent=5 // pred_check
        _
      $region50: #{transformer_decoder_forward.14} parent=5 // pred_check_branch
        %330 = sbr.rel (%p327) target = $region52
      $region51: #{transformer_decoder_forward.14} parent=5 // pred_region
        %s331 = ssub.s32 %s15, 1
        // Predicated region
        $region53: #{transformer_decoder_forward.14} parent=51 // pred_check
          %p332 = pneg %p128
        $region54: #{transformer_decoder_forward.14} parent=51 // pred_check_branch
          %334 = sbr.rel (%p332) target = $region56
        $region55: #{transformer_decoder_forward.14} parent=51 // pred_region
          %336 = dma.done [#allocation3], 256
        $region56: #{transformer_decoder_forward.14} parent=51 // pred_fallthru
          _
        %p337 = scmp.lt.s32.totalorder %s24, 1
        %s338 = scalar_select %p337, %s24, 1
        %p339 = scmp.lt.s32.totalorder %s25, 0
        %s340 = scalar_select %p339, %s25, 0
        %s341 = sadd.s32 %s340, %s338
        %s342 = smul.addr %s341, 4
        %s343 = scalar_lea.vmem %s0, %s342
        %p344 = pneg %p55
        %p345 = pneg %p52
        %p346 = scmp.lt.s32.totalorder %s24, 1
        %s347 = scalar_select %p346, %s24, 1
        %s348 = sadd.s32 %s347, 2
        %s349 = smul.addr %s348, 4
        %s350 = scalar_lea.vmem %s1, %s349
        %p351 = pneg %p81
        %p352 = pneg %p78
        %p353 = scmp.lt.s32.totalorder %s24, 1
        %s354 = scalar_select %p353, %s24, 1
        %s355 = sadd.s32 %s354, 4
        %s356 = smul.addr %s355, 4
        %s357 = scalar_lea.vmem %s2, %s356
        %p358 = pneg %p107
        %p359 = pneg %p104
        %p360 = pneg %p128
        %p361 = pneg %p125
        %p362 = pneg %p149
        %p363 = pneg %p146
        %p364 = scmp.lt.s32.totalorder %s24, 1
        %s365 = scalar_select %p364, %s24, 1
        %p366 = scmp.lt.s32.totalorder %s25, 0
        %s367 = scalar_select %p366, %s25, 0
        %s368 = sadd.s32 %s367, %s365
        %s369 = smul.addr %s368, 8
        %s370 = scalar_lea.vmem %s5, %s369
        %p371 = pneg %p177
        %p372 = pneg %p174
        %p373 = pneg %p198
        %p374 = pneg %p195
        %p375 = pneg %p219
        %p376 = pneg %p216
        %p377 = pneg %p247
        %p378 = pneg %p244
        %p379 = scmp.lt.s32.totalorder %s24, 1
        %s380 = scalar_select %p379, %s24, 1
        %p381 = scmp.lt.s32.totalorder %s25, 0
        %s382 = scalar_select %p381, %s25, 0
        %s383 = sadd.s32 %s382, %s380
        %s384 = smul.addr %s383, 8
        %s385 = scalar_lea.vmem %s8, %s384
        %p386 = scmp.lt.s32.totalorder %s24, 1
        %s387 = scalar_select %p386, %s24, 1
        %p388 = scmp.lt.s32.totalorder %s25, 0
        %s389 = scalar_select %p388, %s25, 0
        %s390 = sadd.s32 %s389, %s387
        %s391 = smul.addr %s390, 4
        %s392 = scalar_lea.vmem %s0, %s391
        %p393 = scmp.lt.s32.totalorder %s24, 1
        %s394 = scalar_select %p393, %s24, 1
        %s395 = sadd.s32 %s394, 2
        %s396 = smul.addr %s395, 4
        %s397 = scalar_lea.vmem %s1, %s396
        %p398 = scmp.lt.s32.totalorder %s24, 1
        %s399 = scalar_select %p398, %s24, 1
        %s400 = sadd.s32 %s399, 4
        %s401 = smul.addr %s400, 4
        %s402 = scalar_lea.vmem %s2, %s401
        %p403 = scmp.lt.s32.totalorder %s24, 1
        %s404 = scalar_select %p403, %s24, 1
        %p405 = scmp.lt.s32.totalorder %s25, 0
        %s406 = scalar_select %p405, %s25, 0
        %s407 = sadd.s32 %s406, %s404
        %s408 = smul.addr %s407, 8
        %s409 = scalar_lea.vmem %s5, %s408
        %p410 = scmp.lt.s32.totalorder %s24, 1
        %s411 = scalar_select %p410, %s24, 1
        %p412 = scmp.lt.s32.totalorder %s25, 0
        %s413 = scalar_select %p412, %s25, 0
        %s414 = sadd.s32 %s413, %s411
        %s415 = smul.addr %s414, 8
        %s416 = scalar_lea.vmem %s8, %s415
        %v418 = vld [vmem:[%s392] sm:$0xf]
        %v419 = vld [vmem:[%s397] sm:$0xf]
        %v420 = vld [vmem:[%s402] sm:$0xf]
        %vm421 = vcmask 64512
        %v423 = vsel %vm421, %v418, 0
        %v426 = vsel %vm421, %v419, 0
        %428 = vmatpush.bf16.xpose.msra.mxu0 0
        %429 = vmatpush.bf16.xpose.msra.mxu0 0
        %430 = vmatpush.bf16.xpose.msra.mxu0 0
        %431 = vmatpush.bf16.xpose.msra.mxu0 0
        %432 = vmatpush.bf16.xpose.msra.mxu0 0
        %433 = vmatpush.bf16.xpose.msra.mxu0 0
        %434 = vmatpush.bf16.xpose.msra.mxu0 0
        %435 = vmatpush.bf16.xpose.msra.mxu0 %v426
        %436 = vmatmul.bf16.gmra.mxu0 %v423
        %v437 = vpop.f32.mrf.mxu0
        %v438 = vadd.f32 0.0, %v437
        %v439 = vpop.f32.mrf.mxu0
        %440 = vdwg.mxu0
        %v441 = vsel %vm421, %v438, -inf
        %442 = vmax.xlane.f32.xlu0 %v441
        %v443 = vpop.xlane.xlu0 %442
        %v444 = vsub.f32 %v438, %v443
        %v445 = vmul.f32 %v444, 1.442695
        %v446 = vpow.pop %v445
        %v447 = vsel %vm421, %v446, 0.0
        %448 = vadd.xlane.f32.xlu0 %v447
        %v449 = vpop.xlane.xlu0 %448
        %v450 = vrcp.pop %v449
        %v451 = vmul.f32 %v446, %v450
        %v452 = vpack.c.bf16 %v451, %v451
        %v454 = vsel %vm421, %v452, 0
        %vm456 = vcmask 1043456
        %v458 = vsel %vm456, %v420, 0
        %460 = vmatpush.bf16.msra.mxu0 0
        %461 = vmatpush.bf16.msra.mxu0 0
        %462 = vmatpush.bf16.msra.mxu0 0
        %463 = vmatpush.bf16.msra.mxu0 0
        %464 = vmatpush.bf16.msra.mxu0 0
        %465 = vmatpush.bf16.msra.mxu0 0
        %466 = vmatpush.bf16.msra.mxu0 0
        %467 = vmatpush.bf16.msra.mxu0 %v458
        %468 = vmatmul.bf16.gmra.mxu0 %v454
        %v469 = vpop.f32.mrf.mxu0
        %v470 = vadd.f32 0.0, %v469
        %v471 = vpop.f32.mrf.mxu0
        %472 = vdwg.mxu0
        %v474 = vunpack.c.l.b16 %v418
        %v475 = vpack.c.b16 %v474, %v474
        %476 = vrot.lane.b32.xlu0 %v475, 120
        %v477 = vpop.permute.xlu0 %476
        %v479 = vunpack.c.l.b16 %v419
        %v480 = vpack.c.b16 %v479, %v479
        %481 = vrot.lane.b32.xlu0 %v480, 120
        %v482 = vpop.permute.xlu0 %481
        %v484 = vsel %vm421, %v477, 0
        %v487 = vsel %vm421, %v482, 0
        %489 = vmatpush.bf16.xpose.msra.mxu0 0
        %490 = vmatpush.bf16.xpose.msra.mxu0 0
        %491 = vmatpush.bf16.xpose.msra.mxu0 0
        %492 = vmatpush.bf16.xpose.msra.mxu0 0
        %493 = vmatpush.bf16.xpose.msra.mxu0 0
        %494 = vmatpush.bf16.xpose.msra.mxu0 0
        %495 = vmatpush.bf16.xpose.msra.mxu0 0
        %496 = vmatpush.bf16.xpose.msra.mxu0 %v487
        %497 = vmatmul.bf16.gmra.mxu0 %v484
        %v498 = vpop.f32.mrf.mxu0
        %v499 = vadd.f32 0.0, %v498
        %v500 = vpop.f32.mrf.mxu0
        %501 = vdwg.mxu0
        %v502 = vsel %vm421, %v499, -inf
        %503 = vmax.xlane.f32.xlu0 %v502
        %v504 = vpop.xlane.xlu0 %503
        %v505 = vsub.f32 %v499, %v504
        %v506 = vmul.f32 %v505, 1.442695
        %v507 = vpow.pop %v506
        %v508 = vsel %vm421, %v507, 0.0
        %509 = vadd.xlane.f32.xlu0 %v508
        %v510 = vpop.xlane.xlu0 %509
        %v511 = vrcp.pop %v510
        %v512 = vmul.f32 %v507, %v511
        %v513 = vpack.c.bf16 %v512, %v512
        %v515 = vunpack.c.l.b16 %v420
        %v516 = vpack.c.b16 %v515, %v515
        %517 = vrot.lane.b32.xlu0 %v516, 120
        %v518 = vpop.permute.xlu0 %517
        %v520 = vsel %vm421, %v513, 0
        %v523 = vsel %vm456, %v518, 0
        %525 = vmatpush.bf16.msra.mxu0 0
        %526 = vmatpush.bf16.msra.mxu0 0
        %527 = vmatpush.bf16.msra.mxu0 0
        %528 = vmatpush.bf16.msra.mxu0 0
        %529 = vmatpush.bf16.msra.mxu0 0
        %530 = vmatpush.bf16.msra.mxu0 0
        %531 = vmatpush.bf16.msra.mxu0 0
        %532 = vmatpush.bf16.msra.mxu0 %v523
        %533 = vmatmul.bf16.gmra.mxu0 %v520
        %v534 = vpop.f32.mrf.mxu0
        %v535 = vadd.f32 0.0, %v534
        %v536 = vpop.f32.mrf.mxu0
        %537 = vdwg.mxu0
        %538 = vrot.lane.b32.xlu0 %v475, 112
        %v539 = vpop.permute.xlu0 %538
        %540 = vrot.lane.b32.xlu0 %v480, 112
        %v541 = vpop.permute.xlu0 %540
        %v543 = vsel %vm421, %v539, 0
        %v546 = vsel %vm421, %v541, 0
        %548 = vmatpush.bf16.xpose.msra.mxu0 0
        %549 = vmatpush.bf16.xpose.msra.mxu0 0
        %550 = vmatpush.bf16.xpose.msra.mxu0 0
        %551 = vmatpush.bf16.xpose.msra.mxu0 0
        %552 = vmatpush.bf16.xpose.msra.mxu0 0
        %553 = vmatpush.bf16.xpose.msra.mxu0 0
        %554 = vmatpush.bf16.xpose.msra.mxu0 0
        %555 = vmatpush.bf16.xpose.msra.mxu0 %v546
        %556 = vmatmul.bf16.gmra.mxu0 %v543
        %v557 = vpop.f32.mrf.mxu0
        %v558 = vadd.f32 0.0, %v557
        %v559 = vpop.f32.mrf.mxu0
        %560 = vdwg.mxu0
        %v561 = vsel %vm421, %v558, -inf
        %562 = vmax.xlane.f32.xlu0 %v561
        %v563 = vpop.xlane.xlu0 %562
        %v564 = vsub.f32 %v558, %v563
        %v565 = vmul.f32 %v564, 1.442695
        %v566 = vpow.pop %v565
        %v567 = vsel %vm421, %v566, 0.0
        %568 = vadd.xlane.f32.xlu0 %v567
        %v569 = vpop.xlane.xlu0 %568
        %v570 = vrcp.pop %v569
        %v571 = vmul.f32 %v566, %v570
        %v572 = vpack.c.bf16 %v571, %v571
        %573 = vrot.lane.b32.xlu0 %v516, 112
        %v574 = vpop.permute.xlu0 %573
        %v576 = vsel %vm421, %v572, 0
        %v579 = vsel %vm456, %v574, 0
        %581 = vmatpush.bf16.msra.mxu0 0
        %582 = vmatpush.bf16.msra.mxu0 0
        %583 = vmatpush.bf16.msra.mxu0 0
        %584 = vmatpush.bf16.msra.mxu0 0
        %585 = vmatpush.bf16.msra.mxu0 0
        %586 = vmatpush.bf16.msra.mxu0 0
        %587 = vmatpush.bf16.msra.mxu0 0
        %588 = vmatpush.bf16.msra.mxu0 %v579
        %589 = vmatmul.bf16.gmra.mxu0 %v576
        %v590 = vpop.f32.mrf.mxu0
        %v591 = vadd.f32 0.0, %v590
        %v592 = vpop.f32.mrf.mxu0
        %593 = vdwg.mxu0
        %594 = vrot.lane.b32.xlu0 %v475, 104
        %v595 = vpop.permute.xlu0 %594
        %596 = vrot.lane.b32.xlu0 %v480, 104
        %v597 = vpop.permute.xlu0 %596
        %v599 = vsel %vm421, %v595, 0
        %v602 = vsel %vm421, %v597, 0
        %604 = vmatpush.bf16.xpose.msra.mxu0 0
        %605 = vmatpush.bf16.xpose.msra.mxu0 0
        %606 = vmatpush.bf16.xpose.msra.mxu0 0
        %607 = vmatpush.bf16.xpose.msra.mxu0 0
        %608 = vmatpush.bf16.xpose.msra.mxu0 0
        %609 = vmatpush.bf16.xpose.msra.mxu0 0
        %610 = vmatpush.bf16.xpose.msra.mxu0 0
        %611 = vmatpush.bf16.xpose.msra.mxu0 %v602
        %612 = vmatmul.bf16.gmra.mxu0 %v599
        %v613 = vpop.f32.mrf.mxu0
        %v614 = vadd.f32 0.0, %v613
        %v615 = vpop.f32.mrf.mxu0
        %616 = vdwg.mxu0
        %v617 = vsel %vm421, %v614, -inf
        %618 = vmax.xlane.f32.xlu0 %v617
        %v619 = vpop.xlane.xlu0 %618
        %v620 = vsub.f32 %v614, %v619
        %v621 = vmul.f32 %v620, 1.442695
        %v622 = vpow.pop %v621
        %v623 = vsel %vm421, %v622, 0.0
        %624 = vadd.xlane.f32.xlu0 %v623
        %v625 = vpop.xlane.xlu0 %624
        %v626 = vrcp.pop %v625
        %v627 = vmul.f32 %v622, %v626
        %v628 = vpack.c.bf16 %v627, %v627
        %629 = vrot.lane.b32.xlu0 %v516, 104
        %v630 = vpop.permute.xlu0 %629
        %v632 = vsel %vm421, %v628, 0
        %v635 = vsel %vm456, %v630, 0
        %637 = vmatpush.bf16.msra.mxu0 0
        %638 = vmatpush.bf16.msra.mxu0 0
        %639 = vmatpush.bf16.msra.mxu0 0
        %640 = vmatpush.bf16.msra.mxu0 0
        %641 = vmatpush.bf16.msra.mxu0 0
        %642 = vmatpush.bf16.msra.mxu0 0
        %643 = vmatpush.bf16.msra.mxu0 0
        %644 = vmatpush.bf16.msra.mxu0 %v635
        %645 = vmatmul.bf16.gmra.mxu0 %v632
        %v646 = vpop.f32.mrf.mxu0
        %v647 = vadd.f32 0.0, %v646
        %v648 = vpop.f32.mrf.mxu0
        %649 = vdwg.mxu0
        %651 = vrot.lane.b32.xlu0 %v535, 8
        %v652 = vpop.permute.xlu0 %651
        %655 = vrot.lane.b32.xlu0 %v591, 16
        %v656 = vpop.permute.xlu0 %655
        %659 = vrot.lane.b32.xlu0 %v647, 24
        %v660 = vpop.permute.xlu0 %659
        %v662 = vsel %vm421, %v470, %v652
        %vm663 = vcmask 130048
        %v664 = vsel %vm663, %v662, %v656
        %vm665 = vcmask 195584
        %v666 = vsel %vm665, %v664, %v660
        %v667 = vpack.c.bf16 %v666, %v666
        %v668 = vld [vmem:[#allocation2] sm:$0xf]
        %v669 = vld [vmem:[#allocation2 + $0x4] sm:$0xf]
        %v670 = vld [vmem:[#allocation2 + $0x8] sm:$0xf]
        %v671 = vld [vmem:[#allocation2 + $0xc] sm:$0xf]
        %v672 = vld [vmem:[%s4] sm:$0x1]
        %v674 = vperm.slane %v672, 0
        %v680 = vunpack.c.l.b16 %v668
        %v681 = vunpack.c.l.b16 %v669
        %v682 = vunpack.c.l.b16 %v670
        %v683 = vunpack.c.l.b16 %v671
        %v684 = vpack.c.b16 %v681, %v680
        %v685 = vpack.c.b16 %v683, %v682
        %vm688 = vcmask 261120
        %v690 = vsel %vm688, %v667, 0
        %692 = vmatpush.bf16.msra.mxu0 0
        %693 = vmatpush.bf16.msra.mxu0 0
        %694 = vmatpush.bf16.msra.mxu0 0
        %695 = vmatpush.bf16.msra.mxu0 0
        %696 = vmatpush.bf16.msra.mxu0 0
        %697 = vmatpush.bf16.msra.mxu0 0
        %698 = vmatpush.bf16.msra.mxu0 %v685
        %699 = vmatpush.bf16.msra.mxu0 %v684
        %700 = vmatmul.bf16.gmra.mxu0 %v690
        %v701 = vpop.f32.mrf.mxu0
        %v702 = vadd.f32 %v674, %v701
        %v703 = vpop.f32.mrf.mxu0
        %704 = vdwg.mxu0
        %v705 = vld [vmem:[%s409] sm:$0xff]
        %v706 = vadd.f32 %v702, %v705
        %v707 = vsel %vm688, %v706, 0.0
        %708 = vadd.xlane.f32.xlu0 %v707
        %v709 = vpop.xlane.xlu0 %708
        %v710 = vrcp.pop 32.0
        %v711 = vmul.f32 32.0, %v710
        %v712 = vsub.f32 1.0, %v711
        %v713 = vmul.f32 %v710, %v712
        %v714 = vadd.f32 %v710, %v713
        %vm715 = vweird.f32 %v710
        %v716 = vsel %vm715, %v710, %v714
        %v717 = vmul.f32 %v709, %v716
        %v718 = vsub.f32 %v706, %v717
        %v719 = vmul.f32 %v718, %v718
        %v720 = vsel %vm688, %v719, 0.0
        %721 = vadd.xlane.f32.xlu0 %v720
        %v722 = vpop.xlane.xlu0 %721
        %v723 = vmul.f32 %v722, %v716
        %v724 = vadd.f32 %v723, 1e-05
        %v725 = vrsqrt.pop %v724
        %v726 = vmul.f32 %v725, %v724
        %v727 = vmul.f32 %v726, %v725
        %v728 = vmul.f32 0.5, %v727
        %v729 = vsub.f32 1.5, %v728
        %v730 = vmul.f32 %v725, %v729
        %vm731 = vweird.f32 %v724
        %vm732 = vweird.f32 %v725
        %vm733 = vmor %vm731, %vm732
        %v734 = vsel %vm733, %v725, %v730
        %v735 = vmul.f32 %v718, %v734
        %v736 = vld [vmem:[%s6] sm:$0x1]
        %v738 = vperm.slane %v736, 0
        %v740 = vmul.f32 %v735, %v738
        %v741 = vld [vmem:[%s7] sm:$0x1]
        %v743 = vperm.slane %v741, 0
        %v745 = vadd.f32 %v740, %v743
        %746 = vst.msk [vmem:[%s416] sm:$0xff] %vm688, %v745
        %p747 = scmp.lt.s32.totalorder %s24, 1
        %s748 = scalar_select %p747, %s24, 1
        %p749 = scmp.lt.s32.totalorder %s25, 0
        %s750 = scalar_select %p749, %s25, 0
        %s751 = sadd.s32 %s750, %s748
        %s752 = smul.addr %s751, 8
        %s753 = scalar_lea.vmem %s8, %s752
        // Predicated region
        $region57: #{transformer_decoder_forward.14} parent=51 // pred_check
          %p754 = pneg %p244
        $region58: #{transformer_decoder_forward.14} parent=51 // pred_check_branch
          %756 = sbr.rel (%p754) target = $region60
        $region59: #{transformer_decoder_forward.14} parent=51 // pred_region
          _
        $region60: #{transformer_decoder_forward.14} parent=51 // pred_fallthru
          _
      $region52: #{transformer_decoder_forward.14} parent=5 // pred_fallthru
        _
      %p757 = scmp.le.s32.totalorder 2, %s15
      // Predicated region
      $region61: #{transformer_decoder_forward.14} parent=5 // pred_check
        %p758 = pneg %p757
      $region62: #{transformer_decoder_forward.14} parent=5 // pred_check_branch
        %760 = sbr.rel (%p758) target = $region64
      $region63: #{transformer_decoder_forward.14} parent=5 // pred_region
        %s761 = ssub.s32 %s15, 2
        // Predicated region
        $region65: #{transformer_decoder_forward.14} parent=63 // pred_check
          %p762 = pneg %p250
        $region66: #{transformer_decoder_forward.14} parent=63 // pred_check_branch
          %764 = sbr.rel (%p762) target = $region68
        $region67: #{transformer_decoder_forward.14} parent=63 // pred_region
          %p765 = scmp.lt.s32.totalorder %s26, 1
          %s766 = scalar_select %p765, %s26, 1
          %p767 = scmp.lt.s32.totalorder %s27, 0
          %s768 = scalar_select %p767, %s27, 0
          %s769 = sadd.s32 %s768, %s766
          %s770 = smul.addr %s769, 8
          %s771 = scalar_lea.vmem %s8, %s770
        $region68: #{transformer_decoder_forward.14} parent=63 // pred_fallthru
          _
      $region64: #{transformer_decoder_forward.14} parent=5 // pred_fallthru
        _
    $region6: #{transformer_decoder_forward.14} parent=1 // loop_footer
      %s19 = sadd.s32 1, %s15
    $region7: #{transformer_decoder_forward.14} parent=1 // loop_footer_branch
      %14 = sbr.rel target = $region3
    $region8: #{transformer_decoder_forward.14} parent=1 // loop_exit
      _
    %772 = vsyncpa [#allocation3], 1
    %s773 = scalar_lea.sflag [#allocation3], 1
    %774 = vsyncpa %s773, 1

// kernel: transformer_decoder_forward.16
$region0: #{transformer_decoder_forward.16}
  #allocation0 [shape = 'u32[]', space=smem, size = 0x4, offset = 0x4, fixed_abs, tag = 'smem constant byte address 0x4 - core index']
  #allocation1 [shape = 'u32[72,128]{1,0:T(1,128)}', space=vmem, size = 0x9000, scoped, tag = 'internal scratch']
  #allocation2 [shape = 'f32[16,32]{1,0:T(8,128)}', space=vmem, size = 0x2000, scoped, tag = 'scratch operand']
  %s0 = inlined_call_operand.vmem [shape: f32[16,32], index: 0, kind: input, shape index: {}]
  %s1 = inlined_call_operand.vmem [shape: bf16[2,32,32], index: 1, kind: input, shape index: {}]
  %s2 = inlined_call_operand.hbm [shape: f32[2,1,32], index: 2, kind: input, shape index: {}]
  %s3 = inlined_call_operand.vmem [shape: bf16[2,16,32], index: 3, kind: output, shape index: {}]
  %s4 = sld [smem:[#allocation0]]
  $region57: #{transformer_decoder_forward.16} parent=0
    _
  %s6 = ssub.s32 1, %s4
  %s7 = scalar_select 0, %s6, %s4
  $region1: #{transformer_decoder_forward.16} parent=0
    #allocation3 [shape = 'u8[1024]{0}', space=vmem, size = 0x400, scoped, tag = 'input window, operand 2']
    #allocation4 [shape = 's32[2]{0}', space=sflag, size = 0x8, scoped, tag = 'scoped memory for transformer_decoder_forward.16']
    %8 = vsyncpa [#allocation4], 0
    %s9 = scalar_lea.sflag [#allocation4], 1
    %10 = vsyncpa %s9, 0
    loop: start=0, step=1, limit=4
    $region2: #{transformer_decoder_forward.16} parent=1 // loop_pre_header
      _
    $region3: #{transformer_decoder_forward.16} parent=1 // loop_header
      %s12 = sphi 0, %s16
      %p13 = scmp.ge.s32.totalorder %s12, 4
      %s19 = sphi 0, %s45
      %s20 = sphi 0, %s41
      %s21 = sphi 0, %s37
      %s22 = sphi 0, %s33
      %s23 = sphi 0, %s19
      %s24 = sphi 0, %s20
      %s25 = sphi 0, %s21
      %s26 = sphi 0, %s22
      %s27 = sphi 0, %s23
      %s28 = sphi 0, %s24
      %s29 = sphi 0, %s25
      %s30 = sphi 0, %s26
      %s50 = sphi 0, %s52
      %s53 = sphi 0, %s50
      %s54 = sphi 0, %s53
      %s70 = sphi 0, %s54
      %s80 = sphi 0, %s82
      %s83 = sphi 0, %s80
      %s84 = sphi 0, %s83
      %s100 = sphi 0, %s84
      %s108 = sphi 0, %s110
      %s111 = sphi 0, %s108
      %s112 = sphi 0, %s111
      %s128 = sphi 0, %s112
      %s138 = sphi 0, %s140
      %s141 = sphi 0, %s138
      %s142 = sphi 0, %s141
      %s158 = sphi 0, %s142
    $region4: #{transformer_decoder_forward.16} parent=1 // loop_header_branch
      %15 = sbr.rel (%p13) target = $region8
    $region5: #{transformer_decoder_forward.16} parent=1 // loop_body
      %s17 = ssub.s32 %s12, 1
      %s18 = ssub.s32 %s12, 2
      %s31 = sadd.s32 1, %s22
      %p32 = scmp.ge.s32.totalorder %s31, 1
      %s33 = scalar_select %p32, 0, %s31
      %s34 = sadd.s32 1, %s21
      %s35 = scalar_select %p32, %s34, %s21
      %p36 = scmp.ge.s32.totalorder %s35, 1
      %s37 = scalar_select %p36, 0, %s35
      %s38 = sadd.s32 1, %s20
      %s39 = scalar_select %p36, %s38, %s20
      %p40 = scmp.ge.s32.totalorder %s39, 1
      %s41 = scalar_select %p40, 0, %s39
      %s42 = sadd.s32 1, %s19
      %s43 = scalar_select %p40, %s42, %s19
      %p44 = scmp.ge.s32.totalorder %s43, 2
      %s45 = scalar_select %p44, 0, %s43
      %s46 = ssub.s32 %s20, %s41
      %s47 = ssub.s32 %s22, %s33
      %s48 = sor.u32 %s46, %s47
      %p49 = scmp.eq.s32.totalorder %s48, 0
      %s51 = sadd.s32 %s50, 1
      %s52 = scalar_select %p49, %s50, %s51
      %p55 = pneg %p49
      %p56 = scmp.eq.s32.totalorder %s12, 1
      %p57 = por %p55, %p56
      %p58 = scmp.ne.s32.totalorder %s50, %s53
      %p59 = scmp.eq.s32.totalorder %s12, 0
      %p60 = por %p58, %p59
      %p61 = scmp.ne.s32.totalorder %s50, %s53
      %p62 = scmp.eq.s32.totalorder %s17, 1
      %p63 = por %p61, %p62
      %p64 = scmp.ne.s32.totalorder %s53, %s54
      %p65 = scmp.eq.s32.totalorder %s17, 0
      %p66 = por %p64, %p65
      %p67 = scmp.ne.s32.totalorder %s53, %s54
      %p68 = scmp.eq.s32.totalorder %s18, 1
      %p69 = por %p67, %p68
      %p71 = scmp.ne.s32.totalorder %s54, %s70
      %p72 = scmp.eq.s32.totalorder %s18, 0
      %p73 = por %p71, %p72
      %s74 = ssub.s32 %s19, %s45
      %s75 = ssub.s32 %s22, %s33
      %s76 = sor.u32 %s74, %s75
      %s77 = ssub.s32 %s21, %s37
      %s78 = sor.u32 %s76, %s77
      %p79 = scmp.eq.s32.totalorder %s78, 0
      %s81 = sadd.s32 %s80, 1
      %s82 = scalar_select %p79, %s80, %s81
      %p85 = pneg %p79
      %p86 = scmp.eq.s32.totalorder %s12, 1
      %p87 = por %p85, %p86
      %p88 = scmp.ne.s32.totalorder %s80, %s83
      %p89 = scmp.eq.s32.totalorder %s12, 0
      %p90 = por %p88, %p89
      %p91 = scmp.ne.s32.totalorder %s80, %s83
      %p92 = scmp.eq.s32.totalorder %s17, 1
      %p93 = por %p91, %p92
      %p94 = scmp.ne.s32.totalorder %s83, %s84
      %p95 = scmp.eq.s32.totalorder %s17, 0
      %p96 = por %p94, %p95
      %p97 = scmp.ne.s32.totalorder %s83, %s84
      %p98 = scmp.eq.s32.totalorder %s18, 1
      %p99 = por %p97, %p98
      %p101 = scmp.ne.s32.totalorder %s84, %s100
      %p102 = scmp.eq.s32.totalorder %s18, 0
      %p103 = por %p101, %p102
      %s104 = ssub.s32 %s19, %s45
      %s105 = ssub.s32 %s21, %s37
      %s106 = sor.u32 %s104, %s105
      %p107 = scmp.eq.s32.totalorder %s106, 0
      %s109 = sadd.s32 %s108, 1
      %s110 = scalar_select %p107, %s108, %s109
      %p113 = pneg %p107
      %p114 = scmp.eq.s32.totalorder %s12, 1
      %p115 = por %p113, %p114
      %p116 = scmp.ne.s32.totalorder %s108, %s111
      %p117 = scmp.eq.s32.totalorder %s12, 0
      %p118 = por %p116, %p117
      %p119 = scmp.ne.s32.totalorder %s108, %s111
      %p120 = scmp.eq.s32.totalorder %s17, 1
      %p121 = por %p119, %p120
      %p122 = scmp.ne.s32.totalorder %s111, %s112
      %p123 = scmp.eq.s32.totalorder %s17, 0
      %p124 = por %p122, %p123
      %p125 = scmp.ne.s32.totalorder %s111, %s112
      %p126 = scmp.eq.s32.totalorder %s18, 1
      %p127 = por %p125, %p126
      %p129 = scmp.ne.s32.totalorder %s112, %s128
      %p130 = scmp.eq.s32.totalorder %s18, 0
      %p131 = por %p129, %p130
      %s132 = ssub.s32 %s19, %s45
      %s133 = ssub.s32 %s20, %s41
      %s134 = sor.u32 %s132, %s133
      %s135 = ssub.s32 %s21, %s37
      %s136 = sor.u32 %s134, %s135
      %p137 = scmp.eq.s32.totalorder %s136, 0
      %s139 = sadd.s32 %s138, 1
      %s140 = scalar_select %p137, %s138, %s139
      %p143 = pneg %p137
      %p144 = scmp.eq.s32.totalorder %s12, 1
      %p145 = por %p143, %p144
      %p146 = scmp.ne.s32.totalorder %s138, %s141
      %p147 = scmp.eq.s32.totalorder %s12, 0
      %p148 = por %p146, %p147
      %p149 = scmp.ne.s32.totalorder %s138, %s141
      %p150 = scmp.eq.s32.totalorder %s17, 1
      %p151 = por %p149, %p150
      %p152 = scmp.ne.s32.totalorder %s141, %s142
      %p153 = scmp.eq.s32.totalorder %s17, 0
      %p154 = por %p152, %p153
      %p155 = scmp.ne.s32.totalorder %s141, %s142
      %p156 = scmp.eq.s32.totalorder %s18, 1
      %p157 = por %p155, %p156
      %p159 = scmp.ne.s32.totalorder %s142, %s158
      %p160 = scmp.eq.s32.totalorder %s18, 0
      %p161 = por %p159, %p160
      %p162 = scmp.le.s32.totalorder 1, %s12
      %p163 = scmp.lt.s32.totalorder %s12, 3
      %p164 = pnand %p162, %p163
      %p165 = pneg %p164
      // Predicated region
      $region9: #{transformer_decoder_forward.16} parent=5 // pred_check
        _
      $region10: #{transformer_decoder_forward.16} parent=5 // pred_check_branch
        %167 = sbr.rel (%p164) target = $region12
      $region11: #{transformer_decoder_forward.16} parent=5 // pred_region
        %s168 = ssub.s32 %s12, 1
        // Predicated region
        $region13: #{transformer_decoder_forward.16} parent=11 // pred_check
          %p169 = pneg %p66
        $region14: #{transformer_decoder_forward.16} parent=11 // pred_check_branch
          %171 = sbr.rel (%p169) target = $region16
        $region15: #{transformer_decoder_forward.16} parent=11 // pred_region
          %s172 = smul.u32 2, %s24
          %p173 = scmp.lt.s32.totalorder %s172, 1
          %s174 = scalar_select %p173, %s172, 1
          %p175 = scmp.lt.s32.totalorder %s26, 0
          %s176 = scalar_select %p175, %s26, 0
          %s177 = sadd.s32 %s176, %s174
          %s178 = smul.addr %s177, 8
          %s179 = scalar_lea.vmem %s0, %s178
          %s180 = smul.u32 2, %s24
        $region16: #{transformer_decoder_forward.16} parent=11 // pred_fallthru
          _
      $region12: #{transformer_decoder_forward.16} parent=5 // pred_fallthru
        _
      %p181 = scmp.lt.s32.totalorder %s12, 2
      // Predicated region
      $region17: #{transformer_decoder_forward.16} parent=5 // pred_check
        %p182 = pneg %p181
      $region18: #{transformer_decoder_forward.16} parent=5 // pred_check_branch
        %184 = sbr.rel (%p182) target = $region20
      $region19: #{transformer_decoder_forward.16} parent=5 // pred_region
        // Predicated region
        $region21: #{transformer_decoder_forward.16} parent=19 // pred_check
          %p185 = pneg %p90
        $region22: #{transformer_decoder_forward.16} parent=19 // pred_check_branch
          %187 = sbr.rel (%p185) target = $region24
        $region23: #{transformer_decoder_forward.16} parent=19 // pred_region
          %s188 = smul.u32 4, %s22
          %p189 = scmp.lt.s32.totalorder %s19, 1
          %s190 = scalar_select %p189, %s19, 1
          %p191 = scmp.lt.s32.totalorder %s188, 3
          %s192 = scalar_select %p191, %s188, 3
          %p193 = scmp.lt.s32.totalorder %s21, 0
          %s194 = scalar_select %p193, %s21, 0
          %s195 = sadd.s32 %s194, %s192
          %s196 = smul.addr %s190, 4
          %s197 = sadd.s32 %s195, %s196
          %s198 = smul.addr %s197, 4
          %s199 = scalar_lea.vmem %s1, %s198
          %s200 = smul.u32 4, %s22
        $region24: #{transformer_decoder_forward.16} parent=19 // pred_fallthru
          _
        // Predicated region
        $region25: #{transformer_decoder_forward.16} parent=19 // pred_check
          %p201 = pneg %p118
        $region26: #{transformer_decoder_forward.16} parent=19 // pred_check_branch
          %203 = sbr.rel (%p201) target = $region28
        $region27: #{transformer_decoder_forward.16} parent=19 // pred_region
          %s204 = sand.u32 %s108, 1
          %s205 = scalar_lea.sflag [#allocation4], %s204
          %s206 = sand.u32 %s108, 1
          %s207 = scalar_lea.vmem [#allocation3], %s206
          %209 = vsyncadd %s205, 0
          %s210 = sadd.s32 %s21, %s19
          %s211 = scalar_lea.hbm %s2, %s210
          %s213 = sshll.u32 %s211, 4
          %s214 = int_to_ptr.hbm [resolvable:$true] %s213
          %s215 = sshll.u32 %s207, 4
          %s216 = int_to_ptr.vmem [resolvable:$true] %s215
          %218 = dma.hbm_to_vmem [thread:$0]  %s214, 16, %s216, %s205
        $region28: #{transformer_decoder_forward.16} parent=19 // pred_fallthru
          _
      $region20: #{transformer_decoder_forward.16} parent=5 // pred_fallthru
        _
      %p219 = scmp.le.s32.totalorder 1, %s12
      %p220 = scmp.lt.s32.totalorder %s12, 3
      %p221 = pnand %p219, %p220
      %p222 = pneg %p221
      // Predicated region
      $region29: #{transformer_decoder_forward.16} parent=5 // pred_check
        _
      $region30: #{transformer_decoder_forward.16} parent=5 // pred_check_branch
        %224 = sbr.rel (%p221) target = $region32
      $region31: #{transformer_decoder_forward.16} parent=5 // pred_region
        %s225 = ssub.s32 %s12, 1
        %s226 = sand.u32 %s111, 1
        %s227 = scalar_lea.sflag [#allocation4], %s226
        %s228 = sand.u32 %s111, 1
        %s229 = scalar_lea.vmem [#allocation3], %s228
        // Predicated region
        $region33: #{transformer_decoder_forward.16} parent=31 // pred_check
          %p230 = pneg %p124
        $region34: #{transformer_decoder_forward.16} parent=31 // pred_check_branch
          %232 = sbr.rel (%p230) target = $region36
        $region35: #{transformer_decoder_forward.16} parent=31 // pred_region
          %234 = dma.done %s227, 16
        $region36: #{transformer_decoder_forward.16} parent=31 // pred_fallthru
          _
        %s235 = smul.u32 2, %s24
        %p236 = scmp.lt.s32.totalorder %s235, 1
        %s237 = scalar_select %p236, %s235, 1
        %p238 = scmp.lt.s32.totalorder %s26, 0
        %s239 = scalar_select %p238, %s26, 0
        %s240 = sadd.s32 %s239, %s237
        %s241 = smul.addr %s240, 8
        %s242 = scalar_lea.vmem %s0, %s241
        %p243 = pneg %p66
        %p244 = pneg %p63
        %s245 = smul.u32 4, %s26
        %p246 = scmp.lt.s32.totalorder %s23, 1
        %s247 = scalar_select %p246, %s23, 1
        %p248 = scmp.lt.s32.totalorder %s245, 3
        %s249 = scalar_select %p248, %s245, 3
        %p250 = scmp.lt.s32.totalorder %s25, 0
        %s251 = scalar_select %p250, %s25, 0
        %s252 = sadd.s32 %s251, %s249
        %s253 = smul.addr %s247, 4
        %s254 = sadd.s32 %s252, %s253
        %s255 = smul.addr %s254, 4
        %s256 = scalar_lea.vmem %s1, %s255
        %p257 = pneg %p96
        %p258 = pneg %p93
        %s259 = sand.u32 %s111, 1
        %s260 = scalar_lea.sflag [#allocation4], %s259
        %s261 = sand.u32 %s111, 1
        %s262 = scalar_lea.vmem [#allocation3], %s261
        %p263 = pneg %p124
        %p264 = pneg %p121
        %p265 = pneg %p154
        %p266 = pneg %p151
        %s267 = smul.u32 2, %s24
        %p268 = scmp.lt.s32.totalorder %s23, 1
        %s269 = scalar_select %p268, %s23, 1
        %p270 = scmp.lt.s32.totalorder %s267, 1
        %s271 = scalar_select %p270, %s267, 1
        %p272 = scmp.lt.s32.totalorder %s25, 0
        %s273 = scalar_select %p272, %s25, 0
        %s274 = sadd.s32 %s273, %s271
        %s275 = smul.addr %s269, 2
        %s276 = sadd.s32 %s274, %s275
        %s277 = smul.addr %s276, 4
        %s278 = scalar_lea.vmem %s3, %s277
        %s279 = smul.u32 2, %s24
        %p280 = scmp.lt.s32.totalorder %s279, 1
        %s281 = scalar_select %p280, %s279, 1
        %p282 = scmp.lt.s32.totalorder %s26, 0
        %s283 = scalar_select %p282, %s26, 0
        %s284 = sadd.s32 %s283, %s281
        %s285 = smul.addr %s284, 8
        %s286 = scalar_lea.vmem %s0, %s285
        %s287 = smul.u32 2, %s24
        %s288 = smul.u32 4, %s26
        %p289 = scmp.lt.s32.totalorder %s23, 1
        %s290 = scalar_select %p289, %s23, 1
        %p291 = scmp.lt.s32.totalorder %s288, 3
        %s292 = scalar_select %p291, %s288, 3
        %p293 = scmp.lt.s32.totalorder %s25, 0
        %s294 = scalar_select %p293, %s25, 0
        %s295 = sadd.s32 %s294, %s292
        %s296 = smul.addr %s290, 4
        %s297 = sadd.s32 %s295, %s296
        %s298 = smul.addr %s297, 4
        %s299 = scalar_lea.vmem %s1, %s298
        %s300 = smul.u32 4, %s26
        %s301 = smul.u32 2, %s24
        %p302 = scmp.lt.s32.totalorder %s23, 1
        %s303 = scalar_select %p302, %s23, 1
        %p304 = scmp.lt.s32.totalorder %s301, 1
        %s305 = scalar_select %p304, %s301, 1
        %p306 = scmp.lt.s32.totalorder %s25, 0
        %s307 = scalar_select %p306, %s25, 0
        %s308 = sadd.s32 %s307, %s305
        %s309 = smul.addr %s303, 2
        %s310 = sadd.s32 %s308, %s309
        %s311 = smul.addr %s310, 4
        %s312 = scalar_lea.vmem %s3, %s311
        %s313 = smul.u32 2, %s24
        %p315 = scmp.eq.s32.totalorder %s26, 0
        // Predicated region
        $region37: #{transformer_decoder_forward.16} parent=31 // pred_check
          %p316 = pneg %p315
        $region38: #{transformer_decoder_forward.16} parent=31 // pred_check_branch
          %318 = sbr.rel (%p316) target = $region40
        $region39: #{transformer_decoder_forward.16} parent=31 // pred_region
          %vm319 = vcmask 261120
          %320 = vst.msk [vmem:[#allocation2] sm:$0xff] %vm319, 0.0
          %321 = vst.msk [vmem:[#allocation2 + $0x8] sm:$0xff] %vm319, 0.0
        $region40: #{transformer_decoder_forward.16} parent=31 // pred_fallthru
          _
        %v322 = vld [vmem:[#allocation2] sm:$0xff]
        %v323 = vld [vmem:[#allocation2 + $0x8] sm:$0xff]
        %v324 = vld [vmem:[%s286] sm:$0xff]
        %v325 = vld [vmem:[%s286 + $0x8] sm:$0xff]
        %v326 = vpack.c.bf16 %v325, %v324
        %v327 = vld [vmem:[%s299] sm:$0xf]
        %v328 = vld [vmem:[%s299 + $0x4] sm:$0xf]
        %v329 = vld [vmem:[%s299 + $0x8] sm:$0xf]
        %v330 = vld [vmem:[%s299 + $0xc] sm:$0xf]
        %v335 = vunpack.c.l.b16 %v327
        %v336 = vunpack.c.l.b16 %v328
        %v337 = vunpack.c.l.b16 %v329
        %v338 = vunpack.c.l.b16 %v330
        %v339 = vpack.c.b16 %v336, %v335
        %v340 = vpack.c.b16 %v338, %v337
        %vm343 = vcmask 261120
        %v345 = vsel %vm343, %v326, 0
        %347 = vmatpush.bf16.msra.mxu0 0
        %348 = vmatpush.bf16.msra.mxu0 0
        %349 = vmatpush.bf16.msra.mxu0 0
        %350 = vmatpush.bf16.msra.mxu0 0
        %351 = vmatpush.bf16.msra.mxu0 0
        %352 = vmatpush.bf16.msra.mxu0 0
        %353 = vmatpush.bf16.msra.mxu0 %v340
        %354 = vmatpush.bf16.msra.mxu0 %v339
        %355 = vmatmul.bf16.gmra.mxu0 %v345
        %v356 = vpop.f32.mrf.mxu0
        %v357 = vadd.f32 0.0, %v356
        %v358 = vpop.f32.mrf.mxu0
        %v359 = vadd.f32 0.0, %v358
        %360 = vdwg.mxu0
        %v361 = vadd.f32 %v322, %v357
        %v362 = vadd.f32 %v323, %v359
        %363 = vst.msk [vmem:[#allocation2] sm:$0xff] %vm343, %v361
        %364 = vst.msk [vmem:[#allocation2 + $0x8] sm:$0xff] %vm343, %v362
        // Predicated region
        $region41: #{transformer_decoder_forward.16} parent=31 // pred_check
          %p365 = pneg %p315
        $region42: #{transformer_decoder_forward.16} parent=31 // pred_check_branch
          %367 = sbr.rel (%p365) target = $region44
        $region43: #{transformer_decoder_forward.16} parent=31 // pred_region
          %v368 = vld [vmem:[#allocation2] sm:$0xff]
          %v369 = vld [vmem:[#allocation2 + $0x8] sm:$0xff]
          %v370 = vld [vmem:[%s229] sm:$0x1]
          %v372 = vperm.slane %v370, 0
          %v374 = vadd.f32 %v368, %v372
          %v375 = vadd.f32 %v369, %v372
          %v376 = vpack.c.bf16 %v374, %v374
          %v377 = vpack.c.bf16 %v375, %v375
          %vm378 = vcmask 257024
          %379 = vst.msk [vmem:[%s312] sm:$0xf] %vm378, %v376
          %380 = vst.msk [vmem:[%s312 + $0x4] sm:$0xf] %vm378, %v377
        $region44: #{transformer_decoder_forward.16} parent=31 // pred_fallthru
          _
        %s381 = smul.u32 2, %s24
        %p382 = scmp.lt.s32.totalorder %s23, 1
        %s383 = scalar_select %p382, %s23, 1
        %p384 = scmp.lt.s32.totalorder %s381, 1
        %s385 = scalar_select %p384, %s381, 1
        %p386 = scmp.lt.s32.totalorder %s25, 0
        %s387 = scalar_select %p386, %s25, 0
        %s388 = sadd.s32 %s387, %s385
        %s389 = smul.addr %s383, 2
        %s390 = sadd.s32 %s388, %s389
        %s391 = smul.addr %s390, 4
        %s392 = scalar_lea.vmem %s3, %s391
        // Predicated region
        $region45: #{transformer_decoder_forward.16} parent=31 // pred_check
          %p393 = pneg %p151
        $region46: #{transformer_decoder_forward.16} parent=31 // pred_check_branch
          %395 = sbr.rel (%p393) target = $region48
        $region47: #{transformer_decoder_forward.16} parent=31 // pred_region
          %s396 = smul.u32 2, %s24
        $region48: #{transformer_decoder_forward.16} parent=31 // pred_fallthru
          _
      $region32: #{transformer_decoder_forward.16} parent=5 // pred_fallthru
        _
      %p397 = scmp.le.s32.totalorder 2, %s12
      // Predicated region
      $region49: #{transformer_decoder_forward.16} parent=5 // pred_check
        %p398 = pneg %p397
      $region50: #{transformer_decoder_forward.16} parent=5 // pred_check_branch
        %400 = sbr.rel (%p398) target = $region52
      $region51: #{transformer_decoder_forward.16} parent=5 // pred_region
        %s401 = ssub.s32 %s12, 2
        // Predicated region
        $region53: #{transformer_decoder_forward.16} parent=51 // pred_check
          %p402 = pneg %p157
        $region54: #{transformer_decoder_forward.16} parent=51 // pred_check_branch
          %404 = sbr.rel (%p402) target = $region56
        $region55: #{transformer_decoder_forward.16} parent=51 // pred_region
          %s405 = smul.u32 2, %s28
          %p406 = scmp.lt.s32.totalorder %s27, 1
          %s407 = scalar_select %p406, %s27, 1
          %p408 = scmp.lt.s32.totalorder %s405, 1
          %s409 = scalar_select %p408, %s405, 1
          %p410 = scmp.lt.s32.totalorder %s29, 0
          %s411 = scalar_select %p410, %s29, 0
          %s412 = sadd.s32 %s411, %s409
          %s413 = smul.addr %s407, 2
          %s414 = sadd.s32 %s412, %s413
          %s415 = smul.addr %s414, 4
          %s416 = scalar_lea.vmem %s3, %s415
        $region56: #{transformer_decoder_forward.16} parent=51 // pred_fallthru
          _
      $region52: #{transformer_decoder_forward.16} parent=5 // pred_fallthru
        _
    $region6: #{transformer_decoder_forward.16} parent=1 // loop_footer
      %s16 = sadd.s32 1, %s12
    $region7: #{transformer_decoder_forward.16} parent=1 // loop_footer_branch
      %11 = sbr.rel target = $region3
    $region8: #{transformer_decoder_forward.16} parent=1 // loop_exit
      _
    %417 = vsyncpa [#allocation4], 1
    %s418 = scalar_lea.sflag [#allocation4], 1
    %419 = vsyncpa %s418, 1

// kernel: transformer_decoder_forward.22
$region0: #{transformer_decoder_forward.22}
  #allocation0 [shape = 'u32[]', space=smem, size = 0x4, offset = 0x4, fixed_abs, tag = 'smem constant byte address 0x4 - core index']
  #allocation1 [shape = 'u32[72,128]{1,0:T(1,128)}', space=vmem, size = 0x9000, scoped, tag = 'internal scratch']
  #allocation2 [shape = 'f32[16,32]{1,0:T(8,128)}', space=vmem, size = 0x2000, scoped, tag = 'scratch operand']
  %s0 = inlined_call_operand.vmem [shape: f32[16,32], index: 0, kind: input, shape index: {}]
  %s1 = inlined_call_operand.hbm [shape: bf16[2,32,32], index: 1, kind: input, shape index: {}]
  %s2 = inlined_call_operand.vmem [shape: f32[2,1,32], index: 2, kind: input, shape index: {}]
  %s3 = inlined_call_operand.vmem [shape: bf16[2,16,32], index: 3, kind: output, shape index: {}]
  %s4 = sld [smem:[#allocation0]]
  $region57: #{transformer_decoder_forward.22} parent=0
    _
  %s6 = ssub.s32 1, %s4
  %s7 = scalar_select 0, %s6, %s4
  $region1: #{transformer_decoder_forward.22} parent=0
    #allocation3 [shape = 'u8[16384]{0}', space=vmem, size = 0x4000, scoped, tag = 'input window, operand 1']
    #allocation4 [shape = 's32[2]{0}', space=sflag, size = 0x8, scoped, tag = 'scoped memory for transformer_decoder_forward.22']
    %8 = vsyncpa [#allocation4], 0
    %s9 = scalar_lea.sflag [#allocation4], 1
    %10 = vsyncpa %s9, 0
    loop: start=0, step=1, limit=4
    $region2: #{transformer_decoder_forward.22} parent=1 // loop_pre_header
      _
    $region3: #{transformer_decoder_forward.22} parent=1 // loop_header
      %s12 = sphi 0, %s16
      %p13 = scmp.ge.s32.totalorder %s12, 4
      %s19 = sphi 0, %s45
      %s20 = sphi 0, %s41
      %s21 = sphi 0, %s37
      %s22 = sphi 0, %s33
      %s23 = sphi 0, %s19
      %s24 = sphi 0, %s20
      %s25 = sphi 0, %s21
      %s26 = sphi 0, %s22
      %s27 = sphi 0, %s23
      %s28 = sphi 0, %s24
      %s29 = sphi 0, %s25
      %s30 = sphi 0, %s26
      %s50 = sphi 0, %s52
      %s53 = sphi 0, %s50
      %s54 = sphi 0, %s53
      %s70 = sphi 0, %s54
      %s80 = sphi 0, %s82
      %s83 = sphi 0, %s80
      %s84 = sphi 0, %s83
      %s100 = sphi 0, %s84
      %s108 = sphi 0, %s110
      %s111 = sphi 0, %s108
      %s112 = sphi 0, %s111
      %s128 = sphi 0, %s112
      %s138 = sphi 0, %s140
      %s141 = sphi 0, %s138
      %s142 = sphi 0, %s141
      %s158 = sphi 0, %s142
    $region4: #{transformer_decoder_forward.22} parent=1 // loop_header_branch
      %15 = sbr.rel (%p13) target = $region8
    $region5: #{transformer_decoder_forward.22} parent=1 // loop_body
      %s17 = ssub.s32 %s12, 1
      %s18 = ssub.s32 %s12, 2
      %s31 = sadd.s32 1, %s22
      %p32 = scmp.ge.s32.totalorder %s31, 1
      %s33 = scalar_select %p32, 0, %s31
      %s34 = sadd.s32 1, %s21
      %s35 = scalar_select %p32, %s34, %s21
      %p36 = scmp.ge.s32.totalorder %s35, 1
      %s37 = scalar_select %p36, 0, %s35
      %s38 = sadd.s32 1, %s20
      %s39 = scalar_select %p36, %s38, %s20
      %p40 = scmp.ge.s32.totalorder %s39, 1
      %s41 = scalar_select %p40, 0, %s39
      %s42 = sadd.s32 1, %s19
      %s43 = scalar_select %p40, %s42, %s19
      %p44 = scmp.ge.s32.totalorder %s43, 2
      %s45 = scalar_select %p44, 0, %s43
      %s46 = ssub.s32 %s20, %s41
      %s47 = ssub.s32 %s22, %s33
      %s48 = sor.u32 %s46, %s47
      %p49 = scmp.eq.s32.totalorder %s48, 0
      %s51 = sadd.s32 %s50, 1
      %s52 = scalar_select %p49, %s50, %s51
      %p55 = pneg %p49
      %p56 = scmp.eq.s32.totalorder %s12, 1
      %p57 = por %p55, %p56
      %p58 = scmp.ne.s32.totalorder %s50, %s53
      %p59 = scmp.eq.s32.totalorder %s12, 0
      %p60 = por %p58, %p59
      %p61 = scmp.ne.s32.totalorder %s50, %s53
      %p62 = scmp.eq.s32.totalorder %s17, 1
      %p63 = por %p61, %p62
      %p64 = scmp.ne.s32.totalorder %s53, %s54
      %p65 = scmp.eq.s32.totalorder %s17, 0
      %p66 = por %p64, %p65
      %p67 = scmp.ne.s32.totalorder %s53, %s54
      %p68 = scmp.eq.s32.totalorder %s18, 1
      %p69 = por %p67, %p68
      %p71 = scmp.ne.s32.totalorder %s54, %s70
      %p72 = scmp.eq.s32.totalorder %s18, 0
      %p73 = por %p71, %p72
      %s74 = ssub.s32 %s19, %s45
      %s75 = ssub.s32 %s22, %s33
      %s76 = sor.u32 %s74, %s75
      %s77 = ssub.s32 %s21, %s37
      %s78 = sor.u32 %s76, %s77
      %p79 = scmp.eq.s32.totalorder %s78, 0
      %s81 = sadd.s32 %s80, 1
      %s82 = scalar_select %p79, %s80, %s81
      %p85 = pneg %p79
      %p86 = scmp.eq.s32.totalorder %s12, 1
      %p87 = por %p85, %p86
      %p88 = scmp.ne.s32.totalorder %s80, %s83
      %p89 = scmp.eq.s32.totalorder %s12, 0
      %p90 = por %p88, %p89
      %p91 = scmp.ne.s32.totalorder %s80, %s83
      %p92 = scmp.eq.s32.totalorder %s17, 1
      %p93 = por %p91, %p92
      %p94 = scmp.ne.s32.totalorder %s83, %s84
      %p95 = scmp.eq.s32.totalorder %s17, 0
      %p96 = por %p94, %p95
      %p97 = scmp.ne.s32.totalorder %s83, %s84
      %p98 = scmp.eq.s32.totalorder %s18, 1
      %p99 = por %p97, %p98
      %p101 = scmp.ne.s32.totalorder %s84, %s100
      %p102 = scmp.eq.s32.totalorder %s18, 0
      %p103 = por %p101, %p102
      %s104 = ssub.s32 %s19, %s45
      %s105 = ssub.s32 %s21, %s37
      %s106 = sor.u32 %s104, %s105
      %p107 = scmp.eq.s32.totalorder %s106, 0
      %s109 = sadd.s32 %s108, 1
      %s110 = scalar_select %p107, %s108, %s109
      %p113 = pneg %p107
      %p114 = scmp.eq.s32.totalorder %s12, 1
      %p115 = por %p113, %p114
      %p116 = scmp.ne.s32.totalorder %s108, %s111
      %p117 = scmp.eq.s32.totalorder %s12, 0
      %p118 = por %p116, %p117
      %p119 = scmp.ne.s32.totalorder %s108, %s111
      %p120 = scmp.eq.s32.totalorder %s17, 1
      %p121 = por %p119, %p120
      %p122 = scmp.ne.s32.totalorder %s111, %s112
      %p123 = scmp.eq.s32.totalorder %s17, 0
      %p124 = por %p122, %p123
      %p125 = scmp.ne.s32.totalorder %s111, %s112
      %p126 = scmp.eq.s32.totalorder %s18, 1
      %p127 = por %p125, %p126
      %p129 = scmp.ne.s32.totalorder %s112, %s128
      %p130 = scmp.eq.s32.totalorder %s18, 0
      %p131 = por %p129, %p130
      %s132 = ssub.s32 %s19, %s45
      %s133 = ssub.s32 %s20, %s41
      %s134 = sor.u32 %s132, %s133
      %s135 = ssub.s32 %s21, %s37
      %s136 = sor.u32 %s134, %s135
      %p137 = scmp.eq.s32.totalorder %s136, 0
      %s139 = sadd.s32 %s138, 1
      %s140 = scalar_select %p137, %s138, %s139
      %p143 = pneg %p137
      %p144 = scmp.eq.s32.totalorder %s12, 1
      %p145 = por %p143, %p144
      %p146 = scmp.ne.s32.totalorder %s138, %s141
      %p147 = scmp.eq.s32.totalorder %s12, 0
      %p148 = por %p146, %p147
      %p149 = scmp.ne.s32.totalorder %s138, %s141
      %p150 = scmp.eq.s32.totalorder %s17, 1
      %p151 = por %p149, %p150
      %p152 = scmp.ne.s32.totalorder %s141, %s142
      %p153 = scmp.eq.s32.totalorder %s17, 0
      %p154 = por %p152, %p153
      %p155 = scmp.ne.s32.totalorder %s141, %s142
      %p156 = scmp.eq.s32.totalorder %s18, 1
      %p157 = por %p155, %p156
      %p159 = scmp.ne.s32.totalorder %s142, %s158
      %p160 = scmp.eq.s32.totalorder %s18, 0
      %p161 = por %p159, %p160
      %p162 = scmp.le.s32.totalorder 1, %s12
      %p163 = scmp.lt.s32.totalorder %s12, 3
      %p164 = pnand %p162, %p163
      %p165 = pneg %p164
      // Predicated region
      $region9: #{transformer_decoder_forward.22} parent=5 // pred_check
        _
      $region10: #{transformer_decoder_forward.22} parent=5 // pred_check_branch
        %167 = sbr.rel (%p164) target = $region12
      $region11: #{transformer_decoder_forward.22} parent=5 // pred_region
        %s168 = ssub.s32 %s12, 1
        // Predicated region
        $region13: #{transformer_decoder_forward.22} parent=11 // pred_check
          %p169 = pneg %p66
        $region14: #{transformer_decoder_forward.22} parent=11 // pred_check_branch
          %171 = sbr.rel (%p169) target = $region16
        $region15: #{transformer_decoder_forward.22} parent=11 // pred_region
          %s172 = smul.u32 2, %s24
          %p173 = scmp.lt.s32.totalorder %s172, 1
          %s174 = scalar_select %p173, %s172, 1
          %p175 = scmp.lt.s32.totalorder %s26, 0
          %s176 = scalar_select %p175, %s26, 0
          %s177 = sadd.s32 %s176, %s174
          %s178 = smul.addr %s177, 8
          %s179 = scalar_lea.vmem %s0, %s178
          %s180 = smul.u32 2, %s24
        $region16: #{transformer_decoder_forward.22} parent=11 // pred_fallthru
          _
      $region12: #{transformer_decoder_forward.22} parent=5 // pred_fallthru
        _
      %p181 = scmp.lt.s32.totalorder %s12, 2
      // Predicated region
      $region17: #{transformer_decoder_forward.22} parent=5 // pred_check
        %p182 = pneg %p181
      $region18: #{transformer_decoder_forward.22} parent=5 // pred_check_branch
        %184 = sbr.rel (%p182) target = $region20
      $region19: #{transformer_decoder_forward.22} parent=5 // pred_region
        // Predicated region
        $region21: #{transformer_decoder_forward.22} parent=19 // pred_check
          %p185 = pneg %p90
        $region22: #{transformer_decoder_forward.22} parent=19 // pred_check_branch
          %187 = sbr.rel (%p185) target = $region24
        $region23: #{transformer_decoder_forward.22} parent=19 // pred_region
          %s188 = sand.u32 %s80, 1
          %s189 = scalar_lea.sflag [#allocation4], %s188
          %s190 = sand.u32 %s80, 1
          %s191 = smul.addr %s190, 16
          %s192 = scalar_lea.vmem [#allocation3], %s191
          %s193 = smul.u32 4, %s22
          %195 = vsyncadd %s189, 0
          %s196 = sadd.s32 %s21, %s193
          %s197 = smul.addr %s19, 4
          %s198 = sadd.s32 %s196, %s197
          %s199 = smul.addr %s198, 4
          %s200 = scalar_lea.hbm %s1, %s199
          %s201 = sshll.u32 %s200, 4
          %s202 = int_to_ptr.hbm [resolvable:$true] %s201
          %s203 = sshll.u32 %s192, 4
          %s204 = int_to_ptr.vmem [resolvable:$true] %s203
          %209 = dma.hbm_to_vmem [thread:$0]  %s202, 256, %s204, %s189, 64, 64, 4
        $region24: #{transformer_decoder_forward.22} parent=19 // pred_fallthru
          _
        // Predicated region
        $region25: #{transformer_decoder_forward.22} parent=19 // pred_check
          %p210 = pneg %p118
        $region26: #{transformer_decoder_forward.22} parent=19 // pred_check_branch
          %212 = sbr.rel (%p210) target = $region28
        $region27: #{transformer_decoder_forward.22} parent=19 // pred_region
          %p213 = scmp.lt.s32.totalorder %s19, 1
          %s214 = scalar_select %p213, %s19, 1
          %p215 = scmp.lt.s32.totalorder %s21, 0
          %s216 = scalar_select %p215, %s21, 0
          %s217 = sadd.s32 %s216, %s214
          %s218 = scalar_lea.vmem %s2, %s217
        $region28: #{transformer_decoder_forward.22} parent=19 // pred_fallthru
          _
      $region20: #{transformer_decoder_forward.22} parent=5 // pred_fallthru
        _
      %p219 = scmp.le.s32.totalorder 1, %s12
      %p220 = scmp.lt.s32.totalorder %s12, 3
      %p221 = pnand %p219, %p220
      %p222 = pneg %p221
      // Predicated region
      $region29: #{transformer_decoder_forward.22} parent=5 // pred_check
        _
      $region30: #{transformer_decoder_forward.22} parent=5 // pred_check_branch
        %224 = sbr.rel (%p221) target = $region32
      $region31: #{transformer_decoder_forward.22} parent=5 // pred_region
        %s225 = ssub.s32 %s12, 1
        %s226 = sand.u32 %s83, 1
        %s227 = scalar_lea.sflag [#allocation4], %s226
        %s228 = sand.u32 %s83, 1
        %s229 = smul.addr %s228, 16
        %s230 = scalar_lea.vmem [#allocation3], %s229
        // Predicated region
        $region33: #{transformer_decoder_forward.22} parent=31 // pred_check
          %p231 = pneg %p96
        $region34: #{transformer_decoder_forward.22} parent=31 // pred_check_branch
          %233 = sbr.rel (%p231) target = $region36
        $region35: #{transformer_decoder_forward.22} parent=31 // pred_region
          %235 = dma.done %s227, 256
        $region36: #{transformer_decoder_forward.22} parent=31 // pred_fallthru
          _
        %s236 = smul.u32 2, %s24
        %p237 = scmp.lt.s32.totalorder %s236, 1
        %s238 = scalar_select %p237, %s236, 1
        %p239 = scmp.lt.s32.totalorder %s26, 0
        %s240 = scalar_select %p239, %s26, 0
        %s241 = sadd.s32 %s240, %s238
        %s242 = smul.addr %s241, 8
        %s243 = scalar_lea.vmem %s0, %s242
        %p244 = pneg %p66
        %p245 = pneg %p63
        %s246 = sand.u32 %s83, 1
        %s247 = scalar_lea.sflag [#allocation4], %s246
        %s248 = sand.u32 %s83, 1
        %s249 = smul.addr %s248, 16
        %s250 = scalar_lea.vmem [#allocation3], %s249
        %p251 = pneg %p96
        %p252 = pneg %p93
        %p253 = scmp.lt.s32.totalorder %s23, 1
        %s254 = scalar_select %p253, %s23, 1
        %p255 = scmp.lt.s32.totalorder %s25, 0
        %s256 = scalar_select %p255, %s25, 0
        %s257 = sadd.s32 %s256, %s254
        %s258 = scalar_lea.vmem %s2, %s257
        %p259 = pneg %p124
        %p260 = pneg %p121
        %p261 = pneg %p154
        %p262 = pneg %p151
        %s263 = smul.u32 2, %s24
        %p264 = scmp.lt.s32.totalorder %s23, 1
        %s265 = scalar_select %p264, %s23, 1
        %p266 = scmp.lt.s32.totalorder %s263, 1
        %s267 = scalar_select %p266, %s263, 1
        %p268 = scmp.lt.s32.totalorder %s25, 0
        %s269 = scalar_select %p268, %s25, 0
        %s270 = sadd.s32 %s269, %s267
        %s271 = smul.addr %s265, 2
        %s272 = sadd.s32 %s270, %s271
        %s273 = smul.addr %s272, 4
        %s274 = scalar_lea.vmem %s3, %s273
        %s275 = smul.u32 2, %s24
        %p276 = scmp.lt.s32.totalorder %s275, 1
        %s277 = scalar_select %p276, %s275, 1
        %p278 = scmp.lt.s32.totalorder %s26, 0
        %s279 = scalar_select %p278, %s26, 0
        %s280 = sadd.s32 %s279, %s277
        %s281 = smul.addr %s280, 8
        %s282 = scalar_lea.vmem %s0, %s281
        %s283 = smul.u32 2, %s24
        %s284 = smul.u32 4, %s26
        %p285 = scmp.lt.s32.totalorder %s23, 1
        %s286 = scalar_select %p285, %s23, 1
        %p287 = scmp.lt.s32.totalorder %s25, 0
        %s288 = scalar_select %p287, %s25, 0
        %s289 = sadd.s32 %s288, %s286
        %s290 = scalar_lea.vmem %s2, %s289
        %s291 = smul.u32 2, %s24
        %p292 = scmp.lt.s32.totalorder %s23, 1
        %s293 = scalar_select %p292, %s23, 1
        %p294 = scmp.lt.s32.totalorder %s291, 1
        %s295 = scalar_select %p294, %s291, 1
        %p296 = scmp.lt.s32.totalorder %s25, 0
        %s297 = scalar_select %p296, %s25, 0
        %s298 = sadd.s32 %s297, %s295
        %s299 = smul.addr %s293, 2
        %s300 = sadd.s32 %s298, %s299
        %s301 = smul.addr %s300, 4
        %s302 = scalar_lea.vmem %s3, %s301
        %s303 = smul.u32 2, %s24
        %p305 = scmp.eq.s32.totalorder %s26, 0
        // Predicated region
        $region37: #{transformer_decoder_forward.22} parent=31 // pred_check
          %p306 = pneg %p305
        $region38: #{transformer_decoder_forward.22} parent=31 // pred_check_branch
          %308 = sbr.rel (%p306) target = $region40
        $region39: #{transformer_decoder_forward.22} parent=31 // pred_region
          %vm309 = vcmask 261120
          %310 = vst.msk [vmem:[#allocation2] sm:$0xff] %vm309, 0.0
          %311 = vst.msk [vmem:[#allocation2 + $0x8] sm:$0xff] %vm309, 0.0
        $region40: #{transformer_decoder_forward.22} parent=31 // pred_fallthru
          _
        %v312 = vld [vmem:[#allocation2] sm:$0xff]
        %v313 = vld [vmem:[#allocation2 + $0x8] sm:$0xff]
        %v314 = vld [vmem:[%s282] sm:$0xff]
        %v315 = vld [vmem:[%s282 + $0x8] sm:$0xff]
        %v316 = vpack.c.bf16 %v315, %v314
        %v317 = vld [vmem:[%s230] sm:$0xf]
        %v318 = vld [vmem:[%s230 + $0x4] sm:$0xf]
        %v319 = vld [vmem:[%s230 + $0x8] sm:$0xf]
        %v320 = vld [vmem:[%s230 + $0xc] sm:$0xf]
        %v325 = vunpack.c.l.b16 %v317
        %v326 = vunpack.c.l.b16 %v318
        %v327 = vunpack.c.l.b16 %v319
        %v328 = vunpack.c.l.b16 %v320
        %v329 = vpack.c.b16 %v326, %v325
        %v330 = vpack.c.b16 %v328, %v327
        %vm333 = vcmask 261120
        %v335 = vsel %vm333, %v316, 0
        %337 = vmatpush.bf16.msra.mxu0 0
        %338 = vmatpush.bf16.msra.mxu0 0
        %339 = vmatpush.bf16.msra.mxu0 0
        %340 = vmatpush.bf16.msra.mxu0 0
        %341 = vmatpush.bf16.msra.mxu0 0
        %342 = vmatpush.bf16.msra.mxu0 0
        %343 = vmatpush.bf16.msra.mxu0 %v330
        %344 = vmatpush.bf16.msra.mxu0 %v329
        %345 = vmatmul.bf16.gmra.mxu0 %v335
        %v346 = vpop.f32.mrf.mxu0
        %v347 = vadd.f32 0.0, %v346
        %v348 = vpop.f32.mrf.mxu0
        %v349 = vadd.f32 0.0, %v348
        %350 = vdwg.mxu0
        %v351 = vadd.f32 %v312, %v347
        %v352 = vadd.f32 %v313, %v349
        %353 = vst.msk [vmem:[#allocation2] sm:$0xff] %vm333, %v351
        %354 = vst.msk [vmem:[#allocation2 + $0x8] sm:$0xff] %vm333, %v352
        // Predicated region
        $region41: #{transformer_decoder_forward.22} parent=31 // pred_check
          %p355 = pneg %p305
        $region42: #{transformer_decoder_forward.22} parent=31 // pred_check_branch
          %357 = sbr.rel (%p355) target = $region44
        $region43: #{transformer_decoder_forward.22} parent=31 // pred_region
          %v358 = vld [vmem:[#allocation2] sm:$0xff]
          %v359 = vld [vmem:[#allocation2 + $0x8] sm:$0xff]
          %v360 = vld [vmem:[%s290] sm:$0x1]
          %v362 = vperm.slane %v360, 0
          %v364 = vadd.f32 %v358, %v362
          %v365 = vadd.f32 %v359, %v362
          %v366 = vpack.c.bf16 %v364, %v364
          %v367 = vpack.c.bf16 %v365, %v365
          %vm368 = vcmask 257024
          %369 = vst.msk [vmem:[%s302] sm:$0xf] %vm368, %v366
          %370 = vst.msk [vmem:[%s302 + $0x4] sm:$0xf] %vm368, %v367
        $region44: #{transformer_decoder_forward.22} parent=31 // pred_fallthru
          _
        %s371 = smul.u32 2, %s24
        %p372 = scmp.lt.s32.totalorder %s23, 1
        %s373 = scalar_select %p372, %s23, 1
        %p374 = scmp.lt.s32.totalorder %s371, 1
        %s375 = scalar_select %p374, %s371, 1
        %p376 = scmp.lt.s32.totalorder %s25, 0
        %s377 = scalar_select %p376, %s25, 0
        %s378 = sadd.s32 %s377, %s375
        %s379 = smul.addr %s373, 2
        %s380 = sadd.s32 %s378, %s379
        %s381 = smul.addr %s380, 4
        %s382 = scalar_lea.vmem %s3, %s381
        // Predicated region
        $region45: #{transformer_decoder_forward.22} parent=31 // pred_check
          %p383 = pneg %p151
        $region46: #{transformer_decoder_forward.22} parent=31 // pred_check_branch
          %385 = sbr.rel (%p383) target = $region48
        $region47: #{transformer_decoder_forward.22} parent=31 // pred_region
          %s386 = smul.u32 2, %s24
        $region48: #{transformer_decoder_forward.22} parent=31 // pred_fallthru
          _
      $region32: #{transformer_decoder_forward.22} parent=5 // pred_fallthru
        _
      %p387 = scmp.le.s32.totalorder 2, %s12
      // Predicated region
      $region49: #{transformer_decoder_forward.22} parent=5 // pred_check
        %p388 = pneg %p387
      $region50: #{transformer_decoder_forward.22} parent=5 // pred_check_branch
        %390 = sbr.rel (%p388) target = $region52
      $region51: #{transformer_decoder_forward.22} parent=5 // pred_region
        %s391 = ssub.s32 %s12, 2
        // Predicated region
        $region53: #{transformer_decoder_forward.22} parent=51 // pred_check
          %p392 = pneg %p157
        $region54: #{transformer_decoder_forward.22} parent=51 // pred_check_branch
          %394 = sbr.rel (%p392) target = $region56
        $region55: #{transformer_decoder_forward.22} parent=51 // pred_region
          %s395 = smul.u32 2, %s28
          %p396 = scmp.lt.s32.totalorder %s27, 1
          %s397 = scalar_select %p396, %s27, 1
          %p398 = scmp.lt.s32.totalorder %s395, 1
          %s399 = scalar_select %p398, %s395, 1
          %p400 = scmp.lt.s32.totalorder %s29, 0
          %s401 = scalar_select %p400, %s29, 0
          %s402 = sadd.s32 %s401, %s399
          %s403 = smul.addr %s397, 2
          %s404 = sadd.s32 %s402, %s403
          %s405 = smul.addr %s404, 4
          %s406 = scalar_lea.vmem %s3, %s405
        $region56: #{transformer_decoder_forward.22} parent=51 // pred_fallthru
          _
      $region52: #{transformer_decoder_forward.22} parent=5 // pred_fallthru
        _
    $region6: #{transformer_decoder_forward.22} parent=1 // loop_footer
      %s16 = sadd.s32 1, %s12
    $region7: #{transformer_decoder_forward.22} parent=1 // loop_footer_branch
      %11 = sbr.rel target = $region3
    $region8: #{transformer_decoder_forward.22} parent=1 // loop_exit
      _
    %407 = vsyncpa [#allocation4], 1
    %s408 = scalar_lea.sflag [#allocation4], 1
    %409 = vsyncpa %s408, 1

// kernel: transformer_decoder_forward.17
$region0: #{transformer_decoder_forward.17}
  #allocation0 [shape = 'u32[]', space=smem, size = 0x4, offset = 0x4, fixed_abs, tag = 'smem constant byte address 0x4 - core index']
  #allocation1 [shape = 'u32[72,128]{1,0:T(1,128)}', space=vmem, size = 0x9000, scoped, tag = 'internal scratch']
  %s0 = inlined_call_operand.vmem [shape: bf16[1,2,8,32], index: 0, kind: input, shape index: {}]
  %s1 = inlined_call_operand.vmem [shape: bf16[2,2,8,32], index: 1, kind: input, shape index: {}, may-alias: {1,2}]
  %s2 = inlined_call_operand.vmem [shape: bf16[2,2,8,32], index: 2, kind: input, shape index: {}, may-alias: {1,2}]
  %s3 = inlined_call_operand.hbm [shape: bf16[32,32], index: 3, kind: input, shape index: {}]
  %s4 = inlined_call_operand.hbm [shape: f32[1,32], index: 4, kind: input, shape index: {}]
  %s5 = inlined_call_operand.vmem [shape: f32[2,8,32], index: 5, kind: input, shape index: {}]
  %s6 = inlined_call_operand.hbm [shape: f32[1,32], index: 6, kind: input, shape index: {}]
  %s7 = inlined_call_operand.hbm [shape: f32[1,32], index: 7, kind: input, shape index: {}]
  %s8 = inlined_call_operand.vmem [shape: f32[2,8,32], index: 8, kind: output, shape index: {}]
  %s9 = sld [smem:[#allocation0]]
  $region81: #{transformer_decoder_forward.17} parent=0
    _
  %s11 = ssub.s32 1, %s9
  %s12 = scalar_select 0, %s11, %s9
  $region1: #{transformer_decoder_forward.17} parent=0
    #allocation2 [shape = 'u8[8192]{0}', space=vmem, size = 0x2000, scoped, tag = 'input window, operand 3, single buffered']
    #allocation3 [shape = 's32[2]{0}', space=sflag, size = 0x8, scoped, tag = 'scoped memory for transformer_decoder_forward.17']
    #allocation4 [shape = 'u8[512]{0}', space=vmem, size = 0x400, scoped, tag = 'input window, operand 4, single buffered']
    #allocation5 [shape = 's32[1]{0}', space=sflag, size = 0x4, scoped, tag = 'scoped memory for transformer_decoder_forward.17']
    #allocation6 [shape = 'u8[512]{0}', space=vmem, size = 0x400, scoped, tag = 'input window, operand 6, single buffered']
    #allocation7 [shape = 'u8[512]{0}', space=vmem, size = 0x400, scoped, tag = 'input window, operand 7, single buffered']
    #allocation8 [shape = 's32[1]{0}', space=sflag, size = 0x4, scoped, tag = 'scoped memory for transformer_decoder_forward.17']
    %13 = vsyncpa [#allocation3], 0
    %14 = vsyncpa [#allocation5], 0
    %15 = vsyncpa [#allocation8], 0
    loop: start=0, step=1, limit=4
    $region2: #{transformer_decoder_forward.17} parent=1 // loop_pre_header
      _
    $region3: #{transformer_decoder_forward.17} parent=1 // loop_header
      %s17 = sphi 0, %s21
      %p18 = scmp.ge.s32.totalorder %s17, 4
      %s24 = sphi 0, %s36
      %s25 = sphi 0, %s32
      %s26 = sphi 0, %s24
      %s27 = sphi 0, %s25
      %s28 = sphi 0, %s26
      %s29 = sphi 0, %s27
      %s41 = sphi 0, %s43
      %s44 = sphi 0, %s41
      %s45 = sphi 0, %s44
      %s61 = sphi 0, %s45
      %s67 = sphi 0, %s69
      %s70 = sphi 0, %s67
      %s71 = sphi 0, %s70
      %s87 = sphi 0, %s71
      %s93 = sphi 0, %s95
      %s96 = sphi 0, %s93
      %s97 = sphi 0, %s96
      %s113 = sphi 0, %s97
      %s117 = sphi 0, %s117
      %s119 = sphi 0, %s117
      %s120 = sphi 0, %s119
      %s134 = sphi 0, %s120
      %s138 = sphi 0, %s138
      %s140 = sphi 0, %s138
      %s141 = sphi 0, %s140
      %s155 = sphi 0, %s141
      %s163 = sphi 0, %s165
      %s166 = sphi 0, %s163
      %s167 = sphi 0, %s166
      %s183 = sphi 0, %s167
      %s187 = sphi 0, %s187
      %s189 = sphi 0, %s187
      %s190 = sphi 0, %s189
      %s204 = sphi 0, %s190
      %s208 = sphi 0, %s208
      %s210 = sphi 0, %s208
      %s211 = sphi 0, %s210
      %s225 = sphi 0, %s211
      %s233 = sphi 0, %s235
      %s236 = sphi 0, %s233
      %s237 = sphi 0, %s236
      %s253 = sphi 0, %s237
    $region4: #{transformer_decoder_forward.17} parent=1 // loop_header_branch
      %20 = sbr.rel (%p18) target = $region8
    $region5: #{transformer_decoder_forward.17} parent=1 // loop_body
      %s22 = ssub.s32 %s17, 1
      %s23 = ssub.s32 %s17, 2
      %s30 = sadd.s32 1, %s25
      %p31 = scmp.ge.s32.totalorder %s30, 1
      %s32 = scalar_select %p31, 0, %s30
      %s33 = sadd.s32 1, %s24
      %s34 = scalar_select %p31, %s33, %s24
      %p35 = scmp.ge.s32.totalorder %s34, 2
      %s36 = scalar_select %p35, 0, %s34
      %s37 = ssub.s32 %s24, %s36
      %s38 = ssub.s32 %s25, %s32
      %s39 = sor.u32 %s37, %s38
      %p40 = scmp.eq.s32.totalorder %s39, 0
      %s42 = sadd.s32 %s41, 1
      %s43 = scalar_select %p40, %s41, %s42
      %p46 = pneg %p40
      %p47 = scmp.eq.s32.totalorder %s17, 1
      %p48 = por %p46, %p47
      %p49 = scmp.ne.s32.totalorder %s41, %s44
      %p50 = scmp.eq.s32.totalorder %s17, 0
      %p51 = por %p49, %p50
      %p52 = scmp.ne.s32.totalorder %s41, %s44
      %p53 = scmp.eq.s32.totalorder %s22, 1
      %p54 = por %p52, %p53
      %p55 = scmp.ne.s32.totalorder %s44, %s45
      %p56 = scmp.eq.s32.totalorder %s22, 0
      %p57 = por %p55, %p56
      %p58 = scmp.ne.s32.totalorder %s44, %s45
      %p59 = scmp.eq.s32.totalorder %s23, 1
      %p60 = por %p58, %p59
      %p62 = scmp.ne.s32.totalorder %s45, %s61
      %p63 = scmp.eq.s32.totalorder %s23, 0
      %p64 = por %p62, %p63
      %s65 = ssub.s32 %s24, %s36
      %p66 = scmp.eq.s32.totalorder %s65, 0
      %s68 = sadd.s32 %s67, 1
      %s69 = scalar_select %p66, %s67, %s68
      %p72 = pneg %p66
      %p73 = scmp.eq.s32.totalorder %s17, 1
      %p74 = por %p72, %p73
      %p75 = scmp.ne.s32.totalorder %s67, %s70
      %p76 = scmp.eq.s32.totalorder %s17, 0
      %p77 = por %p75, %p76
      %p78 = scmp.ne.s32.totalorder %s67, %s70
      %p79 = scmp.eq.s32.totalorder %s22, 1
      %p80 = por %p78, %p79
      %p81 = scmp.ne.s32.totalorder %s70, %s71
      %p82 = scmp.eq.s32.totalorder %s22, 0
      %p83 = por %p81, %p82
      %p84 = scmp.ne.s32.totalorder %s70, %s71
      %p85 = scmp.eq.s32.totalorder %s23, 1
      %p86 = por %p84, %p85
      %p88 = scmp.ne.s32.totalorder %s71, %s87
      %p89 = scmp.eq.s32.totalorder %s23, 0
      %p90 = por %p88, %p89
      %s91 = ssub.s32 %s24, %s36
      %p92 = scmp.eq.s32.totalorder %s91, 0
      %s94 = sadd.s32 %s93, 1
      %s95 = scalar_select %p92, %s93, %s94
      %p98 = pneg %p92
      %p99 = scmp.eq.s32.totalorder %s17, 1
      %p100 = por %p98, %p99
      %p101 = scmp.ne.s32.totalorder %s93, %s96
      %p102 = scmp.eq.s32.totalorder %s17, 0
      %p103 = por %p101, %p102
      %p104 = scmp.ne.s32.totalorder %s93, %s96
      %p105 = scmp.eq.s32.totalorder %s22, 1
      %p106 = por %p104, %p105
      %p107 = scmp.ne.s32.totalorder %s96, %s97
      %p108 = scmp.eq.s32.totalorder %s22, 0
      %p109 = por %p107, %p108
      %p110 = scmp.ne.s32.totalorder %s96, %s97
      %p111 = scmp.eq.s32.totalorder %s23, 1
      %p112 = por %p110, %p111
      %p114 = scmp.ne.s32.totalorder %s97, %s113
      %p115 = scmp.eq.s32.totalorder %s23, 0
      %p116 = por %p114, %p115
      %s118 = sadd.s32 %s117, 1
      %p121 = scmp.eq.s32.totalorder %s17, 1
      %p122 = scmp.ne.s32.totalorder %s117, %s119
      %p123 = scmp.eq.s32.totalorder %s17, 0
      %p124 = por %p122, %p123
      %p125 = scmp.ne.s32.totalorder %s117, %s119
      %p126 = scmp.eq.s32.totalorder %s22, 1
      %p127 = por %p125, %p126
      %p128 = scmp.ne.s32.totalorder %s119, %s120
      %p129 = scmp.eq.s32.totalorder %s22, 0
      %p130 = por %p128, %p129
      %p131 = scmp.ne.s32.totalorder %s119, %s120
      %p132 = scmp.eq.s32.totalorder %s23, 1
      %p133 = por %p131, %p132
      %p135 = scmp.ne.s32.totalorder %s120, %s134
      %p136 = scmp.eq.s32.totalorder %s23, 0
      %p137 = por %p135, %p136
      %s139 = sadd.s32 %s138, 1
      %p142 = scmp.eq.s32.totalorder %s17, 1
      %p143 = scmp.ne.s32.totalorder %s138, %s140
      %p144 = scmp.eq.s32.totalorder %s17, 0
      %p145 = por %p143, %p144
      %p146 = scmp.ne.s32.totalorder %s138, %s140
      %p147 = scmp.eq.s32.totalorder %s22, 1
      %p148 = por %p146, %p147
      %p149 = scmp.ne.s32.totalorder %s140, %s141
      %p150 = scmp.eq.s32.totalorder %s22, 0
      %p151 = por %p149, %p150
      %p152 = scmp.ne.s32.totalorder %s140, %s141
      %p153 = scmp.eq.s32.totalorder %s23, 1
      %p154 = por %p152, %p153
      %p156 = scmp.ne.s32.totalorder %s141, %s155
      %p157 = scmp.eq.s32.totalorder %s23, 0
      %p158 = por %p156, %p157
      %s159 = ssub.s32 %s24, %s36
      %s160 = ssub.s32 %s25, %s32
      %s161 = sor.u32 %s159, %s160
      %p162 = scmp.eq.s32.totalorder %s161, 0
      %s164 = sadd.s32 %s163, 1
      %s165 = scalar_select %p162, %s163, %s164
      %p168 = pneg %p162
      %p169 = scmp.eq.s32.totalorder %s17, 1
      %p170 = por %p168, %p169
      %p171 = scmp.ne.s32.totalorder %s163, %s166
      %p172 = scmp.eq.s32.totalorder %s17, 0
      %p173 = por %p171, %p172
      %p174 = scmp.ne.s32.totalorder %s163, %s166
      %p175 = scmp.eq.s32.totalorder %s22, 1
      %p176 = por %p174, %p175
      %p177 = scmp.ne.s32.totalorder %s166, %s167
      %p178 = scmp.eq.s32.totalorder %s22, 0
      %p179 = por %p177, %p178
      %p180 = scmp.ne.s32.totalorder %s166, %s167
      %p181 = scmp.eq.s32.totalorder %s23, 1
      %p182 = por %p180, %p181
      %p184 = scmp.ne.s32.totalorder %s167, %s183
      %p185 = scmp.eq.s32.totalorder %s23, 0
      %p186 = por %p184, %p185
      %s188 = sadd.s32 %s187, 1
      %p191 = scmp.eq.s32.totalorder %s17, 1
      %p192 = scmp.ne.s32.totalorder %s187, %s189
      %p193 = scmp.eq.s32.totalorder %s17, 0
      %p194 = por %p192, %p193
      %p195 = scmp.ne.s32.totalorder %s187, %s189
      %p196 = scmp.eq.s32.totalorder %s22, 1
      %p197 = por %p195, %p196
      %p198 = scmp.ne.s32.totalorder %s189, %s190
      %p199 = scmp.eq.s32.totalorder %s22, 0
      %p200 = por %p198, %p199
      %p201 = scmp.ne.s32.totalorder %s189, %s190
      %p202 = scmp.eq.s32.totalorder %s23, 1
      %p203 = por %p201, %p202
      %p205 = scmp.ne.s32.totalorder %s190, %s204
      %p206 = scmp.eq.s32.totalorder %s23, 0
      %p207 = por %p205, %p206
      %s209 = sadd.s32 %s208, 1
      %p212 = scmp.eq.s32.totalorder %s17, 1
      %p213 = scmp.ne.s32.totalorder %s208, %s210
      %p214 = scmp.eq.s32.totalorder %s17, 0
      %p215 = por %p213, %p214
      %p216 = scmp.ne.s32.totalorder %s208, %s210
      %p217 = scmp.eq.s32.totalorder %s22, 1
      %p218 = por %p216, %p217
      %p219 = scmp.ne.s32.totalorder %s210, %s211
      %p220 = scmp.eq.s32.totalorder %s22, 0
      %p221 = por %p219, %p220
      %p222 = scmp.ne.s32.totalorder %s210, %s211
      %p223 = scmp.eq.s32.totalorder %s23, 1
      %p224 = por %p222, %p223
      %p226 = scmp.ne.s32.totalorder %s211, %s225
      %p227 = scmp.eq.s32.totalorder %s23, 0
      %p228 = por %p226, %p227
      %s229 = ssub.s32 %s24, %s36
      %s230 = ssub.s32 %s25, %s32
      %s231 = sor.u32 %s229, %s230
      %p232 = scmp.eq.s32.totalorder %s231, 0
      %s234 = sadd.s32 %s233, 1
      %s235 = scalar_select %p232, %s233, %s234
      %p238 = pneg %p232
      %p239 = scmp.eq.s32.totalorder %s17, 1
      %p240 = por %p238, %p239
      %p241 = scmp.ne.s32.totalorder %s233, %s236
      %p242 = scmp.eq.s32.totalorder %s17, 0
      %p243 = por %p241, %p242
      %p244 = scmp.ne.s32.totalorder %s233, %s236
      %p245 = scmp.eq.s32.totalorder %s22, 1
      %p246 = por %p244, %p245
      %p247 = scmp.ne.s32.totalorder %s236, %s237
      %p248 = scmp.eq.s32.totalorder %s22, 0
      %p249 = por %p247, %p248
      %p250 = scmp.ne.s32.totalorder %s236, %s237
      %p251 = scmp.eq.s32.totalorder %s23, 1
      %p252 = por %p250, %p251
      %p254 = scmp.ne.s32.totalorder %s237, %s253
      %p255 = scmp.eq.s32.totalorder %s23, 0
      %p256 = por %p254, %p255
      %p257 = scmp.le.s32.totalorder 1, %s17
      %p258 = scmp.lt.s32.totalorder %s17, 3
      %p259 = pnand %p257, %p258
      %p260 = pneg %p259
      // Predicated region
      $region9: #{transformer_decoder_forward.17} parent=5 // pred_check
        _
      $region10: #{transformer_decoder_forward.17} parent=5 // pred_check_branch
        %262 = sbr.rel (%p259) target = $region12
      $region11: #{transformer_decoder_forward.17} parent=5 // pred_region
        %s263 = ssub.s32 %s17, 1
        // Predicated region
        $region13: #{transformer_decoder_forward.17} parent=11 // pred_check
          %p264 = pneg %p130
        $region14: #{transformer_decoder_forward.17} parent=11 // pred_check_branch
          %266 = sbr.rel (%p264) target = $region16
        $region15: #{transformer_decoder_forward.17} parent=11 // pred_region
          %268 = vsyncadd [#allocation3], 0
          %s269 = sshll.u32 %s3, 4
          %s270 = int_to_ptr.hbm [resolvable:$true] %s269
          %s271 = sshll.u32 [#allocation2], 4
          %s272 = int_to_ptr.vmem [resolvable:$true] %s271
          %277 = dma.hbm_to_vmem [thread:$0]  %s270, 256, %s272, [#allocation3], 64, 64, 4
        $region16: #{transformer_decoder_forward.17} parent=11 // pred_fallthru
          _
        // Predicated region
        $region17: #{transformer_decoder_forward.17} parent=11 // pred_check
          %p278 = pneg %p151
        $region18: #{transformer_decoder_forward.17} parent=11 // pred_check_branch
          %280 = sbr.rel (%p278) target = $region20
        $region19: #{transformer_decoder_forward.17} parent=11 // pred_region
          %282 = vsyncadd [#allocation5], 0
          %s284 = sshll.u32 %s4, 4
          %s285 = int_to_ptr.hbm [resolvable:$true] %s284
          %s286 = sshll.u32 [#allocation4], 4
          %s287 = int_to_ptr.vmem [resolvable:$true] %s286
          %289 = dma.hbm_to_vmem [thread:$0]  %s285, 16, %s287, [#allocation5]
        $region20: #{transformer_decoder_forward.17} parent=11 // pred_fallthru
          _
        // Predicated region
        $region21: #{transformer_decoder_forward.17} parent=11 // pred_check
          %p290 = pneg %p200
        $region22: #{transformer_decoder_forward.17} parent=11 // pred_check_branch
          %292 = sbr.rel (%p290) target = $region24
        $region23: #{transformer_decoder_forward.17} parent=11 // pred_region
          %294 = vsyncadd [#allocation5], 0
          %s296 = sshll.u32 %s6, 4
          %s297 = int_to_ptr.hbm [resolvable:$true] %s296
          %s298 = sshll.u32 [#allocation6], 4
          %s299 = int_to_ptr.vmem [resolvable:$true] %s298
          %301 = dma.hbm_to_vmem [thread:$0]  %s297, 16, %s299, [#allocation5]
        $region24: #{transformer_decoder_forward.17} parent=11 // pred_fallthru
          _
        // Predicated region
        $region25: #{transformer_decoder_forward.17} parent=11 // pred_check
          %p302 = pneg %p221
        $region26: #{transformer_decoder_forward.17} parent=11 // pred_check_branch
          %304 = sbr.rel (%p302) target = $region28
        $region27: #{transformer_decoder_forward.17} parent=11 // pred_region
          %306 = vsyncadd [#allocation8], 0
          %s308 = sshll.u32 %s7, 4
          %s309 = int_to_ptr.hbm [resolvable:$true] %s308
          %s310 = sshll.u32 [#allocation7], 4
          %s311 = int_to_ptr.vmem [resolvable:$true] %s310
          %313 = dma.hbm_to_vmem [thread:$0]  %s309, 16, %s311, [#allocation8]
        $region28: #{transformer_decoder_forward.17} parent=11 // pred_fallthru
          _
      $region12: #{transformer_decoder_forward.17} parent=5 // pred_fallthru
        _
      %p314 = scmp.lt.s32.totalorder %s17, 2
      // Predicated region
      $region29: #{transformer_decoder_forward.17} parent=5 // pred_check
        %p315 = pneg %p314
      $region30: #{transformer_decoder_forward.17} parent=5 // pred_check_branch
        %317 = sbr.rel (%p315) target = $region32
      $region31: #{transformer_decoder_forward.17} parent=5 // pred_region
        // Predicated region
        $region33: #{transformer_decoder_forward.17} parent=31 // pred_check
          %p318 = pneg %p51
        $region34: #{transformer_decoder_forward.17} parent=31 // pred_check_branch
          %320 = sbr.rel (%p318) target = $region36
        $region35: #{transformer_decoder_forward.17} parent=31 // pred_region
          %p321 = scmp.lt.s32.totalorder %s24, 1
          %s322 = scalar_select %p321, %s24, 1
          %p323 = scmp.lt.s32.totalorder %s25, 0
          %s324 = scalar_select %p323, %s25, 0
          %s325 = sadd.s32 %s324, %s322
          %s326 = smul.addr %s325, 4
          %s327 = scalar_lea.vmem %s0, %s326
        $region36: #{transformer_decoder_forward.17} parent=31 // pred_fallthru
          _
        // Predicated region
        $region37: #{transformer_decoder_forward.17} parent=31 // pred_check
          %p328 = pneg %p77
        $region38: #{transformer_decoder_forward.17} parent=31 // pred_check_branch
          %330 = sbr.rel (%p328) target = $region40
        $region39: #{transformer_decoder_forward.17} parent=31 // pred_region
          %p331 = scmp.lt.s32.totalorder %s24, 1
          %s332 = scalar_select %p331, %s24, 1
          %s333 = smul.addr %s332, 4
          %s334 = scalar_lea.vmem %s1, %s333
        $region40: #{transformer_decoder_forward.17} parent=31 // pred_fallthru
          _
        // Predicated region
        $region41: #{transformer_decoder_forward.17} parent=31 // pred_check
          %p335 = pneg %p103
        $region42: #{transformer_decoder_forward.17} parent=31 // pred_check_branch
          %337 = sbr.rel (%p335) target = $region44
        $region43: #{transformer_decoder_forward.17} parent=31 // pred_region
          %p338 = scmp.lt.s32.totalorder %s24, 1
          %s339 = scalar_select %p338, %s24, 1
          %s340 = sadd.s32 %s339, 2
          %s341 = smul.addr %s340, 4
          %s342 = scalar_lea.vmem %s2, %s341
        $region44: #{transformer_decoder_forward.17} parent=31 // pred_fallthru
          _
        // Predicated region
        $region45: #{transformer_decoder_forward.17} parent=31 // pred_check
          %p343 = pneg %p173
        $region46: #{transformer_decoder_forward.17} parent=31 // pred_check_branch
          %345 = sbr.rel (%p343) target = $region48
        $region47: #{transformer_decoder_forward.17} parent=31 // pred_region
          %p346 = scmp.lt.s32.totalorder %s24, 1
          %s347 = scalar_select %p346, %s24, 1
          %p348 = scmp.lt.s32.totalorder %s25, 0
          %s349 = scalar_select %p348, %s25, 0
          %s350 = sadd.s32 %s349, %s347
          %s351 = smul.addr %s350, 8
          %s352 = scalar_lea.vmem %s5, %s351
        $region48: #{transformer_decoder_forward.17} parent=31 // pred_fallthru
          _
      $region32: #{transformer_decoder_forward.17} parent=5 // pred_fallthru
        _
      %p353 = scmp.le.s32.totalorder 1, %s17
      %p354 = scmp.lt.s32.totalorder %s17, 3
      %p355 = pnand %p353, %p354
      %p356 = pneg %p355
      // Predicated region
      $region49: #{transformer_decoder_forward.17} parent=5 // pred_check
        _
      $region50: #{transformer_decoder_forward.17} parent=5 // pred_check_branch
        %358 = sbr.rel (%p355) target = $region52
      $region51: #{transformer_decoder_forward.17} parent=5 // pred_region
        %s359 = ssub.s32 %s17, 1
        // Predicated region
        $region53: #{transformer_decoder_forward.17} parent=51 // pred_check
          %p360 = pneg %p130
        $region54: #{transformer_decoder_forward.17} parent=51 // pred_check_branch
          %362 = sbr.rel (%p360) target = $region56
        $region55: #{transformer_decoder_forward.17} parent=51 // pred_region
          %364 = dma.done [#allocation3], 256
        $region56: #{transformer_decoder_forward.17} parent=51 // pred_fallthru
          _
        // Predicated region
        $region57: #{transformer_decoder_forward.17} parent=51 // pred_check
          %p365 = pneg %p151
        $region58: #{transformer_decoder_forward.17} parent=51 // pred_check_branch
          %367 = sbr.rel (%p365) target = $region60
        $region59: #{transformer_decoder_forward.17} parent=51 // pred_region
          %369 = dma.done [#allocation5], 16
        $region60: #{transformer_decoder_forward.17} parent=51 // pred_fallthru
          _
        // Predicated region
        $region61: #{transformer_decoder_forward.17} parent=51 // pred_check
          %p370 = pneg %p200
        $region62: #{transformer_decoder_forward.17} parent=51 // pred_check_branch
          %372 = sbr.rel (%p370) target = $region64
        $region63: #{transformer_decoder_forward.17} parent=51 // pred_region
          %374 = dma.done [#allocation5], 16
        $region64: #{transformer_decoder_forward.17} parent=51 // pred_fallthru
          _
        // Predicated region
        $region65: #{transformer_decoder_forward.17} parent=51 // pred_check
          %p375 = pneg %p221
        $region66: #{transformer_decoder_forward.17} parent=51 // pred_check_branch
          %377 = sbr.rel (%p375) target = $region68
        $region67: #{transformer_decoder_forward.17} parent=51 // pred_region
          %379 = dma.done [#allocation8], 16
        $region68: #{transformer_decoder_forward.17} parent=51 // pred_fallthru
          _
        %p380 = scmp.lt.s32.totalorder %s26, 1
        %s381 = scalar_select %p380, %s26, 1
        %p382 = scmp.lt.s32.totalorder %s27, 0
        %s383 = scalar_select %p382, %s27, 0
        %s384 = sadd.s32 %s383, %s381
        %s385 = smul.addr %s384, 4
        %s386 = scalar_lea.vmem %s0, %s385
        %p387 = pneg %p57
        %p388 = pneg %p54
        %p389 = scmp.lt.s32.totalorder %s26, 1
        %s390 = scalar_select %p389, %s26, 1
        %s391 = smul.addr %s390, 4
        %s392 = scalar_lea.vmem %s1, %s391
        %p393 = pneg %p83
        %p394 = pneg %p80
        %p395 = scmp.lt.s32.totalorder %s26, 1
        %s396 = scalar_select %p395, %s26, 1
        %s397 = sadd.s32 %s396, 2
        %s398 = smul.addr %s397, 4
        %s399 = scalar_lea.vmem %s2, %s398
        %p400 = pneg %p109
        %p401 = pneg %p106
        %p402 = pneg %p130
        %p403 = pneg %p127
        %p404 = pneg %p151
        %p405 = pneg %p148
        %p406 = scmp.lt.s32.totalorder %s26, 1
        %s407 = scalar_select %p406, %s26, 1
        %p408 = scmp.lt.s32.totalorder %s27, 0
        %s409 = scalar_select %p408, %s27, 0
        %s410 = sadd.s32 %s409, %s407
        %s411 = smul.addr %s410, 8
        %s412 = scalar_lea.vmem %s5, %s411
        %p413 = pneg %p179
        %p414 = pneg %p176
        %p415 = pneg %p200
        %p416 = pneg %p197
        %p417 = pneg %p221
        %p418 = pneg %p218
        %p419 = pneg %p249
        %p420 = pneg %p246
        %p421 = scmp.lt.s32.totalorder %s26, 1
        %s422 = scalar_select %p421, %s26, 1
        %p423 = scmp.lt.s32.totalorder %s27, 0
        %s424 = scalar_select %p423, %s27, 0
        %s425 = sadd.s32 %s424, %s422
        %s426 = smul.addr %s425, 8
        %s427 = scalar_lea.vmem %s8, %s426
        %p428 = scmp.lt.s32.totalorder %s26, 1
        %s429 = scalar_select %p428, %s26, 1
        %p430 = scmp.lt.s32.totalorder %s27, 0
        %s431 = scalar_select %p430, %s27, 0
        %s432 = sadd.s32 %s431, %s429
        %s433 = smul.addr %s432, 4
        %s434 = scalar_lea.vmem %s0, %s433
        %p435 = scmp.lt.s32.totalorder %s26, 1
        %s436 = scalar_select %p435, %s26, 1
        %s437 = smul.addr %s436, 4
        %s438 = scalar_lea.vmem %s1, %s437
        %p439 = scmp.lt.s32.totalorder %s26, 1
        %s440 = scalar_select %p439, %s26, 1
        %s441 = sadd.s32 %s440, 2
        %s442 = smul.addr %s441, 4
        %s443 = scalar_lea.vmem %s2, %s442
        %p444 = scmp.lt.s32.totalorder %s26, 1
        %s445 = scalar_select %p444, %s26, 1
        %p446 = scmp.lt.s32.totalorder %s27, 0
        %s447 = scalar_select %p446, %s27, 0
        %s448 = sadd.s32 %s447, %s445
        %s449 = smul.addr %s448, 8
        %s450 = scalar_lea.vmem %s5, %s449
        %p451 = scmp.lt.s32.totalorder %s26, 1
        %s452 = scalar_select %p451, %s26, 1
        %p453 = scmp.lt.s32.totalorder %s27, 0
        %s454 = scalar_select %p453, %s27, 0
        %s455 = sadd.s32 %s454, %s452
        %s456 = smul.addr %s455, 8
        %s457 = scalar_lea.vmem %s8, %s456
        %v459 = vld [vmem:[%s434] sm:$0xf]
        %v460 = vld [vmem:[%s438] sm:$0xf]
        %v461 = vld [vmem:[%s443] sm:$0xf]
        %vm462 = vcmask 64512
        %v464 = vsel %vm462, %v459, 0
        %v467 = vsel %vm462, %v460, 0
        %469 = vmatpush.bf16.xpose.msra.mxu0 0
        %470 = vmatpush.bf16.xpose.msra.mxu0 0
        %471 = vmatpush.bf16.xpose.msra.mxu0 0
        %472 = vmatpush.bf16.xpose.msra.mxu0 0
        %473 = vmatpush.bf16.xpose.msra.mxu0 0
        %474 = vmatpush.bf16.xpose.msra.mxu0 0
        %475 = vmatpush.bf16.xpose.msra.mxu0 0
        %476 = vmatpush.bf16.xpose.msra.mxu0 %v467
        %477 = vmatmul.bf16.gmra.mxu0 %v464
        %v478 = vpop.f32.mrf.mxu0
        %v479 = vadd.f32 0.0, %v478
        %v480 = vpop.f32.mrf.mxu0
        %481 = vdwg.mxu0
        %v482 = vsel %vm462, %v479, -inf
        %483 = vmax.xlane.f32.xlu0 %v482
        %v484 = vpop.xlane.xlu0 %483
        %v485 = vsub.f32 %v479, %v484
        %v486 = vmul.f32 %v485, 1.442695
        %v487 = vpow.pop %v486
        %v488 = vsel %vm462, %v487, 0.0
        %489 = vadd.xlane.f32.xlu0 %v488
        %v490 = vpop.xlane.xlu0 %489
        %v491 = vrcp.pop %v490
        %v492 = vmul.f32 %v487, %v491
        %v493 = vpack.c.bf16 %v492, %v492
        %v495 = vsel %vm462, %v493, 0
        %vm497 = vcmask 1043456
        %v499 = vsel %vm497, %v461, 0
        %501 = vmatpush.bf16.msra.mxu0 0
        %502 = vmatpush.bf16.msra.mxu0 0
        %503 = vmatpush.bf16.msra.mxu0 0
        %504 = vmatpush.bf16.msra.mxu0 0
        %505 = vmatpush.bf16.msra.mxu0 0
        %506 = vmatpush.bf16.msra.mxu0 0
        %507 = vmatpush.bf16.msra.mxu0 0
        %508 = vmatpush.bf16.msra.mxu0 %v499
        %509 = vmatmul.bf16.gmra.mxu0 %v495
        %v510 = vpop.f32.mrf.mxu0
        %v511 = vadd.f32 0.0, %v510
        %v512 = vpop.f32.mrf.mxu0
        %513 = vdwg.mxu0
        %v515 = vunpack.c.l.b16 %v459
        %v516 = vpack.c.b16 %v515, %v515
        %517 = vrot.lane.b32.xlu0 %v516, 120
        %v518 = vpop.permute.xlu0 %517
        %v520 = vunpack.c.l.b16 %v460
        %v521 = vpack.c.b16 %v520, %v520
        %522 = vrot.lane.b32.xlu0 %v521, 120
        %v523 = vpop.permute.xlu0 %522
        %v525 = vsel %vm462, %v518, 0
        %v528 = vsel %vm462, %v523, 0
        %530 = vmatpush.bf16.xpose.msra.mxu0 0
        %531 = vmatpush.bf16.xpose.msra.mxu0 0
        %532 = vmatpush.bf16.xpose.msra.mxu0 0
        %533 = vmatpush.bf16.xpose.msra.mxu0 0
        %534 = vmatpush.bf16.xpose.msra.mxu0 0
        %535 = vmatpush.bf16.xpose.msra.mxu0 0
        %536 = vmatpush.bf16.xpose.msra.mxu0 0
        %537 = vmatpush.bf16.xpose.msra.mxu0 %v528
        %538 = vmatmul.bf16.gmra.mxu0 %v525
        %v539 = vpop.f32.mrf.mxu0
        %v540 = vadd.f32 0.0, %v539
        %v541 = vpop.f32.mrf.mxu0
        %542 = vdwg.mxu0
        %v543 = vsel %vm462, %v540, -inf
        %544 = vmax.xlane.f32.xlu0 %v543
        %v545 = vpop.xlane.xlu0 %544
        %v546 = vsub.f32 %v540, %v545
        %v547 = vmul.f32 %v546, 1.442695
        %v548 = vpow.pop %v547
        %v549 = vsel %vm462, %v548, 0.0
        %550 = vadd.xlane.f32.xlu0 %v549
        %v551 = vpop.xlane.xlu0 %550
        %v552 = vrcp.pop %v551
        %v553 = vmul.f32 %v548, %v552
        %v554 = vpack.c.bf16 %v553, %v553
        %v556 = vunpack.c.l.b16 %v461
        %v557 = vpack.c.b16 %v556, %v556
        %558 = vrot.lane.b32.xlu0 %v557, 120
        %v559 = vpop.permute.xlu0 %558
        %v561 = vsel %vm462, %v554, 0
        %v564 = vsel %vm497, %v559, 0
        %566 = vmatpush.bf16.msra.mxu0 0
        %567 = vmatpush.bf16.msra.mxu0 0
        %568 = vmatpush.bf16.msra.mxu0 0
        %569 = vmatpush.bf16.msra.mxu0 0
        %570 = vmatpush.bf16.msra.mxu0 0
        %571 = vmatpush.bf16.msra.mxu0 0
        %572 = vmatpush.bf16.msra.mxu0 0
        %573 = vmatpush.bf16.msra.mxu0 %v564
        %574 = vmatmul.bf16.gmra.mxu0 %v561
        %v575 = vpop.f32.mrf.mxu0
        %v576 = vadd.f32 0.0, %v575
        %v577 = vpop.f32.mrf.mxu0
        %578 = vdwg.mxu0
        %579 = vrot.lane.b32.xlu0 %v516, 112
        %v580 = vpop.permute.xlu0 %579
        %581 = vrot.lane.b32.xlu0 %v521, 112
        %v582 = vpop.permute.xlu0 %581
        %v584 = vsel %vm462, %v580, 0
        %v587 = vsel %vm462, %v582, 0
        %589 = vmatpush.bf16.xpose.msra.mxu0 0
        %590 = vmatpush.bf16.xpose.msra.mxu0 0
        %591 = vmatpush.bf16.xpose.msra.mxu0 0
        %592 = vmatpush.bf16.xpose.msra.mxu0 0
        %593 = vmatpush.bf16.xpose.msra.mxu0 0
        %594 = vmatpush.bf16.xpose.msra.mxu0 0
        %595 = vmatpush.bf16.xpose.msra.mxu0 0
        %596 = vmatpush.bf16.xpose.msra.mxu0 %v587
        %597 = vmatmul.bf16.gmra.mxu0 %v584
        %v598 = vpop.f32.mrf.mxu0
        %v599 = vadd.f32 0.0, %v598
        %v600 = vpop.f32.mrf.mxu0
        %601 = vdwg.mxu0
        %v602 = vsel %vm462, %v599, -inf
        %603 = vmax.xlane.f32.xlu0 %v602
        %v604 = vpop.xlane.xlu0 %603
        %v605 = vsub.f32 %v599, %v604
        %v606 = vmul.f32 %v605, 1.442695
        %v607 = vpow.pop %v606
        %v608 = vsel %vm462, %v607, 0.0
        %609 = vadd.xlane.f32.xlu0 %v608
        %v610 = vpop.xlane.xlu0 %609
        %v611 = vrcp.pop %v610
        %v612 = vmul.f32 %v607, %v611
        %v613 = vpack.c.bf16 %v612, %v612
        %614 = vrot.lane.b32.xlu0 %v557, 112
        %v615 = vpop.permute.xlu0 %614
        %v617 = vsel %vm462, %v613, 0
        %v620 = vsel %vm497, %v615, 0
        %622 = vmatpush.bf16.msra.mxu0 0
        %623 = vmatpush.bf16.msra.mxu0 0
        %624 = vmatpush.bf16.msra.mxu0 0
        %625 = vmatpush.bf16.msra.mxu0 0
        %626 = vmatpush.bf16.msra.mxu0 0
        %627 = vmatpush.bf16.msra.mxu0 0
        %628 = vmatpush.bf16.msra.mxu0 0
        %629 = vmatpush.bf16.msra.mxu0 %v620
        %630 = vmatmul.bf16.gmra.mxu0 %v617
        %v631 = vpop.f32.mrf.mxu0
        %v632 = vadd.f32 0.0, %v631
        %v633 = vpop.f32.mrf.mxu0
        %634 = vdwg.mxu0
        %635 = vrot.lane.b32.xlu0 %v516, 104
        %v636 = vpop.permute.xlu0 %635
        %637 = vrot.lane.b32.xlu0 %v521, 104
        %v638 = vpop.permute.xlu0 %637
        %v640 = vsel %vm462, %v636, 0
        %v643 = vsel %vm462, %v638, 0
        %645 = vmatpush.bf16.xpose.msra.mxu0 0
        %646 = vmatpush.bf16.xpose.msra.mxu0 0
        %647 = vmatpush.bf16.xpose.msra.mxu0 0
        %648 = vmatpush.bf16.xpose.msra.mxu0 0
        %649 = vmatpush.bf16.xpose.msra.mxu0 0
        %650 = vmatpush.bf16.xpose.msra.mxu0 0
        %651 = vmatpush.bf16.xpose.msra.mxu0 0
        %652 = vmatpush.bf16.xpose.msra.mxu0 %v643
        %653 = vmatmul.bf16.gmra.mxu0 %v640
        %v654 = vpop.f32.mrf.mxu0
        %v655 = vadd.f32 0.0, %v654
        %v656 = vpop.f32.mrf.mxu0
        %657 = vdwg.mxu0
        %v658 = vsel %vm462, %v655, -inf
        %659 = vmax.xlane.f32.xlu0 %v658
        %v660 = vpop.xlane.xlu0 %659
        %v661 = vsub.f32 %v655, %v660
        %v662 = vmul.f32 %v661, 1.442695
        %v663 = vpow.pop %v662
        %v664 = vsel %vm462, %v663, 0.0
        %665 = vadd.xlane.f32.xlu0 %v664
        %v666 = vpop.xlane.xlu0 %665
        %v667 = vrcp.pop %v666
        %v668 = vmul.f32 %v663, %v667
        %v669 = vpack.c.bf16 %v668, %v668
        %670 = vrot.lane.b32.xlu0 %v557, 104
        %v671 = vpop.permute.xlu0 %670
        %v673 = vsel %vm462, %v669, 0
        %v676 = vsel %vm497, %v671, 0
        %678 = vmatpush.bf16.msra.mxu0 0
        %679 = vmatpush.bf16.msra.mxu0 0
        %680 = vmatpush.bf16.msra.mxu0 0
        %681 = vmatpush.bf16.msra.mxu0 0
        %682 = vmatpush.bf16.msra.mxu0 0
        %683 = vmatpush.bf16.msra.mxu0 0
        %684 = vmatpush.bf16.msra.mxu0 0
        %685 = vmatpush.bf16.msra.mxu0 %v676
        %686 = vmatmul.bf16.gmra.mxu0 %v673
        %v687 = vpop.f32.mrf.mxu0
        %v688 = vadd.f32 0.0, %v687
        %v689 = vpop.f32.mrf.mxu0
        %690 = vdwg.mxu0
        %692 = vrot.lane.b32.xlu0 %v576, 8
        %v693 = vpop.permute.xlu0 %692
        %696 = vrot.lane.b32.xlu0 %v632, 16
        %v697 = vpop.permute.xlu0 %696
        %700 = vrot.lane.b32.xlu0 %v688, 24
        %v701 = vpop.permute.xlu0 %700
        %v703 = vsel %vm462, %v511, %v693
        %vm704 = vcmask 130048
        %v705 = vsel %vm704, %v703, %v697
        %vm706 = vcmask 195584
        %v707 = vsel %vm706, %v705, %v701
        %v708 = vpack.c.bf16 %v707, %v707
        %v709 = vld [vmem:[#allocation2] sm:$0xf]
        %v710 = vld [vmem:[#allocation2 + $0x4] sm:$0xf]
        %v711 = vld [vmem:[#allocation2 + $0x8] sm:$0xf]
        %v712 = vld [vmem:[#allocation2 + $0xc] sm:$0xf]
        %v713 = vld [vmem:[#allocation4] sm:$0x1]
        %v715 = vperm.slane %v713, 0
        %v721 = vunpack.c.l.b16 %v709
        %v722 = vunpack.c.l.b16 %v710
        %v723 = vunpack.c.l.b16 %v711
        %v724 = vunpack.c.l.b16 %v712
        %v725 = vpack.c.b16 %v722, %v721
        %v726 = vpack.c.b16 %v724, %v723
        %vm729 = vcmask 261120
        %v731 = vsel %vm729, %v708, 0
        %733 = vmatpush.bf16.msra.mxu0 0
        %734 = vmatpush.bf16.msra.mxu0 0
        %735 = vmatpush.bf16.msra.mxu0 0
        %736 = vmatpush.bf16.msra.mxu0 0
        %737 = vmatpush.bf16.msra.mxu0 0
        %738 = vmatpush.bf16.msra.mxu0 0
        %739 = vmatpush.bf16.msra.mxu0 %v726
        %740 = vmatpush.bf16.msra.mxu0 %v725
        %741 = vmatmul.bf16.gmra.mxu0 %v731
        %v742 = vpop.f32.mrf.mxu0
        %v743 = vadd.f32 %v715, %v742
        %v744 = vpop.f32.mrf.mxu0
        %745 = vdwg.mxu0
        %v746 = vld [vmem:[%s450] sm:$0xff]
        %v747 = vadd.f32 %v743, %v746
        %v748 = vsel %vm729, %v747, 0.0
        %749 = vadd.xlane.f32.xlu0 %v748
        %v750 = vpop.xlane.xlu0 %749
        %v751 = vrcp.pop 32.0
        %v752 = vmul.f32 32.0, %v751
        %v753 = vsub.f32 1.0, %v752
        %v754 = vmul.f32 %v751, %v753
        %v755 = vadd.f32 %v751, %v754
        %vm756 = vweird.f32 %v751
        %v757 = vsel %vm756, %v751, %v755
        %v758 = vmul.f32 %v750, %v757
        %v759 = vsub.f32 %v747, %v758
        %v760 = vmul.f32 %v759, %v759
        %v761 = vsel %vm729, %v760, 0.0
        %762 = vadd.xlane.f32.xlu0 %v761
        %v763 = vpop.xlane.xlu0 %762
        %v764 = vmul.f32 %v763, %v757
        %v765 = vadd.f32 %v764, 1e-05
        %v766 = vrsqrt.pop %v765
        %v767 = vmul.f32 %v766, %v765
        %v768 = vmul.f32 %v767, %v766
        %v769 = vmul.f32 0.5, %v768
        %v770 = vsub.f32 1.5, %v769
        %v771 = vmul.f32 %v766, %v770
        %vm772 = vweird.f32 %v765
        %vm773 = vweird.f32 %v766
        %vm774 = vmor %vm772, %vm773
        %v775 = vsel %vm774, %v766, %v771
        %v776 = vmul.f32 %v759, %v775
        %v777 = vld [vmem:[#allocation6] sm:$0x1]
        %v779 = vperm.slane %v777, 0
        %v781 = vmul.f32 %v776, %v779
        %v782 = vld [vmem:[#allocation7] sm:$0x1]
        %v784 = vperm.slane %v782, 0
        %v786 = vadd.f32 %v781, %v784
        %787 = vst.msk [vmem:[%s457] sm:$0xff] %vm729, %v786
        %p788 = scmp.lt.s32.totalorder %s26, 1
        %s789 = scalar_select %p788, %s26, 1
        %p790 = scmp.lt.s32.totalorder %s27, 0
        %s791 = scalar_select %p790, %s27, 0
        %s792 = sadd.s32 %s791, %s789
        %s793 = smul.addr %s792, 8
        %s794 = scalar_lea.vmem %s8, %s793
        // Predicated region
        $region69: #{transformer_decoder_forward.17} parent=51 // pred_check
          %p795 = pneg %p246
        $region70: #{transformer_decoder_forward.17} parent=51 // pred_check_branch
          %797 = sbr.rel (%p795) target = $region72
        $region71: #{transformer_decoder_forward.17} parent=51 // pred_region
          _
        $region72: #{transformer_decoder_forward.17} parent=51 // pred_fallthru
          _
      $region52: #{transformer_decoder_forward.17} parent=5 // pred_fallthru
        _
      %p798 = scmp.le.s32.totalorder 2, %s17
      // Predicated region
      $region73: #{transformer_decoder_forward.17} parent=5 // pred_check
        %p799 = pneg %p798
      $region74: #{transformer_decoder_forward.17} parent=5 // pred_check_branch
        %801 = sbr.rel (%p799) target = $region76
      $region75: #{transformer_decoder_forward.17} parent=5 // pred_region
        %s802 = ssub.s32 %s17, 2
        // Predicated region
        $region77: #{transformer_decoder_forward.17} parent=75 // pred_check
          %p803 = pneg %p252
        $region78: #{transformer_decoder_forward.17} parent=75 // pred_check_branch
          %805 = sbr.rel (%p803) target = $region80
        $region79: #{transformer_decoder_forward.17} parent=75 // pred_region
          %p806 = scmp.lt.s32.totalorder %s28, 1
          %s807 = scalar_select %p806, %s28, 1
          %p808 = scmp.lt.s32.totalorder %s29, 0
          %s809 = scalar_select %p808, %s29, 0
          %s810 = sadd.s32 %s809, %s807
          %s811 = smul.addr %s810, 8
          %s812 = scalar_lea.vmem %s8, %s811
        $region80: #{transformer_decoder_forward.17} parent=75 // pred_fallthru
          _
      $region76: #{transformer_decoder_forward.17} parent=5 // pred_fallthru
        _
    $region6: #{transformer_decoder_forward.17} parent=1 // loop_footer
      %s21 = sadd.s32 1, %s17
    $region7: #{transformer_decoder_forward.17} parent=1 // loop_footer_branch
      %16 = sbr.rel target = $region3
    $region8: #{transformer_decoder_forward.17} parent=1 // loop_exit
      _
    %813 = vsyncpa [#allocation3], 1
    %s814 = scalar_lea.sflag [#allocation3], 1
    %815 = vsyncpa %s814, 1
    %816 = vsyncpa [#allocation5], 1
    %817 = vsyncpa [#allocation8], 1

// kernel: transformer_decoder_forward.20
$region0: #{transformer_decoder_forward.20}
  #allocation0 [shape = 'u32[]', space=smem, size = 0x4, offset = 0x4, fixed_abs, tag = 'smem constant byte address 0x4 - core index']
  #allocation1 [shape = 'u32[72,128]{1,0:T(1,128)}', space=vmem, size = 0x9000, scoped, tag = 'internal scratch']
  %s0 = inlined_call_operand.vmem [shape: bf16[3,2,8,32], index: 0, kind: input, shape index: {}, may-alias: {0,1,2}]
  %s1 = inlined_call_operand.vmem [shape: bf16[3,2,8,32], index: 1, kind: input, shape index: {}, may-alias: {0,1,2}]
  %s2 = inlined_call_operand.vmem [shape: bf16[3,2,8,32], index: 2, kind: input, shape index: {}, may-alias: {0,1,2}]
  %s3 = inlined_call_operand.hbm [shape: bf16[32,32], index: 3, kind: input, shape index: {}]
  %s4 = inlined_call_operand.hbm [shape: f32[1,32], index: 4, kind: input, shape index: {}]
  %s5 = inlined_call_operand.vmem [shape: f32[2,8,32], index: 5, kind: input, shape index: {}]
  %s6 = inlined_call_operand.hbm [shape: f32[1,32], index: 6, kind: input, shape index: {}]
  %s7 = inlined_call_operand.hbm [shape: f32[1,32], index: 7, kind: input, shape index: {}]
  %s8 = inlined_call_operand.vmem [shape: f32[2,8,32], index: 8, kind: output, shape index: {}]
  %s9 = sld [smem:[#allocation0]]
  $region81: #{transformer_decoder_forward.20} parent=0
    _
  %s11 = ssub.s32 1, %s9
  %s12 = scalar_select 0, %s11, %s9
  $region1: #{transformer_decoder_forward.20} parent=0
    #allocation2 [shape = 'u8[8192]{0}', space=vmem, size = 0x2000, scoped, tag = 'input window, operand 3, single buffered']
    #allocation3 [shape = 's32[2]{0}', space=sflag, size = 0x8, scoped, tag = 'scoped memory for transformer_decoder_forward.20']
    #allocation4 [shape = 'u8[512]{0}', space=vmem, size = 0x400, scoped, tag = 'input window, operand 4, single buffered']
    #allocation5 [shape = 's32[1]{0}', space=sflag, size = 0x4, scoped, tag = 'scoped memory for transformer_decoder_forward.20']
    #allocation6 [shape = 'u8[512]{0}', space=vmem, size = 0x400, scoped, tag = 'input window, operand 6, single buffered']
    #allocation7 [shape = 'u8[512]{0}', space=vmem, size = 0x400, scoped, tag = 'input window, operand 7, single buffered']
    #allocation8 [shape = 's32[1]{0}', space=sflag, size = 0x4, scoped, tag = 'scoped memory for transformer_decoder_forward.20']
    %13 = vsyncpa [#allocation3], 0
    %14 = vsyncpa [#allocation5], 0
    %15 = vsyncpa [#allocation8], 0
    loop: start=0, step=1, limit=4
    $region2: #{transformer_decoder_forward.20} parent=1 // loop_pre_header
      _
    $region3: #{transformer_decoder_forward.20} parent=1 // loop_header
      %s17 = sphi 0, %s21
      %p18 = scmp.ge.s32.totalorder %s17, 4
      %s24 = sphi 0, %s36
      %s25 = sphi 0, %s32
      %s26 = sphi 0, %s24
      %s27 = sphi 0, %s25
      %s28 = sphi 0, %s26
      %s29 = sphi 0, %s27
      %s41 = sphi 0, %s43
      %s44 = sphi 0, %s41
      %s45 = sphi 0, %s44
      %s61 = sphi 0, %s45
      %s67 = sphi 0, %s69
      %s70 = sphi 0, %s67
      %s71 = sphi 0, %s70
      %s87 = sphi 0, %s71
      %s93 = sphi 0, %s95
      %s96 = sphi 0, %s93
      %s97 = sphi 0, %s96
      %s113 = sphi 0, %s97
      %s117 = sphi 0, %s117
      %s119 = sphi 0, %s117
      %s120 = sphi 0, %s119
      %s134 = sphi 0, %s120
      %s138 = sphi 0, %s138
      %s140 = sphi 0, %s138
      %s141 = sphi 0, %s140
      %s155 = sphi 0, %s141
      %s163 = sphi 0, %s165
      %s166 = sphi 0, %s163
      %s167 = sphi 0, %s166
      %s183 = sphi 0, %s167
      %s187 = sphi 0, %s187
      %s189 = sphi 0, %s187
      %s190 = sphi 0, %s189
      %s204 = sphi 0, %s190
      %s208 = sphi 0, %s208
      %s210 = sphi 0, %s208
      %s211 = sphi 0, %s210
      %s225 = sphi 0, %s211
      %s233 = sphi 0, %s235
      %s236 = sphi 0, %s233
      %s237 = sphi 0, %s236
      %s253 = sphi 0, %s237
    $region4: #{transformer_decoder_forward.20} parent=1 // loop_header_branch
      %20 = sbr.rel (%p18) target = $region8
    $region5: #{transformer_decoder_forward.20} parent=1 // loop_body
      %s22 = ssub.s32 %s17, 1
      %s23 = ssub.s32 %s17, 2
      %s30 = sadd.s32 1, %s25
      %p31 = scmp.ge.s32.totalorder %s30, 1
      %s32 = scalar_select %p31, 0, %s30
      %s33 = sadd.s32 1, %s24
      %s34 = scalar_select %p31, %s33, %s24
      %p35 = scmp.ge.s32.totalorder %s34, 2
      %s36 = scalar_select %p35, 0, %s34
      %s37 = ssub.s32 %s24, %s36
      %s38 = ssub.s32 %s25, %s32
      %s39 = sor.u32 %s37, %s38
      %p40 = scmp.eq.s32.totalorder %s39, 0
      %s42 = sadd.s32 %s41, 1
      %s43 = scalar_select %p40, %s41, %s42
      %p46 = pneg %p40
      %p47 = scmp.eq.s32.totalorder %s17, 1
      %p48 = por %p46, %p47
      %p49 = scmp.ne.s32.totalorder %s41, %s44
      %p50 = scmp.eq.s32.totalorder %s17, 0
      %p51 = por %p49, %p50
      %p52 = scmp.ne.s32.totalorder %s41, %s44
      %p53 = scmp.eq.s32.totalorder %s22, 1
      %p54 = por %p52, %p53
      %p55 = scmp.ne.s32.totalorder %s44, %s45
      %p56 = scmp.eq.s32.totalorder %s22, 0
      %p57 = por %p55, %p56
      %p58 = scmp.ne.s32.totalorder %s44, %s45
      %p59 = scmp.eq.s32.totalorder %s23, 1
      %p60 = por %p58, %p59
      %p62 = scmp.ne.s32.totalorder %s45, %s61
      %p63 = scmp.eq.s32.totalorder %s23, 0
      %p64 = por %p62, %p63
      %s65 = ssub.s32 %s24, %s36
      %p66 = scmp.eq.s32.totalorder %s65, 0
      %s68 = sadd.s32 %s67, 1
      %s69 = scalar_select %p66, %s67, %s68
      %p72 = pneg %p66
      %p73 = scmp.eq.s32.totalorder %s17, 1
      %p74 = por %p72, %p73
      %p75 = scmp.ne.s32.totalorder %s67, %s70
      %p76 = scmp.eq.s32.totalorder %s17, 0
      %p77 = por %p75, %p76
      %p78 = scmp.ne.s32.totalorder %s67, %s70
      %p79 = scmp.eq.s32.totalorder %s22, 1
      %p80 = por %p78, %p79
      %p81 = scmp.ne.s32.totalorder %s70, %s71
      %p82 = scmp.eq.s32.totalorder %s22, 0
      %p83 = por %p81, %p82
      %p84 = scmp.ne.s32.totalorder %s70, %s71
      %p85 = scmp.eq.s32.totalorder %s23, 1
      %p86 = por %p84, %p85
      %p88 = scmp.ne.s32.totalorder %s71, %s87
      %p89 = scmp.eq.s32.totalorder %s23, 0
      %p90 = por %p88, %p89
      %s91 = ssub.s32 %s24, %s36
      %p92 = scmp.eq.s32.totalorder %s91, 0
      %s94 = sadd.s32 %s93, 1
      %s95 = scalar_select %p92, %s93, %s94
      %p98 = pneg %p92
      %p99 = scmp.eq.s32.totalorder %s17, 1
      %p100 = por %p98, %p99
      %p101 = scmp.ne.s32.totalorder %s93, %s96
      %p102 = scmp.eq.s32.totalorder %s17, 0
      %p103 = por %p101, %p102
      %p104 = scmp.ne.s32.totalorder %s93, %s96
      %p105 = scmp.eq.s32.totalorder %s22, 1
      %p106 = por %p104, %p105
      %p107 = scmp.ne.s32.totalorder %s96, %s97
      %p108 = scmp.eq.s32.totalorder %s22, 0
      %p109 = por %p107, %p108
      %p110 = scmp.ne.s32.totalorder %s96, %s97
      %p111 = scmp.eq.s32.totalorder %s23, 1
      %p112 = por %p110, %p111
      %p114 = scmp.ne.s32.totalorder %s97, %s113
      %p115 = scmp.eq.s32.totalorder %s23, 0
      %p116 = por %p114, %p115
      %s118 = sadd.s32 %s117, 1
      %p121 = scmp.eq.s32.totalorder %s17, 1
      %p122 = scmp.ne.s32.totalorder %s117, %s119
      %p123 = scmp.eq.s32.totalorder %s17, 0
      %p124 = por %p122, %p123
      %p125 = scmp.ne.s32.totalorder %s117, %s119
      %p126 = scmp.eq.s32.totalorder %s22, 1
      %p127 = por %p125, %p126
      %p128 = scmp.ne.s32.totalorder %s119, %s120
      %p129 = scmp.eq.s32.totalorder %s22, 0
      %p130 = por %p128, %p129
      %p131 = scmp.ne.s32.totalorder %s119, %s120
      %p132 = scmp.eq.s32.totalorder %s23, 1
      %p133 = por %p131, %p132
      %p135 = scmp.ne.s32.totalorder %s120, %s134
      %p136 = scmp.eq.s32.totalorder %s23, 0
      %p137 = por %p135, %p136
      %s139 = sadd.s32 %s138, 1
      %p142 = scmp.eq.s32.totalorder %s17, 1
      %p143 = scmp.ne.s32.totalorder %s138, %s140
      %p144 = scmp.eq.s32.totalorder %s17, 0
      %p145 = por %p143, %p144
      %p146 = scmp.ne.s32.totalorder %s138, %s140
      %p147 = scmp.eq.s32.totalorder %s22, 1
      %p148 = por %p146, %p147
      %p149 = scmp.ne.s32.totalorder %s140, %s141
      %p150 = scmp.eq.s32.totalorder %s22, 0
      %p151 = por %p149, %p150
      %p152 = scmp.ne.s32.totalorder %s140, %s141
      %p153 = scmp.eq.s32.totalorder %s23, 1
      %p154 = por %p152, %p153
      %p156 = scmp.ne.s32.totalorder %s141, %s155
      %p157 = scmp.eq.s32.totalorder %s23, 0
      %p158 = por %p156, %p157
      %s159 = ssub.s32 %s24, %s36
      %s160 = ssub.s32 %s25, %s32
      %s161 = sor.u32 %s159, %s160
      %p162 = scmp.eq.s32.totalorder %s161, 0
      %s164 = sadd.s32 %s163, 1
      %s165 = scalar_select %p162, %s163, %s164
      %p168 = pneg %p162
      %p169 = scmp.eq.s32.totalorder %s17, 1
      %p170 = por %p168, %p169
      %p171 = scmp.ne.s32.totalorder %s163, %s166
      %p172 = scmp.eq.s32.totalorder %s17, 0
      %p173 = por %p171, %p172
      %p174 = scmp.ne.s32.totalorder %s163, %s166
      %p175 = scmp.eq.s32.totalorder %s22, 1
      %p176 = por %p174, %p175
      %p177 = scmp.ne.s32.totalorder %s166, %s167
      %p178 = scmp.eq.s32.totalorder %s22, 0
      %p179 = por %p177, %p178
      %p180 = scmp.ne.s32.totalorder %s166, %s167
      %p181 = scmp.eq.s32.totalorder %s23, 1
      %p182 = por %p180, %p181
      %p184 = scmp.ne.s32.totalorder %s167, %s183
      %p185 = scmp.eq.s32.totalorder %s23, 0
      %p186 = por %p184, %p185
      %s188 = sadd.s32 %s187, 1
      %p191 = scmp.eq.s32.totalorder %s17, 1
      %p192 = scmp.ne.s32.totalorder %s187, %s189
      %p193 = scmp.eq.s32.totalorder %s17, 0
      %p194 = por %p192, %p193
      %p195 = scmp.ne.s32.totalorder %s187, %s189
      %p196 = scmp.eq.s32.totalorder %s22, 1
      %p197 = por %p195, %p196
      %p198 = scmp.ne.s32.totalorder %s189, %s190
      %p199 = scmp.eq.s32.totalorder %s22, 0
      %p200 = por %p198, %p199
      %p201 = scmp.ne.s32.totalorder %s189, %s190
      %p202 = scmp.eq.s32.totalorder %s23, 1
      %p203 = por %p201, %p202
      %p205 = scmp.ne.s32.totalorder %s190, %s204
      %p206 = scmp.eq.s32.totalorder %s23, 0
      %p207 = por %p205, %p206
      %s209 = sadd.s32 %s208, 1
      %p212 = scmp.eq.s32.totalorder %s17, 1
      %p213 = scmp.ne.s32.totalorder %s208, %s210
      %p214 = scmp.eq.s32.totalorder %s17, 0
      %p215 = por %p213, %p214
      %p216 = scmp.ne.s32.totalorder %s208, %s210
      %p217 = scmp.eq.s32.totalorder %s22, 1
      %p218 = por %p216, %p217
      %p219 = scmp.ne.s32.totalorder %s210, %s211
      %p220 = scmp.eq.s32.totalorder %s22, 0
      %p221 = por %p219, %p220
      %p222 = scmp.ne.s32.totalorder %s210, %s211
      %p223 = scmp.eq.s32.totalorder %s23, 1
      %p224 = por %p222, %p223
      %p226 = scmp.ne.s32.totalorder %s211, %s225
      %p227 = scmp.eq.s32.totalorder %s23, 0
      %p228 = por %p226, %p227
      %s229 = ssub.s32 %s24, %s36
      %s230 = ssub.s32 %s25, %s32
      %s231 = sor.u32 %s229, %s230
      %p232 = scmp.eq.s32.totalorder %s231, 0
      %s234 = sadd.s32 %s233, 1
      %s235 = scalar_select %p232, %s233, %s234
      %p238 = pneg %p232
      %p239 = scmp.eq.s32.totalorder %s17, 1
      %p240 = por %p238, %p239
      %p241 = scmp.ne.s32.totalorder %s233, %s236
      %p242 = scmp.eq.s32.totalorder %s17, 0
      %p243 = por %p241, %p242
      %p244 = scmp.ne.s32.totalorder %s233, %s236
      %p245 = scmp.eq.s32.totalorder %s22, 1
      %p246 = por %p244, %p245
      %p247 = scmp.ne.s32.totalorder %s236, %s237
      %p248 = scmp.eq.s32.totalorder %s22, 0
      %p249 = por %p247, %p248
      %p250 = scmp.ne.s32.totalorder %s236, %s237
      %p251 = scmp.eq.s32.totalorder %s23, 1
      %p252 = por %p250, %p251
      %p254 = scmp.ne.s32.totalorder %s237, %s253
      %p255 = scmp.eq.s32.totalorder %s23, 0
      %p256 = por %p254, %p255
      %p257 = scmp.le.s32.totalorder 1, %s17
      %p258 = scmp.lt.s32.totalorder %s17, 3
      %p259 = pnand %p257, %p258
      %p260 = pneg %p259
      // Predicated region
      $region9: #{transformer_decoder_forward.20} parent=5 // pred_check
        _
      $region10: #{transformer_decoder_forward.20} parent=5 // pred_check_branch
        %262 = sbr.rel (%p259) target = $region12
      $region11: #{transformer_decoder_forward.20} parent=5 // pred_region
        %s263 = ssub.s32 %s17, 1
        // Predicated region
        $region13: #{transformer_decoder_forward.20} parent=11 // pred_check
          %p264 = pneg %p130
        $region14: #{transformer_decoder_forward.20} parent=11 // pred_check_branch
          %266 = sbr.rel (%p264) target = $region16
        $region15: #{transformer_decoder_forward.20} parent=11 // pred_region
          %268 = vsyncadd [#allocation3], 0
          %s269 = sshll.u32 %s3, 4
          %s270 = int_to_ptr.hbm [resolvable:$true] %s269
          %s271 = sshll.u32 [#allocation2], 4
          %s272 = int_to_ptr.vmem [resolvable:$true] %s271
          %277 = dma.hbm_to_vmem [thread:$0]  %s270, 256, %s272, [#allocation3], 64, 64, 4
        $region16: #{transformer_decoder_forward.20} parent=11 // pred_fallthru
          _
        // Predicated region
        $region17: #{transformer_decoder_forward.20} parent=11 // pred_check
          %p278 = pneg %p151
        $region18: #{transformer_decoder_forward.20} parent=11 // pred_check_branch
          %280 = sbr.rel (%p278) target = $region20
        $region19: #{transformer_decoder_forward.20} parent=11 // pred_region
          %282 = vsyncadd [#allocation5], 0
          %s284 = sshll.u32 %s4, 4
          %s285 = int_to_ptr.hbm [resolvable:$true] %s284
          %s286 = sshll.u32 [#allocation4], 4
          %s287 = int_to_ptr.vmem [resolvable:$true] %s286
          %289 = dma.hbm_to_vmem [thread:$0]  %s285, 16, %s287, [#allocation5]
        $region20: #{transformer_decoder_forward.20} parent=11 // pred_fallthru
          _
        // Predicated region
        $region21: #{transformer_decoder_forward.20} parent=11 // pred_check
          %p290 = pneg %p200
        $region22: #{transformer_decoder_forward.20} parent=11 // pred_check_branch
          %292 = sbr.rel (%p290) target = $region24
        $region23: #{transformer_decoder_forward.20} parent=11 // pred_region
          %294 = vsyncadd [#allocation5], 0
          %s296 = sshll.u32 %s6, 4
          %s297 = int_to_ptr.hbm [resolvable:$true] %s296
          %s298 = sshll.u32 [#allocation6], 4
          %s299 = int_to_ptr.vmem [resolvable:$true] %s298
          %301 = dma.hbm_to_vmem [thread:$0]  %s297, 16, %s299, [#allocation5]
        $region24: #{transformer_decoder_forward.20} parent=11 // pred_fallthru
          _
        // Predicated region
        $region25: #{transformer_decoder_forward.20} parent=11 // pred_check
          %p302 = pneg %p221
        $region26: #{transformer_decoder_forward.20} parent=11 // pred_check_branch
          %304 = sbr.rel (%p302) target = $region28
        $region27: #{transformer_decoder_forward.20} parent=11 // pred_region
          %306 = vsyncadd [#allocation8], 0
          %s308 = sshll.u32 %s7, 4
          %s309 = int_to_ptr.hbm [resolvable:$true] %s308
          %s310 = sshll.u32 [#allocation7], 4
          %s311 = int_to_ptr.vmem [resolvable:$true] %s310
          %313 = dma.hbm_to_vmem [thread:$0]  %s309, 16, %s311, [#allocation8]
        $region28: #{transformer_decoder_forward.20} parent=11 // pred_fallthru
          _
      $region12: #{transformer_decoder_forward.20} parent=5 // pred_fallthru
        _
      %p314 = scmp.lt.s32.totalorder %s17, 2
      // Predicated region
      $region29: #{transformer_decoder_forward.20} parent=5 // pred_check
        %p315 = pneg %p314
      $region30: #{transformer_decoder_forward.20} parent=5 // pred_check_branch
        %317 = sbr.rel (%p315) target = $region32
      $region31: #{transformer_decoder_forward.20} parent=5 // pred_region
        // Predicated region
        $region33: #{transformer_decoder_forward.20} parent=31 // pred_check
          %p318 = pneg %p51
        $region34: #{transformer_decoder_forward.20} parent=31 // pred_check_branch
          %320 = sbr.rel (%p318) target = $region36
        $region35: #{transformer_decoder_forward.20} parent=31 // pred_region
          %p321 = scmp.lt.s32.totalorder %s24, 1
          %s322 = scalar_select %p321, %s24, 1
          %p323 = scmp.lt.s32.totalorder %s25, 0
          %s324 = scalar_select %p323, %s25, 0
          %s325 = sadd.s32 %s324, %s322
          %s326 = smul.addr %s325, 4
          %s327 = scalar_lea.vmem %s0, %s326
        $region36: #{transformer_decoder_forward.20} parent=31 // pred_fallthru
          _
        // Predicated region
        $region37: #{transformer_decoder_forward.20} parent=31 // pred_check
          %p328 = pneg %p77
        $region38: #{transformer_decoder_forward.20} parent=31 // pred_check_branch
          %330 = sbr.rel (%p328) target = $region40
        $region39: #{transformer_decoder_forward.20} parent=31 // pred_region
          %p331 = scmp.lt.s32.totalorder %s24, 1
          %s332 = scalar_select %p331, %s24, 1
          %s333 = sadd.s32 %s332, 2
          %s334 = smul.addr %s333, 4
          %s335 = scalar_lea.vmem %s1, %s334
        $region40: #{transformer_decoder_forward.20} parent=31 // pred_fallthru
          _
        // Predicated region
        $region41: #{transformer_decoder_forward.20} parent=31 // pred_check
          %p336 = pneg %p103
        $region42: #{transformer_decoder_forward.20} parent=31 // pred_check_branch
          %338 = sbr.rel (%p336) target = $region44
        $region43: #{transformer_decoder_forward.20} parent=31 // pred_region
          %p339 = scmp.lt.s32.totalorder %s24, 1
          %s340 = scalar_select %p339, %s24, 1
          %s341 = sadd.s32 %s340, 4
          %s342 = smul.addr %s341, 4
          %s343 = scalar_lea.vmem %s2, %s342
        $region44: #{transformer_decoder_forward.20} parent=31 // pred_fallthru
          _
        // Predicated region
        $region45: #{transformer_decoder_forward.20} parent=31 // pred_check
          %p344 = pneg %p173
        $region46: #{transformer_decoder_forward.20} parent=31 // pred_check_branch
          %346 = sbr.rel (%p344) target = $region48
        $region47: #{transformer_decoder_forward.20} parent=31 // pred_region
          %p347 = scmp.lt.s32.totalorder %s24, 1
          %s348 = scalar_select %p347, %s24, 1
          %p349 = scmp.lt.s32.totalorder %s25, 0
          %s350 = scalar_select %p349, %s25, 0
          %s351 = sadd.s32 %s350, %s348
          %s352 = smul.addr %s351, 8
          %s353 = scalar_lea.vmem %s5, %s352
        $region48: #{transformer_decoder_forward.20} parent=31 // pred_fallthru
          _
      $region32: #{transformer_decoder_forward.20} parent=5 // pred_fallthru
        _
      %p354 = scmp.le.s32.totalorder 1, %s17
      %p355 = scmp.lt.s32.totalorder %s17, 3
      %p356 = pnand %p354, %p355
      %p357 = pneg %p356
      // Predicated region
      $region49: #{transformer_decoder_forward.20} parent=5 // pred_check
        _
      $region50: #{transformer_decoder_forward.20} parent=5 // pred_check_branch
        %359 = sbr.rel (%p356) target = $region52
      $region51: #{transformer_decoder_forward.20} parent=5 // pred_region
        %s360 = ssub.s32 %s17, 1
        // Predicated region
        $region53: #{transformer_decoder_forward.20} parent=51 // pred_check
          %p361 = pneg %p130
        $region54: #{transformer_decoder_forward.20} parent=51 // pred_check_branch
          %363 = sbr.rel (%p361) target = $region56
        $region55: #{transformer_decoder_forward.20} parent=51 // pred_region
          %365 = dma.done [#allocation3], 256
        $region56: #{transformer_decoder_forward.20} parent=51 // pred_fallthru
          _
        // Predicated region
        $region57: #{transformer_decoder_forward.20} parent=51 // pred_check
          %p366 = pneg %p151
        $region58: #{transformer_decoder_forward.20} parent=51 // pred_check_branch
          %368 = sbr.rel (%p366) target = $region60
        $region59: #{transformer_decoder_forward.20} parent=51 // pred_region
          %370 = dma.done [#allocation5], 16
        $region60: #{transformer_decoder_forward.20} parent=51 // pred_fallthru
          _
        // Predicated region
        $region61: #{transformer_decoder_forward.20} parent=51 // pred_check
          %p371 = pneg %p200
        $region62: #{transformer_decoder_forward.20} parent=51 // pred_check_branch
          %373 = sbr.rel (%p371) target = $region64
        $region63: #{transformer_decoder_forward.20} parent=51 // pred_region
          %375 = dma.done [#allocation5], 16
        $region64: #{transformer_decoder_forward.20} parent=51 // pred_fallthru
          _
        // Predicated region
        $region65: #{transformer_decoder_forward.20} parent=51 // pred_check
          %p376 = pneg %p221
        $region66: #{transformer_decoder_forward.20} parent=51 // pred_check_branch
          %378 = sbr.rel (%p376) target = $region68
        $region67: #{transformer_decoder_forward.20} parent=51 // pred_region
          %380 = dma.done [#allocation8], 16
        $region68: #{transformer_decoder_forward.20} parent=51 // pred_fallthru
          _
        %p381 = scmp.lt.s32.totalorder %s26, 1
        %s382 = scalar_select %p381, %s26, 1
        %p383 = scmp.lt.s32.totalorder %s27, 0
        %s384 = scalar_select %p383, %s27, 0
        %s385 = sadd.s32 %s384, %s382
        %s386 = smul.addr %s385, 4
        %s387 = scalar_lea.vmem %s0, %s386
        %p388 = pneg %p57
        %p389 = pneg %p54
        %p390 = scmp.lt.s32.totalorder %s26, 1
        %s391 = scalar_select %p390, %s26, 1
        %s392 = sadd.s32 %s391, 2
        %s393 = smul.addr %s392, 4
        %s394 = scalar_lea.vmem %s1, %s393
        %p395 = pneg %p83
        %p396 = pneg %p80
        %p397 = scmp.lt.s32.totalorder %s26, 1
        %s398 = scalar_select %p397, %s26, 1
        %s399 = sadd.s32 %s398, 4
        %s400 = smul.addr %s399, 4
        %s401 = scalar_lea.vmem %s2, %s400
        %p402 = pneg %p109
        %p403 = pneg %p106
        %p404 = pneg %p130
        %p405 = pneg %p127
        %p406 = pneg %p151
        %p407 = pneg %p148
        %p408 = scmp.lt.s32.totalorder %s26, 1
        %s409 = scalar_select %p408, %s26, 1
        %p410 = scmp.lt.s32.totalorder %s27, 0
        %s411 = scalar_select %p410, %s27, 0
        %s412 = sadd.s32 %s411, %s409
        %s413 = smul.addr %s412, 8
        %s414 = scalar_lea.vmem %s5, %s413
        %p415 = pneg %p179
        %p416 = pneg %p176
        %p417 = pneg %p200
        %p418 = pneg %p197
        %p419 = pneg %p221
        %p420 = pneg %p218
        %p421 = pneg %p249
        %p422 = pneg %p246
        %p423 = scmp.lt.s32.totalorder %s26, 1
        %s424 = scalar_select %p423, %s26, 1
        %p425 = scmp.lt.s32.totalorder %s27, 0
        %s426 = scalar_select %p425, %s27, 0
        %s427 = sadd.s32 %s426, %s424
        %s428 = smul.addr %s427, 8
        %s429 = scalar_lea.vmem %s8, %s428
        %p430 = scmp.lt.s32.totalorder %s26, 1
        %s431 = scalar_select %p430, %s26, 1
        %p432 = scmp.lt.s32.totalorder %s27, 0
        %s433 = scalar_select %p432, %s27, 0
        %s434 = sadd.s32 %s433, %s431
        %s435 = smul.addr %s434, 4
        %s436 = scalar_lea.vmem %s0, %s435
        %p437 = scmp.lt.s32.totalorder %s26, 1
        %s438 = scalar_select %p437, %s26, 1
        %s439 = sadd.s32 %s438, 2
        %s440 = smul.addr %s439, 4
        %s441 = scalar_lea.vmem %s1, %s440
        %p442 = scmp.lt.s32.totalorder %s26, 1
        %s443 = scalar_select %p442, %s26, 1
        %s444 = sadd.s32 %s443, 4
        %s445 = smul.addr %s444, 4
        %s446 = scalar_lea.vmem %s2, %s445
        %p447 = scmp.lt.s32.totalorder %s26, 1
        %s448 = scalar_select %p447, %s26, 1
        %p449 = scmp.lt.s32.totalorder %s27, 0
        %s450 = scalar_select %p449, %s27, 0
        %s451 = sadd.s32 %s450, %s448
        %s452 = smul.addr %s451, 8
        %s453 = scalar_lea.vmem %s5, %s452
        %p454 = scmp.lt.s32.totalorder %s26, 1
        %s455 = scalar_select %p454, %s26, 1
        %p456 = scmp.lt.s32.totalorder %s27, 0
        %s457 = scalar_select %p456, %s27, 0
        %s458 = sadd.s32 %s457, %s455
        %s459 = smul.addr %s458, 8
        %s460 = scalar_lea.vmem %s8, %s459
        %v462 = vld [vmem:[%s436] sm:$0xf]
        %v463 = vld [vmem:[%s441] sm:$0xf]
        %v464 = vld [vmem:[%s446] sm:$0xf]
        %vm465 = vcmask 64512
        %v467 = vsel %vm465, %v462, 0
        %v470 = vsel %vm465, %v463, 0
        %472 = vmatpush.bf16.xpose.msra.mxu0 0
        %473 = vmatpush.bf16.xpose.msra.mxu0 0
        %474 = vmatpush.bf16.xpose.msra.mxu0 0
        %475 = vmatpush.bf16.xpose.msra.mxu0 0
        %476 = vmatpush.bf16.xpose.msra.mxu0 0
        %477 = vmatpush.bf16.xpose.msra.mxu0 0
        %478 = vmatpush.bf16.xpose.msra.mxu0 0
        %479 = vmatpush.bf16.xpose.msra.mxu0 %v470
        %480 = vmatmul.bf16.gmra.mxu0 %v467
        %v481 = vpop.f32.mrf.mxu0
        %v482 = vadd.f32 0.0, %v481
        %v483 = vpop.f32.mrf.mxu0
        %484 = vdwg.mxu0
        %v485 = vsel %vm465, %v482, -inf
        %486 = vmax.xlane.f32.xlu0 %v485
        %v487 = vpop.xlane.xlu0 %486
        %v488 = vsub.f32 %v482, %v487
        %v489 = vmul.f32 %v488, 1.442695
        %v490 = vpow.pop %v489
        %v491 = vsel %vm465, %v490, 0.0
        %492 = vadd.xlane.f32.xlu0 %v491
        %v493 = vpop.xlane.xlu0 %492
        %v494 = vrcp.pop %v493
        %v495 = vmul.f32 %v490, %v494
        %v496 = vpack.c.bf16 %v495, %v495
        %v498 = vsel %vm465, %v496, 0
        %vm500 = vcmask 1043456
        %v502 = vsel %vm500, %v464, 0
        %504 = vmatpush.bf16.msra.mxu0 0
        %505 = vmatpush.bf16.msra.mxu0 0
        %506 = vmatpush.bf16.msra.mxu0 0
        %507 = vmatpush.bf16.msra.mxu0 0
        %508 = vmatpush.bf16.msra.mxu0 0
        %509 = vmatpush.bf16.msra.mxu0 0
        %510 = vmatpush.bf16.msra.mxu0 0
        %511 = vmatpush.bf16.msra.mxu0 %v502
        %512 = vmatmul.bf16.gmra.mxu0 %v498
        %v513 = vpop.f32.mrf.mxu0
        %v514 = vadd.f32 0.0, %v513
        %v515 = vpop.f32.mrf.mxu0
        %516 = vdwg.mxu0
        %v518 = vunpack.c.l.b16 %v462
        %v519 = vpack.c.b16 %v518, %v518
        %520 = vrot.lane.b32.xlu0 %v519, 120
        %v521 = vpop.permute.xlu0 %520
        %v523 = vunpack.c.l.b16 %v463
        %v524 = vpack.c.b16 %v523, %v523
        %525 = vrot.lane.b32.xlu0 %v524, 120
        %v526 = vpop.permute.xlu0 %525
        %v528 = vsel %vm465, %v521, 0
        %v531 = vsel %vm465, %v526, 0
        %533 = vmatpush.bf16.xpose.msra.mxu0 0
        %534 = vmatpush.bf16.xpose.msra.mxu0 0
        %535 = vmatpush.bf16.xpose.msra.mxu0 0
        %536 = vmatpush.bf16.xpose.msra.mxu0 0
        %537 = vmatpush.bf16.xpose.msra.mxu0 0
        %538 = vmatpush.bf16.xpose.msra.mxu0 0
        %539 = vmatpush.bf16.xpose.msra.mxu0 0
        %540 = vmatpush.bf16.xpose.msra.mxu0 %v531
        %541 = vmatmul.bf16.gmra.mxu0 %v528
        %v542 = vpop.f32.mrf.mxu0
        %v543 = vadd.f32 0.0, %v542
        %v544 = vpop.f32.mrf.mxu0
        %545 = vdwg.mxu0
        %v546 = vsel %vm465, %v543, -inf
        %547 = vmax.xlane.f32.xlu0 %v546
        %v548 = vpop.xlane.xlu0 %547
        %v549 = vsub.f32 %v543, %v548
        %v550 = vmul.f32 %v549, 1.442695
        %v551 = vpow.pop %v550
        %v552 = vsel %vm465, %v551, 0.0
        %553 = vadd.xlane.f32.xlu0 %v552
        %v554 = vpop.xlane.xlu0 %553
        %v555 = vrcp.pop %v554
        %v556 = vmul.f32 %v551, %v555
        %v557 = vpack.c.bf16 %v556, %v556
        %v559 = vunpack.c.l.b16 %v464
        %v560 = vpack.c.b16 %v559, %v559
        %561 = vrot.lane.b32.xlu0 %v560, 120
        %v562 = vpop.permute.xlu0 %561
        %v564 = vsel %vm465, %v557, 0
        %v567 = vsel %vm500, %v562, 0
        %569 = vmatpush.bf16.msra.mxu0 0
        %570 = vmatpush.bf16.msra.mxu0 0
        %571 = vmatpush.bf16.msra.mxu0 0
        %572 = vmatpush.bf16.msra.mxu0 0
        %573 = vmatpush.bf16.msra.mxu0 0
        %574 = vmatpush.bf16.msra.mxu0 0
        %575 = vmatpush.bf16.msra.mxu0 0
        %576 = vmatpush.bf16.msra.mxu0 %v567
        %577 = vmatmul.bf16.gmra.mxu0 %v564
        %v578 = vpop.f32.mrf.mxu0
        %v579 = vadd.f32 0.0, %v578
        %v580 = vpop.f32.mrf.mxu0
        %581 = vdwg.mxu0
        %582 = vrot.lane.b32.xlu0 %v519, 112
        %v583 = vpop.permute.xlu0 %582
        %584 = vrot.lane.b32.xlu0 %v524, 112
        %v585 = vpop.permute.xlu0 %584
        %v587 = vsel %vm465, %v583, 0
        %v590 = vsel %vm465, %v585, 0
        %592 = vmatpush.bf16.xpose.msra.mxu0 0
        %593 = vmatpush.bf16.xpose.msra.mxu0 0
        %594 = vmatpush.bf16.xpose.msra.mxu0 0
        %595 = vmatpush.bf16.xpose.msra.mxu0 0
        %596 = vmatpush.bf16.xpose.msra.mxu0 0
        %597 = vmatpush.bf16.xpose.msra.mxu0 0
        %598 = vmatpush.bf16.xpose.msra.mxu0 0
        %599 = vmatpush.bf16.xpose.msra.mxu0 %v590
        %600 = vmatmul.bf16.gmra.mxu0 %v587
        %v601 = vpop.f32.mrf.mxu0
        %v602 = vadd.f32 0.0, %v601
        %v603 = vpop.f32.mrf.mxu0
        %604 = vdwg.mxu0
        %v605 = vsel %vm465, %v602, -inf
        %606 = vmax.xlane.f32.xlu0 %v605
        %v607 = vpop.xlane.xlu0 %606
        %v608 = vsub.f32 %v602, %v607
        %v609 = vmul.f32 %v608, 1.442695
        %v610 = vpow.pop %v609
        %v611 = vsel %vm465, %v610, 0.0
        %612 = vadd.xlane.f32.xlu0 %v611
        %v613 = vpop.xlane.xlu0 %612
        %v614 = vrcp.pop %v613
        %v615 = vmul.f32 %v610, %v614
        %v616 = vpack.c.bf16 %v615, %v615
        %617 = vrot.lane.b32.xlu0 %v560, 112
        %v618 = vpop.permute.xlu0 %617
        %v620 = vsel %vm465, %v616, 0
        %v623 = vsel %vm500, %v618, 0
        %625 = vmatpush.bf16.msra.mxu0 0
        %626 = vmatpush.bf16.msra.mxu0 0
        %627 = vmatpush.bf16.msra.mxu0 0
        %628 = vmatpush.bf16.msra.mxu0 0
        %629 = vmatpush.bf16.msra.mxu0 0
        %630 = vmatpush.bf16.msra.mxu0 0
        %631 = vmatpush.bf16.msra.mxu0 0
        %632 = vmatpush.bf16.msra.mxu0 %v623
        %633 = vmatmul.bf16.gmra.mxu0 %v620
        %v634 = vpop.f32.mrf.mxu0
        %v635 = vadd.f32 0.0, %v634
        %v636 = vpop.f32.mrf.mxu0
        %637 = vdwg.mxu0
        %638 = vrot.lane.b32.xlu0 %v519, 104
        %v639 = vpop.permute.xlu0 %638
        %640 = vrot.lane.b32.xlu0 %v524, 104
        %v641 = vpop.permute.xlu0 %640
        %v643 = vsel %vm465, %v639, 0
        %v646 = vsel %vm465, %v641, 0
        %648 = vmatpush.bf16.xpose.msra.mxu0 0
        %649 = vmatpush.bf16.xpose.msra.mxu0 0
        %650 = vmatpush.bf16.xpose.msra.mxu0 0
        %651 = vmatpush.bf16.xpose.msra.mxu0 0
        %652 = vmatpush.bf16.xpose.msra.mxu0 0
        %653 = vmatpush.bf16.xpose.msra.mxu0 0
        %654 = vmatpush.bf16.xpose.msra.mxu0 0
        %655 = vmatpush.bf16.xpose.msra.mxu0 %v646
        %656 = vmatmul.bf16.gmra.mxu0 %v643
        %v657 = vpop.f32.mrf.mxu0
        %v658 = vadd.f32 0.0, %v657
        %v659 = vpop.f32.mrf.mxu0
        %660 = vdwg.mxu0
        %v661 = vsel %vm465, %v658, -inf
        %662 = vmax.xlane.f32.xlu0 %v661
        %v663 = vpop.xlane.xlu0 %662
        %v664 = vsub.f32 %v658, %v663
        %v665 = vmul.f32 %v664, 1.442695
        %v666 = vpow.pop %v665
        %v667 = vsel %vm465, %v666, 0.0
        %668 = vadd.xlane.f32.xlu0 %v667
        %v669 = vpop.xlane.xlu0 %668
        %v670 = vrcp.pop %v669
        %v671 = vmul.f32 %v666, %v670
        %v672 = vpack.c.bf16 %v671, %v671
        %673 = vrot.lane.b32.xlu0 %v560, 104
        %v674 = vpop.permute.xlu0 %673
        %v676 = vsel %vm465, %v672, 0
        %v679 = vsel %vm500, %v674, 0
        %681 = vmatpush.bf16.msra.mxu0 0
        %682 = vmatpush.bf16.msra.mxu0 0
        %683 = vmatpush.bf16.msra.mxu0 0
        %684 = vmatpush.bf16.msra.mxu0 0
        %685 = vmatpush.bf16.msra.mxu0 0
        %686 = vmatpush.bf16.msra.mxu0 0
        %687 = vmatpush.bf16.msra.mxu0 0
        %688 = vmatpush.bf16.msra.mxu0 %v679
        %689 = vmatmul.bf16.gmra.mxu0 %v676
        %v690 = vpop.f32.mrf.mxu0
        %v691 = vadd.f32 0.0, %v690
        %v692 = vpop.f32.mrf.mxu0
        %693 = vdwg.mxu0
        %695 = vrot.lane.b32.xlu0 %v579, 8
        %v696 = vpop.permute.xlu0 %695
        %699 = vrot.lane.b32.xlu0 %v635, 16
        %v700 = vpop.permute.xlu0 %699
        %703 = vrot.lane.b32.xlu0 %v691, 24
        %v704 = vpop.permute.xlu0 %703
        %v706 = vsel %vm465, %v514, %v696
        %vm707 = vcmask 130048
        %v708 = vsel %vm707, %v706, %v700
        %vm709 = vcmask 195584
        %v710 = vsel %vm709, %v708, %v704
        %v711 = vpack.c.bf16 %v710, %v710
        %v712 = vld [vmem:[#allocation2] sm:$0xf]
        %v713 = vld [vmem:[#allocation2 + $0x4] sm:$0xf]
        %v714 = vld [vmem:[#allocation2 + $0x8] sm:$0xf]
        %v715 = vld [vmem:[#allocation2 + $0xc] sm:$0xf]
        %v716 = vld [vmem:[#allocation4] sm:$0x1]
        %v718 = vperm.slane %v716, 0
        %v724 = vunpack.c.l.b16 %v712
        %v725 = vunpack.c.l.b16 %v713
        %v726 = vunpack.c.l.b16 %v714
        %v727 = vunpack.c.l.b16 %v715
        %v728 = vpack.c.b16 %v725, %v724
        %v729 = vpack.c.b16 %v727, %v726
        %vm732 = vcmask 261120
        %v734 = vsel %vm732, %v711, 0
        %736 = vmatpush.bf16.msra.mxu0 0
        %737 = vmatpush.bf16.msra.mxu0 0
        %738 = vmatpush.bf16.msra.mxu0 0
        %739 = vmatpush.bf16.msra.mxu0 0
        %740 = vmatpush.bf16.msra.mxu0 0
        %741 = vmatpush.bf16.msra.mxu0 0
        %742 = vmatpush.bf16.msra.mxu0 %v729
        %743 = vmatpush.bf16.msra.mxu0 %v728
        %744 = vmatmul.bf16.gmra.mxu0 %v734
        %v745 = vpop.f32.mrf.mxu0
        %v746 = vadd.f32 %v718, %v745
        %v747 = vpop.f32.mrf.mxu0
        %748 = vdwg.mxu0
        %v749 = vld [vmem:[%s453] sm:$0xff]
        %v750 = vadd.f32 %v746, %v749
        %v751 = vsel %vm732, %v750, 0.0
        %752 = vadd.xlane.f32.xlu0 %v751
        %v753 = vpop.xlane.xlu0 %752
        %v754 = vrcp.pop 32.0
        %v755 = vmul.f32 32.0, %v754
        %v756 = vsub.f32 1.0, %v755
        %v757 = vmul.f32 %v754, %v756
        %v758 = vadd.f32 %v754, %v757
        %vm759 = vweird.f32 %v754
        %v760 = vsel %vm759, %v754, %v758
        %v761 = vmul.f32 %v753, %v760
        %v762 = vsub.f32 %v750, %v761
        %v763 = vmul.f32 %v762, %v762
        %v764 = vsel %vm732, %v763, 0.0
        %765 = vadd.xlane.f32.xlu0 %v764
        %v766 = vpop.xlane.xlu0 %765
        %v767 = vmul.f32 %v766, %v760
        %v768 = vadd.f32 %v767, 1e-05
        %v769 = vrsqrt.pop %v768
        %v770 = vmul.f32 %v769, %v768
        %v771 = vmul.f32 %v770, %v769
        %v772 = vmul.f32 0.5, %v771
        %v773 = vsub.f32 1.5, %v772
        %v774 = vmul.f32 %v769, %v773
        %vm775 = vweird.f32 %v768
        %vm776 = vweird.f32 %v769
        %vm777 = vmor %vm775, %vm776
        %v778 = vsel %vm777, %v769, %v774
        %v779 = vmul.f32 %v762, %v778
        %v780 = vld [vmem:[#allocation6] sm:$0x1]
        %v782 = vperm.slane %v780, 0
        %v784 = vmul.f32 %v779, %v782
        %v785 = vld [vmem:[#allocation7] sm:$0x1]
        %v787 = vperm.slane %v785, 0
        %v789 = vadd.f32 %v784, %v787
        %790 = vst.msk [vmem:[%s460] sm:$0xff] %vm732, %v789
        %p791 = scmp.lt.s32.totalorder %s26, 1
        %s792 = scalar_select %p791, %s26, 1
        %p793 = scmp.lt.s32.totalorder %s27, 0
        %s794 = scalar_select %p793, %s27, 0
        %s795 = sadd.s32 %s794, %s792
        %s796 = smul.addr %s795, 8
        %s797 = scalar_lea.vmem %s8, %s796
        // Predicated region
        $region69: #{transformer_decoder_forward.20} parent=51 // pred_check
          %p798 = pneg %p246
        $region70: #{transformer_decoder_forward.20} parent=51 // pred_check_branch
          %800 = sbr.rel (%p798) target = $region72
        $region71: #{transformer_decoder_forward.20} parent=51 // pred_region
          _
        $region72: #{transformer_decoder_forward.20} parent=51 // pred_fallthru
          _
      $region52: #{transformer_decoder_forward.20} parent=5 // pred_fallthru
        _
      %p801 = scmp.le.s32.totalorder 2, %s17
      // Predicated region
      $region73: #{transformer_decoder_forward.20} parent=5 // pred_check
        %p802 = pneg %p801
      $region74: #{transformer_decoder_forward.20} parent=5 // pred_check_branch
        %804 = sbr.rel (%p802) target = $region76
      $region75: #{transformer_decoder_forward.20} parent=5 // pred_region
        %s805 = ssub.s32 %s17, 2
        // Predicated region
        $region77: #{transformer_decoder_forward.20} parent=75 // pred_check
          %p806 = pneg %p252
        $region78: #{transformer_decoder_forward.20} parent=75 // pred_check_branch
          %808 = sbr.rel (%p806) target = $region80
        $region79: #{transformer_decoder_forward.20} parent=75 // pred_region
          %p809 = scmp.lt.s32.totalorder %s28, 1
          %s810 = scalar_select %p809, %s28, 1
          %p811 = scmp.lt.s32.totalorder %s29, 0
          %s812 = scalar_select %p811, %s29, 0
          %s813 = sadd.s32 %s812, %s810
          %s814 = smul.addr %s813, 8
          %s815 = scalar_lea.vmem %s8, %s814
        $region80: #{transformer_decoder_forward.20} parent=75 // pred_fallthru
          _
      $region76: #{transformer_decoder_forward.20} parent=5 // pred_fallthru
        _
    $region6: #{transformer_decoder_forward.20} parent=1 // loop_footer
      %s21 = sadd.s32 1, %s17
    $region7: #{transformer_decoder_forward.20} parent=1 // loop_footer_branch
      %16 = sbr.rel target = $region3
    $region8: #{transformer_decoder_forward.20} parent=1 // loop_exit
      _
    %816 = vsyncpa [#allocation3], 1
    %s817 = scalar_lea.sflag [#allocation3], 1
    %818 = vsyncpa %s817, 1
    %819 = vsyncpa [#allocation5], 1
    %820 = vsyncpa [#allocation8], 1

// kernel: transformer_decoder_forward.18
$region0: #{transformer_decoder_forward.18}
  #allocation0 [shape = 'u32[]', space=smem, size = 0x4, offset = 0x4, fixed_abs, tag = 'smem constant byte address 0x4 - core index']
  #allocation1 [shape = 'u32[72,128]{1,0:T(1,128)}', space=vmem, size = 0x9000, scoped, tag = 'internal scratch']
  #allocation2 [shape = 'f32[16,32]{1,0:T(8,128)}', space=vmem, size = 0x2000, scoped, tag = 'scratch operand']
  %s0 = inlined_call_operand.vmem [shape: f32[16,32], index: 0, kind: input, shape index: {}]
  %s1 = inlined_call_operand.hbm [shape: bf16[32,64], index: 1, kind: input, shape index: {}]
  %s2 = inlined_call_operand.hbm [shape: f32[1,64], index: 2, kind: input, shape index: {}]
  %s3 = inlined_call_operand.vmem [shape: bf16[64,32], index: 3, kind: input, shape index: {}]
  %s4 = inlined_call_operand.hbm [shape: f32[1,32], index: 4, kind: input, shape index: {}]
  %s5 = inlined_call_operand.hbm [shape: f32[1,32], index: 5, kind: input, shape index: {}]
  %s6 = inlined_call_operand.hbm [shape: f32[1,32], index: 6, kind: input, shape index: {}]
  %s7 = inlined_call_operand.vmem [shape: f32[16,32], index: 7, kind: output, shape index: {}]
  %s8 = sld [smem:[#allocation0]]
  $region66: #{transformer_decoder_forward.18} parent=0
    _
  %s10 = ssub.s32 1, %s8
  %s11 = scalar_select 0, %s10, %s8
  $region1: #{transformer_decoder_forward.18} parent=0
    #allocation3 [shape = 'u8[8192]{0}', space=vmem, size = 0x2000, scoped, tag = 'input window, operand 1, single buffered']
    #allocation4 [shape = 's32[1]{0}', space=sflag, size = 0x4, scoped, tag = 'scoped memory for transformer_decoder_forward.18']
    #allocation5 [shape = 'u8[512]{0}', space=vmem, size = 0x400, scoped, tag = 'input window, operand 2, single buffered']
    #allocation6 [shape = 's32[1]{0}', space=sflag, size = 0x4, scoped, tag = 'scoped memory for transformer_decoder_forward.18']
    #allocation7 [shape = 'u8[512]{0}', space=vmem, size = 0x400, scoped, tag = 'input window, operand 4, single buffered']
    #allocation8 [shape = 'u8[512]{0}', space=vmem, size = 0x400, scoped, tag = 'input window, operand 5, single buffered']
    #allocation9 [shape = 's32[1]{0}', space=sflag, size = 0x4, scoped, tag = 'scoped memory for transformer_decoder_forward.18']
    #allocation10 [shape = 'u8[512]{0}', space=vmem, size = 0x400, scoped, tag = 'input window, operand 6, single buffered']
    %12 = vsyncpa [#allocation4], 0
    %13 = vsyncpa [#allocation6], 0
    %14 = vsyncpa [#allocation9], 0
    // Predicated region
    $region2: #{transformer_decoder_forward.18} parent=1 // pred_check
      _
    $region3: #{transformer_decoder_forward.18} parent=1 // pred_check_branch
      %16 = sbr.rel (0) target = $region5
    $region4: #{transformer_decoder_forward.18} parent=1 // pred_region
      _
    $region5: #{transformer_decoder_forward.18} parent=1 // pred_fallthru
      _
    // Predicated region
    $region6: #{transformer_decoder_forward.18} parent=1 // pred_check
      _
    $region7: #{transformer_decoder_forward.18} parent=1 // pred_check_branch
      %18 = sbr.rel (0) target = $region9
    $region8: #{transformer_decoder_forward.18} parent=1 // pred_region
      %20 = vsyncadd [#allocation4], 0
      %s21 = sshll.u32 %s1, 4
      %s22 = int_to_ptr.hbm [resolvable:$true] %s21
      %s23 = sshll.u32 [#allocation3], 4
      %s24 = int_to_ptr.vmem [resolvable:$true] %s23
      %29 = dma.hbm_to_vmem [thread:$0]  %s22, 256, %s24, [#allocation4], 64, 64, 4
    $region9: #{transformer_decoder_forward.18} parent=1 // pred_fallthru
      _
    // Predicated region
    $region10: #{transformer_decoder_forward.18} parent=1 // pred_check
      _
    $region11: #{transformer_decoder_forward.18} parent=1 // pred_check_branch
      %31 = sbr.rel (0) target = $region13
    $region12: #{transformer_decoder_forward.18} parent=1 // pred_region
      %33 = vsyncadd [#allocation6], 0
      %s35 = sshll.u32 %s2, 4
      %s36 = int_to_ptr.hbm [resolvable:$true] %s35
      %s37 = sshll.u32 [#allocation5], 4
      %s38 = int_to_ptr.vmem [resolvable:$true] %s37
      %40 = dma.hbm_to_vmem [thread:$0]  %s36, 16, %s38, [#allocation6]
    $region13: #{transformer_decoder_forward.18} parent=1 // pred_fallthru
      _
    // Predicated region
    $region14: #{transformer_decoder_forward.18} parent=1 // pred_check
      _
    $region15: #{transformer_decoder_forward.18} parent=1 // pred_check_branch
      %42 = sbr.rel (0) target = $region17
    $region16: #{transformer_decoder_forward.18} parent=1 // pred_region
      _
    $region17: #{transformer_decoder_forward.18} parent=1 // pred_fallthru
      _
    // Predicated region
    $region18: #{transformer_decoder_forward.18} parent=1 // pred_check
      _
    $region19: #{transformer_decoder_forward.18} parent=1 // pred_check_branch
      %44 = sbr.rel (0) target = $region21
    $region20: #{transformer_decoder_forward.18} parent=1 // pred_region
      %46 = vsyncadd [#allocation6], 0
      %s48 = sshll.u32 %s4, 4
      %s49 = int_to_ptr.hbm [resolvable:$true] %s48
      %s50 = sshll.u32 [#allocation7], 4
      %s51 = int_to_ptr.vmem [resolvable:$true] %s50
      %53 = dma.hbm_to_vmem [thread:$0]  %s49, 16, %s51, [#allocation6]
    $region21: #{transformer_decoder_forward.18} parent=1 // pred_fallthru
      _
    // Predicated region
    $region22: #{transformer_decoder_forward.18} parent=1 // pred_check
      _
    $region23: #{transformer_decoder_forward.18} parent=1 // pred_check_branch
      %55 = sbr.rel (0) target = $region25
    $region24: #{transformer_decoder_forward.18} parent=1 // pred_region
      %57 = vsyncadd [#allocation9], 0
      %s59 = sshll.u32 %s5, 4
      %s60 = int_to_ptr.hbm [resolvable:$true] %s59
      %s61 = sshll.u32 [#allocation8], 4
      %s62 = int_to_ptr.vmem [resolvable:$true] %s61
      %64 = dma.hbm_to_vmem [thread:$0]  %s60, 16, %s62, [#allocation9]
    $region25: #{transformer_decoder_forward.18} parent=1 // pred_fallthru
      _
    // Predicated region
    $region26: #{transformer_decoder_forward.18} parent=1 // pred_check
      _
    $region27: #{transformer_decoder_forward.18} parent=1 // pred_check_branch
      %66 = sbr.rel (0) target = $region29
    $region28: #{transformer_decoder_forward.18} parent=1 // pred_region
      %68 = vsyncadd [#allocation9], 0
      %s70 = sshll.u32 %s6, 4
      %s71 = int_to_ptr.hbm [resolvable:$true] %s70
      %s72 = sshll.u32 [#allocation10], 4
      %s73 = int_to_ptr.vmem [resolvable:$true] %s72
      %75 = dma.hbm_to_vmem [thread:$0]  %s71, 16, %s73, [#allocation9]
    $region29: #{transformer_decoder_forward.18} parent=1 // pred_fallthru
      _
    // Predicated region
    $region30: #{transformer_decoder_forward.18} parent=1 // pred_check
      _
    $region31: #{transformer_decoder_forward.18} parent=1 // pred_check_branch
      %77 = sbr.rel (0) target = $region33
    $region32: #{transformer_decoder_forward.18} parent=1 // pred_region
      %79 = dma.done [#allocation4], 256
    $region33: #{transformer_decoder_forward.18} parent=1 // pred_fallthru
      _
    // Predicated region
    $region34: #{transformer_decoder_forward.18} parent=1 // pred_check
      _
    $region35: #{transformer_decoder_forward.18} parent=1 // pred_check_branch
      %81 = sbr.rel (0) target = $region37
    $region36: #{transformer_decoder_forward.18} parent=1 // pred_region
      %83 = dma.done [#allocation6], 16
    $region37: #{transformer_decoder_forward.18} parent=1 // pred_fallthru
      _
    // Predicated region
    $region38: #{transformer_decoder_forward.18} parent=1 // pred_check
      _
    $region39: #{transformer_decoder_forward.18} parent=1 // pred_check_branch
      %85 = sbr.rel (0) target = $region41
    $region40: #{transformer_decoder_forward.18} parent=1 // pred_region
      %87 = dma.done [#allocation6], 16
    $region41: #{transformer_decoder_forward.18} parent=1 // pred_fallthru
      _
    // Predicated region
    $region42: #{transformer_decoder_forward.18} parent=1 // pred_check
      _
    $region43: #{transformer_decoder_forward.18} parent=1 // pred_check_branch
      %89 = sbr.rel (0) target = $region45
    $region44: #{transformer_decoder_forward.18} parent=1 // pred_region
      %91 = dma.done [#allocation9], 16
    $region45: #{transformer_decoder_forward.18} parent=1 // pred_fallthru
      _
    // Predicated region
    $region46: #{transformer_decoder_forward.18} parent=1 // pred_check
      _
    $region47: #{transformer_decoder_forward.18} parent=1 // pred_check_branch
      %93 = sbr.rel (0) target = $region49
    $region48: #{transformer_decoder_forward.18} parent=1 // pred_region
      %95 = dma.done [#allocation9], 16
    $region49: #{transformer_decoder_forward.18} parent=1 // pred_fallthru
      _
    %p97 = scmp.eq.s32.totalorder 0, 0
    // Predicated region
    $region50: #{transformer_decoder_forward.18} parent=1 // pred_check
      %p98 = pneg %p97
    $region51: #{transformer_decoder_forward.18} parent=1 // pred_check_branch
      %100 = sbr.rel (%p98) target = $region53
    $region52: #{transformer_decoder_forward.18} parent=1 // pred_region
      %vm101 = vcmask 261120
      %102 = vst.msk [vmem:[#allocation2] sm:$0xff] %vm101, 0.0
      %103 = vst.msk [vmem:[#allocation2 + $0x8] sm:$0xff] %vm101, 0.0
    $region53: #{transformer_decoder_forward.18} parent=1 // pred_fallthru
      _
    %v104 = vld [vmem:[%s0] sm:$0xff]
    %v105 = vld [vmem:[%s0 + $0x8] sm:$0xff]
    %v106 = vpack.c.bf16 %v105, %v104
    %v107 = vld [vmem:[#allocation3] sm:$0xf]
    %v108 = vld [vmem:[#allocation3 + $0x4] sm:$0xf]
    %v109 = vld [vmem:[#allocation3 + $0x8] sm:$0xf]
    %v110 = vld [vmem:[#allocation3 + $0xc] sm:$0xf]
    %v111 = vld [vmem:[#allocation5] sm:$0x1]
    %v113 = vperm.slane %v111, 0
    %v119 = vunpack.c.l.b16 %v107
    %v120 = vunpack.c.l.b16 %v108
    %v121 = vunpack.c.l.b16 %v109
    %v122 = vunpack.c.l.b16 %v110
    %v123 = vpack.c.b16 %v120, %v119
    %v124 = vpack.c.b16 %v122, %v121
    %vm127 = vcmask 261120
    %v129 = vsel %vm127, %v106, 0
    %131 = vmatpush.bf16.msra.mxu0 0
    %132 = vmatpush.bf16.msra.mxu0 0
    %133 = vmatpush.bf16.msra.mxu0 0
    %134 = vmatpush.bf16.msra.mxu0 0
    %135 = vmatpush.bf16.msra.mxu0 0
    %136 = vmatpush.bf16.msra.mxu0 0
    %137 = vmatpush.bf16.msra.mxu0 %v124
    %138 = vmatpush.bf16.msra.mxu0 %v123
    %139 = vmatmul.bf16.gmra.mxu0 %v129
    %v140 = vpop.f32.mrf.mxu0
    %v141 = vadd.f32 %v113, %v140
    %v142 = vpop.f32.mrf.mxu0
    %v143 = vadd.f32 %v113, %v142
    %144 = vdwg.mxu0
    %v145 = vmax.f32 %v141, 0.0
    %v146 = vmax.f32 %v143, 0.0
    %v147 = vld [vmem:[#allocation2] sm:$0xff]
    %v148 = vld [vmem:[#allocation2 + $0x8] sm:$0xff]
    %v149 = vpack.c.bf16 %v146, %v145
    %v150 = vld [vmem:[%s3] sm:$0xf]
    %v151 = vld [vmem:[%s3 + $0x4] sm:$0xf]
    %v152 = vld [vmem:[%s3 + $0x8] sm:$0xf]
    %v153 = vld [vmem:[%s3 + $0xc] sm:$0xf]
    %v154 = vld [vmem:[%s3 + $0x10] sm:$0xf]
    %v155 = vld [vmem:[%s3 + $0x14] sm:$0xf]
    %v156 = vld [vmem:[%s3 + $0x18] sm:$0xf]
    %v157 = vld [vmem:[%s3 + $0x1c] sm:$0xf]
    %v166 = vunpack.c.l.b16 %v150
    %v167 = vunpack.c.l.b16 %v151
    %v168 = vunpack.c.l.b16 %v152
    %v169 = vunpack.c.l.b16 %v153
    %v170 = vunpack.c.l.b16 %v154
    %v171 = vunpack.c.l.b16 %v155
    %v172 = vunpack.c.l.b16 %v156
    %v173 = vunpack.c.l.b16 %v157
    %v174 = vpack.c.b16 %v167, %v166
    %v175 = vpack.c.b16 %v169, %v168
    %v176 = vpack.c.b16 %v171, %v170
    %v177 = vpack.c.b16 %v173, %v172
    %vm182 = vcmask 523264
    %v184 = vsel %vm182, %v149, 0
    %186 = vmatpush.bf16.msra.mxu0 0
    %187 = vmatpush.bf16.msra.mxu0 0
    %188 = vmatpush.bf16.msra.mxu0 0
    %189 = vmatpush.bf16.msra.mxu0 0
    %190 = vmatpush.bf16.msra.mxu0 %v177
    %191 = vmatpush.bf16.msra.mxu0 %v176
    %192 = vmatpush.bf16.msra.mxu0 %v175
    %193 = vmatpush.bf16.msra.mxu0 %v174
    %194 = vmatmul.bf16.gmra.mxu0 %v184
    %v195 = vpop.f32.mrf.mxu0
    %v196 = vadd.f32 0.0, %v195
    %v197 = vpop.f32.mrf.mxu0
    %v198 = vadd.f32 0.0, %v197
    %199 = vdwg.mxu0
    %v200 = vadd.f32 %v147, %v196
    %v201 = vadd.f32 %v148, %v198
    %202 = vst.msk [vmem:[#allocation2] sm:$0xff] %vm127, %v200
    %203 = vst.msk [vmem:[#allocation2 + $0x8] sm:$0xff] %vm127, %v201
    // Predicated region
    $region54: #{transformer_decoder_forward.18} parent=1 // pred_check
      %p204 = pneg %p97
    $region55: #{transformer_decoder_forward.18} parent=1 // pred_check_branch
      %206 = sbr.rel (%p204) target = $region57
    $region56: #{transformer_decoder_forward.18} parent=1 // pred_region
      %v207 = vld [vmem:[#allocation2] sm:$0xff]
      %v208 = vld [vmem:[#allocation2 + $0x8] sm:$0xff]
      %v209 = vld [vmem:[#allocation7] sm:$0x1]
      %v211 = vperm.slane %v209, 0
      %v213 = vadd.f32 %v207, %v211
      %v214 = vadd.f32 %v208, %v211
      %v215 = vadd.f32 %v213, %v104
      %v216 = vadd.f32 %v214, %v105
      %v217 = vsel %vm127, %v215, 0.0
      %218 = vadd.xlane.f32.xlu0 %v217
      %v219 = vpop.xlane.xlu0 %218
      %v220 = vsel %vm127, %v216, 0.0
      %221 = vadd.xlane.f32.xlu0 %v220
      %v222 = vpop.xlane.xlu0 %221
      %v223 = vrcp.pop 32.0
      %v224 = vmul.f32 32.0, %v223
      %v225 = vsub.f32 1.0, %v224
      %v226 = vmul.f32 %v223, %v225
      %v227 = vadd.f32 %v223, %v226
      %vm228 = vweird.f32 %v223
      %v229 = vsel %vm228, %v223, %v227
      %v230 = vmul.f32 %v219, %v229
      %v231 = vmul.f32 %v222, %v229
      %v232 = vsub.f32 %v215, %v230
      %v233 = vsub.f32 %v216, %v231
      %v234 = vmul.f32 %v232, %v232
      %v235 = vmul.f32 %v233, %v233
      %v236 = vsel %vm127, %v234, 0.0
      %237 = vadd.xlane.f32.xlu0 %v236
      %v238 = vpop.xlane.xlu0 %237
      %v239 = vsel %vm127, %v235, 0.0
      %240 = vadd.xlane.f32.xlu0 %v239
      %v241 = vpop.xlane.xlu0 %240
      %v242 = vmul.f32 %v238, %v229
      %v243 = vmul.f32 %v241, %v229
      %v244 = vadd.f32 %v242, 1e-05
      %v245 = vadd.f32 %v243, 1e-05
      %v246 = vrsqrt.pop %v244
      %v247 = vmul.f32 %v246, %v244
      %v248 = vmul.f32 %v247, %v246
      %v249 = vmul.f32 0.5, %v248
      %v250 = vsub.f32 1.5, %v249
      %v251 = vmul.f32 %v246, %v250
      %vm252 = vweird.f32 %v244
      %vm253 = vweird.f32 %v246
      %vm254 = vmor %vm252, %vm253
      %v255 = vsel %vm254, %v246, %v251
      %v256 = vrsqrt.pop %v245
      %v257 = vmul.f32 %v256, %v245
      %v258 = vmul.f32 %v257, %v256
      %v259 = vmul.f32 0.5, %v258
      %v260 = vsub.f32 1.5, %v259
      %v261 = vmul.f32 %v256, %v260
      %vm262 = vweird.f32 %v245
      %vm263 = vweird.f32 %v256
      %vm264 = vmor %vm262, %vm263
      %v265 = vsel %vm264, %v256, %v261
      %v266 = vmul.f32 %v232, %v255
      %v267 = vmul.f32 %v233, %v265
      %v268 = vld [vmem:[#allocation8] sm:$0x1]
      %v270 = vperm.slane %v268, 0
      %v272 = vmul.f32 %v266, %v270
      %v273 = vmul.f32 %v267, %v270
      %v274 = vld [vmem:[#allocation10] sm:$0x1]
      %v276 = vperm.slane %v274, 0
      %v278 = vadd.f32 %v272, %v276
      %v279 = vadd.f32 %v273, %v276
      %280 = vst.msk [vmem:[%s7] sm:$0xff] %vm127, %v278
      %281 = vst.msk [vmem:[%s7 + $0x8] sm:$0xff] %vm127, %v279
    $region57: #{transformer_decoder_forward.18} parent=1 // pred_fallthru
      _
    // Predicated region
    $region58: #{transformer_decoder_forward.18} parent=1 // pred_check
      _
    $region59: #{transformer_decoder_forward.18} parent=1 // pred_check_branch
      %283 = sbr.rel (0) target = $region61
    $region60: #{transformer_decoder_forward.18} parent=1 // pred_region
      _
    $region61: #{transformer_decoder_forward.18} parent=1 // pred_fallthru
      _
    // Predicated region
    $region62: #{transformer_decoder_forward.18} parent=1 // pred_check
      _
    $region63: #{transformer_decoder_forward.18} parent=1 // pred_check_branch
      %285 = sbr.rel (0) target = $region65
    $region64: #{transformer_decoder_forward.18} parent=1 // pred_region
      _
    $region65: #{transformer_decoder_forward.18} parent=1 // pred_fallthru
      _
    %286 = vsyncpa [#allocation4], 1
    %287 = vsyncpa [#allocation6], 1
    %288 = vsyncpa [#allocation9], 1

// kernel: transformer_decoder_forward.25
$region0: #{transformer_decoder_forward.25}
  #allocation0 [shape = 'u32[]', space=smem, size = 0x4, offset = 0x4, fixed_abs, tag = 'smem constant byte address 0x4 - core index']
  #allocation1 [shape = 'u32[72,128]{1,0:T(1,128)}', space=vmem, size = 0x9000, scoped, tag = 'internal scratch']
  %s0 = inlined_call_operand.vmem [shape: f32[16,32], index: 0, kind: input, shape index: {}]
  %s1 = inlined_call_operand.vmem [shape: f32[1,32], index: 1, kind: input, shape index: {}]
  %s2 = inlined_call_operand.vmem [shape: f32[1,32], index: 2, kind: input, shape index: {}]
  %s3 = inlined_call_operand.vmem [shape: f32[16,32], index: 3, kind: output, shape index: {}]
  %s4 = sld [smem:[#allocation0]]
  $region22: #{transformer_decoder_forward.25} parent=0
    _
  %s6 = ssub.s32 1, %s4
  %s7 = scalar_select 0, %s6, %s4
  // Predicated region
  $region2: #{transformer_decoder_forward.25} parent=0 // pred_check
    _
  $region3: #{transformer_decoder_forward.25} parent=0 // pred_check_branch
    %9 = sbr.rel (0) target = $region5
  $region4: #{transformer_decoder_forward.25} parent=0 // pred_region
    _
  $region5: #{transformer_decoder_forward.25} parent=0 // pred_fallthru
    _
  // Predicated region
  $region6: #{transformer_decoder_forward.25} parent=0 // pred_check
    _
  $region7: #{transformer_decoder_forward.25} parent=0 // pred_check_branch
    %11 = sbr.rel (0) target = $region9
  $region8: #{transformer_decoder_forward.25} parent=0 // pred_region
    _
  $region9: #{transformer_decoder_forward.25} parent=0 // pred_fallthru
    _
  // Predicated region
  $region10: #{transformer_decoder_forward.25} parent=0 // pred_check
    _
  $region11: #{transformer_decoder_forward.25} parent=0 // pred_check_branch
    %13 = sbr.rel (0) target = $region13
  $region12: #{transformer_decoder_forward.25} parent=0 // pred_region
    _
  $region13: #{transformer_decoder_forward.25} parent=0 // pred_fallthru
    _
  %v14 = vld [vmem:[%s0] sm:$0xff]
  %v15 = vld [vmem:[%s0 + $0x8] sm:$0xff]
  %vm16 = vcmask 261120
  %v17 = vsel %vm16, %v14, 0.0
  %18 = vadd.xlane.f32.xlu0 %v17
  %v19 = vpop.xlane.xlu0 %18
  %v20 = vsel %vm16, %v15, 0.0
  %21 = vadd.xlane.f32.xlu0 %v20
  %v22 = vpop.xlane.xlu0 %21
  %v23 = vrcp.pop 32.0
  %v24 = vmul.f32 32.0, %v23
  %v25 = vsub.f32 1.0, %v24
  %v26 = vmul.f32 %v23, %v25
  %v27 = vadd.f32 %v23, %v26
  %vm28 = vweird.f32 %v23
  %v29 = vsel %vm28, %v23, %v27
  %v30 = vmul.f32 %v19, %v29
  %v31 = vmul.f32 %v22, %v29
  %v32 = vsub.f32 %v14, %v30
  %v33 = vsub.f32 %v15, %v31
  %v34 = vmul.f32 %v32, %v32
  %v35 = vmul.f32 %v33, %v33
  %v36 = vsel %vm16, %v34, 0.0
  %37 = vadd.xlane.f32.xlu0 %v36
  %v38 = vpop.xlane.xlu0 %37
  %v39 = vsel %vm16, %v35, 0.0
  %40 = vadd.xlane.f32.xlu0 %v39
  %v41 = vpop.xlane.xlu0 %40
  %v42 = vmul.f32 %v38, %v29
  %v43 = vmul.f32 %v41, %v29
  %v44 = vadd.f32 %v42, 1e-05
  %v45 = vadd.f32 %v43, 1e-05
  %v46 = vrsqrt.pop %v44
  %v47 = vmul.f32 %v46, %v44
  %v48 = vmul.f32 %v47, %v46
  %v49 = vmul.f32 0.5, %v48
  %v50 = vsub.f32 1.5, %v49
  %v51 = vmul.f32 %v46, %v50
  %vm52 = vweird.f32 %v44
  %vm53 = vweird.f32 %v46
  %vm54 = vmor %vm52, %vm53
  %v55 = vsel %vm54, %v46, %v51
  %v56 = vrsqrt.pop %v45
  %v57 = vmul.f32 %v56, %v45
  %v58 = vmul.f32 %v57, %v56
  %v59 = vmul.f32 0.5, %v58
  %v60 = vsub.f32 1.5, %v59
  %v61 = vmul.f32 %v56, %v60
  %vm62 = vweird.f32 %v45
  %vm63 = vweird.f32 %v56
  %vm64 = vmor %vm62, %vm63
  %v65 = vsel %vm64, %v56, %v61
  %v66 = vmul.f32 %v32, %v55
  %v67 = vmul.f32 %v33, %v65
  %v68 = vld [vmem:[%s1] sm:$0x1]
  %v70 = vperm.slane %v68, 0
  %v72 = vmul.f32 %v66, %v70
  %v73 = vmul.f32 %v67, %v70
  %v74 = vld [vmem:[%s2] sm:$0x1]
  %v76 = vperm.slane %v74, 0
  %v78 = vadd.f32 %v72, %v76
  %v79 = vadd.f32 %v73, %v76
  %80 = vst.msk [vmem:[%s3] sm:$0xff] %vm16, %v78
  %81 = vst.msk [vmem:[%s3 + $0x8] sm:$0xff] %vm16, %v79
  // Predicated region
  $region14: #{transformer_decoder_forward.25} parent=0 // pred_check
    _
  $region15: #{transformer_decoder_forward.25} parent=0 // pred_check_branch
    %83 = sbr.rel (0) target = $region17
  $region16: #{transformer_decoder_forward.25} parent=0 // pred_region
    _
  $region17: #{transformer_decoder_forward.25} parent=0 // pred_fallthru
    _
  // Predicated region
  $region18: #{transformer_decoder_forward.25} parent=0 // pred_check
    _
  $region19: #{transformer_decoder_forward.25} parent=0 // pred_check_branch
    %85 = sbr.rel (0) target = $region21
  $region20: #{transformer_decoder_forward.25} parent=0 // pred_region
    _
  $region21: #{transformer_decoder_forward.25} parent=0 // pred_fallthru
    _

// kernel: transformer_decoder_forward.24
$region0: #{transformer_decoder_forward.24}
  #allocation0 [shape = 'u32[]', space=smem, size = 0x4, offset = 0x4, fixed_abs, tag = 'smem constant byte address 0x4 - core index']
  #allocation1 [shape = 'u32[72,128]{1,0:T(1,128)}', space=vmem, size = 0x9000, scoped, tag = 'internal scratch']
  #allocation2 [shape = 'f32[16,32]{1,0:T(8,128)}', space=vmem, size = 0x2000, scoped, tag = 'scratch operand']
  %s0 = inlined_call_operand.vmem [shape: f32[16,32], index: 0, kind: input, shape index: {}]
  %s1 = inlined_call_operand.vmem [shape: bf16[32,64], index: 1, kind: input, shape index: {}]
  %s2 = inlined_call_operand.vmem [shape: f32[1,64], index: 2, kind: input, shape index: {}]
  %s3 = inlined_call_operand.vmem [shape: bf16[64,32], index: 3, kind: input, shape index: {}]
  %s4 = inlined_call_operand.vmem [shape: f32[1,32], index: 4, kind: input, shape index: {}]
  %s5 = inlined_call_operand.vmem [shape: f32[1,32], index: 5, kind: input, shape index: {}]
  %s6 = inlined_call_operand.vmem [shape: f32[1,32], index: 6, kind: input, shape index: {}]
  %s7 = inlined_call_operand.vmem [shape: f32[16,32], index: 7, kind: output, shape index: {}]
  %s8 = sld [smem:[#allocation0]]
  $region46: #{transformer_decoder_forward.24} parent=0
    _
  %s10 = ssub.s32 1, %s8
  %s11 = scalar_select 0, %s10, %s8
  // Predicated region
  $region2: #{transformer_decoder_forward.24} parent=0 // pred_check
    _
  $region3: #{transformer_decoder_forward.24} parent=0 // pred_check_branch
    %13 = sbr.rel (0) target = $region5
  $region4: #{transformer_decoder_forward.24} parent=0 // pred_region
    _
  $region5: #{transformer_decoder_forward.24} parent=0 // pred_fallthru
    _
  // Predicated region
  $region6: #{transformer_decoder_forward.24} parent=0 // pred_check
    _
  $region7: #{transformer_decoder_forward.24} parent=0 // pred_check_branch
    %15 = sbr.rel (0) target = $region9
  $region8: #{transformer_decoder_forward.24} parent=0 // pred_region
    _
  $region9: #{transformer_decoder_forward.24} parent=0 // pred_fallthru
    _
  // Predicated region
  $region10: #{transformer_decoder_forward.24} parent=0 // pred_check
    _
  $region11: #{transformer_decoder_forward.24} parent=0 // pred_check_branch
    %17 = sbr.rel (0) target = $region13
  $region12: #{transformer_decoder_forward.24} parent=0 // pred_region
    _
  $region13: #{transformer_decoder_forward.24} parent=0 // pred_fallthru
    _
  // Predicated region
  $region14: #{transformer_decoder_forward.24} parent=0 // pred_check
    _
  $region15: #{transformer_decoder_forward.24} parent=0 // pred_check_branch
    %19 = sbr.rel (0) target = $region17
  $region16: #{transformer_decoder_forward.24} parent=0 // pred_region
    _
  $region17: #{transformer_decoder_forward.24} parent=0 // pred_fallthru
    _
  // Predicated region
  $region18: #{transformer_decoder_forward.24} parent=0 // pred_check
    _
  $region19: #{transformer_decoder_forward.24} parent=0 // pred_check_branch
    %21 = sbr.rel (0) target = $region21
  $region20: #{transformer_decoder_forward.24} parent=0 // pred_region
    _
  $region21: #{transformer_decoder_forward.24} parent=0 // pred_fallthru
    _
  // Predicated region
  $region22: #{transformer_decoder_forward.24} parent=0 // pred_check
    _
  $region23: #{transformer_decoder_forward.24} parent=0 // pred_check_branch
    %23 = sbr.rel (0) target = $region25
  $region24: #{transformer_decoder_forward.24} parent=0 // pred_region
    _
  $region25: #{transformer_decoder_forward.24} parent=0 // pred_fallthru
    _
  // Predicated region
  $region26: #{transformer_decoder_forward.24} parent=0 // pred_check
    _
  $region27: #{transformer_decoder_forward.24} parent=0 // pred_check_branch
    %25 = sbr.rel (0) target = $region29
  $region28: #{transformer_decoder_forward.24} parent=0 // pred_region
    _
  $region29: #{transformer_decoder_forward.24} parent=0 // pred_fallthru
    _
  %p27 = scmp.eq.s32.totalorder 0, 0
  // Predicated region
  $region30: #{transformer_decoder_forward.24} parent=0 // pred_check
    %p28 = pneg %p27
  $region31: #{transformer_decoder_forward.24} parent=0 // pred_check_branch
    %30 = sbr.rel (%p28) target = $region33
  $region32: #{transformer_decoder_forward.24} parent=0 // pred_region
    %vm31 = vcmask 261120
    %32 = vst.msk [vmem:[#allocation2] sm:$0xff] %vm31, 0.0
    %33 = vst.msk [vmem:[#allocation2 + $0x8] sm:$0xff] %vm31, 0.0
  $region33: #{transformer_decoder_forward.24} parent=0 // pred_fallthru
    _
  %v34 = vld [vmem:[%s0] sm:$0xff]
  %v35 = vld [vmem:[%s0 + $0x8] sm:$0xff]
  %v36 = vpack.c.bf16 %v35, %v34
  %v37 = vld [vmem:[%s1] sm:$0xf]
  %v38 = vld [vmem:[%s1 + $0x4] sm:$0xf]
  %v39 = vld [vmem:[%s1 + $0x8] sm:$0xf]
  %v40 = vld [vmem:[%s1 + $0xc] sm:$0xf]
  %v41 = vld [vmem:[%s2] sm:$0x1]
  %v43 = vperm.slane %v41, 0
  %v49 = vunpack.c.l.b16 %v37
  %v50 = vunpack.c.l.b16 %v38
  %v51 = vunpack.c.l.b16 %v39
  %v52 = vunpack.c.l.b16 %v40
  %v53 = vpack.c.b16 %v50, %v49
  %v54 = vpack.c.b16 %v52, %v51
  %vm57 = vcmask 261120
  %v59 = vsel %vm57, %v36, 0
  %61 = vmatpush.bf16.msra.mxu0 0
  %62 = vmatpush.bf16.msra.mxu0 0
  %63 = vmatpush.bf16.msra.mxu0 0
  %64 = vmatpush.bf16.msra.mxu0 0
  %65 = vmatpush.bf16.msra.mxu0 0
  %66 = vmatpush.bf16.msra.mxu0 0
  %67 = vmatpush.bf16.msra.mxu0 %v54
  %68 = vmatpush.bf16.msra.mxu0 %v53
  %69 = vmatmul.bf16.gmra.mxu0 %v59
  %v70 = vpop.f32.mrf.mxu0
  %v71 = vadd.f32 %v43, %v70
  %v72 = vpop.f32.mrf.mxu0
  %v73 = vadd.f32 %v43, %v72
  %74 = vdwg.mxu0
  %v75 = vmax.f32 %v71, 0.0
  %v76 = vmax.f32 %v73, 0.0
  %v77 = vld [vmem:[#allocation2] sm:$0xff]
  %v78 = vld [vmem:[#allocation2 + $0x8] sm:$0xff]
  %v79 = vpack.c.bf16 %v76, %v75
  %v80 = vld [vmem:[%s3] sm:$0xf]
  %v81 = vld [vmem:[%s3 + $0x4] sm:$0xf]
  %v82 = vld [vmem:[%s3 + $0x8] sm:$0xf]
  %v83 = vld [vmem:[%s3 + $0xc] sm:$0xf]
  %v84 = vld [vmem:[%s3 + $0x10] sm:$0xf]
  %v85 = vld [vmem:[%s3 + $0x14] sm:$0xf]
  %v86 = vld [vmem:[%s3 + $0x18] sm:$0xf]
  %v87 = vld [vmem:[%s3 + $0x1c] sm:$0xf]
  %v96 = vunpack.c.l.b16 %v80
  %v97 = vunpack.c.l.b16 %v81
  %v98 = vunpack.c.l.b16 %v82
  %v99 = vunpack.c.l.b16 %v83
  %v100 = vunpack.c.l.b16 %v84
  %v101 = vunpack.c.l.b16 %v85
  %v102 = vunpack.c.l.b16 %v86
  %v103 = vunpack.c.l.b16 %v87
  %v104 = vpack.c.b16 %v97, %v96
  %v105 = vpack.c.b16 %v99, %v98
  %v106 = vpack.c.b16 %v101, %v100
  %v107 = vpack.c.b16 %v103, %v102
  %vm112 = vcmask 523264
  %v114 = vsel %vm112, %v79, 0
  %116 = vmatpush.bf16.msra.mxu0 0
  %117 = vmatpush.bf16.msra.mxu0 0
  %118 = vmatpush.bf16.msra.mxu0 0
  %119 = vmatpush.bf16.msra.mxu0 0
  %120 = vmatpush.bf16.msra.mxu0 %v107
  %121 = vmatpush.bf16.msra.mxu0 %v106
  %122 = vmatpush.bf16.msra.mxu0 %v105
  %123 = vmatpush.bf16.msra.mxu0 %v104
  %124 = vmatmul.bf16.gmra.mxu0 %v114
  %v125 = vpop.f32.mrf.mxu0
  %v126 = vadd.f32 0.0, %v125
  %v127 = vpop.f32.mrf.mxu0
  %v128 = vadd.f32 0.0, %v127
  %129 = vdwg.mxu0
  %v130 = vadd.f32 %v77, %v126
  %v131 = vadd.f32 %v78, %v128
  %132 = vst.msk [vmem:[#allocation2] sm:$0xff] %vm57, %v130
  %133 = vst.msk [vmem:[#allocation2 + $0x8] sm:$0xff] %vm57, %v131
  // Predicated region
  $region34: #{transformer_decoder_forward.24} parent=0 // pred_check
    %p134 = pneg %p27
  $region35: #{transformer_decoder_forward.24} parent=0 // pred_check_branch
    %136 = sbr.rel (%p134) target = $region37
  $region36: #{transformer_decoder_forward.24} parent=0 // pred_region
    %v137 = vld [vmem:[#allocation2] sm:$0xff]
    %v138 = vld [vmem:[#allocation2 + $0x8] sm:$0xff]
    %v139 = vld [vmem:[%s4] sm:$0x1]
    %v141 = vperm.slane %v139, 0
    %v143 = vadd.f32 %v137, %v141
    %v144 = vadd.f32 %v138, %v141
    %v145 = vadd.f32 %v143, %v34
    %v146 = vadd.f32 %v144, %v35
    %v147 = vsel %vm57, %v145, 0.0
    %148 = vadd.xlane.f32.xlu0 %v147
    %v149 = vpop.xlane.xlu0 %148
    %v150 = vsel %vm57, %v146, 0.0
    %151 = vadd.xlane.f32.xlu0 %v150
    %v152 = vpop.xlane.xlu0 %151
    %v153 = vrcp.pop 32.0
    %v154 = vmul.f32 32.0, %v153
    %v155 = vsub.f32 1.0, %v154
    %v156 = vmul.f32 %v153, %v155
    %v157 = vadd.f32 %v153, %v156
    %vm158 = vweird.f32 %v153
    %v159 = vsel %vm158, %v153, %v157
    %v160 = vmul.f32 %v149, %v159
    %v161 = vmul.f32 %v152, %v159
    %v162 = vsub.f32 %v145, %v160
    %v163 = vsub.f32 %v146, %v161
    %v164 = vmul.f32 %v162, %v162
    %v165 = vmul.f32 %v163, %v163
    %v166 = vsel %vm57, %v164, 0.0
    %167 = vadd.xlane.f32.xlu0 %v166
    %v168 = vpop.xlane.xlu0 %167
    %v169 = vsel %vm57, %v165, 0.0
    %170 = vadd.xlane.f32.xlu0 %v169
    %v171 = vpop.xlane.xlu0 %170
    %v172 = vmul.f32 %v168, %v159
    %v173 = vmul.f32 %v171, %v159
    %v174 = vadd.f32 %v172, 1e-05
    %v175 = vadd.f32 %v173, 1e-05
    %v176 = vrsqrt.pop %v174
    %v177 = vmul.f32 %v176, %v174
    %v178 = vmul.f32 %v177, %v176
    %v179 = vmul.f32 0.5, %v178
    %v180 = vsub.f32 1.5, %v179
    %v181 = vmul.f32 %v176, %v180
    %vm182 = vweird.f32 %v174
    %vm183 = vweird.f32 %v176
    %vm184 = vmor %vm182, %vm183
    %v185 = vsel %vm184, %v176, %v181
    %v186 = vrsqrt.pop %v175
    %v187 = vmul.f32 %v186, %v175
    %v188 = vmul.f32 %v187, %v186
    %v189 = vmul.f32 0.5, %v188
    %v190 = vsub.f32 1.5, %v189
    %v191 = vmul.f32 %v186, %v190
    %vm192 = vweird.f32 %v175
    %vm193 = vweird.f32 %v186
    %vm194 = vmor %vm192, %vm193
    %v195 = vsel %vm194, %v186, %v191
    %v196 = vmul.f32 %v162, %v185
    %v197 = vmul.f32 %v163, %v195
    %v198 = vld [vmem:[%s5] sm:$0x1]
    %v200 = vperm.slane %v198, 0
    %v202 = vmul.f32 %v196, %v200
    %v203 = vmul.f32 %v197, %v200
    %v204 = vld [vmem:[%s6] sm:$0x1]
    %v206 = vperm.slane %v204, 0
    %v208 = vadd.f32 %v202, %v206
    %v209 = vadd.f32 %v203, %v206
    %210 = vst.msk [vmem:[%s7] sm:$0xff] %vm57, %v208
    %211 = vst.msk [vmem:[%s7 + $0x8] sm:$0xff] %vm57, %v209
  $region37: #{transformer_decoder_forward.24} parent=0 // pred_fallthru
    _
  // Predicated region
  $region38: #{transformer_decoder_forward.24} parent=0 // pred_check
    _
  $region39: #{transformer_decoder_forward.24} parent=0 // pred_check_branch
    %213 = sbr.rel (0) target = $region41
  $region40: #{transformer_decoder_forward.24} parent=0 // pred_region
    _
  $region41: #{transformer_decoder_forward.24} parent=0 // pred_fallthru
    _
  // Predicated region
  $region42: #{transformer_decoder_forward.24} parent=0 // pred_check
    _
  $region43: #{transformer_decoder_forward.24} parent=0 // pred_check_branch
    %215 = sbr.rel (0) target = $region45
  $region44: #{transformer_decoder_forward.24} parent=0 // pred_region
    _
  $region45: #{transformer_decoder_forward.24} parent=0 // pred_fallthru
    _

</llo_original>
